<compile_context>
chip_gen: v5e
topology: v5e:2x2
jax: 0.10.0
libtpu: 0.0.40
codegen_flags: <defaults>
</compile_context>

<pallas_src>
import functools

import jax
import jax.numpy as jnp
from jax import lax
from jax.experimental import pallas as pl
from jax.experimental.pallas import tpu as pltpu


# dot_general dimension numbers (2-D operands, no batch dims)
_TN = (((0,), (0,)), ((), ()))   # contract dim 0 of both  (lhs-transposed matmul)
_NT = (((1,), (1,)), ((), ()))   # contract dim 1 of both  (rhs-transposed matmul)

_LEFT = 8                        # scratch interior starts at sublane column 8 (aligned)
_RH = 8                          # row-strip height for the depthwise convs


# ------------------------------ fused kernel --------------------------------


def _flow_fused_kernel(x_ref, w1_ref, b1_ref, w2_ref, b2_ref, w3_ref, b3_ref,
                       w4t_ref, b4_ref, out_ref, h1_pad, d2_pad,
                       *, H, W, C, RH, NB):
    f32 = jnp.float32
    W_pad = h1_pad.shape[2]

    # ---- Zero only the halo border (rows 0 / H+1, two 8-wide column blocks).
    # The interior is fully overwritten below; border-only zeroing is O(H+W)
    # per image instead of a full extra write pass over both scratches.
    zrow = jnp.zeros((1, W_pad, C), f32)
    zcol = jnp.zeros((H + 2, 8, C), f32)
    for b in range(NB):
        for buf in (h1_pad, d2_pad):
            buf[b, 0:1, :, :] = zrow
            buf[b, H + 1:H + 2, :, :] = zrow
            buf[b, :, 0:_LEFT, :] = zcol                      # covers left halo col 7
            buf[b, :, _LEFT + W:_LEFT + W + 8, :] = zcol      # covers right halo col 8+W

    # ---- Layer 1: 1x1 conv (BN + channel concat folded into w1) + ReLU. -----
    # x block is (NB, 2*C_half, H*W) bf16; one K=2*C_half MXU matmul per image
    # (f32 accumulate), written into the aligned scratch interior.
    w1 = w1_ref[...]                     # (dim_in, C) bf16
    b1 = b1_ref[...]                     # (1, C) f32
    for b in range(NB):
        h1 = lax.dot_general(x_ref[b], w1, _TN, preferred_element_type=f32)
        h1 = jnp.maximum(h1 + b1, 0.0)                        # (H*W, C)
        h1_pad[b, 1:H + 1, _LEFT:_LEFT + W, :] = h1.reshape(H, W, C)

    # ---- Depthwise tap weights / biases hoisted out of the strip loops. -----
    w2 = w2_ref[...]
    w3 = w3_ref[...]
    w2_taps = [w2[i].reshape(1, 1, C) for i in range(9)]
    w3_taps = [w3[i].reshape(1, 1, C) for i in range(9)]
    b2 = b2_ref[...].reshape(1, 1, C)
    b3 = b3_ref[...].reshape(1, 1, C)
    w4t = w4t_ref[...]                   # (C_out, C) bf16
    b4 = b4_ref[...]                     # (C_out, 1) f32

    def dw_strip(src, taps, bias, b, r0, rh):
        acc = jnp.zeros((rh, W, C), f32)
        for ky in range(3):
            for kx in range(3):
                t = src[b, r0 + ky:r0 + ky + rh,
                        _LEFT - 1 + kx:_LEFT - 1 + kx + W, :]
                acc = acc + t * taps[ky * 3 + kx]
        return jnp.maximum(acc + bias, 0.0)

    # RH-row strips (+ one static remainder strip) bound the live accumulator
    # to (RH, W, C) for any H — no (H, W, C) spill cliff for H % 8 != 0.
    n_full = H // RH
    strips = [(i * RH, RH) for i in range(n_full)]
    if H % RH:
        strips.append((n_full * RH, H % RH))

    # ---- Layer 2: depthwise 3x3 + ReLU -> d2_pad interior (aligned stores). -
    for b in range(NB):
        for r0, rh in strips:
            d2 = dw_strip(h1_pad, w2_taps, b2, b, r0, rh)
            d2_pad[b, r0 + 1:r0 + 1 + rh, _LEFT:_LEFT + W, :] = d2

    # ---- Layer 3: depthwise 3x3 + ReLU fused with layer 4 (1x1 C -> C_out). -
    for b in range(NB):
        for r0, rh in strips:
            d3 = dw_strip(d2_pad, w3_taps, b3, b, r0, rh)
            # (C_out, C) x (rh*W, C)^T -> (C_out, rh*W): lane-dense output strip.
            o = lax.dot_general(w4t, d3.reshape(rh * W, C).astype(jnp.bfloat16),
                                _NT, preferred_element_type=f32)
            out_ref[b, :, r0 * W:(r0 + rh) * W] = (o + b4).astype(out_ref.dtype)


# ---------------------------- parameter set-up ------------------------------


def init_params(key, dim_in, dim_out=2, dim_mid=128):
    ks = jax.random.split(key, 12)

    def u(k, shape, fan_in):
        bound = 1.0 / jnp.sqrt(float(fan_in))
        return jax.random.uniform(k, shape, jnp.float32, -bound, bound)

    return {
        # BatchNorm2d(dim_in) — eval-mode running statistics.
        "bn_gamma": 1.0 + 0.1 * jax.random.normal(ks[0], (dim_in,), jnp.float32),
        "bn_beta": 0.1 * jax.random.normal(ks[1], (dim_in,), jnp.float32),
        "bn_mean": 0.1 * jax.random.normal(ks[2], (dim_in,), jnp.float32),
        "bn_var": jnp.abs(jax.random.normal(ks[3], (dim_in,), jnp.float32)) + 1.0,
        # Conv1: 1x1, dim_in -> dim_mid   (stored transposed: (Cin, Cout))
        "w1": u(ks[4], (dim_in, dim_mid), dim_in),
        "b1": u(ks[5], (dim_mid,), dim_in),
        # Conv2/3: depthwise 3x3, dim_mid groups  (stored (3, 3, C))
        "w2": u(ks[6], (3, 3, dim_mid), 9),
        "b2": u(ks[7], (dim_mid,), 9),
        "w3": u(ks[8], (3, 3, dim_mid), 9),
        "b3": u(ks[9], (dim_mid,), 9),
        # Conv4: 1x1, dim_mid -> dim_out, no activation
        "w4": u(ks[10], (dim_mid, dim_out), dim_mid),
        "b4": u(ks[11], (dim_out,), dim_mid),
    }


def _prepare_params(params):
    """Fold eval-mode BN into conv1 and shape/quantize weights for the kernel."""
    eps = 1e-5
    scale = params["bn_gamma"] / jnp.sqrt(params["bn_var"] + eps)
    shift = params["bn_beta"] - params["bn_mean"] * scale
    w1 = params["w1"] * scale[:, None]
    b1 = params["b1"] + shift @ params["w1"]
    c_mid = params["w1"].shape[1]
    c_out = params["w4"].shape[1]
    return {
        "w1": w1.astype(jnp.bfloat16),                 # (dim_in, C) — concat fused
        "b1": b1.reshape(1, c_mid),
        "w2": params["w2"].reshape(9, c_mid),
        "b2": params["b2"].reshape(1, c_mid),
        "w3": params["w3"].reshape(9, c_mid),
        "b3": params["b3"].reshape(1, c_mid),
        "w4t": params["w4"].T.astype(jnp.bfloat16),    # (C_out, C)
        "b4": params["b4"].reshape(c_out, 1),
    }


def _pick_batch_block(n, h, w):
    """Largest divisor of n (<= 8) keeping the blocked spatial work modest."""
    target = max(1, 4096 // max(1, h * w))
    nb = 1
    for d in range(1, min(n, 8) + 1):
        if n % d == 0 and d <= target:
            nb = d
    return nb


# ------------------------------ forward pass --------------------------------


def flow_estimator_forward(warping_fea, shape_fea, params):
    """FlowEstimator forward.  Inputs/outputs are NCHW (PyTorch convention)."""
    N, c_half, H, W = warping_fea.shape
    dim_in = 2 * c_half
    p = _prepare_params(params)
    c_mid = p["w1"].shape[1]
    c_out = p["w4t"].shape[0]

    RH = _RH
    NB = _pick_batch_block(N, H, W)
    W_pad = W + 16                       # interior at [8, 8+W); halo cols 7 and 8+W

    # Channel concat + bf16 cast in the wrapper: stays NCHW-flat (no activation
    # relayout), halves the per-step input DMA, feeds one stacked-K matmul.
    x = jnp.concatenate([warping_fea, shape_fea], axis=1)
    x = x.reshape(N, dim_in, H * W).astype(jnp.bfloat16)

    kernel = functools.partial(_flow_fused_kernel, H=H, W=W, C=c_mid, RH=RH, NB=NB)

    scratch_bytes = 2 * NB * (H + 2) * W_pad * c_mid * 4
    io_bytes = 2 * (NB * dim_in * H * W * 2 + NB * c_out * H * W * 4)
    vmem_limit = int(min(100 * 2 ** 20,
                         max(32 * 2 ** 20, 2 * (scratch_bytes + io_bytes) + (4 << 20))))

    out = pl.pallas_call(
        kernel,
        out_shape=jax.ShapeDtypeStruct((N, c_out, H * W), jnp.float32),
        grid=(N // NB,),
        in_specs=[
            pl.BlockSpec((NB, dim_in, H * W), lambda g: (g, 0, 0)),   # concat input (bf16)
            pl.BlockSpec((dim_in, c_mid), lambda g: (0, 0)),          # w1 (BN folded, bf16)
            pl.BlockSpec((1, c_mid), lambda g: (0, 0)),               # b1
            pl.BlockSpec((9, c_mid), lambda g: (0, 0)),               # w2
            pl.BlockSpec((1, c_mid), lambda g: (0, 0)),               # b2
            pl.BlockSpec((9, c_mid), lambda g: (0, 0)),               # w3
            pl.BlockSpec((1, c_mid), lambda g: (0, 0)),               # b3
            pl.BlockSpec((c_out, c_mid), lambda g: (0, 0)),           # w4^T (bf16)
            pl.BlockSpec((c_out, 1), lambda g: (0, 0)),               # b4
        ],
        out_specs=pl.BlockSpec((NB, c_out, H * W), lambda g: (g, 0, 0)),
        scratch_shapes=[
            pltpu.VMEM((NB, H + 2, W_pad, c_mid), jnp.float32),  # padded conv1 out
            pltpu.VMEM((NB, H + 2, W_pad, c_mid), jnp.float32),  # padded dw2 out
        ],
        compiler_params=pltpu.CompilerParams(
            dimension_semantics=("parallel",),
            vmem_limit_bytes=vmem_limit,
        ),
    )(x, p["w1"], p["b1"], p["w2"], p["b2"], p["w3"], p["b3"], p["w4t"], p["b4"])

    # (N, C_out, H*W) is already NCHW-flat: free reshape, no transpose.
    return out.reshape(N, c_out, H, W)


# -------------------------- pure-XLA reference -------------------------------


def _reference_forward(warping_fea, shape_fea, params):
    """Same math in plain jnp/XLA (incl. the bf16 matmul-operand rounding)."""
    N, c_half, H, W = warping_fea.shape
    p = _prepare_params(params)
    f32 = jnp.float32

    x = jnp.concatenate([warping_fea, shape_fea], axis=1)
    x = jnp.transpose(x, (0, 2, 3, 1)).astype(jnp.bfloat16).astype(f32)
    h = jnp.einsum("nhwc,cd->nhwd", x, p["w1"].astype(f32))
    h = jnp.maximum(h + p["b1"][0], 0.0)

    def dw(xin, w9, b):
        xp = jnp.pad(xin, ((0, 0), (1, 1), (1, 1), (0, 0)))
        acc = jnp.zeros_like(xin)
        for ky in range(3):
            for kx in range(3):
                acc = acc + xp[:, ky:ky + H, kx:kx + W, :] * w9[ky * 3 + kx]
        return jnp.maximum(acc + b[0], 0.0)

    h = dw(h, p["w2"], p["b2"])
    h = dw(h, p["w3"], p["b3"])
    h_b = h.astype(jnp.bfloat16).astype(f32)
    out = jnp.einsum("nhwc,oc->nhwo", h_b, p["w4t"].astype(f32)) + p["b4"][:, 0]
    return jnp.transpose(out, (0, 3, 1, 2))


# ----------------------------------- main ------------------------------------

if __name__ == "__main__":
    key = jax.random.PRNGKey(0)
    k_w, k_s, k_p = jax.random.split(key, 3)

    N, C_half, H, W = 2, 8, 16, 16
    dim_in, dim_out, dim_mid = 2 * C_half, 2, 128

    warping_fea = jax.random.normal(k_w, (N, C_half, H, W), jnp.float32)
    shape_fea = jax.random.normal(k_s, (N, C_half, H, W), jnp.float32)
    params = init_params(k_p, dim_in, dim_out=dim_out, dim_mid=dim_mid)

    fwd = jax.jit(lambda a, b: flow_estimator_forward(a, b, params))
    out = fwd(warping_fea, shape_fea)
    jax.block_until_ready(out)

    assert out.shape == (N, dim_out, H, W), out.shape
    assert out.dtype == jnp.float32

    # Correctness check vs. a pure-XLA reference of the same (bf16-operand,
    # f32-accumulate) math; only accumulation order differs.
    ref = jax.jit(lambda a, b: _reference_forward(a, b, params))(warping_fea, shape_fea)
    max_err = float(jnp.max(jnp.abs(out - ref)))
    assert bool(jnp.allclose(out, ref, rtol=1e-2, atol=1e-2)), max_err

    print("KERNEL_OK")
</pallas_src>

<mosaic_0001>
module attributes {stable_mosaic.version = 11 : i64} {
  func.func @_flow_fused_kernel(%arg0: i32, %arg1: memref<2x16x256xbf16, #tpu.memory_space<vmem>>, %arg2: memref<16x128xbf16, #tpu.memory_space<vmem>>, %arg3: memref<1x128xf32, #tpu.memory_space<vmem>>, %arg4: memref<9x128xf32, #tpu.memory_space<vmem>>, %arg5: memref<1x128xf32, #tpu.memory_space<vmem>>, %arg6: memref<9x128xf32, #tpu.memory_space<vmem>>, %arg7: memref<1x128xf32, #tpu.memory_space<vmem>>, %arg8: memref<2x128xbf16, #tpu.memory_space<vmem>>, %arg9: memref<2x1xf32, #tpu.memory_space<vmem>>, %arg10: memref<2x2x256xf32, #tpu.memory_space<vmem>>, %arg11: memref<2x18x32x128xf32, #tpu.memory_space<vmem>>, %arg12: memref<2x18x32x128xf32, #tpu.memory_space<vmem>>) attributes {dimension_semantics = [#tpu.dimension_semantics<parallel>], iteration_bounds = array<i64: 1>, scalar_prefetch = 0 : i64, scratch_operands = 2 : i64, tpu.core_type = #tpu.core_type<tc>, window_params = [{transform_indices = @transform_0, window_bounds = array<i64: 2, 16, 256>}, {pipeline_mode = #tpu.pipeline_mode<synchronous>, transform_indices = @transform_1, window_bounds = array<i64: 16, 128>}, {pipeline_mode = #tpu.pipeline_mode<synchronous>, transform_indices = @transform_2, window_bounds = array<i64: 1, 128>}, {pipeline_mode = #tpu.pipeline_mode<synchronous>, transform_indices = @transform_3, window_bounds = array<i64: 9, 128>}, {pipeline_mode = #tpu.pipeline_mode<synchronous>, transform_indices = @transform_4, window_bounds = array<i64: 1, 128>}, {pipeline_mode = #tpu.pipeline_mode<synchronous>, transform_indices = @transform_5, window_bounds = array<i64: 9, 128>}, {pipeline_mode = #tpu.pipeline_mode<synchronous>, transform_indices = @transform_6, window_bounds = array<i64: 1, 128>}, {pipeline_mode = #tpu.pipeline_mode<synchronous>, transform_indices = @transform_7, window_bounds = array<i64: 2, 128>}, {pipeline_mode = #tpu.pipeline_mode<synchronous>, transform_indices = @transform_8, window_bounds = array<i64: 2, 1>}, {transform_indices = @transform_9, window_bounds = array<i64: 2, 2, 256>}]} {
    %cst = arith.constant 0.000000e+00 : f32
    %0 = vector.broadcast %cst : f32 to vector<1x32x128xf32>
    %cst_0 = arith.constant 0.000000e+00 : f32
    %1 = vector.broadcast %cst_0 : f32 to vector<18x8x128xf32>
    %c0 = arith.constant 0 : index
    %c0_1 = arith.constant 0 : index
    %c0_2 = arith.constant 0 : index
    %c0_3 = arith.constant 0 : index
    %2 = vector.load %arg11[%c0, %c0_1, %c0_2, %c0_3] : memref<2x18x32x128xf32, #tpu.memory_space<vmem>>, vector<1x1x32x128xf32>
    %3 = vector.shape_cast %2 : vector<1x1x32x128xf32> to vector<1x32x128xf32>
    %4 = vector.shape_cast %0 : vector<1x32x128xf32> to vector<1x1x32x128xf32>
    tpu.vector_store %arg11[%c0, %c0_1, %c0_2, %c0_3], %4 {strides = array<i32>} : memref<2x18x32x128xf32, #tpu.memory_space<vmem>>, vector<1x1x32x128xf32>,
    %c0_4 = arith.constant 0 : index
    %c17 = arith.constant 17 : index
    %c0_5 = arith.constant 0 : index
    %c0_6 = arith.constant 0 : index
    %5 = vector.load %arg11[%c0_4, %c17, %c0_5, %c0_6] : memref<2x18x32x128xf32, #tpu.memory_space<vmem>>, vector<1x1x32x128xf32>
    %6 = vector.shape_cast %5 : vector<1x1x32x128xf32> to vector<1x32x128xf32>
    %7 = vector.shape_cast %0 : vector<1x32x128xf32> to vector<1x1x32x128xf32>
    tpu.vector_store %arg11[%c0_4, %c17, %c0_5, %c0_6], %7 {strides = array<i32>} : memref<2x18x32x128xf32, #tpu.memory_space<vmem>>, vector<1x1x32x128xf32>,
    %c0_7 = arith.constant 0 : index
    %c0_8 = arith.constant 0 : index
    %c0_9 = arith.constant 0 : index
    %c0_10 = arith.constant 0 : index
    %8 = vector.load %arg11[%c0_7, %c0_8, %c0_9, %c0_10] : memref<2x18x32x128xf32, #tpu.memory_space<vmem>>, vector<1x18x8x128xf32>
    %9 = vector.shape_cast %8 : vector<1x18x8x128xf32> to vector<18x8x128xf32>
    %10 = vector.shape_cast %1 : vector<18x8x128xf32> to vector<1x18x8x128xf32>
    tpu.vector_store %arg11[%c0_7, %c0_8, %c0_9, %c0_10], %10 {strides = array<i32>} : memref<2x18x32x128xf32, #tpu.memory_space<vmem>>, vector<1x18x8x128xf32>,
    %c0_11 = arith.constant 0 : index
    %c0_12 = arith.constant 0 : index
    %c24 = arith.constant 24 : index
    %c0_13 = arith.constant 0 : index
    %11 = vector.load %arg11[%c0_11, %c0_12, %c24, %c0_13] : memref<2x18x32x128xf32, #tpu.memory_space<vmem>>, vector<1x18x8x128xf32>
    %12 = vector.shape_cast %11 : vector<1x18x8x128xf32> to vector<18x8x128xf32>
    %13 = vector.shape_cast %1 : vector<18x8x128xf32> to vector<1x18x8x128xf32>
    tpu.vector_store %arg11[%c0_11, %c0_12, %c24, %c0_13], %13 {strides = array<i32>} : memref<2x18x32x128xf32, #tpu.memory_space<vmem>>, vector<1x18x8x128xf32>,
    %c0_14 = arith.constant 0 : index
    %c0_15 = arith.constant 0 : index
    %c0_16 = arith.constant 0 : index
    %c0_17 = arith.constant 0 : index
    %14 = vector.load %arg12[%c0_14, %c0_15, %c0_16, %c0_17] : memref<2x18x32x128xf32, #tpu.memory_space<vmem>>, vector<1x1x32x128xf32>
    %15 = vector.shape_cast %14 : vector<1x1x32x128xf32> to vector<1x32x128xf32>
    %16 = vector.shape_cast %0 : vector<1x32x128xf32> to vector<1x1x32x128xf32>
    tpu.vector_store %arg12[%c0_14, %c0_15, %c0_16, %c0_17], %16 {strides = array<i32>} : memref<2x18x32x128xf32, #tpu.memory_space<vmem>>, vector<1x1x32x128xf32>,
    %c0_18 = arith.constant 0 : index
    %c17_19 = arith.constant 17 : index
    %c0_20 = arith.constant 0 : index
    %c0_21 = arith.constant 0 : index
    %17 = vector.load %arg12[%c0_18, %c17_19, %c0_20, %c0_21] : memref<2x18x32x128xf32, #tpu.memory_space<vmem>>, vector<1x1x32x128xf32>
    %18 = vector.shape_cast %17 : vector<1x1x32x128xf32> to vector<1x32x128xf32>
    %19 = vector.shape_cast %0 : vector<1x32x128xf32> to vector<1x1x32x128xf32>
    tpu.vector_store %arg12[%c0_18, %c17_19, %c0_20, %c0_21], %19 {strides = array<i32>} : memref<2x18x32x128xf32, #tpu.memory_space<vmem>>, vector<1x1x32x128xf32>,
    %c0_22 = arith.constant 0 : index
    %c0_23 = arith.constant 0 : index
    %c0_24 = arith.constant 0 : index
    %c0_25 = arith.constant 0 : index
    %20 = vector.load %arg12[%c0_22, %c0_23, %c0_24, %c0_25] : memref<2x18x32x128xf32, #tpu.memory_space<vmem>>, vector<1x18x8x128xf32>
    %21 = vector.shape_cast %20 : vector<1x18x8x128xf32> to vector<18x8x128xf32>
    %22 = vector.shape_cast %1 : vector<18x8x128xf32> to vector<1x18x8x128xf32>
    tpu.vector_store %arg12[%c0_22, %c0_23, %c0_24, %c0_25], %22 {strides = array<i32>} : memref<2x18x32x128xf32, #tpu.memory_space<vmem>>, vector<1x18x8x128xf32>,
    %c0_26 = arith.constant 0 : index
    %c0_27 = arith.constant 0 : index
    %c24_28 = arith.constant 24 : index
    %c0_29 = arith.constant 0 : index
    %23 = vector.load %arg12[%c0_26, %c0_27, %c24_28, %c0_29] : memref<2x18x32x128xf32, #tpu.memory_space<vmem>>, vector<1x18x8x128xf32>
    %24 = vector.shape_cast %23 : vector<1x18x8x128xf32> to vector<18x8x128xf32>
    %25 = vector.shape_cast %1 : vector<18x8x128xf32> to vector<1x18x8x128xf32>
    tpu.vector_store %arg12[%c0_26, %c0_27, %c24_28, %c0_29], %25 {strides = array<i32>} : memref<2x18x32x128xf32, #tpu.memory_space<vmem>>, vector<1x18x8x128xf32>,
    %c1 = arith.constant 1 : index
    %c0_30 = arith.constant 0 : index
    %c0_31 = arith.constant 0 : index
    %c0_32 = arith.constant 0 : index
    %26 = vector.load %arg11[%c1, %c0_30, %c0_31, %c0_32] : memref<2x18x32x128xf32, #tpu.memory_space<vmem>>, vector<1x1x32x128xf32>
    %27 = vector.shape_cast %26 : vector<1x1x32x128xf32> to vector<1x32x128xf32>
    %28 = vector.shape_cast %0 : vector<1x32x128xf32> to vector<1x1x32x128xf32>
    tpu.vector_store %arg11[%c1, %c0_30, %c0_31, %c0_32], %28 {strides = array<i32>} : memref<2x18x32x128xf32, #tpu.memory_space<vmem>>, vector<1x1x32x128xf32>,
    %c1_33 = arith.constant 1 : index
    %c17_34 = arith.constant 17 : index
    %c0_35 = arith.constant 0 : index
    %c0_36 = arith.constant 0 : index
    %29 = vector.load %arg11[%c1_33, %c17_34, %c0_35, %c0_36] : memref<2x18x32x128xf32, #tpu.memory_space<vmem>>, vector<1x1x32x128xf32>
    %30 = vector.shape_cast %29 : vector<1x1x32x128xf32> to vector<1x32x128xf32>
    %31 = vector.shape_cast %0 : vector<1x32x128xf32> to vector<1x1x32x128xf32>
    tpu.vector_store %arg11[%c1_33, %c17_34, %c0_35, %c0_36], %31 {strides = array<i32>} : memref<2x18x32x128xf32, #tpu.memory_space<vmem>>, vector<1x1x32x128xf32>,
    %c1_37 = arith.constant 1 : index
    %c0_38 = arith.constant 0 : index
    %c0_39 = arith.constant 0 : index
    %c0_40 = arith.constant 0 : index
    %32 = vector.load %arg11[%c1_37, %c0_38, %c0_39, %c0_40] : memref<2x18x32x128xf32, #tpu.memory_space<vmem>>, vector<1x18x8x128xf32>
    %33 = vector.shape_cast %32 : vector<1x18x8x128xf32> to vector<18x8x128xf32>
    %34 = vector.shape_cast %1 : vector<18x8x128xf32> to vector<1x18x8x128xf32>
    tpu.vector_store %arg11[%c1_37, %c0_38, %c0_39, %c0_40], %34 {strides = array<i32>} : memref<2x18x32x128xf32, #tpu.memory_space<vmem>>, vector<1x18x8x128xf32>,
    %c1_41 = arith.constant 1 : index
    %c0_42 = arith.constant 0 : index
    %c24_43 = arith.constant 24 : index
    %c0_44 = arith.constant 0 : index
    %35 = vector.load %arg11[%c1_41, %c0_42, %c24_43, %c0_44] : memref<2x18x32x128xf32, #tpu.memory_space<vmem>>, vector<1x18x8x128xf32>
    %36 = vector.shape_cast %35 : vector<1x18x8x128xf32> to vector<18x8x128xf32>
    %37 = vector.shape_cast %1 : vector<18x8x128xf32> to vector<1x18x8x128xf32>
    tpu.vector_store %arg11[%c1_41, %c0_42, %c24_43, %c0_44], %37 {strides = array<i32>} : memref<2x18x32x128xf32, #tpu.memory_space<vmem>>, vector<1x18x8x128xf32>,
    %c1_45 = arith.constant 1 : index
    %c0_46 = arith.constant 0 : index
    %c0_47 = arith.constant 0 : index
    %c0_48 = arith.constant 0 : index
    %38 = vector.load %arg12[%c1_45, %c0_46, %c0_47, %c0_48] : memref<2x18x32x128xf32, #tpu.memory_space<vmem>>, vector<1x1x32x128xf32>
    %39 = vector.shape_cast %38 : vector<1x1x32x128xf32> to vector<1x32x128xf32>
    %40 = vector.shape_cast %0 : vector<1x32x128xf32> to vector<1x1x32x128xf32>
    tpu.vector_store %arg12[%c1_45, %c0_46, %c0_47, %c0_48], %40 {strides = array<i32>} : memref<2x18x32x128xf32, #tpu.memory_space<vmem>>, vector<1x1x32x128xf32>,
    %c1_49 = arith.constant 1 : index
    %c17_50 = arith.constant 17 : index
    %c0_51 = arith.constant 0 : index
    %c0_52 = arith.constant 0 : index
    %41 = vector.load %arg12[%c1_49, %c17_50, %c0_51, %c0_52] : memref<2x18x32x128xf32, #tpu.memory_space<vmem>>, vector<1x1x32x128xf32>
    %42 = vector.shape_cast %41 : vector<1x1x32x128xf32> to vector<1x32x128xf32>
    %43 = vector.shape_cast %0 : vector<1x32x128xf32> to vector<1x1x32x128xf32>
    tpu.vector_store %arg12[%c1_49, %c17_50, %c0_51, %c0_52], %43 {strides = array<i32>} : memref<2x18x32x128xf32, #tpu.memory_space<vmem>>, vector<1x1x32x128xf32>,
    %c1_53 = arith.constant 1 : index
    %c0_54 = arith.constant 0 : index
    %c0_55 = arith.constant 0 : index
    %c0_56 = arith.constant 0 : index
    %44 = vector.load %arg12[%c1_53, %c0_54, %c0_55, %c0_56] : memref<2x18x32x128xf32, #tpu.memory_space<vmem>>, vector<1x18x8x128xf32>
    %45 = vector.shape_cast %44 : vector<1x18x8x128xf32> to vector<18x8x128xf32>
    %46 = vector.shape_cast %1 : vector<18x8x128xf32> to vector<1x18x8x128xf32>
    tpu.vector_store %arg12[%c1_53, %c0_54, %c0_55, %c0_56], %46 {strides = array<i32>} : memref<2x18x32x128xf32, #tpu.memory_space<vmem>>, vector<1x18x8x128xf32>,
    %c1_57 = arith.constant 1 : index
    %c0_58 = arith.constant 0 : index
    %c24_59 = arith.constant 24 : index
    %c0_60 = arith.constant 0 : index
    %47 = vector.load %arg12[%c1_57, %c0_58, %c24_59, %c0_60] : memref<2x18x32x128xf32, #tpu.memory_space<vmem>>, vector<1x18x8x128xf32>
    %48 = vector.shape_cast %47 : vector<1x18x8x128xf32> to vector<18x8x128xf32>
    %49 = vector.shape_cast %1 : vector<18x8x128xf32> to vector<1x18x8x128xf32>
    tpu.vector_store %arg12[%c1_57, %c0_58, %c24_59, %c0_60], %49 {strides = array<i32>} : memref<2x18x32x128xf32, #tpu.memory_space<vmem>>, vector<1x18x8x128xf32>,
    %c0_61 = arith.constant 0 : index
    %c0_62 = arith.constant 0 : index
    %50 = vector.load %arg2[%c0_61, %c0_62] : memref<16x128xbf16, #tpu.memory_space<vmem>>, vector<16x128xbf16>
    %c0_63 = arith.constant 0 : index
    %c0_64 = arith.constant 0 : index
    %51 = vector.load %arg3[%c0_63, %c0_64] : memref<1x128xf32, #tpu.memory_space<vmem>>, vector<1x128xf32>
    %c0_65 = arith.constant 0 : index
    %c0_66 = arith.constant 0 : index
    %c0_67 = arith.constant 0 : index
    %52 = vector.load %arg1[%c0_65, %c0_66, %c0_67] : memref<2x16x256xbf16, #tpu.memory_space<vmem>>, vector<1x16x256xbf16>
    %53 = vector.shape_cast %52 : vector<1x16x256xbf16> to vector<16x256xbf16>
    %cst_68 = arith.constant dense<0.000000e+00> : vector<256x128xf32>
    %54 = tpu.matmul %53, %50, %cst_68 {dimension_numbers = #tpu.dot_dimension_numbers<[0], [0], [1], [1], [0, 1, 1, 1], [], []>} : vector<16x256xbf16>, vector<16x128xbf16>, vector<256x128xf32> -> vector<256x128xf32>
    %55 = vector.broadcast %51 : vector<1x128xf32> to vector<256x128xf32>
    %56 = arith.addf %54, %55 : vector<256x128xf32>
    %cst_69 = arith.constant 0.000000e+00 : f32
    %57 = vector.broadcast %cst_69 : f32 to vector<256x128xf32>
    %58 = arith.maximumf %56, %57 : vector<256x128xf32>
    %59 = vector.shape_cast %58 : vector<256x128xf32> to vector<16x16x128xf32>
    %c0_70 = arith.constant 0 : index
    %c1_71 = arith.constant 1 : index
    %c8 = arith.constant 8 : index
    %c0_72 = arith.constant 0 : index
    %60 = vector.load %arg11[%c0_70, %c1_71, %c8, %c0_72] : memref<2x18x32x128xf32, #tpu.memory_space<vmem>>, vector<1x16x16x128xf32>
    %61 = vector.shape_cast %60 : vector<1x16x16x128xf32> to vector<16x16x128xf32>
    %62 = vector.shape_cast %59 : vector<16x16x128xf32> to vector<1x16x16x128xf32>
    tpu.vector_store %arg11[%c0_70, %c1_71, %c8, %c0_72], %62 {strides = array<i32>} : memref<2x18x32x128xf32, #tpu.memory_space<vmem>>, vector<1x16x16x128xf32>,
    %c1_73 = arith.constant 1 : index
    %c0_74 = arith.constant 0 : index
    %c0_75 = arith.constant 0 : index
    %63 = vector.load %arg1[%c1_73, %c0_74, %c0_75] : memref<2x16x256xbf16, #tpu.memory_space<vmem>>, vector<1x16x256xbf16>
    %64 = vector.shape_cast %63 : vector<1x16x256xbf16> to vector<16x256xbf16>
    %cst_76 = arith.constant dense<0.000000e+00> : vector<256x128xf32>
    %65 = tpu.matmul %64, %50, %cst_76 {dimension_numbers = #tpu.dot_dimension_numbers<[0], [0], [1], [1], [0, 1, 1, 1], [], []>} : vector<16x256xbf16>, vector<16x128xbf16>, vector<256x128xf32> -> vector<256x128xf32>
    %66 = vector.broadcast %51 : vector<1x128xf32> to vector<256x128xf32>
    %67 = arith.addf %65, %66 : vector<256x128xf32>
    %cst_77 = arith.constant 0.000000e+00 : f32
    %68 = vector.broadcast %cst_77 : f32 to vector<256x128xf32>
    %69 = arith.maximumf %67, %68 : vector<256x128xf32>
    %70 = vector.shape_cast %69 : vector<256x128xf32> to vector<16x16x128xf32>
    %c1_78 = arith.constant 1 : index
    %c1_79 = arith.constant 1 : index
    %c8_80 = arith.constant 8 : index
    %c0_81 = arith.constant 0 : index
    %71 = vector.load %arg11[%c1_78, %c1_79, %c8_80, %c0_81] : memref<2x18x32x128xf32, #tpu.memory_space<vmem>>, vector<1x16x16x128xf32>
    %72 = vector.shape_cast %71 : vector<1x16x16x128xf32> to vector<16x16x128xf32>
    %73 = vector.shape_cast %70 : vector<16x16x128xf32> to vector<1x16x16x128xf32>
    tpu.vector_store %arg11[%c1_78, %c1_79, %c8_80, %c0_81], %73 {strides = array<i32>} : memref<2x18x32x128xf32, #tpu.memory_space<vmem>>, vector<1x16x16x128xf32>,
    %c0_82 = arith.constant 0 : index
    %c0_83 = arith.constant 0 : index
    %74 = vector.load %arg4[%c0_82, %c0_83] : memref<9x128xf32, #tpu.memory_space<vmem>>, vector<9x128xf32>
    %c0_84 = arith.constant 0 : index
    %c0_85 = arith.constant 0 : index
    %75 = vector.load %arg6[%c0_84, %c0_85] : memref<9x128xf32, #tpu.memory_space<vmem>>, vector<9x128xf32>
    %76 = vector.extract_strided_slice %74 {offsets = [0, 0], sizes = [1, 128], strides = [1, 1]} : vector<9x128xf32> to vector<1x128xf32>
    %77 = vector.shape_cast %76 : vector<1x128xf32> to vector<128xf32>
    %78 = vector.shape_cast %77 : vector<128xf32> to vector<1x1x128xf32>
    %79 = vector.extract_strided_slice %74 {offsets = [1, 0], sizes = [1, 128], strides = [1, 1]} : vector<9x128xf32> to vector<1x128xf32>
    %80 = vector.shape_cast %79 : vector<1x128xf32> to vector<128xf32>
    %81 = vector.shape_cast %80 : vector<128xf32> to vector<1x1x128xf32>
    %82 = vector.extract_strided_slice %74 {offsets = [2, 0], sizes = [1, 128], strides = [1, 1]} : vector<9x128xf32> to vector<1x128xf32>
    %83 = vector.shape_cast %82 : vector<1x128xf32> to vector<128xf32>
    %84 = vector.shape_cast %83 : vector<128xf32> to vector<1x1x128xf32>
    %85 = vector.extract_strided_slice %74 {offsets = [3, 0], sizes = [1, 128], strides = [1, 1]} : vector<9x128xf32> to vector<1x128xf32>
    %86 = vector.shape_cast %85 : vector<1x128xf32> to vector<128xf32>
    %87 = vector.shape_cast %86 : vector<128xf32> to vector<1x1x128xf32>
    %88 = vector.extract_strided_slice %74 {offsets = [4, 0], sizes = [1, 128], strides = [1, 1]} : vector<9x128xf32> to vector<1x128xf32>
    %89 = vector.shape_cast %88 : vector<1x128xf32> to vector<128xf32>
    %90 = vector.shape_cast %89 : vector<128xf32> to vector<1x1x128xf32>
    %91 = vector.extract_strided_slice %74 {offsets = [5, 0], sizes = [1, 128], strides = [1, 1]} : vector<9x128xf32> to vector<1x128xf32>
    %92 = vector.shape_cast %91 : vector<1x128xf32> to vector<128xf32>
    %93 = vector.shape_cast %92 : vector<128xf32> to vector<1x1x128xf32>
    %94 = vector.extract_strided_slice %74 {offsets = [6, 0], sizes = [1, 128], strides = [1, 1]} : vector<9x128xf32> to vector<1x128xf32>
    %95 = vector.shape_cast %94 : vector<1x128xf32> to vector<128xf32>
    %96 = vector.shape_cast %95 : vector<128xf32> to vector<1x1x128xf32>
    %97 = vector.extract_strided_slice %74 {offsets = [7, 0], sizes = [1, 128], strides = [1, 1]} : vector<9x128xf32> to vector<1x128xf32>
    %98 = vector.shape_cast %97 : vector<1x128xf32> to vector<128xf32>
    %99 = vector.shape_cast %98 : vector<128xf32> to vector<1x1x128xf32>
    %100 = vector.extract_strided_slice %74 {offsets = [8, 0], sizes = [1, 128], strides = [1, 1]} : vector<9x128xf32> to vector<1x128xf32>
    %101 = vector.shape_cast %100 : vector<1x128xf32> to vector<128xf32>
    %102 = vector.shape_cast %101 : vector<128xf32> to vector<1x1x128xf32>
    %103 = vector.extract_strided_slice %75 {offsets = [0, 0], sizes = [1, 128], strides = [1, 1]} : vector<9x128xf32> to vector<1x128xf32>
    %104 = vector.shape_cast %103 : vector<1x128xf32> to vector<128xf32>
    %105 = vector.shape_cast %104 : vector<128xf32> to vector<1x1x128xf32>
    %106 = vector.extract_strided_slice %75 {offsets = [1, 0], sizes = [1, 128], strides = [1, 1]} : vector<9x128xf32> to vector<1x128xf32>
    %107 = vector.shape_cast %106 : vector<1x128xf32> to vector<128xf32>
    %108 = vector.shape_cast %107 : vector<128xf32> to vector<1x1x128xf32>
    %109 = vector.extract_strided_slice %75 {offsets = [2, 0], sizes = [1, 128], strides = [1, 1]} : vector<9x128xf32> to vector<1x128xf32>
    %110 = vector.shape_cast %109 : vector<1x128xf32> to vector<128xf32>
    %111 = vector.shape_cast %110 : vector<128xf32> to vector<1x1x128xf32>
    %112 = vector.extract_strided_slice %75 {offsets = [3, 0], sizes = [1, 128], strides = [1, 1]} : vector<9x128xf32> to vector<1x128xf32>
    %113 = vector.shape_cast %112 : vector<1x128xf32> to vector<128xf32>
    %114 = vector.shape_cast %113 : vector<128xf32> to vector<1x1x128xf32>
    %115 = vector.extract_strided_slice %75 {offsets = [4, 0], sizes = [1, 128], strides = [1, 1]} : vector<9x128xf32> to vector<1x128xf32>
    %116 = vector.shape_cast %115 : vector<1x128xf32> to vector<128xf32>
    %117 = vector.shape_cast %116 : vector<128xf32> to vector<1x1x128xf32>
    %118 = vector.extract_strided_slice %75 {offsets = [5, 0], sizes = [1, 128], strides = [1, 1]} : vector<9x128xf32> to vector<1x128xf32>
    %119 = vector.shape_cast %118 : vector<1x128xf32> to vector<128xf32>
    %120 = vector.shape_cast %119 : vector<128xf32> to vector<1x1x128xf32>
    %121 = vector.extract_strided_slice %75 {offsets = [6, 0], sizes = [1, 128], strides = [1, 1]} : vector<9x128xf32> to vector<1x128xf32>
    %122 = vector.shape_cast %121 : vector<1x128xf32> to vector<128xf32>
    %123 = vector.shape_cast %122 : vector<128xf32> to vector<1x1x128xf32>
    %124 = vector.extract_strided_slice %75 {offsets = [7, 0], sizes = [1, 128], strides = [1, 1]} : vector<9x128xf32> to vector<1x128xf32>
    %125 = vector.shape_cast %124 : vector<1x128xf32> to vector<128xf32>
    %126 = vector.shape_cast %125 : vector<128xf32> to vector<1x1x128xf32>
    %127 = vector.extract_strided_slice %75 {offsets = [8, 0], sizes = [1, 128], strides = [1, 1]} : vector<9x128xf32> to vector<1x128xf32>
    %128 = vector.shape_cast %127 : vector<1x128xf32> to vector<128xf32>
    %129 = vector.shape_cast %128 : vector<128xf32> to vector<1x1x128xf32>
    %c0_86 = arith.constant 0 : index
    %c0_87 = arith.constant 0 : index
    %130 = vector.load %arg5[%c0_86, %c0_87] : memref<1x128xf32, #tpu.memory_space<vmem>>, vector<1x128xf32>
    %131 = vector.shape_cast %130 : vector<1x128xf32> to vector<1x1x128xf32>
    %c0_88 = arith.constant 0 : index
    %c0_89 = arith.constant 0 : index
    %132 = vector.load %arg7[%c0_88, %c0_89] : memref<1x128xf32, #tpu.memory_space<vmem>>, vector<1x128xf32>
    %133 = vector.shape_cast %132 : vector<1x128xf32> to vector<1x1x128xf32>
    %c0_90 = arith.constant 0 : index
    %c0_91 = arith.constant 0 : index
    %134 = vector.load %arg8[%c0_90, %c0_91] : memref<2x128xbf16, #tpu.memory_space<vmem>>, vector<2x128xbf16>
    %c0_92 = arith.constant 0 : index
    %c0_93 = arith.constant 0 : index
    %135 = vector.load %arg9[%c0_92, %c0_93] : memref<2x1xf32, #tpu.memory_space<vmem>>, vector<2x1xf32>
    %cst_94 = arith.constant 0.000000e+00 : f32
    %136 = vector.broadcast %cst_94 : f32 to vector<8x16x128xf32>
    %c0_95 = arith.constant 0 : index
    %c0_96 = arith.constant 0 : index
    %c7 = arith.constant 7 : index
    %c0_97 = arith.constant 0 : index
    %137 = vector.load %arg11[%c0_95, %c0_96, %c7, %c0_97] : memref<2x18x32x128xf32, #tpu.memory_space<vmem>>, vector<1x8x16x128xf32>
    %138 = vector.shape_cast %137 : vector<1x8x16x128xf32> to vector<8x16x128xf32>
    %139 = vector.broadcast %78 : vector<1x1x128xf32> to vector<8x16x128xf32>
    %140 = arith.mulf %138, %139 : vector<8x16x128xf32>
    %141 = arith.addf %136, %140 : vector<8x16x128xf32>
    %c0_98 = arith.constant 0 : index
    %c0_99 = arith.constant 0 : index
    %c8_100 = arith.constant 8 : index
    %c0_101 = arith.constant 0 : index
    %142 = vector.load %arg11[%c0_98, %c0_99, %c8_100, %c0_101] : memref<2x18x32x128xf32, #tpu.memory_space<vmem>>, vector<1x8x16x128xf32>
    %143 = vector.shape_cast %142 : vector<1x8x16x128xf32> to vector<8x16x128xf32>
    %144 = vector.broadcast %81 : vector<1x1x128xf32> to vector<8x16x128xf32>
    %145 = arith.mulf %143, %144 : vector<8x16x128xf32>
    %146 = arith.addf %141, %145 : vector<8x16x128xf32>
    %c0_102 = arith.constant 0 : index
    %c0_103 = arith.constant 0 : index
    %c9 = arith.constant 9 : index
    %c0_104 = arith.constant 0 : index
    %147 = vector.load %arg11[%c0_102, %c0_103, %c9, %c0_104] : memref<2x18x32x128xf32, #tpu.memory_space<vmem>>, vector<1x8x16x128xf32>
    %148 = vector.shape_cast %147 : vector<1x8x16x128xf32> to vector<8x16x128xf32>
    %149 = vector.broadcast %84 : vector<1x1x128xf32> to vector<8x16x128xf32>
    %150 = arith.mulf %148, %149 : vector<8x16x128xf32>
    %151 = arith.addf %146, %150 : vector<8x16x128xf32>
    %c0_105 = arith.constant 0 : index
    %c1_106 = arith.constant 1 : index
    %c7_107 = arith.constant 7 : index
    %c0_108 = arith.constant 0 : index
    %152 = vector.load %arg11[%c0_105, %c1_106, %c7_107, %c0_108] : memref<2x18x32x128xf32, #tpu.memory_space<vmem>>, vector<1x8x16x128xf32>
    %153 = vector.shape_cast %152 : vector<1x8x16x128xf32> to vector<8x16x128xf32>
    %154 = vector.broadcast %87 : vector<1x1x128xf32> to vector<8x16x128xf32>
    %155 = arith.mulf %153, %154 : vector<8x16x128xf32>
    %156 = arith.addf %151, %155 : vector<8x16x128xf32>
    %c0_109 = arith.constant 0 : index
    %c1_110 = arith.constant 1 : index
    %c8_111 = arith.constant 8 : index
    %c0_112 = arith.constant 0 : index
    %157 = vector.load %arg11[%c0_109, %c1_110, %c8_111, %c0_112] : memref<2x18x32x128xf32, #tpu.memory_space<vmem>>, vector<1x8x16x128xf32>
    %158 = vector.shape_cast %157 : vector<1x8x16x128xf32> to vector<8x16x128xf32>
    %159 = vector.broadcast %90 : vector<1x1x128xf32> to vector<8x16x128xf32>
    %160 = arith.mulf %158, %159 : vector<8x16x128xf32>
    %161 = arith.addf %156, %160 : vector<8x16x128xf32>
    %c0_113 = arith.constant 0 : index
    %c1_114 = arith.constant 1 : index
    %c9_115 = arith.constant 9 : index
    %c0_116 = arith.constant 0 : index
    %162 = vector.load %arg11[%c0_113, %c1_114, %c9_115, %c0_116] : memref<2x18x32x128xf32, #tpu.memory_space<vmem>>, vector<1x8x16x128xf32>
    %163 = vector.shape_cast %162 : vector<1x8x16x128xf32> to vector<8x16x128xf32>
    %164 = vector.broadcast %93 : vector<1x1x128xf32> to vector<8x16x128xf32>
    %165 = arith.mulf %163, %164 : vector<8x16x128xf32>
    %166 = arith.addf %161, %165 : vector<8x16x128xf32>
    %c0_117 = arith.constant 0 : index
    %c2 = arith.constant 2 : index
    %c7_118 = arith.constant 7 : index
    %c0_119 = arith.constant 0 : index
    %167 = vector.load %arg11[%c0_117, %c2, %c7_118, %c0_119] : memref<2x18x32x128xf32, #tpu.memory_space<vmem>>, vector<1x8x16x128xf32>
    %168 = vector.shape_cast %167 : vector<1x8x16x128xf32> to vector<8x16x128xf32>
    %169 = vector.broadcast %96 : vector<1x1x128xf32> to vector<8x16x128xf32>
    %170 = arith.mulf %168, %169 : vector<8x16x128xf32>
    %171 = arith.addf %166, %170 : vector<8x16x128xf32>
    %c0_120 = arith.constant 0 : index
    %c2_121 = arith.constant 2 : index
    %c8_122 = arith.constant 8 : index
    %c0_123 = arith.constant 0 : index
    %172 = vector.load %arg11[%c0_120, %c2_121, %c8_122, %c0_123] : memref<2x18x32x128xf32, #tpu.memory_space<vmem>>, vector<1x8x16x128xf32>
    %173 = vector.shape_cast %172 : vector<1x8x16x128xf32> to vector<8x16x128xf32>
    %174 = vector.broadcast %99 : vector<1x1x128xf32> to vector<8x16x128xf32>
    %175 = arith.mulf %173, %174 : vector<8x16x128xf32>
    %176 = arith.addf %171, %175 : vector<8x16x128xf32>
    %c0_124 = arith.constant 0 : index
    %c2_125 = arith.constant 2 : index
    %c9_126 = arith.constant 9 : index
    %c0_127 = arith.constant 0 : index
    %177 = vector.load %arg11[%c0_124, %c2_125, %c9_126, %c0_127] : memref<2x18x32x128xf32, #tpu.memory_space<vmem>>, vector<1x8x16x128xf32>
    %178 = vector.shape_cast %177 : vector<1x8x16x128xf32> to vector<8x16x128xf32>
    %179 = vector.broadcast %102 : vector<1x1x128xf32> to vector<8x16x128xf32>
    %180 = arith.mulf %178, %179 : vector<8x16x128xf32>
    %181 = arith.addf %176, %180 : vector<8x16x128xf32>
    %182 = vector.broadcast %131 : vector<1x1x128xf32> to vector<8x16x128xf32>
    %183 = arith.addf %181, %182 : vector<8x16x128xf32>
    %cst_128 = arith.constant 0.000000e+00 : f32
    %184 = vector.broadcast %cst_128 : f32 to vector<8x16x128xf32>
    %185 = arith.maximumf %183, %184 : vector<8x16x128xf32>
    %c0_129 = arith.constant 0 : index
    %c1_130 = arith.constant 1 : index
    %c8_131 = arith.constant 8 : index
    %c0_132 = arith.constant 0 : index
    %186 = vector.load %arg12[%c0_129, %c1_130, %c8_131, %c0_132] : memref<2x18x32x128xf32, #tpu.memory_space<vmem>>, vector<1x8x16x128xf32>
    %187 = vector.shape_cast %186 : vector<1x8x16x128xf32> to vector<8x16x128xf32>
    %188 = vector.shape_cast %185 : vector<8x16x128xf32> to vector<1x8x16x128xf32>
    tpu.vector_store %arg12[%c0_129, %c1_130, %c8_131, %c0_132], %188 {strides = array<i32>} : memref<2x18x32x128xf32, #tpu.memory_space<vmem>>, vector<1x8x16x128xf32>,
    %cst_133 = arith.constant 0.000000e+00 : f32
    %189 = vector.broadcast %cst_133 : f32 to vector<8x16x128xf32>
    %c0_134 = arith.constant 0 : index
    %c8_135 = arith.constant 8 : index
    %c7_136 = arith.constant 7 : index
    %c0_137 = arith.constant 0 : index
    %190 = vector.load %arg11[%c0_134, %c8_135, %c7_136, %c0_137] : memref<2x18x32x128xf32, #tpu.memory_space<vmem>>, vector<1x8x16x128xf32>
    %191 = vector.shape_cast %190 : vector<1x8x16x128xf32> to vector<8x16x128xf32>
    %192 = vector.broadcast %78 : vector<1x1x128xf32> to vector<8x16x128xf32>
    %193 = arith.mulf %191, %192 : vector<8x16x128xf32>
    %194 = arith.addf %189, %193 : vector<8x16x128xf32>
    %c0_138 = arith.constant 0 : index
    %c8_139 = arith.constant 8 : index
    %c8_140 = arith.constant 8 : index
    %c0_141 = arith.constant 0 : index
    %195 = vector.load %arg11[%c0_138, %c8_139, %c8_140, %c0_141] : memref<2x18x32x128xf32, #tpu.memory_space<vmem>>, vector<1x8x16x128xf32>
    %196 = vector.shape_cast %195 : vector<1x8x16x128xf32> to vector<8x16x128xf32>
    %197 = vector.broadcast %81 : vector<1x1x128xf32> to vector<8x16x128xf32>
    %198 = arith.mulf %196, %197 : vector<8x16x128xf32>
    %199 = arith.addf %194, %198 : vector<8x16x128xf32>
    %c0_142 = arith.constant 0 : index
    %c8_143 = arith.constant 8 : index
    %c9_144 = arith.constant 9 : index
    %c0_145 = arith.constant 0 : index
    %200 = vector.load %arg11[%c0_142, %c8_143, %c9_144, %c0_145] : memref<2x18x32x128xf32, #tpu.memory_space<vmem>>, vector<1x8x16x128xf32>
    %201 = vector.shape_cast %200 : vector<1x8x16x128xf32> to vector<8x16x128xf32>
    %202 = vector.broadcast %84 : vector<1x1x128xf32> to vector<8x16x128xf32>
    %203 = arith.mulf %201, %202 : vector<8x16x128xf32>
    %204 = arith.addf %199, %203 : vector<8x16x128xf32>
    %c0_146 = arith.constant 0 : index
    %c9_147 = arith.constant 9 : index
    %c7_148 = arith.constant 7 : index
    %c0_149 = arith.constant 0 : index
    %205 = vector.load %arg11[%c0_146, %c9_147, %c7_148, %c0_149] : memref<2x18x32x128xf32, #tpu.memory_space<vmem>>, vector<1x8x16x128xf32>
    %206 = vector.shape_cast %205 : vector<1x8x16x128xf32> to vector<8x16x128xf32>
    %207 = vector.broadcast %87 : vector<1x1x128xf32> to vector<8x16x128xf32>
    %208 = arith.mulf %206, %207 : vector<8x16x128xf32>
    %209 = arith.addf %204, %208 : vector<8x16x128xf32>
    %c0_150 = arith.constant 0 : index
    %c9_151 = arith.constant 9 : index
    %c8_152 = arith.constant 8 : index
    %c0_153 = arith.constant 0 : index
    %210 = vector.load %arg11[%c0_150, %c9_151, %c8_152, %c0_153] : memref<2x18x32x128xf32, #tpu.memory_space<vmem>>, vector<1x8x16x128xf32>
    %211 = vector.shape_cast %210 : vector<1x8x16x128xf32> to vector<8x16x128xf32>
    %212 = vector.broadcast %90 : vector<1x1x128xf32> to vector<8x16x128xf32>
    %213 = arith.mulf %211, %212 : vector<8x16x128xf32>
    %214 = arith.addf %209, %213 : vector<8x16x128xf32>
    %c0_154 = arith.constant 0 : index
    %c9_155 = arith.constant 9 : index
    %c9_156 = arith.constant 9 : index
    %c0_157 = arith.constant 0 : index
    %215 = vector.load %arg11[%c0_154, %c9_155, %c9_156, %c0_157] : memref<2x18x32x128xf32, #tpu.memory_space<vmem>>, vector<1x8x16x128xf32>
    %216 = vector.shape_cast %215 : vector<1x8x16x128xf32> to vector<8x16x128xf32>
    %217 = vector.broadcast %93 : vector<1x1x128xf32> to vector<8x16x128xf32>
    %218 = arith.mulf %216, %217 : vector<8x16x128xf32>
    %219 = arith.addf %214, %218 : vector<8x16x128xf32>
    %c0_158 = arith.constant 0 : index
    %c10 = arith.constant 10 : index
    %c7_159 = arith.constant 7 : index
    %c0_160 = arith.constant 0 : index
    %220 = vector.load %arg11[%c0_158, %c10, %c7_159, %c0_160] : memref<2x18x32x128xf32, #tpu.memory_space<vmem>>, vector<1x8x16x128xf32>
    %221 = vector.shape_cast %220 : vector<1x8x16x128xf32> to vector<8x16x128xf32>
    %222 = vector.broadcast %96 : vector<1x1x128xf32> to vector<8x16x128xf32>
    %223 = arith.mulf %221, %222 : vector<8x16x128xf32>
    %224 = arith.addf %219, %223 : vector<8x16x128xf32>
    %c0_161 = arith.constant 0 : index
    %c10_162 = arith.constant 10 : index
    %c8_163 = arith.constant 8 : index
    %c0_164 = arith.constant 0 : index
    %225 = vector.load %arg11[%c0_161, %c10_162, %c8_163, %c0_164] : memref<2x18x32x128xf32, #tpu.memory_space<vmem>>, vector<1x8x16x128xf32>
    %226 = vector.shape_cast %225 : vector<1x8x16x128xf32> to vector<8x16x128xf32>
    %227 = vector.broadcast %99 : vector<1x1x128xf32> to vector<8x16x128xf32>
    %228 = arith.mulf %226, %227 : vector<8x16x128xf32>
    %229 = arith.addf %224, %228 : vector<8x16x128xf32>
    %c0_165 = arith.constant 0 : index
    %c10_166 = arith.constant 10 : index
    %c9_167 = arith.constant 9 : index
    %c0_168 = arith.constant 0 : index
    %230 = vector.load %arg11[%c0_165, %c10_166, %c9_167, %c0_168] : memref<2x18x32x128xf32, #tpu.memory_space<vmem>>, vector<1x8x16x128xf32>
    %231 = vector.shape_cast %230 : vector<1x8x16x128xf32> to vector<8x16x128xf32>
    %232 = vector.broadcast %102 : vector<1x1x128xf32> to vector<8x16x128xf32>
    %233 = arith.mulf %231, %232 : vector<8x16x128xf32>
    %234 = arith.addf %229, %233 : vector<8x16x128xf32>
    %235 = vector.broadcast %131 : vector<1x1x128xf32> to vector<8x16x128xf32>
    %236 = arith.addf %234, %235 : vector<8x16x128xf32>
    %cst_169 = arith.constant 0.000000e+00 : f32
    %237 = vector.broadcast %cst_169 : f32 to vector<8x16x128xf32>
    %238 = arith.maximumf %236, %237 : vector<8x16x128xf32>
    %c0_170 = arith.constant 0 : index
    %c9_171 = arith.constant 9 : index
    %c8_172 = arith.constant 8 : index
    %c0_173 = arith.constant 0 : index
    %239 = vector.load %arg12[%c0_170, %c9_171, %c8_172, %c0_173] : memref<2x18x32x128xf32, #tpu.memory_space<vmem>>, vector<1x8x16x128xf32>
    %240 = vector.shape_cast %239 : vector<1x8x16x128xf32> to vector<8x16x128xf32>
    %241 = vector.shape_cast %238 : vector<8x16x128xf32> to vector<1x8x16x128xf32>
    tpu.vector_store %arg12[%c0_170, %c9_171, %c8_172, %c0_173], %241 {strides = array<i32>} : memref<2x18x32x128xf32, #tpu.memory_space<vmem>>, vector<1x8x16x128xf32>,
    %cst_174 = arith.constant 0.000000e+00 : f32
    %242 = vector.broadcast %cst_174 : f32 to vector<8x16x128xf32>
    %c1_175 = arith.constant 1 : index
    %c0_176 = arith.constant 0 : index
    %c7_177 = arith.constant 7 : index
    %c0_178 = arith.constant 0 : index
    %243 = vector.load %arg11[%c1_175, %c0_176, %c7_177, %c0_178] : memref<2x18x32x128xf32, #tpu.memory_space<vmem>>, vector<1x8x16x128xf32>
    %244 = vector.shape_cast %243 : vector<1x8x16x128xf32> to vector<8x16x128xf32>
    %245 = vector.broadcast %78 : vector<1x1x128xf32> to vector<8x16x128xf32>
    %246 = arith.mulf %244, %245 : vector<8x16x128xf32>
    %247 = arith.addf %242, %246 : vector<8x16x128xf32>
    %c1_179 = arith.constant 1 : index
    %c0_180 = arith.constant 0 : index
    %c8_181 = arith.constant 8 : index
    %c0_182 = arith.constant 0 : index
    %248 = vector.load %arg11[%c1_179, %c0_180, %c8_181, %c0_182] : memref<2x18x32x128xf32, #tpu.memory_space<vmem>>, vector<1x8x16x128xf32>
    %249 = vector.shape_cast %248 : vector<1x8x16x128xf32> to vector<8x16x128xf32>
    %250 = vector.broadcast %81 : vector<1x1x128xf32> to vector<8x16x128xf32>
    %251 = arith.mulf %249, %250 : vector<8x16x128xf32>
    %252 = arith.addf %247, %251 : vector<8x16x128xf32>
    %c1_183 = arith.constant 1 : index
    %c0_184 = arith.constant 0 : index
    %c9_185 = arith.constant 9 : index
    %c0_186 = arith.constant 0 : index
    %253 = vector.load %arg11[%c1_183, %c0_184, %c9_185, %c0_186] : memref<2x18x32x128xf32, #tpu.memory_space<vmem>>, vector<1x8x16x128xf32>
    %254 = vector.shape_cast %253 : vector<1x8x16x128xf32> to vector<8x16x128xf32>
    %255 = vector.broadcast %84 : vector<1x1x128xf32> to vector<8x16x128xf32>
    %256 = arith.mulf %254, %255 : vector<8x16x128xf32>
    %257 = arith.addf %252, %256 : vector<8x16x128xf32>
    %c1_187 = arith.constant 1 : index
    %c1_188 = arith.constant 1 : index
    %c7_189 = arith.constant 7 : index
    %c0_190 = arith.constant 0 : index
    %258 = vector.load %arg11[%c1_187, %c1_188, %c7_189, %c0_190] : memref<2x18x32x128xf32, #tpu.memory_space<vmem>>, vector<1x8x16x128xf32>
    %259 = vector.shape_cast %258 : vector<1x8x16x128xf32> to vector<8x16x128xf32>
    %260 = vector.broadcast %87 : vector<1x1x128xf32> to vector<8x16x128xf32>
    %261 = arith.mulf %259, %260 : vector<8x16x128xf32>
    %262 = arith.addf %257, %261 : vector<8x16x128xf32>
    %c1_191 = arith.constant 1 : index
    %c1_192 = arith.constant 1 : index
    %c8_193 = arith.constant 8 : index
    %c0_194 = arith.constant 0 : index
    %263 = vector.load %arg11[%c1_191, %c1_192, %c8_193, %c0_194] : memref<2x18x32x128xf32, #tpu.memory_space<vmem>>, vector<1x8x16x128xf32>
    %264 = vector.shape_cast %263 : vector<1x8x16x128xf32> to vector<8x16x128xf32>
    %265 = vector.broadcast %90 : vector<1x1x128xf32> to vector<8x16x128xf32>
    %266 = arith.mulf %264, %265 : vector<8x16x128xf32>
    %267 = arith.addf %262, %266 : vector<8x16x128xf32>
    %c1_195 = arith.constant 1 : index
    %c1_196 = arith.constant 1 : index
    %c9_197 = arith.constant 9 : index
    %c0_198 = arith.constant 0 : index
    %268 = vector.load %arg11[%c1_195, %c1_196, %c9_197, %c0_198] : memref<2x18x32x128xf32, #tpu.memory_space<vmem>>, vector<1x8x16x128xf32>
    %269 = vector.shape_cast %268 : vector<1x8x16x128xf32> to vector<8x16x128xf32>
    %270 = vector.broadcast %93 : vector<1x1x128xf32> to vector<8x16x128xf32>
    %271 = arith.mulf %269, %270 : vector<8x16x128xf32>
    %272 = arith.addf %267, %271 : vector<8x16x128xf32>
    %c1_199 = arith.constant 1 : index
    %c2_200 = arith.constant 2 : index
    %c7_201 = arith.constant 7 : index
    %c0_202 = arith.constant 0 : index
    %273 = vector.load %arg11[%c1_199, %c2_200, %c7_201, %c0_202] : memref<2x18x32x128xf32, #tpu.memory_space<vmem>>, vector<1x8x16x128xf32>
    %274 = vector.shape_cast %273 : vector<1x8x16x128xf32> to vector<8x16x128xf32>
    %275 = vector.broadcast %96 : vector<1x1x128xf32> to vector<8x16x128xf32>
    %276 = arith.mulf %274, %275 : vector<8x16x128xf32>
    %277 = arith.addf %272, %276 : vector<8x16x128xf32>
    %c1_203 = arith.constant 1 : index
    %c2_204 = arith.constant 2 : index
    %c8_205 = arith.constant 8 : index
    %c0_206 = arith.constant 0 : index
    %278 = vector.load %arg11[%c1_203, %c2_204, %c8_205, %c0_206] : memref<2x18x32x128xf32, #tpu.memory_space<vmem>>, vector<1x8x16x128xf32>
    %279 = vector.shape_cast %278 : vector<1x8x16x128xf32> to vector<8x16x128xf32>
    %280 = vector.broadcast %99 : vector<1x1x128xf32> to vector<8x16x128xf32>
    %281 = arith.mulf %279, %280 : vector<8x16x128xf32>
    %282 = arith.addf %277, %281 : vector<8x16x128xf32>
    %c1_207 = arith.constant 1 : index
    %c2_208 = arith.constant 2 : index
    %c9_209 = arith.constant 9 : index
    %c0_210 = arith.constant 0 : index
    %283 = vector.load %arg11[%c1_207, %c2_208, %c9_209, %c0_210] : memref<2x18x32x128xf32, #tpu.memory_space<vmem>>, vector<1x8x16x128xf32>
    %284 = vector.shape_cast %283 : vector<1x8x16x128xf32> to vector<8x16x128xf32>
    %285 = vector.broadcast %102 : vector<1x1x128xf32> to vector<8x16x128xf32>
    %286 = arith.mulf %284, %285 : vector<8x16x128xf32>
    %287 = arith.addf %282, %286 : vector<8x16x128xf32>
    %288 = vector.broadcast %131 : vector<1x1x128xf32> to vector<8x16x128xf32>
    %289 = arith.addf %287, %288 : vector<8x16x128xf32>
    %cst_211 = arith.constant 0.000000e+00 : f32
    %290 = vector.broadcast %cst_211 : f32 to vector<8x16x128xf32>
    %291 = arith.maximumf %289, %290 : vector<8x16x128xf32>
    %c1_212 = arith.constant 1 : index
    %c1_213 = arith.constant 1 : index
    %c8_214 = arith.constant 8 : index
    %c0_215 = arith.constant 0 : index
    %292 = vector.load %arg12[%c1_212, %c1_213, %c8_214, %c0_215] : memref<2x18x32x128xf32, #tpu.memory_space<vmem>>, vector<1x8x16x128xf32>
    %293 = vector.shape_cast %292 : vector<1x8x16x128xf32> to vector<8x16x128xf32>
    %294 = vector.shape_cast %291 : vector<8x16x128xf32> to vector<1x8x16x128xf32>
    tpu.vector_store %arg12[%c1_212, %c1_213, %c8_214, %c0_215], %294 {strides = array<i32>} : memref<2x18x32x128xf32, #tpu.memory_space<vmem>>, vector<1x8x16x128xf32>,
    %cst_216 = arith.constant 0.000000e+00 : f32
    %295 = vector.broadcast %cst_216 : f32 to vector<8x16x128xf32>
    %c1_217 = arith.constant 1 : index
    %c8_218 = arith.constant 8 : index
    %c7_219 = arith.constant 7 : index
    %c0_220 = arith.constant 0 : index
    %296 = vector.load %arg11[%c1_217, %c8_218, %c7_219, %c0_220] : memref<2x18x32x128xf32, #tpu.memory_space<vmem>>, vector<1x8x16x128xf32>
    %297 = vector.shape_cast %296 : vector<1x8x16x128xf32> to vector<8x16x128xf32>
    %298 = vector.broadcast %78 : vector<1x1x128xf32> to vector<8x16x128xf32>
    %299 = arith.mulf %297, %298 : vector<8x16x128xf32>
    %300 = arith.addf %295, %299 : vector<8x16x128xf32>
    %c1_221 = arith.constant 1 : index
    %c8_222 = arith.constant 8 : index
    %c8_223 = arith.constant 8 : index
    %c0_224 = arith.constant 0 : index
    %301 = vector.load %arg11[%c1_221, %c8_222, %c8_223, %c0_224] : memref<2x18x32x128xf32, #tpu.memory_space<vmem>>, vector<1x8x16x128xf32>
    %302 = vector.shape_cast %301 : vector<1x8x16x128xf32> to vector<8x16x128xf32>
    %303 = vector.broadcast %81 : vector<1x1x128xf32> to vector<8x16x128xf32>
    %304 = arith.mulf %302, %303 : vector<8x16x128xf32>
    %305 = arith.addf %300, %304 : vector<8x16x128xf32>
    %c1_225 = arith.constant 1 : index
    %c8_226 = arith.constant 8 : index
    %c9_227 = arith.constant 9 : index
    %c0_228 = arith.constant 0 : index
    %306 = vector.load %arg11[%c1_225, %c8_226, %c9_227, %c0_228] : memref<2x18x32x128xf32, #tpu.memory_space<vmem>>, vector<1x8x16x128xf32>
    %307 = vector.shape_cast %306 : vector<1x8x16x128xf32> to vector<8x16x128xf32>
    %308 = vector.broadcast %84 : vector<1x1x128xf32> to vector<8x16x128xf32>
    %309 = arith.mulf %307, %308 : vector<8x16x128xf32>
    %310 = arith.addf %305, %309 : vector<8x16x128xf32>
    %c1_229 = arith.constant 1 : index
    %c9_230 = arith.constant 9 : index
    %c7_231 = arith.constant 7 : index
    %c0_232 = arith.constant 0 : index
    %311 = vector.load %arg11[%c1_229, %c9_230, %c7_231, %c0_232] : memref<2x18x32x128xf32, #tpu.memory_space<vmem>>, vector<1x8x16x128xf32>
    %312 = vector.shape_cast %311 : vector<1x8x16x128xf32> to vector<8x16x128xf32>
    %313 = vector.broadcast %87 : vector<1x1x128xf32> to vector<8x16x128xf32>
    %314 = arith.mulf %312, %313 : vector<8x16x128xf32>
    %315 = arith.addf %310, %314 : vector<8x16x128xf32>
    %c1_233 = arith.constant 1 : index
    %c9_234 = arith.constant 9 : index
    %c8_235 = arith.constant 8 : index
    %c0_236 = arith.constant 0 : index
    %316 = vector.load %arg11[%c1_233, %c9_234, %c8_235, %c0_236] : memref<2x18x32x128xf32, #tpu.memory_space<vmem>>, vector<1x8x16x128xf32>
    %317 = vector.shape_cast %316 : vector<1x8x16x128xf32> to vector<8x16x128xf32>
    %318 = vector.broadcast %90 : vector<1x1x128xf32> to vector<8x16x128xf32>
    %319 = arith.mulf %317, %318 : vector<8x16x128xf32>
    %320 = arith.addf %315, %319 : vector<8x16x128xf32>
    %c1_237 = arith.constant 1 : index
    %c9_238 = arith.constant 9 : index
    %c9_239 = arith.constant 9 : index
    %c0_240 = arith.constant 0 : index
    %321 = vector.load %arg11[%c1_237, %c9_238, %c9_239, %c0_240] : memref<2x18x32x128xf32, #tpu.memory_space<vmem>>, vector<1x8x16x128xf32>
    %322 = vector.shape_cast %321 : vector<1x8x16x128xf32> to vector<8x16x128xf32>
    %323 = vector.broadcast %93 : vector<1x1x128xf32> to vector<8x16x128xf32>
    %324 = arith.mulf %322, %323 : vector<8x16x128xf32>
    %325 = arith.addf %320, %324 : vector<8x16x128xf32>
    %c1_241 = arith.constant 1 : index
    %c10_242 = arith.constant 10 : index
    %c7_243 = arith.constant 7 : index
    %c0_244 = arith.constant 0 : index
    %326 = vector.load %arg11[%c1_241, %c10_242, %c7_243, %c0_244] : memref<2x18x32x128xf32, #tpu.memory_space<vmem>>, vector<1x8x16x128xf32>
    %327 = vector.shape_cast %326 : vector<1x8x16x128xf32> to vector<8x16x128xf32>
    %328 = vector.broadcast %96 : vector<1x1x128xf32> to vector<8x16x128xf32>
    %329 = arith.mulf %327, %328 : vector<8x16x128xf32>
    %330 = arith.addf %325, %329 : vector<8x16x128xf32>
    %c1_245 = arith.constant 1 : index
    %c10_246 = arith.constant 10 : index
    %c8_247 = arith.constant 8 : index
    %c0_248 = arith.constant 0 : index
    %331 = vector.load %arg11[%c1_245, %c10_246, %c8_247, %c0_248] : memref<2x18x32x128xf32, #tpu.memory_space<vmem>>, vector<1x8x16x128xf32>
    %332 = vector.shape_cast %331 : vector<1x8x16x128xf32> to vector<8x16x128xf32>
    %333 = vector.broadcast %99 : vector<1x1x128xf32> to vector<8x16x128xf32>
    %334 = arith.mulf %332, %333 : vector<8x16x128xf32>
    %335 = arith.addf %330, %334 : vector<8x16x128xf32>
    %c1_249 = arith.constant 1 : index
    %c10_250 = arith.constant 10 : index
    %c9_251 = arith.constant 9 : index
    %c0_252 = arith.constant 0 : index
    %336 = vector.load %arg11[%c1_249, %c10_250, %c9_251, %c0_252] : memref<2x18x32x128xf32, #tpu.memory_space<vmem>>, vector<1x8x16x128xf32>
    %337 = vector.shape_cast %336 : vector<1x8x16x128xf32> to vector<8x16x128xf32>
    %338 = vector.broadcast %102 : vector<1x1x128xf32> to vector<8x16x128xf32>
    %339 = arith.mulf %337, %338 : vector<8x16x128xf32>
    %340 = arith.addf %335, %339 : vector<8x16x128xf32>
    %341 = vector.broadcast %131 : vector<1x1x128xf32> to vector<8x16x128xf32>
    %342 = arith.addf %340, %341 : vector<8x16x128xf32>
    %cst_253 = arith.constant 0.000000e+00 : f32
    %343 = vector.broadcast %cst_253 : f32 to vector<8x16x128xf32>
    %344 = arith.maximumf %342, %343 : vector<8x16x128xf32>
    %c1_254 = arith.constant 1 : index
    %c9_255 = arith.constant 9 : index
    %c8_256 = arith.constant 8 : index
    %c0_257 = arith.constant 0 : index
    %345 = vector.load %arg12[%c1_254, %c9_255, %c8_256, %c0_257] : memref<2x18x32x128xf32, #tpu.memory_space<vmem>>, vector<1x8x16x128xf32>
    %346 = vector.shape_cast %345 : vector<1x8x16x128xf32> to vector<8x16x128xf32>
    %347 = vector.shape_cast %344 : vector<8x16x128xf32> to vector<1x8x16x128xf32>
    tpu.vector_store %arg12[%c1_254, %c9_255, %c8_256, %c0_257], %347 {strides = array<i32>} : memref<2x18x32x128xf32, #tpu.memory_space<vmem>>, vector<1x8x16x128xf32>,
    %cst_258 = arith.constant 0.000000e+00 : f32
    %348 = vector.broadcast %cst_258 : f32 to vector<8x16x128xf32>
    %c0_259 = arith.constant 0 : index
    %c0_260 = arith.constant 0 : index
    %c7_261 = arith.constant 7 : index
    %c0_262 = arith.constant 0 : index
    %349 = vector.load %arg12[%c0_259, %c0_260, %c7_261, %c0_262] : memref<2x18x32x128xf32, #tpu.memory_space<vmem>>, vector<1x8x16x128xf32>
    %350 = vector.shape_cast %349 : vector<1x8x16x128xf32> to vector<8x16x128xf32>
    %351 = vector.broadcast %105 : vector<1x1x128xf32> to vector<8x16x128xf32>
    %352 = arith.mulf %350, %351 : vector<8x16x128xf32>
    %353 = arith.addf %348, %352 : vector<8x16x128xf32>
    %c0_263 = arith.constant 0 : index
    %c0_264 = arith.constant 0 : index
    %c8_265 = arith.constant 8 : index
    %c0_266 = arith.constant 0 : index
    %354 = vector.load %arg12[%c0_263, %c0_264, %c8_265, %c0_266] : memref<2x18x32x128xf32, #tpu.memory_space<vmem>>, vector<1x8x16x128xf32>
    %355 = vector.shape_cast %354 : vector<1x8x16x128xf32> to vector<8x16x128xf32>
    %356 = vector.broadcast %108 : vector<1x1x128xf32> to vector<8x16x128xf32>
    %357 = arith.mulf %355, %356 : vector<8x16x128xf32>
    %358 = arith.addf %353, %357 : vector<8x16x128xf32>
    %c0_267 = arith.constant 0 : index
    %c0_268 = arith.constant 0 : index
    %c9_269 = arith.constant 9 : index
    %c0_270 = arith.constant 0 : index
    %359 = vector.load %arg12[%c0_267, %c0_268, %c9_269, %c0_270] : memref<2x18x32x128xf32, #tpu.memory_space<vmem>>, vector<1x8x16x128xf32>
    %360 = vector.shape_cast %359 : vector<1x8x16x128xf32> to vector<8x16x128xf32>
    %361 = vector.broadcast %111 : vector<1x1x128xf32> to vector<8x16x128xf32>
    %362 = arith.mulf %360, %361 : vector<8x16x128xf32>
    %363 = arith.addf %358, %362 : vector<8x16x128xf32>
    %c0_271 = arith.constant 0 : index
    %c1_272 = arith.constant 1 : index
    %c7_273 = arith.constant 7 : index
    %c0_274 = arith.constant 0 : index
    %364 = vector.load %arg12[%c0_271, %c1_272, %c7_273, %c0_274] : memref<2x18x32x128xf32, #tpu.memory_space<vmem>>, vector<1x8x16x128xf32>
    %365 = vector.shape_cast %364 : vector<1x8x16x128xf32> to vector<8x16x128xf32>
    %366 = vector.broadcast %114 : vector<1x1x128xf32> to vector<8x16x128xf32>
    %367 = arith.mulf %365, %366 : vector<8x16x128xf32>
    %368 = arith.addf %363, %367 : vector<8x16x128xf32>
    %c0_275 = arith.constant 0 : index
    %c1_276 = arith.constant 1 : index
    %c8_277 = arith.constant 8 : index
    %c0_278 = arith.constant 0 : index
    %369 = vector.load %arg12[%c0_275, %c1_276, %c8_277, %c0_278] : memref<2x18x32x128xf32, #tpu.memory_space<vmem>>, vector<1x8x16x128xf32>
    %370 = vector.shape_cast %369 : vector<1x8x16x128xf32> to vector<8x16x128xf32>
    %371 = vector.broadcast %117 : vector<1x1x128xf32> to vector<8x16x128xf32>
    %372 = arith.mulf %370, %371 : vector<8x16x128xf32>
    %373 = arith.addf %368, %372 : vector<8x16x128xf32>
    %c0_279 = arith.constant 0 : index
    %c1_280 = arith.constant 1 : index
    %c9_281 = arith.constant 9 : index
    %c0_282 = arith.constant 0 : index
    %374 = vector.load %arg12[%c0_279, %c1_280, %c9_281, %c0_282] : memref<2x18x32x128xf32, #tpu.memory_space<vmem>>, vector<1x8x16x128xf32>
    %375 = vector.shape_cast %374 : vector<1x8x16x128xf32> to vector<8x16x128xf32>
    %376 = vector.broadcast %120 : vector<1x1x128xf32> to vector<8x16x128xf32>
    %377 = arith.mulf %375, %376 : vector<8x16x128xf32>
    %378 = arith.addf %373, %377 : vector<8x16x128xf32>
    %c0_283 = arith.constant 0 : index
    %c2_284 = arith.constant 2 : index
    %c7_285 = arith.constant 7 : index
    %c0_286 = arith.constant 0 : index
    %379 = vector.load %arg12[%c0_283, %c2_284, %c7_285, %c0_286] : memref<2x18x32x128xf32, #tpu.memory_space<vmem>>, vector<1x8x16x128xf32>
    %380 = vector.shape_cast %379 : vector<1x8x16x128xf32> to vector<8x16x128xf32>
    %381 = vector.broadcast %123 : vector<1x1x128xf32> to vector<8x16x128xf32>
    %382 = arith.mulf %380, %381 : vector<8x16x128xf32>
    %383 = arith.addf %378, %382 : vector<8x16x128xf32>
    %c0_287 = arith.constant 0 : index
    %c2_288 = arith.constant 2 : index
    %c8_289 = arith.constant 8 : index
    %c0_290 = arith.constant 0 : index
    %384 = vector.load %arg12[%c0_287, %c2_288, %c8_289, %c0_290] : memref<2x18x32x128xf32, #tpu.memory_space<vmem>>, vector<1x8x16x128xf32>
    %385 = vector.shape_cast %384 : vector<1x8x16x128xf32> to vector<8x16x128xf32>
    %386 = vector.broadcast %126 : vector<1x1x128xf32> to vector<8x16x128xf32>
    %387 = arith.mulf %385, %386 : vector<8x16x128xf32>
    %388 = arith.addf %383, %387 : vector<8x16x128xf32>
    %c0_291 = arith.constant 0 : index
    %c2_292 = arith.constant 2 : index
    %c9_293 = arith.constant 9 : index
    %c0_294 = arith.constant 0 : index
    %389 = vector.load %arg12[%c0_291, %c2_292, %c9_293, %c0_294] : memref<2x18x32x128xf32, #tpu.memory_space<vmem>>, vector<1x8x16x128xf32>
    %390 = vector.shape_cast %389 : vector<1x8x16x128xf32> to vector<8x16x128xf32>
    %391 = vector.broadcast %129 : vector<1x1x128xf32> to vector<8x16x128xf32>
    %392 = arith.mulf %390, %391 : vector<8x16x128xf32>
    %393 = arith.addf %388, %392 : vector<8x16x128xf32>
    %394 = vector.broadcast %133 : vector<1x1x128xf32> to vector<8x16x128xf32>
    %395 = arith.addf %393, %394 : vector<8x16x128xf32>
    %cst_295 = arith.constant 0.000000e+00 : f32
    %396 = vector.broadcast %cst_295 : f32 to vector<8x16x128xf32>
    %397 = arith.maximumf %395, %396 : vector<8x16x128xf32>
    %398 = vector.shape_cast %397 : vector<8x16x128xf32> to vector<128x128xf32>
    %399 = arith.truncf %398 : vector<128x128xf32> to vector<128x128xbf16>
    %cst_296 = arith.constant dense<0.000000e+00> : vector<2x128xf32>
    %400 = tpu.matmul %134, %399, %cst_296 {dimension_numbers = #tpu.dot_dimension_numbers<[1], [1], [0], [0], [0, 0, 1, 0], [], []>} : vector<2x128xbf16>, vector<128x128xbf16>, vector<2x128xf32> -> vector<2x128xf32>
    %401 = vector.broadcast %135 : vector<2x1xf32> to vector<2x128xf32>
    %402 = arith.addf %400, %401 : vector<2x128xf32>
    %c0_297 = arith.constant 0 : index
    %c0_298 = arith.constant 0 : index
    %c0_299 = arith.constant 0 : index
    %403 = vector.load %arg10[%c0_297, %c0_298, %c0_299] : memref<2x2x256xf32, #tpu.memory_space<vmem>>, vector<1x2x128xf32>
    %404 = vector.shape_cast %403 : vector<1x2x128xf32> to vector<2x128xf32>
    %405 = vector.shape_cast %402 : vector<2x128xf32> to vector<1x2x128xf32>
    tpu.vector_store %arg10[%c0_297, %c0_298, %c0_299], %405 {strides = array<i32>} : memref<2x2x256xf32, #tpu.memory_space<vmem>>, vector<1x2x128xf32>,
    %cst_300 = arith.constant 0.000000e+00 : f32
    %406 = vector.broadcast %cst_300 : f32 to vector<8x16x128xf32>
    %c0_301 = arith.constant 0 : index
    %c8_302 = arith.constant 8 : index
    %c7_303 = arith.constant 7 : index
    %c0_304 = arith.constant 0 : index
    %407 = vector.load %arg12[%c0_301, %c8_302, %c7_303, %c0_304] : memref<2x18x32x128xf32, #tpu.memory_space<vmem>>, vector<1x8x16x128xf32>
    %408 = vector.shape_cast %407 : vector<1x8x16x128xf32> to vector<8x16x128xf32>
    %409 = vector.broadcast %105 : vector<1x1x128xf32> to vector<8x16x128xf32>
    %410 = arith.mulf %408, %409 : vector<8x16x128xf32>
    %411 = arith.addf %406, %410 : vector<8x16x128xf32>
    %c0_305 = arith.constant 0 : index
    %c8_306 = arith.constant 8 : index
    %c8_307 = arith.constant 8 : index
    %c0_308 = arith.constant 0 : index
    %412 = vector.load %arg12[%c0_305, %c8_306, %c8_307, %c0_308] : memref<2x18x32x128xf32, #tpu.memory_space<vmem>>, vector<1x8x16x128xf32>
    %413 = vector.shape_cast %412 : vector<1x8x16x128xf32> to vector<8x16x128xf32>
    %414 = vector.broadcast %108 : vector<1x1x128xf32> to vector<8x16x128xf32>
    %415 = arith.mulf %413, %414 : vector<8x16x128xf32>
    %416 = arith.addf %411, %415 : vector<8x16x128xf32>
    %c0_309 = arith.constant 0 : index
    %c8_310 = arith.constant 8 : index
    %c9_311 = arith.constant 9 : index
    %c0_312 = arith.constant 0 : index
    %417 = vector.load %arg12[%c0_309, %c8_310, %c9_311, %c0_312] : memref<2x18x32x128xf32, #tpu.memory_space<vmem>>, vector<1x8x16x128xf32>
    %418 = vector.shape_cast %417 : vector<1x8x16x128xf32> to vector<8x16x128xf32>
    %419 = vector.broadcast %111 : vector<1x1x128xf32> to vector<8x16x128xf32>
    %420 = arith.mulf %418, %419 : vector<8x16x128xf32>
    %421 = arith.addf %416, %420 : vector<8x16x128xf32>
    %c0_313 = arith.constant 0 : index
    %c9_314 = arith.constant 9 : index
    %c7_315 = arith.constant 7 : index
    %c0_316 = arith.constant 0 : index
    %422 = vector.load %arg12[%c0_313, %c9_314, %c7_315, %c0_316] : memref<2x18x32x128xf32, #tpu.memory_space<vmem>>, vector<1x8x16x128xf32>
    %423 = vector.shape_cast %422 : vector<1x8x16x128xf32> to vector<8x16x128xf32>
    %424 = vector.broadcast %114 : vector<1x1x128xf32> to vector<8x16x128xf32>
    %425 = arith.mulf %423, %424 : vector<8x16x128xf32>
    %426 = arith.addf %421, %425 : vector<8x16x128xf32>
    %c0_317 = arith.constant 0 : index
    %c9_318 = arith.constant 9 : index
    %c8_319 = arith.constant 8 : index
    %c0_320 = arith.constant 0 : index
    %427 = vector.load %arg12[%c0_317, %c9_318, %c8_319, %c0_320] : memref<2x18x32x128xf32, #tpu.memory_space<vmem>>, vector<1x8x16x128xf32>
    %428 = vector.shape_cast %427 : vector<1x8x16x128xf32> to vector<8x16x128xf32>
    %429 = vector.broadcast %117 : vector<1x1x128xf32> to vector<8x16x128xf32>
    %430 = arith.mulf %428, %429 : vector<8x16x128xf32>
    %431 = arith.addf %426, %430 : vector<8x16x128xf32>
    %c0_321 = arith.constant 0 : index
    %c9_322 = arith.constant 9 : index
    %c9_323 = arith.constant 9 : index
    %c0_324 = arith.constant 0 : index
    %432 = vector.load %arg12[%c0_321, %c9_322, %c9_323, %c0_324] : memref<2x18x32x128xf32, #tpu.memory_space<vmem>>, vector<1x8x16x128xf32>
    %433 = vector.shape_cast %432 : vector<1x8x16x128xf32> to vector<8x16x128xf32>
    %434 = vector.broadcast %120 : vector<1x1x128xf32> to vector<8x16x128xf32>
    %435 = arith.mulf %433, %434 : vector<8x16x128xf32>
    %436 = arith.addf %431, %435 : vector<8x16x128xf32>
    %c0_325 = arith.constant 0 : index
    %c10_326 = arith.constant 10 : index
    %c7_327 = arith.constant 7 : index
    %c0_328 = arith.constant 0 : index
    %437 = vector.load %arg12[%c0_325, %c10_326, %c7_327, %c0_328] : memref<2x18x32x128xf32, #tpu.memory_space<vmem>>, vector<1x8x16x128xf32>
    %438 = vector.shape_cast %437 : vector<1x8x16x128xf32> to vector<8x16x128xf32>
    %439 = vector.broadcast %123 : vector<1x1x128xf32> to vector<8x16x128xf32>
    %440 = arith.mulf %438, %439 : vector<8x16x128xf32>
    %441 = arith.addf %436, %440 : vector<8x16x128xf32>
    %c0_329 = arith.constant 0 : index
    %c10_330 = arith.constant 10 : index
    %c8_331 = arith.constant 8 : index
    %c0_332 = arith.constant 0 : index
    %442 = vector.load %arg12[%c0_329, %c10_330, %c8_331, %c0_332] : memref<2x18x32x128xf32, #tpu.memory_space<vmem>>, vector<1x8x16x128xf32>
    %443 = vector.shape_cast %442 : vector<1x8x16x128xf32> to vector<8x16x128xf32>
    %444 = vector.broadcast %126 : vector<1x1x128xf32> to vector<8x16x128xf32>
    %445 = arith.mulf %443, %444 : vector<8x16x128xf32>
    %446 = arith.addf %441, %445 : vector<8x16x128xf32>
    %c0_333 = arith.constant 0 : index
    %c10_334 = arith.constant 10 : index
    %c9_335 = arith.constant 9 : index
    %c0_336 = arith.constant 0 : index
    %447 = vector.load %arg12[%c0_333, %c10_334, %c9_335, %c0_336] : memref<2x18x32x128xf32, #tpu.memory_space<vmem>>, vector<1x8x16x128xf32>
    %448 = vector.shape_cast %447 : vector<1x8x16x128xf32> to vector<8x16x128xf32>
    %449 = vector.broadcast %129 : vector<1x1x128xf32> to vector<8x16x128xf32>
    %450 = arith.mulf %448, %449 : vector<8x16x128xf32>
    %451 = arith.addf %446, %450 : vector<8x16x128xf32>
    %452 = vector.broadcast %133 : vector<1x1x128xf32> to vector<8x16x128xf32>
    %453 = arith.addf %451, %452 : vector<8x16x128xf32>
    %cst_337 = arith.constant 0.000000e+00 : f32
    %454 = vector.broadcast %cst_337 : f32 to vector<8x16x128xf32>
    %455 = arith.maximumf %453, %454 : vector<8x16x128xf32>
    %456 = vector.shape_cast %455 : vector<8x16x128xf32> to vector<128x128xf32>
    %457 = arith.truncf %456 : vector<128x128xf32> to vector<128x128xbf16>
    %cst_338 = arith.constant dense<0.000000e+00> : vector<2x128xf32>
    %458 = tpu.matmul %134, %457, %cst_338 {dimension_numbers = #tpu.dot_dimension_numbers<[1], [1], [0], [0], [0, 0, 1, 0], [], []>} : vector<2x128xbf16>, vector<128x128xbf16>, vector<2x128xf32> -> vector<2x128xf32>
    %459 = vector.broadcast %135 : vector<2x1xf32> to vector<2x128xf32>
    %460 = arith.addf %458, %459 : vector<2x128xf32>
    %c0_339 = arith.constant 0 : index
    %c0_340 = arith.constant 0 : index
    %c128 = arith.constant 128 : index
    %461 = vector.load %arg10[%c0_339, %c0_340, %c128] : memref<2x2x256xf32, #tpu.memory_space<vmem>>, vector<1x2x128xf32>
    %462 = vector.shape_cast %461 : vector<1x2x128xf32> to vector<2x128xf32>
    %463 = vector.shape_cast %460 : vector<2x128xf32> to vector<1x2x128xf32>
    tpu.vector_store %arg10[%c0_339, %c0_340, %c128], %463 {strides = array<i32>} : memref<2x2x256xf32, #tpu.memory_space<vmem>>, vector<1x2x128xf32>,
    %cst_341 = arith.constant 0.000000e+00 : f32
    %464 = vector.broadcast %cst_341 : f32 to vector<8x16x128xf32>
    %c1_342 = arith.constant 1 : index
    %c0_343 = arith.constant 0 : index
    %c7_344 = arith.constant 7 : index
    %c0_345 = arith.constant 0 : index
    %465 = vector.load %arg12[%c1_342, %c0_343, %c7_344, %c0_345] : memref<2x18x32x128xf32, #tpu.memory_space<vmem>>, vector<1x8x16x128xf32>
    %466 = vector.shape_cast %465 : vector<1x8x16x128xf32> to vector<8x16x128xf32>
    %467 = vector.broadcast %105 : vector<1x1x128xf32> to vector<8x16x128xf32>
    %468 = arith.mulf %466, %467 : vector<8x16x128xf32>
    %469 = arith.addf %464, %468 : vector<8x16x128xf32>
    %c1_346 = arith.constant 1 : index
    %c0_347 = arith.constant 0 : index
    %c8_348 = arith.constant 8 : index
    %c0_349 = arith.constant 0 : index
    %470 = vector.load %arg12[%c1_346, %c0_347, %c8_348, %c0_349] : memref<2x18x32x128xf32, #tpu.memory_space<vmem>>, vector<1x8x16x128xf32>
    %471 = vector.shape_cast %470 : vector<1x8x16x128xf32> to vector<8x16x128xf32>
    %472 = vector.broadcast %108 : vector<1x1x128xf32> to vector<8x16x128xf32>
    %473 = arith.mulf %471, %472 : vector<8x16x128xf32>
    %474 = arith.addf %469, %473 : vector<8x16x128xf32>
    %c1_350 = arith.constant 1 : index
    %c0_351 = arith.constant 0 : index
    %c9_352 = arith.constant 9 : index
    %c0_353 = arith.constant 0 : index
    %475 = vector.load %arg12[%c1_350, %c0_351, %c9_352, %c0_353] : memref<2x18x32x128xf32, #tpu.memory_space<vmem>>, vector<1x8x16x128xf32>
    %476 = vector.shape_cast %475 : vector<1x8x16x128xf32> to vector<8x16x128xf32>
    %477 = vector.broadcast %111 : vector<1x1x128xf32> to vector<8x16x128xf32>
    %478 = arith.mulf %476, %477 : vector<8x16x128xf32>
    %479 = arith.addf %474, %478 : vector<8x16x128xf32>
    %c1_354 = arith.constant 1 : index
    %c1_355 = arith.constant 1 : index
    %c7_356 = arith.constant 7 : index
    %c0_357 = arith.constant 0 : index
    %480 = vector.load %arg12[%c1_354, %c1_355, %c7_356, %c0_357] : memref<2x18x32x128xf32, #tpu.memory_space<vmem>>, vector<1x8x16x128xf32>
    %481 = vector.shape_cast %480 : vector<1x8x16x128xf32> to vector<8x16x128xf32>
    %482 = vector.broadcast %114 : vector<1x1x128xf32> to vector<8x16x128xf32>
    %483 = arith.mulf %481, %482 : vector<8x16x128xf32>
    %484 = arith.addf %479, %483 : vector<8x16x128xf32>
    %c1_358 = arith.constant 1 : index
    %c1_359 = arith.constant 1 : index
    %c8_360 = arith.constant 8 : index
    %c0_361 = arith.constant 0 : index
    %485 = vector.load %arg12[%c1_358, %c1_359, %c8_360, %c0_361] : memref<2x18x32x128xf32, #tpu.memory_space<vmem>>, vector<1x8x16x128xf32>
    %486 = vector.shape_cast %485 : vector<1x8x16x128xf32> to vector<8x16x128xf32>
    %487 = vector.broadcast %117 : vector<1x1x128xf32> to vector<8x16x128xf32>
    %488 = arith.mulf %486, %487 : vector<8x16x128xf32>
    %489 = arith.addf %484, %488 : vector<8x16x128xf32>
    %c1_362 = arith.constant 1 : index
    %c1_363 = arith.constant 1 : index
    %c9_364 = arith.constant 9 : index
    %c0_365 = arith.constant 0 : index
    %490 = vector.load %arg12[%c1_362, %c1_363, %c9_364, %c0_365] : memref<2x18x32x128xf32, #tpu.memory_space<vmem>>, vector<1x8x16x128xf32>
    %491 = vector.shape_cast %490 : vector<1x8x16x128xf32> to vector<8x16x128xf32>
    %492 = vector.broadcast %120 : vector<1x1x128xf32> to vector<8x16x128xf32>
    %493 = arith.mulf %491, %492 : vector<8x16x128xf32>
    %494 = arith.addf %489, %493 : vector<8x16x128xf32>
    %c1_366 = arith.constant 1 : index
    %c2_367 = arith.constant 2 : index
    %c7_368 = arith.constant 7 : index
    %c0_369 = arith.constant 0 : index
    %495 = vector.load %arg12[%c1_366, %c2_367, %c7_368, %c0_369] : memref<2x18x32x128xf32, #tpu.memory_space<vmem>>, vector<1x8x16x128xf32>
    %496 = vector.shape_cast %495 : vector<1x8x16x128xf32> to vector<8x16x128xf32>
    %497 = vector.broadcast %123 : vector<1x1x128xf32> to vector<8x16x128xf32>
    %498 = arith.mulf %496, %497 : vector<8x16x128xf32>
    %499 = arith.addf %494, %498 : vector<8x16x128xf32>
    %c1_370 = arith.constant 1 : index
    %c2_371 = arith.constant 2 : index
    %c8_372 = arith.constant 8 : index
    %c0_373 = arith.constant 0 : index
    %500 = vector.load %arg12[%c1_370, %c2_371, %c8_372, %c0_373] : memref<2x18x32x128xf32, #tpu.memory_space<vmem>>, vector<1x8x16x128xf32>
    %501 = vector.shape_cast %500 : vector<1x8x16x128xf32> to vector<8x16x128xf32>
    %502 = vector.broadcast %126 : vector<1x1x128xf32> to vector<8x16x128xf32>
    %503 = arith.mulf %501, %502 : vector<8x16x128xf32>
    %504 = arith.addf %499, %503 : vector<8x16x128xf32>
    %c1_374 = arith.constant 1 : index
    %c2_375 = arith.constant 2 : index
    %c9_376 = arith.constant 9 : index
    %c0_377 = arith.constant 0 : index
    %505 = vector.load %arg12[%c1_374, %c2_375, %c9_376, %c0_377] : memref<2x18x32x128xf32, #tpu.memory_space<vmem>>, vector<1x8x16x128xf32>
    %506 = vector.shape_cast %505 : vector<1x8x16x128xf32> to vector<8x16x128xf32>
    %507 = vector.broadcast %129 : vector<1x1x128xf32> to vector<8x16x128xf32>
    %508 = arith.mulf %506, %507 : vector<8x16x128xf32>
    %509 = arith.addf %504, %508 : vector<8x16x128xf32>
    %510 = vector.broadcast %133 : vector<1x1x128xf32> to vector<8x16x128xf32>
    %511 = arith.addf %509, %510 : vector<8x16x128xf32>
    %cst_378 = arith.constant 0.000000e+00 : f32
    %512 = vector.broadcast %cst_378 : f32 to vector<8x16x128xf32>
    %513 = arith.maximumf %511, %512 : vector<8x16x128xf32>
    %514 = vector.shape_cast %513 : vector<8x16x128xf32> to vector<128x128xf32>
    %515 = arith.truncf %514 : vector<128x128xf32> to vector<128x128xbf16>
    %cst_379 = arith.constant dense<0.000000e+00> : vector<2x128xf32>
    %516 = tpu.matmul %134, %515, %cst_379 {dimension_numbers = #tpu.dot_dimension_numbers<[1], [1], [0], [0], [0, 0, 1, 0], [], []>} : vector<2x128xbf16>, vector<128x128xbf16>, vector<2x128xf32> -> vector<2x128xf32>
    %517 = vector.broadcast %135 : vector<2x1xf32> to vector<2x128xf32>
    %518 = arith.addf %516, %517 : vector<2x128xf32>
    %c1_380 = arith.constant 1 : index
    %c0_381 = arith.constant 0 : index
    %c0_382 = arith.constant 0 : index
    %519 = vector.load %arg10[%c1_380, %c0_381, %c0_382] : memref<2x2x256xf32, #tpu.memory_space<vmem>>, vector<1x2x128xf32>
    %520 = vector.shape_cast %519 : vector<1x2x128xf32> to vector<2x128xf32>
    %521 = vector.shape_cast %518 : vector<2x128xf32> to vector<1x2x128xf32>
    tpu.vector_store %arg10[%c1_380, %c0_381, %c0_382], %521 {strides = array<i32>} : memref<2x2x256xf32, #tpu.memory_space<vmem>>, vector<1x2x128xf32>,
    %cst_383 = arith.constant 0.000000e+00 : f32
    %522 = vector.broadcast %cst_383 : f32 to vector<8x16x128xf32>
    %c1_384 = arith.constant 1 : index
    %c8_385 = arith.constant 8 : index
    %c7_386 = arith.constant 7 : index
    %c0_387 = arith.constant 0 : index
    %523 = vector.load %arg12[%c1_384, %c8_385, %c7_386, %c0_387] : memref<2x18x32x128xf32, #tpu.memory_space<vmem>>, vector<1x8x16x128xf32>
    %524 = vector.shape_cast %523 : vector<1x8x16x128xf32> to vector<8x16x128xf32>
    %525 = vector.broadcast %105 : vector<1x1x128xf32> to vector<8x16x128xf32>
    %526 = arith.mulf %524, %525 : vector<8x16x128xf32>
    %527 = arith.addf %522, %526 : vector<8x16x128xf32>
    %c1_388 = arith.constant 1 : index
    %c8_389 = arith.constant 8 : index
    %c8_390 = arith.constant 8 : index
    %c0_391 = arith.constant 0 : index
    %528 = vector.load %arg12[%c1_388, %c8_389, %c8_390, %c0_391] : memref<2x18x32x128xf32, #tpu.memory_space<vmem>>, vector<1x8x16x128xf32>
    %529 = vector.shape_cast %528 : vector<1x8x16x128xf32> to vector<8x16x128xf32>
    %530 = vector.broadcast %108 : vector<1x1x128xf32> to vector<8x16x128xf32>
    %531 = arith.mulf %529, %530 : vector<8x16x128xf32>
    %532 = arith.addf %527, %531 : vector<8x16x128xf32>
    %c1_392 = arith.constant 1 : index
    %c8_393 = arith.constant 8 : index
    %c9_394 = arith.constant 9 : index
    %c0_395 = arith.constant 0 : index
    %533 = vector.load %arg12[%c1_392, %c8_393, %c9_394, %c0_395] : memref<2x18x32x128xf32, #tpu.memory_space<vmem>>, vector<1x8x16x128xf32>
    %534 = vector.shape_cast %533 : vector<1x8x16x128xf32> to vector<8x16x128xf32>
    %535 = vector.broadcast %111 : vector<1x1x128xf32> to vector<8x16x128xf32>
    %536 = arith.mulf %534, %535 : vector<8x16x128xf32>
    %537 = arith.addf %532, %536 : vector<8x16x128xf32>
    %c1_396 = arith.constant 1 : index
    %c9_397 = arith.constant 9 : index
    %c7_398 = arith.constant 7 : index
    %c0_399 = arith.constant 0 : index
    %538 = vector.load %arg12[%c1_396, %c9_397, %c7_398, %c0_399] : memref<2x18x32x128xf32, #tpu.memory_space<vmem>>, vector<1x8x16x128xf32>
    %539 = vector.shape_cast %538 : vector<1x8x16x128xf32> to vector<8x16x128xf32>
    %540 = vector.broadcast %114 : vector<1x1x128xf32> to vector<8x16x128xf32>
    %541 = arith.mulf %539, %540 : vector<8x16x128xf32>
    %542 = arith.addf %537, %541 : vector<8x16x128xf32>
    %c1_400 = arith.constant 1 : index
    %c9_401 = arith.constant 9 : index
    %c8_402 = arith.constant 8 : index
    %c0_403 = arith.constant 0 : index
    %543 = vector.load %arg12[%c1_400, %c9_401, %c8_402, %c0_403] : memref<2x18x32x128xf32, #tpu.memory_space<vmem>>, vector<1x8x16x128xf32>
    %544 = vector.shape_cast %543 : vector<1x8x16x128xf32> to vector<8x16x128xf32>
    %545 = vector.broadcast %117 : vector<1x1x128xf32> to vector<8x16x128xf32>
    %546 = arith.mulf %544, %545 : vector<8x16x128xf32>
    %547 = arith.addf %542, %546 : vector<8x16x128xf32>
    %c1_404 = arith.constant 1 : index
    %c9_405 = arith.constant 9 : index
    %c9_406 = arith.constant 9 : index
    %c0_407 = arith.constant 0 : index
    %548 = vector.load %arg12[%c1_404, %c9_405, %c9_406, %c0_407] : memref<2x18x32x128xf32, #tpu.memory_space<vmem>>, vector<1x8x16x128xf32>
    %549 = vector.shape_cast %548 : vector<1x8x16x128xf32> to vector<8x16x128xf32>
    %550 = vector.broadcast %120 : vector<1x1x128xf32> to vector<8x16x128xf32>
    %551 = arith.mulf %549, %550 : vector<8x16x128xf32>
    %552 = arith.addf %547, %551 : vector<8x16x128xf32>
    %c1_408 = arith.constant 1 : index
    %c10_409 = arith.constant 10 : index
    %c7_410 = arith.constant 7 : index
    %c0_411 = arith.constant 0 : index
    %553 = vector.load %arg12[%c1_408, %c10_409, %c7_410, %c0_411] : memref<2x18x32x128xf32, #tpu.memory_space<vmem>>, vector<1x8x16x128xf32>
    %554 = vector.shape_cast %553 : vector<1x8x16x128xf32> to vector<8x16x128xf32>
    %555 = vector.broadcast %123 : vector<1x1x128xf32> to vector<8x16x128xf32>
    %556 = arith.mulf %554, %555 : vector<8x16x128xf32>
    %557 = arith.addf %552, %556 : vector<8x16x128xf32>
    %c1_412 = arith.constant 1 : index
    %c10_413 = arith.constant 10 : index
    %c8_414 = arith.constant 8 : index
    %c0_415 = arith.constant 0 : index
    %558 = vector.load %arg12[%c1_412, %c10_413, %c8_414, %c0_415] : memref<2x18x32x128xf32, #tpu.memory_space<vmem>>, vector<1x8x16x128xf32>
    %559 = vector.shape_cast %558 : vector<1x8x16x128xf32> to vector<8x16x128xf32>
    %560 = vector.broadcast %126 : vector<1x1x128xf32> to vector<8x16x128xf32>
    %561 = arith.mulf %559, %560 : vector<8x16x128xf32>
    %562 = arith.addf %557, %561 : vector<8x16x128xf32>
    %c1_416 = arith.constant 1 : index
    %c10_417 = arith.constant 10 : index
    %c9_418 = arith.constant 9 : index
    %c0_419 = arith.constant 0 : index
    %563 = vector.load %arg12[%c1_416, %c10_417, %c9_418, %c0_419] : memref<2x18x32x128xf32, #tpu.memory_space<vmem>>, vector<1x8x16x128xf32>
    %564 = vector.shape_cast %563 : vector<1x8x16x128xf32> to vector<8x16x128xf32>
    %565 = vector.broadcast %129 : vector<1x1x128xf32> to vector<8x16x128xf32>
    %566 = arith.mulf %564, %565 : vector<8x16x128xf32>
    %567 = arith.addf %562, %566 : vector<8x16x128xf32>
    %568 = vector.broadcast %133 : vector<1x1x128xf32> to vector<8x16x128xf32>
    %569 = arith.addf %567, %568 : vector<8x16x128xf32>
    %cst_420 = arith.constant 0.000000e+00 : f32
    %570 = vector.broadcast %cst_420 : f32 to vector<8x16x128xf32>
    %571 = arith.maximumf %569, %570 : vector<8x16x128xf32>
    %572 = vector.shape_cast %571 : vector<8x16x128xf32> to vector<128x128xf32>
    %573 = arith.truncf %572 : vector<128x128xf32> to vector<128x128xbf16>
    %cst_421 = arith.constant dense<0.000000e+00> : vector<2x128xf32>
    %574 = tpu.matmul %134, %573, %cst_421 {dimension_numbers = #tpu.dot_dimension_numbers<[1], [1], [0], [0], [0, 0, 1, 0], [], []>} : vector<2x128xbf16>, vector<128x128xbf16>, vector<2x128xf32> -> vector<2x128xf32>
    %575 = vector.broadcast %135 : vector<2x1xf32> to vector<2x128xf32>
    %576 = arith.addf %574, %575 : vector<2x128xf32>
    %c1_422 = arith.constant 1 : index
    %c0_423 = arith.constant 0 : index
    %c128_424 = arith.constant 128 : index
    %577 = vector.load %arg10[%c1_422, %c0_423, %c128_424] : memref<2x2x256xf32, #tpu.memory_space<vmem>>, vector<1x2x128xf32>
    %578 = vector.shape_cast %577 : vector<1x2x128xf32> to vector<2x128xf32>
    %579 = vector.shape_cast %576 : vector<2x128xf32> to vector<1x2x128xf32>
    tpu.vector_store %arg10[%c1_422, %c0_423, %c128_424], %579 {strides = array<i32>} : memref<2x2x256xf32, #tpu.memory_space<vmem>>, vector<1x2x128xf32>,
    return
  }
  func.func @transform_0(%arg0: i32) -> (i32, i32, i32) {
    %c0_i32 = arith.constant 0 : i32
    %c0_i32_0 = arith.constant 0 : i32
    %c0_i32_1 = arith.constant 0 : i32
    return %arg0, %c0_i32, %c0_i32_0 : i32, i32, i32
  }
  func.func @transform_1(%arg0: i32) -> (i32, i32) {
    %c0_i32 = arith.constant 0 : i32
    %c0_i32_0 = arith.constant 0 : i32
    %c0_i32_1 = arith.constant 0 : i32
    return %c0_i32, %c0_i32_0 : i32, i32
  }
  func.func @transform_2(%arg0: i32) -> (i32, i32) {
    %c0_i32 = arith.constant 0 : i32
    %c0_i32_0 = arith.constant 0 : i32
    %c0_i32_1 = arith.constant 0 : i32
    return %c0_i32, %c0_i32_0 : i32, i32
  }
  func.func @transform_3(%arg0: i32) -> (i32, i32) {
    %c0_i32 = arith.constant 0 : i32
    %c0_i32_0 = arith.constant 0 : i32
    %c0_i32_1 = arith.constant 0 : i32
    return %c0_i32, %c0_i32_0 : i32, i32
  }
  func.func @transform_4(%arg0: i32) -> (i32, i32) {
    %c0_i32 = arith.constant 0 : i32
    %c0_i32_0 = arith.constant 0 : i32
    %c0_i32_1 = arith.constant 0 : i32
    return %c0_i32, %c0_i32_0 : i32, i32
  }
  func.func @transform_5(%arg0: i32) -> (i32, i32) {
    %c0_i32 = arith.constant 0 : i32
    %c0_i32_0 = arith.constant 0 : i32
    %c0_i32_1 = arith.constant 0 : i32
    return %c0_i32, %c0_i32_0 : i32, i32
  }
  func.func @transform_6(%arg0: i32) -> (i32, i32) {
    %c0_i32 = arith.constant 0 : i32
    %c0_i32_0 = arith.constant 0 : i32
    %c0_i32_1 = arith.constant 0 : i32
    return %c0_i32, %c0_i32_0 : i32, i32
  }
  func.func @transform_7(%arg0: i32) -> (i32, i32) {
    %c0_i32 = arith.constant 0 : i32
    %c0_i32_0 = arith.constant 0 : i32
    %c0_i32_1 = arith.constant 0 : i32
    return %c0_i32, %c0_i32_0 : i32, i32
  }
  func.func @transform_8(%arg0: i32) -> (i32, i32) {
    %c0_i32 = arith.constant 0 : i32
    %c0_i32_0 = arith.constant 0 : i32
    %c0_i32_1 = arith.constant 0 : i32
    return %c0_i32, %c0_i32_0 : i32, i32
  }
  func.func @transform_9(%arg0: i32) -> (i32, i32, i32) {
    %c0_i32 = arith.constant 0 : i32
    %c0_i32_0 = arith.constant 0 : i32
    %c0_i32_1 = arith.constant 0 : i32
    return %arg0, %c0_i32, %c0_i32_0 : i32, i32, i32
  }
}

</mosaic_0001>

<llo_original>
// kernel: _lambda_.1
$region0: #{_lambda_.1}
  #allocation0 [shape = 'u32[]', space=smem, size = 0x4, offset = 0x4, fixed_abs, tag = 'smem constant byte address 0x4 - core index']
  #allocation1 [shape = 'u32[72,128]{1,0:T(1,128)}', space=vmem, size = 0x9000, scoped, tag = 'internal scratch']
  #allocation2 [shape = 'f32[2,18,32,128]{3,2,1,0:T(8,128)}', space=vmem, size = 0x90000, scoped, tag = 'scratch operand']
  #allocation3 [shape = 'f32[2,18,32,128]{3,2,1,0:T(8,128)}', space=vmem, size = 0x90000, scoped, tag = 'scratch operand']
  %s0 = inlined_call_operand.vmem [shape: bf16[2,16,256], index: 0, kind: input, shape index: {}]
  %s1 = inlined_call_operand.vmem [shape: bf16[16,128], index: 1, kind: input, shape index: {}]
  %s2 = inlined_call_operand.vmem [shape: f32[1,128], index: 2, kind: input, shape index: {}]
  %s3 = inlined_call_operand.vmem [shape: f32[9,128], index: 3, kind: input, shape index: {}]
  %s4 = inlined_call_operand.vmem [shape: f32[1,128], index: 4, kind: input, shape index: {}]
  %s5 = inlined_call_operand.vmem [shape: f32[9,128], index: 5, kind: input, shape index: {}]
  %s6 = inlined_call_operand.vmem [shape: f32[1,128], index: 6, kind: input, shape index: {}]
  %s7 = inlined_call_operand.vmem [shape: bf16[2,128], index: 7, kind: input, shape index: {}]
  %s8 = inlined_call_operand.vmem [shape: f32[2,1], index: 8, kind: input, shape index: {}]
  %s9 = inlined_call_operand.vmem [shape: f32[2,2,256], index: 9, kind: output, shape index: {}]
  %s10 = sld [smem:[#allocation0]]
  $region46: #{_lambda_.1} parent=0
    _
  %s12 = ssub.s32 1, %s10
  %s13 = scalar_select 0, %s12, %s10
  // Predicated region
  $region2: #{_lambda_.1} parent=0 // pred_check
    _
  $region3: #{_lambda_.1} parent=0 // pred_check_branch
    %15 = sbr.rel (0) target = $region5
  $region4: #{_lambda_.1} parent=0 // pred_region
    _
  $region5: #{_lambda_.1} parent=0 // pred_fallthru
    _
  // Predicated region
  $region6: #{_lambda_.1} parent=0 // pred_check
    _
  $region7: #{_lambda_.1} parent=0 // pred_check_branch
    %17 = sbr.rel (0) target = $region9
  $region8: #{_lambda_.1} parent=0 // pred_region
    _
  $region9: #{_lambda_.1} parent=0 // pred_fallthru
    _
  // Predicated region
  $region10: #{_lambda_.1} parent=0 // pred_check
    _
  $region11: #{_lambda_.1} parent=0 // pred_check_branch
    %19 = sbr.rel (0) target = $region13
  $region12: #{_lambda_.1} parent=0 // pred_region
    _
  $region13: #{_lambda_.1} parent=0 // pred_fallthru
    _
  // Predicated region
  $region14: #{_lambda_.1} parent=0 // pred_check
    _
  $region15: #{_lambda_.1} parent=0 // pred_check_branch
    %21 = sbr.rel (0) target = $region17
  $region16: #{_lambda_.1} parent=0 // pred_region
    _
  $region17: #{_lambda_.1} parent=0 // pred_fallthru
    _
  // Predicated region
  $region18: #{_lambda_.1} parent=0 // pred_check
    _
  $region19: #{_lambda_.1} parent=0 // pred_check_branch
    %23 = sbr.rel (0) target = $region21
  $region20: #{_lambda_.1} parent=0 // pred_region
    _
  $region21: #{_lambda_.1} parent=0 // pred_fallthru
    _
  // Predicated region
  $region22: #{_lambda_.1} parent=0 // pred_check
    _
  $region23: #{_lambda_.1} parent=0 // pred_check_branch
    %25 = sbr.rel (0) target = $region25
  $region24: #{_lambda_.1} parent=0 // pred_region
    _
  $region25: #{_lambda_.1} parent=0 // pred_fallthru
    _
  // Predicated region
  $region26: #{_lambda_.1} parent=0 // pred_check
    _
  $region27: #{_lambda_.1} parent=0 // pred_check_branch
    %27 = sbr.rel (0) target = $region29
  $region28: #{_lambda_.1} parent=0 // pred_region
    _
  $region29: #{_lambda_.1} parent=0 // pred_fallthru
    _
  // Predicated region
  $region30: #{_lambda_.1} parent=0 // pred_check
    _
  $region31: #{_lambda_.1} parent=0 // pred_check_branch
    %29 = sbr.rel (0) target = $region33
  $region32: #{_lambda_.1} parent=0 // pred_region
    _
  $region33: #{_lambda_.1} parent=0 // pred_fallthru
    _
  // Predicated region
  $region34: #{_lambda_.1} parent=0 // pred_check
    _
  $region35: #{_lambda_.1} parent=0 // pred_check_branch
    %31 = sbr.rel (0) target = $region37
  $region36: #{_lambda_.1} parent=0 // pred_region
    _
  $region37: #{_lambda_.1} parent=0 // pred_fallthru
    _
  %33 = vst [vmem:[#allocation2] sm:$0xff] 0.0
  %34 = vst [vmem:[#allocation2 + $0x8] sm:$0xff] 0.0
  %35 = vst [vmem:[#allocation2 + $0x10] sm:$0xff] 0.0
  %36 = vst [vmem:[#allocation2 + $0x18] sm:$0xff] 0.0
  %s37 = scalar_lea.vmem [#allocation2], 544
  %38 = vst [vmem:[%s37] sm:$0xff] 0.0
  %39 = vst [vmem:[%s37 + $0x8] sm:$0xff] 0.0
  %40 = vst [vmem:[%s37 + $0x10] sm:$0xff] 0.0
  %41 = vst [vmem:[%s37 + $0x18] sm:$0xff] 0.0
  %42 = vst [vmem:[#allocation2] sm:$0xff] 0.0
  %43 = vst [vmem:[#allocation2 + $0x20] sm:$0xff] 0.0
  %44 = vst [vmem:[#allocation2 + $0x40] sm:$0xff] 0.0
  %45 = vst [vmem:[#allocation2 + $0x60] sm:$0xff] 0.0
  %46 = vst [vmem:[#allocation2 + $0x80] sm:$0xff] 0.0
  %47 = vst [vmem:[#allocation2 + $0xa0] sm:$0xff] 0.0
  %48 = vst [vmem:[#allocation2 + $0xc0] sm:$0xff] 0.0
  %49 = vst [vmem:[#allocation2 + $0xe0] sm:$0xff] 0.0
  %50 = vst [vmem:[#allocation2 + $0x100] sm:$0xff] 0.0
  %51 = vst [vmem:[#allocation2 + $0x120] sm:$0xff] 0.0
  %52 = vst [vmem:[#allocation2 + $0x140] sm:$0xff] 0.0
  %53 = vst [vmem:[#allocation2 + $0x160] sm:$0xff] 0.0
  %54 = vst [vmem:[#allocation2 + $0x180] sm:$0xff] 0.0
  %55 = vst [vmem:[#allocation2 + $0x1a0] sm:$0xff] 0.0
  %56 = vst [vmem:[#allocation2 + $0x1c0] sm:$0xff] 0.0
  %57 = vst [vmem:[#allocation2 + $0x1e0] sm:$0xff] 0.0
  %58 = vst [vmem:[#allocation2 + $0x200] sm:$0xff] 0.0
  %59 = vst [vmem:[#allocation2 + $0x220] sm:$0xff] 0.0
  %60 = vst [vmem:[#allocation2 + $0x18] sm:$0xff] 0.0
  %61 = vst [vmem:[#allocation2 + $0x38] sm:$0xff] 0.0
  %62 = vst [vmem:[#allocation2 + $0x58] sm:$0xff] 0.0
  %63 = vst [vmem:[#allocation2 + $0x78] sm:$0xff] 0.0
  %64 = vst [vmem:[#allocation2 + $0x98] sm:$0xff] 0.0
  %65 = vst [vmem:[#allocation2 + $0xb8] sm:$0xff] 0.0
  %66 = vst [vmem:[#allocation2 + $0xd8] sm:$0xff] 0.0
  %67 = vst [vmem:[#allocation2 + $0xf8] sm:$0xff] 0.0
  %68 = vst [vmem:[#allocation2 + $0x118] sm:$0xff] 0.0
  %69 = vst [vmem:[#allocation2 + $0x138] sm:$0xff] 0.0
  %70 = vst [vmem:[#allocation2 + $0x158] sm:$0xff] 0.0
  %71 = vst [vmem:[#allocation2 + $0x178] sm:$0xff] 0.0
  %72 = vst [vmem:[#allocation2 + $0x198] sm:$0xff] 0.0
  %73 = vst [vmem:[#allocation2 + $0x1b8] sm:$0xff] 0.0
  %74 = vst [vmem:[#allocation2 + $0x1d8] sm:$0xff] 0.0
  %75 = vst [vmem:[#allocation2 + $0x1f8] sm:$0xff] 0.0
  %76 = vst [vmem:[#allocation2 + $0x218] sm:$0xff] 0.0
  %77 = vst [vmem:[#allocation2 + $0x238] sm:$0xff] 0.0
  %78 = vst [vmem:[#allocation3] sm:$0xff] 0.0
  %79 = vst [vmem:[#allocation3 + $0x8] sm:$0xff] 0.0
  %80 = vst [vmem:[#allocation3 + $0x10] sm:$0xff] 0.0
  %81 = vst [vmem:[#allocation3 + $0x18] sm:$0xff] 0.0
  %s82 = scalar_lea.vmem [#allocation3], 544
  %83 = vst [vmem:[%s82] sm:$0xff] 0.0
  %84 = vst [vmem:[%s82 + $0x8] sm:$0xff] 0.0
  %85 = vst [vmem:[%s82 + $0x10] sm:$0xff] 0.0
  %86 = vst [vmem:[%s82 + $0x18] sm:$0xff] 0.0
  %87 = vst [vmem:[#allocation3] sm:$0xff] 0.0
  %88 = vst [vmem:[#allocation3 + $0x20] sm:$0xff] 0.0
  %89 = vst [vmem:[#allocation3 + $0x40] sm:$0xff] 0.0
  %90 = vst [vmem:[#allocation3 + $0x60] sm:$0xff] 0.0
  %91 = vst [vmem:[#allocation3 + $0x80] sm:$0xff] 0.0
  %92 = vst [vmem:[#allocation3 + $0xa0] sm:$0xff] 0.0
  %93 = vst [vmem:[#allocation3 + $0xc0] sm:$0xff] 0.0
  %94 = vst [vmem:[#allocation3 + $0xe0] sm:$0xff] 0.0
  %95 = vst [vmem:[#allocation3 + $0x100] sm:$0xff] 0.0
  %96 = vst [vmem:[#allocation3 + $0x120] sm:$0xff] 0.0
  %97 = vst [vmem:[#allocation3 + $0x140] sm:$0xff] 0.0
  %98 = vst [vmem:[#allocation3 + $0x160] sm:$0xff] 0.0
  %99 = vst [vmem:[#allocation3 + $0x180] sm:$0xff] 0.0
  %100 = vst [vmem:[#allocation3 + $0x1a0] sm:$0xff] 0.0
  %101 = vst [vmem:[#allocation3 + $0x1c0] sm:$0xff] 0.0
  %102 = vst [vmem:[#allocation3 + $0x1e0] sm:$0xff] 0.0
  %103 = vst [vmem:[#allocation3 + $0x200] sm:$0xff] 0.0
  %104 = vst [vmem:[#allocation3 + $0x220] sm:$0xff] 0.0
  %105 = vst [vmem:[#allocation3 + $0x18] sm:$0xff] 0.0
  %106 = vst [vmem:[#allocation3 + $0x38] sm:$0xff] 0.0
  %107 = vst [vmem:[#allocation3 + $0x58] sm:$0xff] 0.0
  %108 = vst [vmem:[#allocation3 + $0x78] sm:$0xff] 0.0
  %109 = vst [vmem:[#allocation3 + $0x98] sm:$0xff] 0.0
  %110 = vst [vmem:[#allocation3 + $0xb8] sm:$0xff] 0.0
  %111 = vst [vmem:[#allocation3 + $0xd8] sm:$0xff] 0.0
  %112 = vst [vmem:[#allocation3 + $0xf8] sm:$0xff] 0.0
  %113 = vst [vmem:[#allocation3 + $0x118] sm:$0xff] 0.0
  %114 = vst [vmem:[#allocation3 + $0x138] sm:$0xff] 0.0
  %115 = vst [vmem:[#allocation3 + $0x158] sm:$0xff] 0.0
  %116 = vst [vmem:[#allocation3 + $0x178] sm:$0xff] 0.0
  %117 = vst [vmem:[#allocation3 + $0x198] sm:$0xff] 0.0
  %118 = vst [vmem:[#allocation3 + $0x1b8] sm:$0xff] 0.0
  %119 = vst [vmem:[#allocation3 + $0x1d8] sm:$0xff] 0.0
  %120 = vst [vmem:[#allocation3 + $0x1f8] sm:$0xff] 0.0
  %121 = vst [vmem:[#allocation3 + $0x218] sm:$0xff] 0.0
  %122 = vst [vmem:[#allocation3 + $0x238] sm:$0xff] 0.0
  %s123 = scalar_lea.vmem [#allocation2], 576
  %124 = vst [vmem:[%s123] sm:$0xff] 0.0
  %125 = vst [vmem:[%s123 + $0x8] sm:$0xff] 0.0
  %126 = vst [vmem:[%s123 + $0x10] sm:$0xff] 0.0
  %127 = vst [vmem:[%s123 + $0x18] sm:$0xff] 0.0
  %s128 = scalar_lea.vmem [#allocation2], 1120
  %129 = vst [vmem:[%s128] sm:$0xff] 0.0
  %130 = vst [vmem:[%s128 + $0x8] sm:$0xff] 0.0
  %131 = vst [vmem:[%s128 + $0x10] sm:$0xff] 0.0
  %132 = vst [vmem:[%s128 + $0x18] sm:$0xff] 0.0
  %133 = vst [vmem:[%s123] sm:$0xff] 0.0
  %134 = vst [vmem:[%s123 + $0x20] sm:$0xff] 0.0
  %135 = vst [vmem:[%s123 + $0x40] sm:$0xff] 0.0
  %136 = vst [vmem:[%s123 + $0x60] sm:$0xff] 0.0
  %137 = vst [vmem:[%s123 + $0x80] sm:$0xff] 0.0
  %138 = vst [vmem:[%s123 + $0xa0] sm:$0xff] 0.0
  %139 = vst [vmem:[%s123 + $0xc0] sm:$0xff] 0.0
  %140 = vst [vmem:[%s123 + $0xe0] sm:$0xff] 0.0
  %141 = vst [vmem:[%s123 + $0x100] sm:$0xff] 0.0
  %142 = vst [vmem:[%s123 + $0x120] sm:$0xff] 0.0
  %143 = vst [vmem:[%s123 + $0x140] sm:$0xff] 0.0
  %144 = vst [vmem:[%s123 + $0x160] sm:$0xff] 0.0
  %145 = vst [vmem:[%s123 + $0x180] sm:$0xff] 0.0
  %146 = vst [vmem:[%s123 + $0x1a0] sm:$0xff] 0.0
  %147 = vst [vmem:[%s123 + $0x1c0] sm:$0xff] 0.0
  %148 = vst [vmem:[%s123 + $0x1e0] sm:$0xff] 0.0
  %149 = vst [vmem:[%s123 + $0x200] sm:$0xff] 0.0
  %150 = vst [vmem:[%s123 + $0x220] sm:$0xff] 0.0
  %151 = vst [vmem:[%s123 + $0x18] sm:$0xff] 0.0
  %152 = vst [vmem:[%s123 + $0x38] sm:$0xff] 0.0
  %153 = vst [vmem:[%s123 + $0x58] sm:$0xff] 0.0
  %154 = vst [vmem:[%s123 + $0x78] sm:$0xff] 0.0
  %155 = vst [vmem:[%s123 + $0x98] sm:$0xff] 0.0
  %156 = vst [vmem:[%s123 + $0xb8] sm:$0xff] 0.0
  %157 = vst [vmem:[%s123 + $0xd8] sm:$0xff] 0.0
  %158 = vst [vmem:[%s123 + $0xf8] sm:$0xff] 0.0
  %159 = vst [vmem:[%s123 + $0x118] sm:$0xff] 0.0
  %160 = vst [vmem:[%s123 + $0x138] sm:$0xff] 0.0
  %161 = vst [vmem:[%s123 + $0x158] sm:$0xff] 0.0
  %162 = vst [vmem:[%s123 + $0x178] sm:$0xff] 0.0
  %163 = vst [vmem:[%s123 + $0x198] sm:$0xff] 0.0
  %164 = vst [vmem:[%s123 + $0x1b8] sm:$0xff] 0.0
  %165 = vst [vmem:[%s123 + $0x1d8] sm:$0xff] 0.0
  %166 = vst [vmem:[%s123 + $0x1f8] sm:$0xff] 0.0
  %167 = vst [vmem:[%s123 + $0x218] sm:$0xff] 0.0
  %168 = vst [vmem:[%s123 + $0x238] sm:$0xff] 0.0
  %s169 = scalar_lea.vmem [#allocation3], 576
  %170 = vst [vmem:[%s169] sm:$0xff] 0.0
  %171 = vst [vmem:[%s169 + $0x8] sm:$0xff] 0.0
  %172 = vst [vmem:[%s169 + $0x10] sm:$0xff] 0.0
  %173 = vst [vmem:[%s169 + $0x18] sm:$0xff] 0.0
  %s174 = scalar_lea.vmem [#allocation3], 1120
  %175 = vst [vmem:[%s174] sm:$0xff] 0.0
  %176 = vst [vmem:[%s174 + $0x8] sm:$0xff] 0.0
  %177 = vst [vmem:[%s174 + $0x10] sm:$0xff] 0.0
  %178 = vst [vmem:[%s174 + $0x18] sm:$0xff] 0.0
  %179 = vst [vmem:[%s169] sm:$0xff] 0.0
  %180 = vst [vmem:[%s169 + $0x20] sm:$0xff] 0.0
  %181 = vst [vmem:[%s169 + $0x40] sm:$0xff] 0.0
  %182 = vst [vmem:[%s169 + $0x60] sm:$0xff] 0.0
  %183 = vst [vmem:[%s169 + $0x80] sm:$0xff] 0.0
  %184 = vst [vmem:[%s169 + $0xa0] sm:$0xff] 0.0
  %185 = vst [vmem:[%s169 + $0xc0] sm:$0xff] 0.0
  %186 = vst [vmem:[%s169 + $0xe0] sm:$0xff] 0.0
  %187 = vst [vmem:[%s169 + $0x100] sm:$0xff] 0.0
  %188 = vst [vmem:[%s169 + $0x120] sm:$0xff] 0.0
  %189 = vst [vmem:[%s169 + $0x140] sm:$0xff] 0.0
  %190 = vst [vmem:[%s169 + $0x160] sm:$0xff] 0.0
  %191 = vst [vmem:[%s169 + $0x180] sm:$0xff] 0.0
  %192 = vst [vmem:[%s169 + $0x1a0] sm:$0xff] 0.0
  %193 = vst [vmem:[%s169 + $0x1c0] sm:$0xff] 0.0
  %194 = vst [vmem:[%s169 + $0x1e0] sm:$0xff] 0.0
  %195 = vst [vmem:[%s169 + $0x200] sm:$0xff] 0.0
  %196 = vst [vmem:[%s169 + $0x220] sm:$0xff] 0.0
  %197 = vst [vmem:[%s169 + $0x18] sm:$0xff] 0.0
  %198 = vst [vmem:[%s169 + $0x38] sm:$0xff] 0.0
  %199 = vst [vmem:[%s169 + $0x58] sm:$0xff] 0.0
  %200 = vst [vmem:[%s169 + $0x78] sm:$0xff] 0.0
  %201 = vst [vmem:[%s169 + $0x98] sm:$0xff] 0.0
  %202 = vst [vmem:[%s169 + $0xb8] sm:$0xff] 0.0
  %203 = vst [vmem:[%s169 + $0xd8] sm:$0xff] 0.0
  %204 = vst [vmem:[%s169 + $0xf8] sm:$0xff] 0.0
  %205 = vst [vmem:[%s169 + $0x118] sm:$0xff] 0.0
  %206 = vst [vmem:[%s169 + $0x138] sm:$0xff] 0.0
  %207 = vst [vmem:[%s169 + $0x158] sm:$0xff] 0.0
  %208 = vst [vmem:[%s169 + $0x178] sm:$0xff] 0.0
  %209 = vst [vmem:[%s169 + $0x198] sm:$0xff] 0.0
  %210 = vst [vmem:[%s169 + $0x1b8] sm:$0xff] 0.0
  %211 = vst [vmem:[%s169 + $0x1d8] sm:$0xff] 0.0
  %212 = vst [vmem:[%s169 + $0x1f8] sm:$0xff] 0.0
  %213 = vst [vmem:[%s169 + $0x218] sm:$0xff] 0.0
  %214 = vst [vmem:[%s169 + $0x238] sm:$0xff] 0.0
  %v215 = vld [vmem:[%s1] sm:$0xf]
  %v216 = vld [vmem:[%s1 + $0x4] sm:$0xf]
  %v217 = vld [vmem:[%s2] sm:$0x1]
  %v218 = vld [vmem:[%s0] sm:$0xff]
  %v219 = vld [vmem:[%s0 + $0x8] sm:$0xff]
  %v221 = vperm.slane %v217, 0
  %v225 = vunpack.c.l.b16 %v218
  %v226 = vunpack.c.h.b16 %v218
  %v227 = vunpack.c.l.b16 %v219
  %v228 = vunpack.c.h.b16 %v219
  %v229 = vpack.c.b16 %v227, %v225
  %v230 = vpack.c.b16 %v228, %v226
  %233 = vxpose.binary.xlu0.c.b16.start [1/16] %v230, %v229, 128
  %234 = vxpose.binary.xlu0.c.b16.cont [2/16] 0, 0, 128
  %235 = vxpose.binary.xlu0.c.b16.cont [3/16] 0, 0, 128
  %236 = vxpose.binary.xlu0.c.b16.cont [4/16] 0, 0, 128
  %237 = vxpose.binary.xlu0.c.b16.cont [5/16] 0, 0, 128
  %238 = vxpose.binary.xlu0.c.b16.cont [6/16] 0, 0, 128
  %239 = vxpose.binary.xlu0.c.b16.cont [7/16] 0, 0, 128
  %240 = vxpose.binary.xlu0.c.b16.end [8/16] 0, 0, 128
  %v241 = vpop.trf.xlu0
  %v242 = vpop.trf.xlu0
  %v243 = vpop.trf.xlu0
  %v244 = vpop.trf.xlu0
  %v245 = vpop.trf.xlu0
  %v246 = vpop.trf.xlu0
  %v247 = vpop.trf.xlu0
  %v248 = vpop.trf.xlu0
  %v249 = vpop.trf.xlu0
  %v250 = vpop.trf.xlu0
  %v251 = vpop.trf.xlu0
  %v252 = vpop.trf.xlu0
  %v253 = vpop.trf.xlu0
  %v254 = vpop.trf.xlu0
  %v255 = vpop.trf.xlu0
  %v256 = vpop.trf.xlu0
  %v259 = vunpack.c.l.b16 %v215
  %v260 = vunpack.c.l.b16 %v216
  %v261 = vpack.c.b16 %v260, %v259
  %vm263 = vcmask 130048
  %v265 = vsel %vm263, %v241, 0
  %v268 = vsel %vm263, %v243, 0
  %v271 = vsel %vm263, %v245, 0
  %v274 = vsel %vm263, %v247, 0
  %v277 = vsel %vm263, %v249, 0
  %v280 = vsel %vm263, %v251, 0
  %v283 = vsel %vm263, %v253, 0
  %v286 = vsel %vm263, %v255, 0
  %v289 = vsel %vm263, %v242, 0
  %v292 = vsel %vm263, %v244, 0
  %v295 = vsel %vm263, %v246, 0
  %v298 = vsel %vm263, %v248, 0
  %v301 = vsel %vm263, %v250, 0
  %v304 = vsel %vm263, %v252, 0
  %v307 = vsel %vm263, %v254, 0
  %v310 = vsel %vm263, %v256, 0
  %312 = vmatpush.bf16.msra.mxu0 0
  %313 = vmatpush.bf16.msra.mxu0 0
  %314 = vmatpush.bf16.msra.mxu0 0
  %315 = vmatpush.bf16.msra.mxu0 0
  %316 = vmatpush.bf16.msra.mxu0 0
  %317 = vmatpush.bf16.msra.mxu0 0
  %318 = vmatpush.bf16.msra.mxu0 0
  %319 = vmatpush.bf16.msra.mxu0 %v261
  %320 = vmatmul.bf16.gmra.mxu0 %v265
  %v321 = vpop.f32.mrf.mxu0
  %v322 = vadd.f32 %v221, %v321
  %v323 = vpop.f32.mrf.mxu0
  %v324 = vadd.f32 %v221, %v323
  %325 = vmatmul.bf16.gmra.mxu0 %v268
  %v326 = vpop.f32.mrf.mxu0
  %v327 = vadd.f32 %v221, %v326
  %v328 = vpop.f32.mrf.mxu0
  %v329 = vadd.f32 %v221, %v328
  %330 = vmatmul.bf16.gmra.mxu0 %v271
  %v331 = vpop.f32.mrf.mxu0
  %v332 = vadd.f32 %v221, %v331
  %v333 = vpop.f32.mrf.mxu0
  %v334 = vadd.f32 %v221, %v333
  %335 = vmatmul.bf16.gmra.mxu0 %v274
  %v336 = vpop.f32.mrf.mxu0
  %v337 = vadd.f32 %v221, %v336
  %v338 = vpop.f32.mrf.mxu0
  %v339 = vadd.f32 %v221, %v338
  %340 = vmatmul.bf16.gmra.mxu0 %v277
  %v341 = vpop.f32.mrf.mxu0
  %v342 = vadd.f32 %v221, %v341
  %v343 = vpop.f32.mrf.mxu0
  %v344 = vadd.f32 %v221, %v343
  %345 = vmatmul.bf16.gmra.mxu0 %v280
  %v346 = vpop.f32.mrf.mxu0
  %v347 = vadd.f32 %v221, %v346
  %v348 = vpop.f32.mrf.mxu0
  %v349 = vadd.f32 %v221, %v348
  %350 = vmatmul.bf16.gmra.mxu0 %v283
  %v351 = vpop.f32.mrf.mxu0
  %v352 = vadd.f32 %v221, %v351
  %v353 = vpop.f32.mrf.mxu0
  %v354 = vadd.f32 %v221, %v353
  %355 = vmatmul.bf16.gmra.mxu0 %v286
  %v356 = vpop.f32.mrf.mxu0
  %v357 = vadd.f32 %v221, %v356
  %v358 = vpop.f32.mrf.mxu0
  %v359 = vadd.f32 %v221, %v358
  %360 = vmatmul.bf16.gmra.mxu0 %v289
  %v361 = vpop.f32.mrf.mxu0
  %v362 = vadd.f32 %v221, %v361
  %v363 = vpop.f32.mrf.mxu0
  %v364 = vadd.f32 %v221, %v363
  %365 = vmatmul.bf16.gmra.mxu0 %v292
  %v366 = vpop.f32.mrf.mxu0
  %v367 = vadd.f32 %v221, %v366
  %v368 = vpop.f32.mrf.mxu0
  %v369 = vadd.f32 %v221, %v368
  %370 = vmatmul.bf16.gmra.mxu0 %v295
  %v371 = vpop.f32.mrf.mxu0
  %v372 = vadd.f32 %v221, %v371
  %v373 = vpop.f32.mrf.mxu0
  %v374 = vadd.f32 %v221, %v373
  %375 = vmatmul.bf16.gmra.mxu0 %v298
  %v376 = vpop.f32.mrf.mxu0
  %v377 = vadd.f32 %v221, %v376
  %v378 = vpop.f32.mrf.mxu0
  %v379 = vadd.f32 %v221, %v378
  %380 = vmatmul.bf16.gmra.mxu0 %v301
  %v381 = vpop.f32.mrf.mxu0
  %v382 = vadd.f32 %v221, %v381
  %v383 = vpop.f32.mrf.mxu0
  %v384 = vadd.f32 %v221, %v383
  %385 = vmatmul.bf16.gmra.mxu0 %v304
  %v386 = vpop.f32.mrf.mxu0
  %v387 = vadd.f32 %v221, %v386
  %v388 = vpop.f32.mrf.mxu0
  %v389 = vadd.f32 %v221, %v388
  %390 = vmatmul.bf16.gmra.mxu0 %v307
  %v391 = vpop.f32.mrf.mxu0
  %v392 = vadd.f32 %v221, %v391
  %v393 = vpop.f32.mrf.mxu0
  %v394 = vadd.f32 %v221, %v393
  %395 = vmatmul.bf16.gmra.mxu0 %v310
  %v396 = vpop.f32.mrf.mxu0
  %v397 = vadd.f32 %v221, %v396
  %v398 = vpop.f32.mrf.mxu0
  %v399 = vadd.f32 %v221, %v398
  %400 = vdwg.mxu0
  %v401 = vmax.f32 %v322, 0.0
  %v402 = vmax.f32 %v324, 0.0
  %v403 = vmax.f32 %v327, 0.0
  %v404 = vmax.f32 %v329, 0.0
  %v405 = vmax.f32 %v332, 0.0
  %v406 = vmax.f32 %v334, 0.0
  %v407 = vmax.f32 %v337, 0.0
  %v408 = vmax.f32 %v339, 0.0
  %v409 = vmax.f32 %v342, 0.0
  %v410 = vmax.f32 %v344, 0.0
  %v411 = vmax.f32 %v347, 0.0
  %v412 = vmax.f32 %v349, 0.0
  %v413 = vmax.f32 %v352, 0.0
  %v414 = vmax.f32 %v354, 0.0
  %v415 = vmax.f32 %v357, 0.0
  %v416 = vmax.f32 %v359, 0.0
  %v417 = vmax.f32 %v362, 0.0
  %v418 = vmax.f32 %v364, 0.0
  %v419 = vmax.f32 %v367, 0.0
  %v420 = vmax.f32 %v369, 0.0
  %v421 = vmax.f32 %v372, 0.0
  %v422 = vmax.f32 %v374, 0.0
  %v423 = vmax.f32 %v377, 0.0
  %v424 = vmax.f32 %v379, 0.0
  %v425 = vmax.f32 %v382, 0.0
  %v426 = vmax.f32 %v384, 0.0
  %v427 = vmax.f32 %v387, 0.0
  %v428 = vmax.f32 %v389, 0.0
  %v429 = vmax.f32 %v392, 0.0
  %v430 = vmax.f32 %v394, 0.0
  %v431 = vmax.f32 %v397, 0.0
  %v432 = vmax.f32 %v399, 0.0
  %s433 = scalar_lea.vmem [#allocation2], 32
  %434 = vst [vmem:[%s433 + $0x8] sm:$0xff] %v401
  %435 = vst [vmem:[%s433 + $0x10] sm:$0xff] %v402
  %436 = vst [vmem:[%s433 + $0x28] sm:$0xff] %v403
  %437 = vst [vmem:[%s433 + $0x30] sm:$0xff] %v404
  %438 = vst [vmem:[%s433 + $0x48] sm:$0xff] %v405
  %439 = vst [vmem:[%s433 + $0x50] sm:$0xff] %v406
  %440 = vst [vmem:[%s433 + $0x68] sm:$0xff] %v407
  %441 = vst [vmem:[%s433 + $0x70] sm:$0xff] %v408
  %442 = vst [vmem:[%s433 + $0x88] sm:$0xff] %v409
  %443 = vst [vmem:[%s433 + $0x90] sm:$0xff] %v410
  %444 = vst [vmem:[%s433 + $0xa8] sm:$0xff] %v411
  %445 = vst [vmem:[%s433 + $0xb0] sm:$0xff] %v412
  %446 = vst [vmem:[%s433 + $0xc8] sm:$0xff] %v413
  %447 = vst [vmem:[%s433 + $0xd0] sm:$0xff] %v414
  %448 = vst [vmem:[%s433 + $0xe8] sm:$0xff] %v415
  %449 = vst [vmem:[%s433 + $0xf0] sm:$0xff] %v416
  %450 = vst [vmem:[%s433 + $0x108] sm:$0xff] %v417
  %451 = vst [vmem:[%s433 + $0x110] sm:$0xff] %v418
  %452 = vst [vmem:[%s433 + $0x128] sm:$0xff] %v419
  %453 = vst [vmem:[%s433 + $0x130] sm:$0xff] %v420
  %454 = vst [vmem:[%s433 + $0x148] sm:$0xff] %v421
  %455 = vst [vmem:[%s433 + $0x150] sm:$0xff] %v422
  %456 = vst [vmem:[%s433 + $0x168] sm:$0xff] %v423
  %457 = vst [vmem:[%s433 + $0x170] sm:$0xff] %v424
  %458 = vst [vmem:[%s433 + $0x188] sm:$0xff] %v425
  %459 = vst [vmem:[%s433 + $0x190] sm:$0xff] %v426
  %460 = vst [vmem:[%s433 + $0x1a8] sm:$0xff] %v427
  %461 = vst [vmem:[%s433 + $0x1b0] sm:$0xff] %v428
  %462 = vst [vmem:[%s433 + $0x1c8] sm:$0xff] %v429
  %463 = vst [vmem:[%s433 + $0x1d0] sm:$0xff] %v430
  %464 = vst [vmem:[%s433 + $0x1e8] sm:$0xff] %v431
  %465 = vst [vmem:[%s433 + $0x1f0] sm:$0xff] %v432
  %s466 = scalar_lea.vmem %s0, 16
  %v467 = vld [vmem:[%s466] sm:$0xff]
  %v468 = vld [vmem:[%s466 + $0x8] sm:$0xff]
  %v471 = vunpack.c.l.b16 %v467
  %v472 = vunpack.c.h.b16 %v467
  %v473 = vunpack.c.l.b16 %v468
  %v474 = vunpack.c.h.b16 %v468
  %v475 = vpack.c.b16 %v473, %v471
  %v476 = vpack.c.b16 %v474, %v472
  %479 = vxpose.binary.xlu0.c.b16.start [1/16] %v476, %v475, 128
  %480 = vxpose.binary.xlu0.c.b16.cont [2/16] 0, 0, 128
  %481 = vxpose.binary.xlu0.c.b16.cont [3/16] 0, 0, 128
  %482 = vxpose.binary.xlu0.c.b16.cont [4/16] 0, 0, 128
  %483 = vxpose.binary.xlu0.c.b16.cont [5/16] 0, 0, 128
  %484 = vxpose.binary.xlu0.c.b16.cont [6/16] 0, 0, 128
  %485 = vxpose.binary.xlu0.c.b16.cont [7/16] 0, 0, 128
  %486 = vxpose.binary.xlu0.c.b16.end [8/16] 0, 0, 128
  %v487 = vpop.trf.xlu0
  %v488 = vpop.trf.xlu0
  %v489 = vpop.trf.xlu0
  %v490 = vpop.trf.xlu0
  %v491 = vpop.trf.xlu0
  %v492 = vpop.trf.xlu0
  %v493 = vpop.trf.xlu0
  %v494 = vpop.trf.xlu0
  %v495 = vpop.trf.xlu0
  %v496 = vpop.trf.xlu0
  %v497 = vpop.trf.xlu0
  %v498 = vpop.trf.xlu0
  %v499 = vpop.trf.xlu0
  %v500 = vpop.trf.xlu0
  %v501 = vpop.trf.xlu0
  %v502 = vpop.trf.xlu0
  %v504 = vsel %vm263, %v487, 0
  %v507 = vsel %vm263, %v489, 0
  %v510 = vsel %vm263, %v491, 0
  %v513 = vsel %vm263, %v493, 0
  %v516 = vsel %vm263, %v495, 0
  %v519 = vsel %vm263, %v497, 0
  %v522 = vsel %vm263, %v499, 0
  %v525 = vsel %vm263, %v501, 0
  %v528 = vsel %vm263, %v488, 0
  %v531 = vsel %vm263, %v490, 0
  %v534 = vsel %vm263, %v492, 0
  %v537 = vsel %vm263, %v494, 0
  %v540 = vsel %vm263, %v496, 0
  %v543 = vsel %vm263, %v498, 0
  %v546 = vsel %vm263, %v500, 0
  %v549 = vsel %vm263, %v502, 0
  %551 = vmatpush.bf16.msra.mxu0 0
  %552 = vmatpush.bf16.msra.mxu0 0
  %553 = vmatpush.bf16.msra.mxu0 0
  %554 = vmatpush.bf16.msra.mxu0 0
  %555 = vmatpush.bf16.msra.mxu0 0
  %556 = vmatpush.bf16.msra.mxu0 0
  %557 = vmatpush.bf16.msra.mxu0 0
  %558 = vmatpush.bf16.msra.mxu0 %v261
  %559 = vmatmul.bf16.gmra.mxu0 %v504
  %v560 = vpop.f32.mrf.mxu0
  %v561 = vadd.f32 %v221, %v560
  %v562 = vpop.f32.mrf.mxu0
  %v563 = vadd.f32 %v221, %v562
  %564 = vmatmul.bf16.gmra.mxu0 %v507
  %v565 = vpop.f32.mrf.mxu0
  %v566 = vadd.f32 %v221, %v565
  %v567 = vpop.f32.mrf.mxu0
  %v568 = vadd.f32 %v221, %v567
  %569 = vmatmul.bf16.gmra.mxu0 %v510
  %v570 = vpop.f32.mrf.mxu0
  %v571 = vadd.f32 %v221, %v570
  %v572 = vpop.f32.mrf.mxu0
  %v573 = vadd.f32 %v221, %v572
  %574 = vmatmul.bf16.gmra.mxu0 %v513
  %v575 = vpop.f32.mrf.mxu0
  %v576 = vadd.f32 %v221, %v575
  %v577 = vpop.f32.mrf.mxu0
  %v578 = vadd.f32 %v221, %v577
  %579 = vmatmul.bf16.gmra.mxu0 %v516
  %v580 = vpop.f32.mrf.mxu0
  %v581 = vadd.f32 %v221, %v580
  %v582 = vpop.f32.mrf.mxu0
  %v583 = vadd.f32 %v221, %v582
  %584 = vmatmul.bf16.gmra.mxu0 %v519
  %v585 = vpop.f32.mrf.mxu0
  %v586 = vadd.f32 %v221, %v585
  %v587 = vpop.f32.mrf.mxu0
  %v588 = vadd.f32 %v221, %v587
  %589 = vmatmul.bf16.gmra.mxu0 %v522
  %v590 = vpop.f32.mrf.mxu0
  %v591 = vadd.f32 %v221, %v590
  %v592 = vpop.f32.mrf.mxu0
  %v593 = vadd.f32 %v221, %v592
  %594 = vmatmul.bf16.gmra.mxu0 %v525
  %v595 = vpop.f32.mrf.mxu0
  %v596 = vadd.f32 %v221, %v595
  %v597 = vpop.f32.mrf.mxu0
  %v598 = vadd.f32 %v221, %v597
  %599 = vmatmul.bf16.gmra.mxu0 %v528
  %v600 = vpop.f32.mrf.mxu0
  %v601 = vadd.f32 %v221, %v600
  %v602 = vpop.f32.mrf.mxu0
  %v603 = vadd.f32 %v221, %v602
  %604 = vmatmul.bf16.gmra.mxu0 %v531
  %v605 = vpop.f32.mrf.mxu0
  %v606 = vadd.f32 %v221, %v605
  %v607 = vpop.f32.mrf.mxu0
  %v608 = vadd.f32 %v221, %v607
  %609 = vmatmul.bf16.gmra.mxu0 %v534
  %v610 = vpop.f32.mrf.mxu0
  %v611 = vadd.f32 %v221, %v610
  %v612 = vpop.f32.mrf.mxu0
  %v613 = vadd.f32 %v221, %v612
  %614 = vmatmul.bf16.gmra.mxu0 %v537
  %v615 = vpop.f32.mrf.mxu0
  %v616 = vadd.f32 %v221, %v615
  %v617 = vpop.f32.mrf.mxu0
  %v618 = vadd.f32 %v221, %v617
  %619 = vmatmul.bf16.gmra.mxu0 %v540
  %v620 = vpop.f32.mrf.mxu0
  %v621 = vadd.f32 %v221, %v620
  %v622 = vpop.f32.mrf.mxu0
  %v623 = vadd.f32 %v221, %v622
  %624 = vmatmul.bf16.gmra.mxu0 %v543
  %v625 = vpop.f32.mrf.mxu0
  %v626 = vadd.f32 %v221, %v625
  %v627 = vpop.f32.mrf.mxu0
  %v628 = vadd.f32 %v221, %v627
  %629 = vmatmul.bf16.gmra.mxu0 %v546
  %v630 = vpop.f32.mrf.mxu0
  %v631 = vadd.f32 %v221, %v630
  %v632 = vpop.f32.mrf.mxu0
  %v633 = vadd.f32 %v221, %v632
  %634 = vmatmul.bf16.gmra.mxu0 %v549
  %v635 = vpop.f32.mrf.mxu0
  %v636 = vadd.f32 %v221, %v635
  %v637 = vpop.f32.mrf.mxu0
  %v638 = vadd.f32 %v221, %v637
  %639 = vdwg.mxu0
  %v640 = vmax.f32 %v561, 0.0
  %v641 = vmax.f32 %v563, 0.0
  %v642 = vmax.f32 %v566, 0.0
  %v643 = vmax.f32 %v568, 0.0
  %v644 = vmax.f32 %v571, 0.0
  %v645 = vmax.f32 %v573, 0.0
  %v646 = vmax.f32 %v576, 0.0
  %v647 = vmax.f32 %v578, 0.0
  %v648 = vmax.f32 %v581, 0.0
  %v649 = vmax.f32 %v583, 0.0
  %v650 = vmax.f32 %v586, 0.0
  %v651 = vmax.f32 %v588, 0.0
  %v652 = vmax.f32 %v591, 0.0
  %v653 = vmax.f32 %v593, 0.0
  %v654 = vmax.f32 %v596, 0.0
  %v655 = vmax.f32 %v598, 0.0
  %v656 = vmax.f32 %v601, 0.0
  %v657 = vmax.f32 %v603, 0.0
  %v658 = vmax.f32 %v606, 0.0
  %v659 = vmax.f32 %v608, 0.0
  %v660 = vmax.f32 %v611, 0.0
  %v661 = vmax.f32 %v613, 0.0
  %v662 = vmax.f32 %v616, 0.0
  %v663 = vmax.f32 %v618, 0.0
  %v664 = vmax.f32 %v621, 0.0
  %v665 = vmax.f32 %v623, 0.0
  %v666 = vmax.f32 %v626, 0.0
  %v667 = vmax.f32 %v628, 0.0
  %v668 = vmax.f32 %v631, 0.0
  %v669 = vmax.f32 %v633, 0.0
  %v670 = vmax.f32 %v636, 0.0
  %v671 = vmax.f32 %v638, 0.0
  %s672 = scalar_lea.vmem [#allocation2], 608
  %673 = vst [vmem:[%s672 + $0x8] sm:$0xff] %v640
  %674 = vst [vmem:[%s672 + $0x10] sm:$0xff] %v641
  %675 = vst [vmem:[%s672 + $0x28] sm:$0xff] %v642
  %676 = vst [vmem:[%s672 + $0x30] sm:$0xff] %v643
  %677 = vst [vmem:[%s672 + $0x48] sm:$0xff] %v644
  %678 = vst [vmem:[%s672 + $0x50] sm:$0xff] %v645
  %679 = vst [vmem:[%s672 + $0x68] sm:$0xff] %v646
  %680 = vst [vmem:[%s672 + $0x70] sm:$0xff] %v647
  %681 = vst [vmem:[%s672 + $0x88] sm:$0xff] %v648
  %682 = vst [vmem:[%s672 + $0x90] sm:$0xff] %v649
  %683 = vst [vmem:[%s672 + $0xa8] sm:$0xff] %v650
  %684 = vst [vmem:[%s672 + $0xb0] sm:$0xff] %v651
  %685 = vst [vmem:[%s672 + $0xc8] sm:$0xff] %v652
  %686 = vst [vmem:[%s672 + $0xd0] sm:$0xff] %v653
  %687 = vst [vmem:[%s672 + $0xe8] sm:$0xff] %v654
  %688 = vst [vmem:[%s672 + $0xf0] sm:$0xff] %v655
  %689 = vst [vmem:[%s672 + $0x108] sm:$0xff] %v656
  %690 = vst [vmem:[%s672 + $0x110] sm:$0xff] %v657
  %691 = vst [vmem:[%s672 + $0x128] sm:$0xff] %v658
  %692 = vst [vmem:[%s672 + $0x130] sm:$0xff] %v659
  %693 = vst [vmem:[%s672 + $0x148] sm:$0xff] %v660
  %694 = vst [vmem:[%s672 + $0x150] sm:$0xff] %v661
  %695 = vst [vmem:[%s672 + $0x168] sm:$0xff] %v662
  %696 = vst [vmem:[%s672 + $0x170] sm:$0xff] %v663
  %697 = vst [vmem:[%s672 + $0x188] sm:$0xff] %v664
  %698 = vst [vmem:[%s672 + $0x190] sm:$0xff] %v665
  %699 = vst [vmem:[%s672 + $0x1a8] sm:$0xff] %v666
  %700 = vst [vmem:[%s672 + $0x1b0] sm:$0xff] %v667
  %701 = vst [vmem:[%s672 + $0x1c8] sm:$0xff] %v668
  %702 = vst [vmem:[%s672 + $0x1d0] sm:$0xff] %v669
  %703 = vst [vmem:[%s672 + $0x1e8] sm:$0xff] %v670
  %704 = vst [vmem:[%s672 + $0x1f0] sm:$0xff] %v671
  %v705 = vld [vmem:[%s3] sm:$0xff]
  %v706 = vld [vmem:[%s3 + $0x8] sm:$0x1]
  %v707 = vld [vmem:[%s5] sm:$0xff]
  %v708 = vld [vmem:[%s5 + $0x8] sm:$0x1]
  %v709 = vld [vmem:[%s4] sm:$0x1]
  %v710 = vld [vmem:[%s6] sm:$0x1]
  %v711 = vld [vmem:[%s7] sm:$0x1]
  %v712 = vld [vmem:[%s8] sm:$0x3]
  %v713 = vld [vmem:[#allocation2 + $0x7] sm:$0xff]
  %v714 = vld [vmem:[#allocation2 + $0xf] sm:$0xff]
  %v715 = vld [vmem:[#allocation2 + $0x27] sm:$0xff]
  %v716 = vld [vmem:[#allocation2 + $0x2f] sm:$0xff]
  %v717 = vld [vmem:[#allocation2 + $0x47] sm:$0xff]
  %v718 = vld [vmem:[#allocation2 + $0x4f] sm:$0xff]
  %v719 = vld [vmem:[#allocation2 + $0x67] sm:$0xff]
  %v720 = vld [vmem:[#allocation2 + $0x6f] sm:$0xff]
  %v721 = vld [vmem:[#allocation2 + $0x87] sm:$0xff]
  %v722 = vld [vmem:[#allocation2 + $0x8f] sm:$0xff]
  %v723 = vld [vmem:[#allocation2 + $0xa7] sm:$0xff]
  %v724 = vld [vmem:[#allocation2 + $0xaf] sm:$0xff]
  %v725 = vld [vmem:[#allocation2 + $0xc7] sm:$0xff]
  %v726 = vld [vmem:[#allocation2 + $0xcf] sm:$0xff]
  %v727 = vld [vmem:[#allocation2 + $0xe7] sm:$0xff]
  %v728 = vld [vmem:[#allocation2 + $0xef] sm:$0xff]
  %v729 = vperm.slane %v705, 0
  %v730 = vmul.f32 %v713, %v729
  %v731 = vmul.f32 %v714, %v729
  %v732 = vmul.f32 %v715, %v729
  %v733 = vmul.f32 %v716, %v729
  %v734 = vmul.f32 %v717, %v729
  %v735 = vmul.f32 %v718, %v729
  %v736 = vmul.f32 %v719, %v729
  %v737 = vmul.f32 %v720, %v729
  %v738 = vmul.f32 %v721, %v729
  %v739 = vmul.f32 %v722, %v729
  %v740 = vmul.f32 %v723, %v729
  %v741 = vmul.f32 %v724, %v729
  %v742 = vmul.f32 %v725, %v729
  %v743 = vmul.f32 %v726, %v729
  %v744 = vmul.f32 %v727, %v729
  %v745 = vmul.f32 %v728, %v729
  %v746 = vadd.f32 %v730, 0.0
  %v747 = vadd.f32 %v731, 0.0
  %v748 = vadd.f32 %v732, 0.0
  %v749 = vadd.f32 %v733, 0.0
  %v750 = vadd.f32 %v734, 0.0
  %v751 = vadd.f32 %v735, 0.0
  %v752 = vadd.f32 %v736, 0.0
  %v753 = vadd.f32 %v737, 0.0
  %v754 = vadd.f32 %v738, 0.0
  %v755 = vadd.f32 %v739, 0.0
  %v756 = vadd.f32 %v740, 0.0
  %v757 = vadd.f32 %v741, 0.0
  %v758 = vadd.f32 %v742, 0.0
  %v759 = vadd.f32 %v743, 0.0
  %v760 = vadd.f32 %v744, 0.0
  %v761 = vadd.f32 %v745, 0.0
  %v762 = vld [vmem:[#allocation2 + $0x8] sm:$0xff]
  %v763 = vld [vmem:[#allocation2 + $0x10] sm:$0xff]
  %v764 = vld [vmem:[#allocation2 + $0x28] sm:$0xff]
  %v765 = vld [vmem:[#allocation2 + $0x30] sm:$0xff]
  %v766 = vld [vmem:[#allocation2 + $0x48] sm:$0xff]
  %v767 = vld [vmem:[#allocation2 + $0x50] sm:$0xff]
  %v768 = vld [vmem:[#allocation2 + $0x68] sm:$0xff]
  %v769 = vld [vmem:[#allocation2 + $0x70] sm:$0xff]
  %v770 = vld [vmem:[#allocation2 + $0x88] sm:$0xff]
  %v771 = vld [vmem:[#allocation2 + $0x90] sm:$0xff]
  %v772 = vld [vmem:[#allocation2 + $0xa8] sm:$0xff]
  %v773 = vld [vmem:[#allocation2 + $0xb0] sm:$0xff]
  %v774 = vld [vmem:[#allocation2 + $0xc8] sm:$0xff]
  %v775 = vld [vmem:[#allocation2 + $0xd0] sm:$0xff]
  %v776 = vld [vmem:[#allocation2 + $0xe8] sm:$0xff]
  %v777 = vld [vmem:[#allocation2 + $0xf0] sm:$0xff]
  %v778 = vperm.slane %v705, 1
  %v779 = vmul.f32 %v762, %v778
  %v780 = vmul.f32 %v763, %v778
  %v781 = vmul.f32 %v764, %v778
  %v782 = vmul.f32 %v765, %v778
  %v783 = vmul.f32 %v766, %v778
  %v784 = vmul.f32 %v767, %v778
  %v785 = vmul.f32 %v768, %v778
  %v786 = vmul.f32 %v769, %v778
  %v787 = vmul.f32 %v770, %v778
  %v788 = vmul.f32 %v771, %v778
  %v789 = vmul.f32 %v772, %v778
  %v790 = vmul.f32 %v773, %v778
  %v791 = vmul.f32 %v774, %v778
  %v792 = vmul.f32 %v775, %v778
  %v793 = vmul.f32 %v776, %v778
  %v794 = vmul.f32 %v777, %v778
  %v795 = vadd.f32 %v746, %v779
  %v796 = vadd.f32 %v747, %v780
  %v797 = vadd.f32 %v748, %v781
  %v798 = vadd.f32 %v749, %v782
  %v799 = vadd.f32 %v750, %v783
  %v800 = vadd.f32 %v751, %v784
  %v801 = vadd.f32 %v752, %v785
  %v802 = vadd.f32 %v753, %v786
  %v803 = vadd.f32 %v754, %v787
  %v804 = vadd.f32 %v755, %v788
  %v805 = vadd.f32 %v756, %v789
  %v806 = vadd.f32 %v757, %v790
  %v807 = vadd.f32 %v758, %v791
  %v808 = vadd.f32 %v759, %v792
  %v809 = vadd.f32 %v760, %v793
  %v810 = vadd.f32 %v761, %v794
  %v811 = vld [vmem:[#allocation2 + $0x9] sm:$0xff]
  %v812 = vld [vmem:[#allocation2 + $0x11] sm:$0xff]
  %v813 = vld [vmem:[#allocation2 + $0x29] sm:$0xff]
  %v814 = vld [vmem:[#allocation2 + $0x31] sm:$0xff]
  %v815 = vld [vmem:[#allocation2 + $0x49] sm:$0xff]
  %v816 = vld [vmem:[#allocation2 + $0x51] sm:$0xff]
  %v817 = vld [vmem:[#allocation2 + $0x69] sm:$0xff]
  %v818 = vld [vmem:[#allocation2 + $0x71] sm:$0xff]
  %v819 = vld [vmem:[#allocation2 + $0x89] sm:$0xff]
  %v820 = vld [vmem:[#allocation2 + $0x91] sm:$0xff]
  %v821 = vld [vmem:[#allocation2 + $0xa9] sm:$0xff]
  %v822 = vld [vmem:[#allocation2 + $0xb1] sm:$0xff]
  %v823 = vld [vmem:[#allocation2 + $0xc9] sm:$0xff]
  %v824 = vld [vmem:[#allocation2 + $0xd1] sm:$0xff]
  %v825 = vld [vmem:[#allocation2 + $0xe9] sm:$0xff]
  %v826 = vld [vmem:[#allocation2 + $0xf1] sm:$0xff]
  %v827 = vperm.slane %v705, 2
  %v828 = vmul.f32 %v811, %v827
  %v829 = vmul.f32 %v812, %v827
  %v830 = vmul.f32 %v813, %v827
  %v831 = vmul.f32 %v814, %v827
  %v832 = vmul.f32 %v815, %v827
  %v833 = vmul.f32 %v816, %v827
  %v834 = vmul.f32 %v817, %v827
  %v835 = vmul.f32 %v818, %v827
  %v836 = vmul.f32 %v819, %v827
  %v837 = vmul.f32 %v820, %v827
  %v838 = vmul.f32 %v821, %v827
  %v839 = vmul.f32 %v822, %v827
  %v840 = vmul.f32 %v823, %v827
  %v841 = vmul.f32 %v824, %v827
  %v842 = vmul.f32 %v825, %v827
  %v843 = vmul.f32 %v826, %v827
  %v844 = vadd.f32 %v795, %v828
  %v845 = vadd.f32 %v796, %v829
  %v846 = vadd.f32 %v797, %v830
  %v847 = vadd.f32 %v798, %v831
  %v848 = vadd.f32 %v799, %v832
  %v849 = vadd.f32 %v800, %v833
  %v850 = vadd.f32 %v801, %v834
  %v851 = vadd.f32 %v802, %v835
  %v852 = vadd.f32 %v803, %v836
  %v853 = vadd.f32 %v804, %v837
  %v854 = vadd.f32 %v805, %v838
  %v855 = vadd.f32 %v806, %v839
  %v856 = vadd.f32 %v807, %v840
  %v857 = vadd.f32 %v808, %v841
  %v858 = vadd.f32 %v809, %v842
  %v859 = vadd.f32 %v810, %v843
  %v860 = vld [vmem:[%s433 + $0x7] sm:$0xff]
  %v861 = vld [vmem:[%s433 + $0xf] sm:$0xff]
  %v862 = vld [vmem:[%s433 + $0x27] sm:$0xff]
  %v863 = vld [vmem:[%s433 + $0x2f] sm:$0xff]
  %v864 = vld [vmem:[%s433 + $0x47] sm:$0xff]
  %v865 = vld [vmem:[%s433 + $0x4f] sm:$0xff]
  %v866 = vld [vmem:[%s433 + $0x67] sm:$0xff]
  %v867 = vld [vmem:[%s433 + $0x6f] sm:$0xff]
  %v868 = vld [vmem:[%s433 + $0x87] sm:$0xff]
  %v869 = vld [vmem:[%s433 + $0x8f] sm:$0xff]
  %v870 = vld [vmem:[%s433 + $0xa7] sm:$0xff]
  %v871 = vld [vmem:[%s433 + $0xaf] sm:$0xff]
  %v872 = vld [vmem:[%s433 + $0xc7] sm:$0xff]
  %v873 = vld [vmem:[%s433 + $0xcf] sm:$0xff]
  %v874 = vld [vmem:[%s433 + $0xe7] sm:$0xff]
  %v875 = vld [vmem:[%s433 + $0xef] sm:$0xff]
  %v876 = vperm.slane %v705, 3
  %v877 = vmul.f32 %v860, %v876
  %v878 = vmul.f32 %v861, %v876
  %v879 = vmul.f32 %v862, %v876
  %v880 = vmul.f32 %v863, %v876
  %v881 = vmul.f32 %v864, %v876
  %v882 = vmul.f32 %v865, %v876
  %v883 = vmul.f32 %v866, %v876
  %v884 = vmul.f32 %v867, %v876
  %v885 = vmul.f32 %v868, %v876
  %v886 = vmul.f32 %v869, %v876
  %v887 = vmul.f32 %v870, %v876
  %v888 = vmul.f32 %v871, %v876
  %v889 = vmul.f32 %v872, %v876
  %v890 = vmul.f32 %v873, %v876
  %v891 = vmul.f32 %v874, %v876
  %v892 = vmul.f32 %v875, %v876
  %v893 = vadd.f32 %v844, %v877
  %v894 = vadd.f32 %v845, %v878
  %v895 = vadd.f32 %v846, %v879
  %v896 = vadd.f32 %v847, %v880
  %v897 = vadd.f32 %v848, %v881
  %v898 = vadd.f32 %v849, %v882
  %v899 = vadd.f32 %v850, %v883
  %v900 = vadd.f32 %v851, %v884
  %v901 = vadd.f32 %v852, %v885
  %v902 = vadd.f32 %v853, %v886
  %v903 = vadd.f32 %v854, %v887
  %v904 = vadd.f32 %v855, %v888
  %v905 = vadd.f32 %v856, %v889
  %v906 = vadd.f32 %v857, %v890
  %v907 = vadd.f32 %v858, %v891
  %v908 = vadd.f32 %v859, %v892
  %v909 = vld [vmem:[%s433 + $0x8] sm:$0xff]
  %v910 = vld [vmem:[%s433 + $0x10] sm:$0xff]
  %v911 = vld [vmem:[%s433 + $0x28] sm:$0xff]
  %v912 = vld [vmem:[%s433 + $0x30] sm:$0xff]
  %v913 = vld [vmem:[%s433 + $0x48] sm:$0xff]
  %v914 = vld [vmem:[%s433 + $0x50] sm:$0xff]
  %v915 = vld [vmem:[%s433 + $0x68] sm:$0xff]
  %v916 = vld [vmem:[%s433 + $0x70] sm:$0xff]
  %v917 = vld [vmem:[%s433 + $0x88] sm:$0xff]
  %v918 = vld [vmem:[%s433 + $0x90] sm:$0xff]
  %v919 = vld [vmem:[%s433 + $0xa8] sm:$0xff]
  %v920 = vld [vmem:[%s433 + $0xb0] sm:$0xff]
  %v921 = vld [vmem:[%s433 + $0xc8] sm:$0xff]
  %v922 = vld [vmem:[%s433 + $0xd0] sm:$0xff]
  %v923 = vld [vmem:[%s433 + $0xe8] sm:$0xff]
  %v924 = vld [vmem:[%s433 + $0xf0] sm:$0xff]
  %v925 = vperm.slane %v705, 4
  %v926 = vmul.f32 %v909, %v925
  %v927 = vmul.f32 %v910, %v925
  %v928 = vmul.f32 %v911, %v925
  %v929 = vmul.f32 %v912, %v925
  %v930 = vmul.f32 %v913, %v925
  %v931 = vmul.f32 %v914, %v925
  %v932 = vmul.f32 %v915, %v925
  %v933 = vmul.f32 %v916, %v925
  %v934 = vmul.f32 %v917, %v925
  %v935 = vmul.f32 %v918, %v925
  %v936 = vmul.f32 %v919, %v925
  %v937 = vmul.f32 %v920, %v925
  %v938 = vmul.f32 %v921, %v925
  %v939 = vmul.f32 %v922, %v925
  %v940 = vmul.f32 %v923, %v925
  %v941 = vmul.f32 %v924, %v925
  %v942 = vadd.f32 %v893, %v926
  %v943 = vadd.f32 %v894, %v927
  %v944 = vadd.f32 %v895, %v928
  %v945 = vadd.f32 %v896, %v929
  %v946 = vadd.f32 %v897, %v930
  %v947 = vadd.f32 %v898, %v931
  %v948 = vadd.f32 %v899, %v932
  %v949 = vadd.f32 %v900, %v933
  %v950 = vadd.f32 %v901, %v934
  %v951 = vadd.f32 %v902, %v935
  %v952 = vadd.f32 %v903, %v936
  %v953 = vadd.f32 %v904, %v937
  %v954 = vadd.f32 %v905, %v938
  %v955 = vadd.f32 %v906, %v939
  %v956 = vadd.f32 %v907, %v940
  %v957 = vadd.f32 %v908, %v941
  %v958 = vld [vmem:[%s433 + $0x9] sm:$0xff]
  %v959 = vld [vmem:[%s433 + $0x11] sm:$0xff]
  %v960 = vld [vmem:[%s433 + $0x29] sm:$0xff]
  %v961 = vld [vmem:[%s433 + $0x31] sm:$0xff]
  %v962 = vld [vmem:[%s433 + $0x49] sm:$0xff]
  %v963 = vld [vmem:[%s433 + $0x51] sm:$0xff]
  %v964 = vld [vmem:[%s433 + $0x69] sm:$0xff]
  %v965 = vld [vmem:[%s433 + $0x71] sm:$0xff]
  %v966 = vld [vmem:[%s433 + $0x89] sm:$0xff]
  %v967 = vld [vmem:[%s433 + $0x91] sm:$0xff]
  %v968 = vld [vmem:[%s433 + $0xa9] sm:$0xff]
  %v969 = vld [vmem:[%s433 + $0xb1] sm:$0xff]
  %v970 = vld [vmem:[%s433 + $0xc9] sm:$0xff]
  %v971 = vld [vmem:[%s433 + $0xd1] sm:$0xff]
  %v972 = vld [vmem:[%s433 + $0xe9] sm:$0xff]
  %v973 = vld [vmem:[%s433 + $0xf1] sm:$0xff]
  %v974 = vperm.slane %v705, 5
  %v975 = vmul.f32 %v958, %v974
  %v976 = vmul.f32 %v959, %v974
  %v977 = vmul.f32 %v960, %v974
  %v978 = vmul.f32 %v961, %v974
  %v979 = vmul.f32 %v962, %v974
  %v980 = vmul.f32 %v963, %v974
  %v981 = vmul.f32 %v964, %v974
  %v982 = vmul.f32 %v965, %v974
  %v983 = vmul.f32 %v966, %v974
  %v984 = vmul.f32 %v967, %v974
  %v985 = vmul.f32 %v968, %v974
  %v986 = vmul.f32 %v969, %v974
  %v987 = vmul.f32 %v970, %v974
  %v988 = vmul.f32 %v971, %v974
  %v989 = vmul.f32 %v972, %v974
  %v990 = vmul.f32 %v973, %v974
  %v991 = vadd.f32 %v942, %v975
  %v992 = vadd.f32 %v943, %v976
  %v993 = vadd.f32 %v944, %v977
  %v994 = vadd.f32 %v945, %v978
  %v995 = vadd.f32 %v946, %v979
  %v996 = vadd.f32 %v947, %v980
  %v997 = vadd.f32 %v948, %v981
  %v998 = vadd.f32 %v949, %v982
  %v999 = vadd.f32 %v950, %v983
  %v1000 = vadd.f32 %v951, %v984
  %v1001 = vadd.f32 %v952, %v985
  %v1002 = vadd.f32 %v953, %v986
  %v1003 = vadd.f32 %v954, %v987
  %v1004 = vadd.f32 %v955, %v988
  %v1005 = vadd.f32 %v956, %v989
  %v1006 = vadd.f32 %v957, %v990
  %s1007 = scalar_lea.vmem [#allocation2], 64
  %v1008 = vld [vmem:[%s1007 + $0x7] sm:$0xff]
  %v1009 = vld [vmem:[%s1007 + $0xf] sm:$0xff]
  %v1010 = vld [vmem:[%s1007 + $0x27] sm:$0xff]
  %v1011 = vld [vmem:[%s1007 + $0x2f] sm:$0xff]
  %v1012 = vld [vmem:[%s1007 + $0x47] sm:$0xff]
  %v1013 = vld [vmem:[%s1007 + $0x4f] sm:$0xff]
  %v1014 = vld [vmem:[%s1007 + $0x67] sm:$0xff]
  %v1015 = vld [vmem:[%s1007 + $0x6f] sm:$0xff]
  %v1016 = vld [vmem:[%s1007 + $0x87] sm:$0xff]
  %v1017 = vld [vmem:[%s1007 + $0x8f] sm:$0xff]
  %v1018 = vld [vmem:[%s1007 + $0xa7] sm:$0xff]
  %v1019 = vld [vmem:[%s1007 + $0xaf] sm:$0xff]
  %v1020 = vld [vmem:[%s1007 + $0xc7] sm:$0xff]
  %v1021 = vld [vmem:[%s1007 + $0xcf] sm:$0xff]
  %v1022 = vld [vmem:[%s1007 + $0xe7] sm:$0xff]
  %v1023 = vld [vmem:[%s1007 + $0xef] sm:$0xff]
  %v1024 = vperm.slane %v705, 6
  %v1025 = vmul.f32 %v1008, %v1024
  %v1026 = vmul.f32 %v1009, %v1024
  %v1027 = vmul.f32 %v1010, %v1024
  %v1028 = vmul.f32 %v1011, %v1024
  %v1029 = vmul.f32 %v1012, %v1024
  %v1030 = vmul.f32 %v1013, %v1024
  %v1031 = vmul.f32 %v1014, %v1024
  %v1032 = vmul.f32 %v1015, %v1024
  %v1033 = vmul.f32 %v1016, %v1024
  %v1034 = vmul.f32 %v1017, %v1024
  %v1035 = vmul.f32 %v1018, %v1024
  %v1036 = vmul.f32 %v1019, %v1024
  %v1037 = vmul.f32 %v1020, %v1024
  %v1038 = vmul.f32 %v1021, %v1024
  %v1039 = vmul.f32 %v1022, %v1024
  %v1040 = vmul.f32 %v1023, %v1024
  %v1041 = vadd.f32 %v991, %v1025
  %v1042 = vadd.f32 %v992, %v1026
  %v1043 = vadd.f32 %v993, %v1027
  %v1044 = vadd.f32 %v994, %v1028
  %v1045 = vadd.f32 %v995, %v1029
  %v1046 = vadd.f32 %v996, %v1030
  %v1047 = vadd.f32 %v997, %v1031
  %v1048 = vadd.f32 %v998, %v1032
  %v1049 = vadd.f32 %v999, %v1033
  %v1050 = vadd.f32 %v1000, %v1034
  %v1051 = vadd.f32 %v1001, %v1035
  %v1052 = vadd.f32 %v1002, %v1036
  %v1053 = vadd.f32 %v1003, %v1037
  %v1054 = vadd.f32 %v1004, %v1038
  %v1055 = vadd.f32 %v1005, %v1039
  %v1056 = vadd.f32 %v1006, %v1040
  %v1057 = vld [vmem:[%s1007 + $0x8] sm:$0xff]
  %v1058 = vld [vmem:[%s1007 + $0x10] sm:$0xff]
  %v1059 = vld [vmem:[%s1007 + $0x28] sm:$0xff]
  %v1060 = vld [vmem:[%s1007 + $0x30] sm:$0xff]
  %v1061 = vld [vmem:[%s1007 + $0x48] sm:$0xff]
  %v1062 = vld [vmem:[%s1007 + $0x50] sm:$0xff]
  %v1063 = vld [vmem:[%s1007 + $0x68] sm:$0xff]
  %v1064 = vld [vmem:[%s1007 + $0x70] sm:$0xff]
  %v1065 = vld [vmem:[%s1007 + $0x88] sm:$0xff]
  %v1066 = vld [vmem:[%s1007 + $0x90] sm:$0xff]
  %v1067 = vld [vmem:[%s1007 + $0xa8] sm:$0xff]
  %v1068 = vld [vmem:[%s1007 + $0xb0] sm:$0xff]
  %v1069 = vld [vmem:[%s1007 + $0xc8] sm:$0xff]
  %v1070 = vld [vmem:[%s1007 + $0xd0] sm:$0xff]
  %v1071 = vld [vmem:[%s1007 + $0xe8] sm:$0xff]
  %v1072 = vld [vmem:[%s1007 + $0xf0] sm:$0xff]
  %v1073 = vperm.slane %v705, 7
  %v1074 = vmul.f32 %v1057, %v1073
  %v1075 = vmul.f32 %v1058, %v1073
  %v1076 = vmul.f32 %v1059, %v1073
  %v1077 = vmul.f32 %v1060, %v1073
  %v1078 = vmul.f32 %v1061, %v1073
  %v1079 = vmul.f32 %v1062, %v1073
  %v1080 = vmul.f32 %v1063, %v1073
  %v1081 = vmul.f32 %v1064, %v1073
  %v1082 = vmul.f32 %v1065, %v1073
  %v1083 = vmul.f32 %v1066, %v1073
  %v1084 = vmul.f32 %v1067, %v1073
  %v1085 = vmul.f32 %v1068, %v1073
  %v1086 = vmul.f32 %v1069, %v1073
  %v1087 = vmul.f32 %v1070, %v1073
  %v1088 = vmul.f32 %v1071, %v1073
  %v1089 = vmul.f32 %v1072, %v1073
  %v1090 = vadd.f32 %v1041, %v1074
  %v1091 = vadd.f32 %v1042, %v1075
  %v1092 = vadd.f32 %v1043, %v1076
  %v1093 = vadd.f32 %v1044, %v1077
  %v1094 = vadd.f32 %v1045, %v1078
  %v1095 = vadd.f32 %v1046, %v1079
  %v1096 = vadd.f32 %v1047, %v1080
  %v1097 = vadd.f32 %v1048, %v1081
  %v1098 = vadd.f32 %v1049, %v1082
  %v1099 = vadd.f32 %v1050, %v1083
  %v1100 = vadd.f32 %v1051, %v1084
  %v1101 = vadd.f32 %v1052, %v1085
  %v1102 = vadd.f32 %v1053, %v1086
  %v1103 = vadd.f32 %v1054, %v1087
  %v1104 = vadd.f32 %v1055, %v1088
  %v1105 = vadd.f32 %v1056, %v1089
  %v1106 = vld [vmem:[%s1007 + $0x9] sm:$0xff]
  %v1107 = vld [vmem:[%s1007 + $0x11] sm:$0xff]
  %v1108 = vld [vmem:[%s1007 + $0x29] sm:$0xff]
  %v1109 = vld [vmem:[%s1007 + $0x31] sm:$0xff]
  %v1110 = vld [vmem:[%s1007 + $0x49] sm:$0xff]
  %v1111 = vld [vmem:[%s1007 + $0x51] sm:$0xff]
  %v1112 = vld [vmem:[%s1007 + $0x69] sm:$0xff]
  %v1113 = vld [vmem:[%s1007 + $0x71] sm:$0xff]
  %v1114 = vld [vmem:[%s1007 + $0x89] sm:$0xff]
  %v1115 = vld [vmem:[%s1007 + $0x91] sm:$0xff]
  %v1116 = vld [vmem:[%s1007 + $0xa9] sm:$0xff]
  %v1117 = vld [vmem:[%s1007 + $0xb1] sm:$0xff]
  %v1118 = vld [vmem:[%s1007 + $0xc9] sm:$0xff]
  %v1119 = vld [vmem:[%s1007 + $0xd1] sm:$0xff]
  %v1120 = vld [vmem:[%s1007 + $0xe9] sm:$0xff]
  %v1121 = vld [vmem:[%s1007 + $0xf1] sm:$0xff]
  %v1122 = vperm.slane %v706, 0
  %v1123 = vmul.f32 %v1106, %v1122
  %v1124 = vmul.f32 %v1107, %v1122
  %v1125 = vmul.f32 %v1108, %v1122
  %v1126 = vmul.f32 %v1109, %v1122
  %v1127 = vmul.f32 %v1110, %v1122
  %v1128 = vmul.f32 %v1111, %v1122
  %v1129 = vmul.f32 %v1112, %v1122
  %v1130 = vmul.f32 %v1113, %v1122
  %v1131 = vmul.f32 %v1114, %v1122
  %v1132 = vmul.f32 %v1115, %v1122
  %v1133 = vmul.f32 %v1116, %v1122
  %v1134 = vmul.f32 %v1117, %v1122
  %v1135 = vmul.f32 %v1118, %v1122
  %v1136 = vmul.f32 %v1119, %v1122
  %v1137 = vmul.f32 %v1120, %v1122
  %v1138 = vmul.f32 %v1121, %v1122
  %v1139 = vadd.f32 %v1090, %v1123
  %v1140 = vadd.f32 %v1091, %v1124
  %v1141 = vadd.f32 %v1092, %v1125
  %v1142 = vadd.f32 %v1093, %v1126
  %v1143 = vadd.f32 %v1094, %v1127
  %v1144 = vadd.f32 %v1095, %v1128
  %v1145 = vadd.f32 %v1096, %v1129
  %v1146 = vadd.f32 %v1097, %v1130
  %v1147 = vadd.f32 %v1098, %v1131
  %v1148 = vadd.f32 %v1099, %v1132
  %v1149 = vadd.f32 %v1100, %v1133
  %v1150 = vadd.f32 %v1101, %v1134
  %v1151 = vadd.f32 %v1102, %v1135
  %v1152 = vadd.f32 %v1103, %v1136
  %v1153 = vadd.f32 %v1104, %v1137
  %v1154 = vadd.f32 %v1105, %v1138
  %v1156 = vperm.slane %v709, 0
  %v1158 = vadd.f32 %v1139, %v1156
  %v1159 = vadd.f32 %v1140, %v1156
  %v1160 = vadd.f32 %v1141, %v1156
  %v1161 = vadd.f32 %v1142, %v1156
  %v1162 = vadd.f32 %v1143, %v1156
  %v1163 = vadd.f32 %v1144, %v1156
  %v1164 = vadd.f32 %v1145, %v1156
  %v1165 = vadd.f32 %v1146, %v1156
  %v1166 = vadd.f32 %v1147, %v1156
  %v1167 = vadd.f32 %v1148, %v1156
  %v1168 = vadd.f32 %v1149, %v1156
  %v1169 = vadd.f32 %v1150, %v1156
  %v1170 = vadd.f32 %v1151, %v1156
  %v1171 = vadd.f32 %v1152, %v1156
  %v1172 = vadd.f32 %v1153, %v1156
  %v1173 = vadd.f32 %v1154, %v1156
  %v1174 = vmax.f32 %v1158, 0.0
  %v1175 = vmax.f32 %v1159, 0.0
  %v1176 = vmax.f32 %v1160, 0.0
  %v1177 = vmax.f32 %v1161, 0.0
  %v1178 = vmax.f32 %v1162, 0.0
  %v1179 = vmax.f32 %v1163, 0.0
  %v1180 = vmax.f32 %v1164, 0.0
  %v1181 = vmax.f32 %v1165, 0.0
  %v1182 = vmax.f32 %v1166, 0.0
  %v1183 = vmax.f32 %v1167, 0.0
  %v1184 = vmax.f32 %v1168, 0.0
  %v1185 = vmax.f32 %v1169, 0.0
  %v1186 = vmax.f32 %v1170, 0.0
  %v1187 = vmax.f32 %v1171, 0.0
  %v1188 = vmax.f32 %v1172, 0.0
  %v1189 = vmax.f32 %v1173, 0.0
  %s1190 = scalar_lea.vmem [#allocation3], 32
  %1191 = vst [vmem:[%s1190 + $0x8] sm:$0xff] %v1174
  %1192 = vst [vmem:[%s1190 + $0x10] sm:$0xff] %v1175
  %1193 = vst [vmem:[%s1190 + $0x28] sm:$0xff] %v1176
  %1194 = vst [vmem:[%s1190 + $0x30] sm:$0xff] %v1177
  %1195 = vst [vmem:[%s1190 + $0x48] sm:$0xff] %v1178
  %1196 = vst [vmem:[%s1190 + $0x50] sm:$0xff] %v1179
  %1197 = vst [vmem:[%s1190 + $0x68] sm:$0xff] %v1180
  %1198 = vst [vmem:[%s1190 + $0x70] sm:$0xff] %v1181
  %1199 = vst [vmem:[%s1190 + $0x88] sm:$0xff] %v1182
  %1200 = vst [vmem:[%s1190 + $0x90] sm:$0xff] %v1183
  %1201 = vst [vmem:[%s1190 + $0xa8] sm:$0xff] %v1184
  %1202 = vst [vmem:[%s1190 + $0xb0] sm:$0xff] %v1185
  %1203 = vst [vmem:[%s1190 + $0xc8] sm:$0xff] %v1186
  %1204 = vst [vmem:[%s1190 + $0xd0] sm:$0xff] %v1187
  %1205 = vst [vmem:[%s1190 + $0xe8] sm:$0xff] %v1188
  %1206 = vst [vmem:[%s1190 + $0xf0] sm:$0xff] %v1189
  %s1207 = scalar_lea.vmem [#allocation2], 256
  %v1208 = vld [vmem:[%s1207 + $0x7] sm:$0xff]
  %v1209 = vld [vmem:[%s1207 + $0xf] sm:$0xff]
  %v1210 = vld [vmem:[%s1207 + $0x27] sm:$0xff]
  %v1211 = vld [vmem:[%s1207 + $0x2f] sm:$0xff]
  %v1212 = vld [vmem:[%s1207 + $0x47] sm:$0xff]
  %v1213 = vld [vmem:[%s1207 + $0x4f] sm:$0xff]
  %v1214 = vld [vmem:[%s1207 + $0x67] sm:$0xff]
  %v1215 = vld [vmem:[%s1207 + $0x6f] sm:$0xff]
  %v1216 = vld [vmem:[%s1207 + $0x87] sm:$0xff]
  %v1217 = vld [vmem:[%s1207 + $0x8f] sm:$0xff]
  %v1218 = vld [vmem:[%s1207 + $0xa7] sm:$0xff]
  %v1219 = vld [vmem:[%s1207 + $0xaf] sm:$0xff]
  %v1220 = vld [vmem:[%s1207 + $0xc7] sm:$0xff]
  %v1221 = vld [vmem:[%s1207 + $0xcf] sm:$0xff]
  %v1222 = vld [vmem:[%s1207 + $0xe7] sm:$0xff]
  %v1223 = vld [vmem:[%s1207 + $0xef] sm:$0xff]
  %v1224 = vmul.f32 %v1208, %v729
  %v1225 = vmul.f32 %v1209, %v729
  %v1226 = vmul.f32 %v1210, %v729
  %v1227 = vmul.f32 %v1211, %v729
  %v1228 = vmul.f32 %v1212, %v729
  %v1229 = vmul.f32 %v1213, %v729
  %v1230 = vmul.f32 %v1214, %v729
  %v1231 = vmul.f32 %v1215, %v729
  %v1232 = vmul.f32 %v1216, %v729
  %v1233 = vmul.f32 %v1217, %v729
  %v1234 = vmul.f32 %v1218, %v729
  %v1235 = vmul.f32 %v1219, %v729
  %v1236 = vmul.f32 %v1220, %v729
  %v1237 = vmul.f32 %v1221, %v729
  %v1238 = vmul.f32 %v1222, %v729
  %v1239 = vmul.f32 %v1223, %v729
  %v1240 = vadd.f32 %v1224, 0.0
  %v1241 = vadd.f32 %v1225, 0.0
  %v1242 = vadd.f32 %v1226, 0.0
  %v1243 = vadd.f32 %v1227, 0.0
  %v1244 = vadd.f32 %v1228, 0.0
  %v1245 = vadd.f32 %v1229, 0.0
  %v1246 = vadd.f32 %v1230, 0.0
  %v1247 = vadd.f32 %v1231, 0.0
  %v1248 = vadd.f32 %v1232, 0.0
  %v1249 = vadd.f32 %v1233, 0.0
  %v1250 = vadd.f32 %v1234, 0.0
  %v1251 = vadd.f32 %v1235, 0.0
  %v1252 = vadd.f32 %v1236, 0.0
  %v1253 = vadd.f32 %v1237, 0.0
  %v1254 = vadd.f32 %v1238, 0.0
  %v1255 = vadd.f32 %v1239, 0.0
  %v1256 = vld [vmem:[%s1207 + $0x8] sm:$0xff]
  %v1257 = vld [vmem:[%s1207 + $0x10] sm:$0xff]
  %v1258 = vld [vmem:[%s1207 + $0x28] sm:$0xff]
  %v1259 = vld [vmem:[%s1207 + $0x30] sm:$0xff]
  %v1260 = vld [vmem:[%s1207 + $0x48] sm:$0xff]
  %v1261 = vld [vmem:[%s1207 + $0x50] sm:$0xff]
  %v1262 = vld [vmem:[%s1207 + $0x68] sm:$0xff]
  %v1263 = vld [vmem:[%s1207 + $0x70] sm:$0xff]
  %v1264 = vld [vmem:[%s1207 + $0x88] sm:$0xff]
  %v1265 = vld [vmem:[%s1207 + $0x90] sm:$0xff]
  %v1266 = vld [vmem:[%s1207 + $0xa8] sm:$0xff]
  %v1267 = vld [vmem:[%s1207 + $0xb0] sm:$0xff]
  %v1268 = vld [vmem:[%s1207 + $0xc8] sm:$0xff]
  %v1269 = vld [vmem:[%s1207 + $0xd0] sm:$0xff]
  %v1270 = vld [vmem:[%s1207 + $0xe8] sm:$0xff]
  %v1271 = vld [vmem:[%s1207 + $0xf0] sm:$0xff]
  %v1272 = vmul.f32 %v1256, %v778
  %v1273 = vmul.f32 %v1257, %v778
  %v1274 = vmul.f32 %v1258, %v778
  %v1275 = vmul.f32 %v1259, %v778
  %v1276 = vmul.f32 %v1260, %v778
  %v1277 = vmul.f32 %v1261, %v778
  %v1278 = vmul.f32 %v1262, %v778
  %v1279 = vmul.f32 %v1263, %v778
  %v1280 = vmul.f32 %v1264, %v778
  %v1281 = vmul.f32 %v1265, %v778
  %v1282 = vmul.f32 %v1266, %v778
  %v1283 = vmul.f32 %v1267, %v778
  %v1284 = vmul.f32 %v1268, %v778
  %v1285 = vmul.f32 %v1269, %v778
  %v1286 = vmul.f32 %v1270, %v778
  %v1287 = vmul.f32 %v1271, %v778
  %v1288 = vadd.f32 %v1240, %v1272
  %v1289 = vadd.f32 %v1241, %v1273
  %v1290 = vadd.f32 %v1242, %v1274
  %v1291 = vadd.f32 %v1243, %v1275
  %v1292 = vadd.f32 %v1244, %v1276
  %v1293 = vadd.f32 %v1245, %v1277
  %v1294 = vadd.f32 %v1246, %v1278
  %v1295 = vadd.f32 %v1247, %v1279
  %v1296 = vadd.f32 %v1248, %v1280
  %v1297 = vadd.f32 %v1249, %v1281
  %v1298 = vadd.f32 %v1250, %v1282
  %v1299 = vadd.f32 %v1251, %v1283
  %v1300 = vadd.f32 %v1252, %v1284
  %v1301 = vadd.f32 %v1253, %v1285
  %v1302 = vadd.f32 %v1254, %v1286
  %v1303 = vadd.f32 %v1255, %v1287
  %v1304 = vld [vmem:[%s1207 + $0x9] sm:$0xff]
  %v1305 = vld [vmem:[%s1207 + $0x11] sm:$0xff]
  %v1306 = vld [vmem:[%s1207 + $0x29] sm:$0xff]
  %v1307 = vld [vmem:[%s1207 + $0x31] sm:$0xff]
  %v1308 = vld [vmem:[%s1207 + $0x49] sm:$0xff]
  %v1309 = vld [vmem:[%s1207 + $0x51] sm:$0xff]
  %v1310 = vld [vmem:[%s1207 + $0x69] sm:$0xff]
  %v1311 = vld [vmem:[%s1207 + $0x71] sm:$0xff]
  %v1312 = vld [vmem:[%s1207 + $0x89] sm:$0xff]
  %v1313 = vld [vmem:[%s1207 + $0x91] sm:$0xff]
  %v1314 = vld [vmem:[%s1207 + $0xa9] sm:$0xff]
  %v1315 = vld [vmem:[%s1207 + $0xb1] sm:$0xff]
  %v1316 = vld [vmem:[%s1207 + $0xc9] sm:$0xff]
  %v1317 = vld [vmem:[%s1207 + $0xd1] sm:$0xff]
  %v1318 = vld [vmem:[%s1207 + $0xe9] sm:$0xff]
  %v1319 = vld [vmem:[%s1207 + $0xf1] sm:$0xff]
  %v1320 = vmul.f32 %v1304, %v827
  %v1321 = vmul.f32 %v1305, %v827
  %v1322 = vmul.f32 %v1306, %v827
  %v1323 = vmul.f32 %v1307, %v827
  %v1324 = vmul.f32 %v1308, %v827
  %v1325 = vmul.f32 %v1309, %v827
  %v1326 = vmul.f32 %v1310, %v827
  %v1327 = vmul.f32 %v1311, %v827
  %v1328 = vmul.f32 %v1312, %v827
  %v1329 = vmul.f32 %v1313, %v827
  %v1330 = vmul.f32 %v1314, %v827
  %v1331 = vmul.f32 %v1315, %v827
  %v1332 = vmul.f32 %v1316, %v827
  %v1333 = vmul.f32 %v1317, %v827
  %v1334 = vmul.f32 %v1318, %v827
  %v1335 = vmul.f32 %v1319, %v827
  %v1336 = vadd.f32 %v1288, %v1320
  %v1337 = vadd.f32 %v1289, %v1321
  %v1338 = vadd.f32 %v1290, %v1322
  %v1339 = vadd.f32 %v1291, %v1323
  %v1340 = vadd.f32 %v1292, %v1324
  %v1341 = vadd.f32 %v1293, %v1325
  %v1342 = vadd.f32 %v1294, %v1326
  %v1343 = vadd.f32 %v1295, %v1327
  %v1344 = vadd.f32 %v1296, %v1328
  %v1345 = vadd.f32 %v1297, %v1329
  %v1346 = vadd.f32 %v1298, %v1330
  %v1347 = vadd.f32 %v1299, %v1331
  %v1348 = vadd.f32 %v1300, %v1332
  %v1349 = vadd.f32 %v1301, %v1333
  %v1350 = vadd.f32 %v1302, %v1334
  %v1351 = vadd.f32 %v1303, %v1335
  %s1352 = scalar_lea.vmem [#allocation2], 288
  %v1353 = vld [vmem:[%s1352 + $0x7] sm:$0xff]
  %v1354 = vld [vmem:[%s1352 + $0xf] sm:$0xff]
  %v1355 = vld [vmem:[%s1352 + $0x27] sm:$0xff]
  %v1356 = vld [vmem:[%s1352 + $0x2f] sm:$0xff]
  %v1357 = vld [vmem:[%s1352 + $0x47] sm:$0xff]
  %v1358 = vld [vmem:[%s1352 + $0x4f] sm:$0xff]
  %v1359 = vld [vmem:[%s1352 + $0x67] sm:$0xff]
  %v1360 = vld [vmem:[%s1352 + $0x6f] sm:$0xff]
  %v1361 = vld [vmem:[%s1352 + $0x87] sm:$0xff]
  %v1362 = vld [vmem:[%s1352 + $0x8f] sm:$0xff]
  %v1363 = vld [vmem:[%s1352 + $0xa7] sm:$0xff]
  %v1364 = vld [vmem:[%s1352 + $0xaf] sm:$0xff]
  %v1365 = vld [vmem:[%s1352 + $0xc7] sm:$0xff]
  %v1366 = vld [vmem:[%s1352 + $0xcf] sm:$0xff]
  %v1367 = vld [vmem:[%s1352 + $0xe7] sm:$0xff]
  %v1368 = vld [vmem:[%s1352 + $0xef] sm:$0xff]
  %v1369 = vmul.f32 %v1353, %v876
  %v1370 = vmul.f32 %v1354, %v876
  %v1371 = vmul.f32 %v1355, %v876
  %v1372 = vmul.f32 %v1356, %v876
  %v1373 = vmul.f32 %v1357, %v876
  %v1374 = vmul.f32 %v1358, %v876
  %v1375 = vmul.f32 %v1359, %v876
  %v1376 = vmul.f32 %v1360, %v876
  %v1377 = vmul.f32 %v1361, %v876
  %v1378 = vmul.f32 %v1362, %v876
  %v1379 = vmul.f32 %v1363, %v876
  %v1380 = vmul.f32 %v1364, %v876
  %v1381 = vmul.f32 %v1365, %v876
  %v1382 = vmul.f32 %v1366, %v876
  %v1383 = vmul.f32 %v1367, %v876
  %v1384 = vmul.f32 %v1368, %v876
  %v1385 = vadd.f32 %v1336, %v1369
  %v1386 = vadd.f32 %v1337, %v1370
  %v1387 = vadd.f32 %v1338, %v1371
  %v1388 = vadd.f32 %v1339, %v1372
  %v1389 = vadd.f32 %v1340, %v1373
  %v1390 = vadd.f32 %v1341, %v1374
  %v1391 = vadd.f32 %v1342, %v1375
  %v1392 = vadd.f32 %v1343, %v1376
  %v1393 = vadd.f32 %v1344, %v1377
  %v1394 = vadd.f32 %v1345, %v1378
  %v1395 = vadd.f32 %v1346, %v1379
  %v1396 = vadd.f32 %v1347, %v1380
  %v1397 = vadd.f32 %v1348, %v1381
  %v1398 = vadd.f32 %v1349, %v1382
  %v1399 = vadd.f32 %v1350, %v1383
  %v1400 = vadd.f32 %v1351, %v1384
  %v1401 = vld [vmem:[%s1352 + $0x8] sm:$0xff]
  %v1402 = vld [vmem:[%s1352 + $0x10] sm:$0xff]
  %v1403 = vld [vmem:[%s1352 + $0x28] sm:$0xff]
  %v1404 = vld [vmem:[%s1352 + $0x30] sm:$0xff]
  %v1405 = vld [vmem:[%s1352 + $0x48] sm:$0xff]
  %v1406 = vld [vmem:[%s1352 + $0x50] sm:$0xff]
  %v1407 = vld [vmem:[%s1352 + $0x68] sm:$0xff]
  %v1408 = vld [vmem:[%s1352 + $0x70] sm:$0xff]
  %v1409 = vld [vmem:[%s1352 + $0x88] sm:$0xff]
  %v1410 = vld [vmem:[%s1352 + $0x90] sm:$0xff]
  %v1411 = vld [vmem:[%s1352 + $0xa8] sm:$0xff]
  %v1412 = vld [vmem:[%s1352 + $0xb0] sm:$0xff]
  %v1413 = vld [vmem:[%s1352 + $0xc8] sm:$0xff]
  %v1414 = vld [vmem:[%s1352 + $0xd0] sm:$0xff]
  %v1415 = vld [vmem:[%s1352 + $0xe8] sm:$0xff]
  %v1416 = vld [vmem:[%s1352 + $0xf0] sm:$0xff]
  %v1417 = vmul.f32 %v1401, %v925
  %v1418 = vmul.f32 %v1402, %v925
  %v1419 = vmul.f32 %v1403, %v925
  %v1420 = vmul.f32 %v1404, %v925
  %v1421 = vmul.f32 %v1405, %v925
  %v1422 = vmul.f32 %v1406, %v925
  %v1423 = vmul.f32 %v1407, %v925
  %v1424 = vmul.f32 %v1408, %v925
  %v1425 = vmul.f32 %v1409, %v925
  %v1426 = vmul.f32 %v1410, %v925
  %v1427 = vmul.f32 %v1411, %v925
  %v1428 = vmul.f32 %v1412, %v925
  %v1429 = vmul.f32 %v1413, %v925
  %v1430 = vmul.f32 %v1414, %v925
  %v1431 = vmul.f32 %v1415, %v925
  %v1432 = vmul.f32 %v1416, %v925
  %v1433 = vadd.f32 %v1385, %v1417
  %v1434 = vadd.f32 %v1386, %v1418
  %v1435 = vadd.f32 %v1387, %v1419
  %v1436 = vadd.f32 %v1388, %v1420
  %v1437 = vadd.f32 %v1389, %v1421
  %v1438 = vadd.f32 %v1390, %v1422
  %v1439 = vadd.f32 %v1391, %v1423
  %v1440 = vadd.f32 %v1392, %v1424
  %v1441 = vadd.f32 %v1393, %v1425
  %v1442 = vadd.f32 %v1394, %v1426
  %v1443 = vadd.f32 %v1395, %v1427
  %v1444 = vadd.f32 %v1396, %v1428
  %v1445 = vadd.f32 %v1397, %v1429
  %v1446 = vadd.f32 %v1398, %v1430
  %v1447 = vadd.f32 %v1399, %v1431
  %v1448 = vadd.f32 %v1400, %v1432
  %v1449 = vld [vmem:[%s1352 + $0x9] sm:$0xff]
  %v1450 = vld [vmem:[%s1352 + $0x11] sm:$0xff]
  %v1451 = vld [vmem:[%s1352 + $0x29] sm:$0xff]
  %v1452 = vld [vmem:[%s1352 + $0x31] sm:$0xff]
  %v1453 = vld [vmem:[%s1352 + $0x49] sm:$0xff]
  %v1454 = vld [vmem:[%s1352 + $0x51] sm:$0xff]
  %v1455 = vld [vmem:[%s1352 + $0x69] sm:$0xff]
  %v1456 = vld [vmem:[%s1352 + $0x71] sm:$0xff]
  %v1457 = vld [vmem:[%s1352 + $0x89] sm:$0xff]
  %v1458 = vld [vmem:[%s1352 + $0x91] sm:$0xff]
  %v1459 = vld [vmem:[%s1352 + $0xa9] sm:$0xff]
  %v1460 = vld [vmem:[%s1352 + $0xb1] sm:$0xff]
  %v1461 = vld [vmem:[%s1352 + $0xc9] sm:$0xff]
  %v1462 = vld [vmem:[%s1352 + $0xd1] sm:$0xff]
  %v1463 = vld [vmem:[%s1352 + $0xe9] sm:$0xff]
  %v1464 = vld [vmem:[%s1352 + $0xf1] sm:$0xff]
  %v1465 = vmul.f32 %v1449, %v974
  %v1466 = vmul.f32 %v1450, %v974
  %v1467 = vmul.f32 %v1451, %v974
  %v1468 = vmul.f32 %v1452, %v974
  %v1469 = vmul.f32 %v1453, %v974
  %v1470 = vmul.f32 %v1454, %v974
  %v1471 = vmul.f32 %v1455, %v974
  %v1472 = vmul.f32 %v1456, %v974
  %v1473 = vmul.f32 %v1457, %v974
  %v1474 = vmul.f32 %v1458, %v974
  %v1475 = vmul.f32 %v1459, %v974
  %v1476 = vmul.f32 %v1460, %v974
  %v1477 = vmul.f32 %v1461, %v974
  %v1478 = vmul.f32 %v1462, %v974
  %v1479 = vmul.f32 %v1463, %v974
  %v1480 = vmul.f32 %v1464, %v974
  %v1481 = vadd.f32 %v1433, %v1465
  %v1482 = vadd.f32 %v1434, %v1466
  %v1483 = vadd.f32 %v1435, %v1467
  %v1484 = vadd.f32 %v1436, %v1468
  %v1485 = vadd.f32 %v1437, %v1469
  %v1486 = vadd.f32 %v1438, %v1470
  %v1487 = vadd.f32 %v1439, %v1471
  %v1488 = vadd.f32 %v1440, %v1472
  %v1489 = vadd.f32 %v1441, %v1473
  %v1490 = vadd.f32 %v1442, %v1474
  %v1491 = vadd.f32 %v1443, %v1475
  %v1492 = vadd.f32 %v1444, %v1476
  %v1493 = vadd.f32 %v1445, %v1477
  %v1494 = vadd.f32 %v1446, %v1478
  %v1495 = vadd.f32 %v1447, %v1479
  %v1496 = vadd.f32 %v1448, %v1480
  %s1497 = scalar_lea.vmem [#allocation2], 320
  %v1498 = vld [vmem:[%s1497 + $0x7] sm:$0xff]
  %v1499 = vld [vmem:[%s1497 + $0xf] sm:$0xff]
  %v1500 = vld [vmem:[%s1497 + $0x27] sm:$0xff]
  %v1501 = vld [vmem:[%s1497 + $0x2f] sm:$0xff]
  %v1502 = vld [vmem:[%s1497 + $0x47] sm:$0xff]
  %v1503 = vld [vmem:[%s1497 + $0x4f] sm:$0xff]
  %v1504 = vld [vmem:[%s1497 + $0x67] sm:$0xff]
  %v1505 = vld [vmem:[%s1497 + $0x6f] sm:$0xff]
  %v1506 = vld [vmem:[%s1497 + $0x87] sm:$0xff]
  %v1507 = vld [vmem:[%s1497 + $0x8f] sm:$0xff]
  %v1508 = vld [vmem:[%s1497 + $0xa7] sm:$0xff]
  %v1509 = vld [vmem:[%s1497 + $0xaf] sm:$0xff]
  %v1510 = vld [vmem:[%s1497 + $0xc7] sm:$0xff]
  %v1511 = vld [vmem:[%s1497 + $0xcf] sm:$0xff]
  %v1512 = vld [vmem:[%s1497 + $0xe7] sm:$0xff]
  %v1513 = vld [vmem:[%s1497 + $0xef] sm:$0xff]
  %v1514 = vmul.f32 %v1498, %v1024
  %v1515 = vmul.f32 %v1499, %v1024
  %v1516 = vmul.f32 %v1500, %v1024
  %v1517 = vmul.f32 %v1501, %v1024
  %v1518 = vmul.f32 %v1502, %v1024
  %v1519 = vmul.f32 %v1503, %v1024
  %v1520 = vmul.f32 %v1504, %v1024
  %v1521 = vmul.f32 %v1505, %v1024
  %v1522 = vmul.f32 %v1506, %v1024
  %v1523 = vmul.f32 %v1507, %v1024
  %v1524 = vmul.f32 %v1508, %v1024
  %v1525 = vmul.f32 %v1509, %v1024
  %v1526 = vmul.f32 %v1510, %v1024
  %v1527 = vmul.f32 %v1511, %v1024
  %v1528 = vmul.f32 %v1512, %v1024
  %v1529 = vmul.f32 %v1513, %v1024
  %v1530 = vadd.f32 %v1481, %v1514
  %v1531 = vadd.f32 %v1482, %v1515
  %v1532 = vadd.f32 %v1483, %v1516
  %v1533 = vadd.f32 %v1484, %v1517
  %v1534 = vadd.f32 %v1485, %v1518
  %v1535 = vadd.f32 %v1486, %v1519
  %v1536 = vadd.f32 %v1487, %v1520
  %v1537 = vadd.f32 %v1488, %v1521
  %v1538 = vadd.f32 %v1489, %v1522
  %v1539 = vadd.f32 %v1490, %v1523
  %v1540 = vadd.f32 %v1491, %v1524
  %v1541 = vadd.f32 %v1492, %v1525
  %v1542 = vadd.f32 %v1493, %v1526
  %v1543 = vadd.f32 %v1494, %v1527
  %v1544 = vadd.f32 %v1495, %v1528
  %v1545 = vadd.f32 %v1496, %v1529
  %v1546 = vld [vmem:[%s1497 + $0x8] sm:$0xff]
  %v1547 = vld [vmem:[%s1497 + $0x10] sm:$0xff]
  %v1548 = vld [vmem:[%s1497 + $0x28] sm:$0xff]
  %v1549 = vld [vmem:[%s1497 + $0x30] sm:$0xff]
  %v1550 = vld [vmem:[%s1497 + $0x48] sm:$0xff]
  %v1551 = vld [vmem:[%s1497 + $0x50] sm:$0xff]
  %v1552 = vld [vmem:[%s1497 + $0x68] sm:$0xff]
  %v1553 = vld [vmem:[%s1497 + $0x70] sm:$0xff]
  %v1554 = vld [vmem:[%s1497 + $0x88] sm:$0xff]
  %v1555 = vld [vmem:[%s1497 + $0x90] sm:$0xff]
  %v1556 = vld [vmem:[%s1497 + $0xa8] sm:$0xff]
  %v1557 = vld [vmem:[%s1497 + $0xb0] sm:$0xff]
  %v1558 = vld [vmem:[%s1497 + $0xc8] sm:$0xff]
  %v1559 = vld [vmem:[%s1497 + $0xd0] sm:$0xff]
  %v1560 = vld [vmem:[%s1497 + $0xe8] sm:$0xff]
  %v1561 = vld [vmem:[%s1497 + $0xf0] sm:$0xff]
  %v1562 = vmul.f32 %v1546, %v1073
  %v1563 = vmul.f32 %v1547, %v1073
  %v1564 = vmul.f32 %v1548, %v1073
  %v1565 = vmul.f32 %v1549, %v1073
  %v1566 = vmul.f32 %v1550, %v1073
  %v1567 = vmul.f32 %v1551, %v1073
  %v1568 = vmul.f32 %v1552, %v1073
  %v1569 = vmul.f32 %v1553, %v1073
  %v1570 = vmul.f32 %v1554, %v1073
  %v1571 = vmul.f32 %v1555, %v1073
  %v1572 = vmul.f32 %v1556, %v1073
  %v1573 = vmul.f32 %v1557, %v1073
  %v1574 = vmul.f32 %v1558, %v1073
  %v1575 = vmul.f32 %v1559, %v1073
  %v1576 = vmul.f32 %v1560, %v1073
  %v1577 = vmul.f32 %v1561, %v1073
  %v1578 = vadd.f32 %v1530, %v1562
  %v1579 = vadd.f32 %v1531, %v1563
  %v1580 = vadd.f32 %v1532, %v1564
  %v1581 = vadd.f32 %v1533, %v1565
  %v1582 = vadd.f32 %v1534, %v1566
  %v1583 = vadd.f32 %v1535, %v1567
  %v1584 = vadd.f32 %v1536, %v1568
  %v1585 = vadd.f32 %v1537, %v1569
  %v1586 = vadd.f32 %v1538, %v1570
  %v1587 = vadd.f32 %v1539, %v1571
  %v1588 = vadd.f32 %v1540, %v1572
  %v1589 = vadd.f32 %v1541, %v1573
  %v1590 = vadd.f32 %v1542, %v1574
  %v1591 = vadd.f32 %v1543, %v1575
  %v1592 = vadd.f32 %v1544, %v1576
  %v1593 = vadd.f32 %v1545, %v1577
  %v1594 = vld [vmem:[%s1497 + $0x9] sm:$0xff]
  %v1595 = vld [vmem:[%s1497 + $0x11] sm:$0xff]
  %v1596 = vld [vmem:[%s1497 + $0x29] sm:$0xff]
  %v1597 = vld [vmem:[%s1497 + $0x31] sm:$0xff]
  %v1598 = vld [vmem:[%s1497 + $0x49] sm:$0xff]
  %v1599 = vld [vmem:[%s1497 + $0x51] sm:$0xff]
  %v1600 = vld [vmem:[%s1497 + $0x69] sm:$0xff]
  %v1601 = vld [vmem:[%s1497 + $0x71] sm:$0xff]
  %v1602 = vld [vmem:[%s1497 + $0x89] sm:$0xff]
  %v1603 = vld [vmem:[%s1497 + $0x91] sm:$0xff]
  %v1604 = vld [vmem:[%s1497 + $0xa9] sm:$0xff]
  %v1605 = vld [vmem:[%s1497 + $0xb1] sm:$0xff]
  %v1606 = vld [vmem:[%s1497 + $0xc9] sm:$0xff]
  %v1607 = vld [vmem:[%s1497 + $0xd1] sm:$0xff]
  %v1608 = vld [vmem:[%s1497 + $0xe9] sm:$0xff]
  %v1609 = vld [vmem:[%s1497 + $0xf1] sm:$0xff]
  %v1610 = vmul.f32 %v1594, %v1122
  %v1611 = vmul.f32 %v1595, %v1122
  %v1612 = vmul.f32 %v1596, %v1122
  %v1613 = vmul.f32 %v1597, %v1122
  %v1614 = vmul.f32 %v1598, %v1122
  %v1615 = vmul.f32 %v1599, %v1122
  %v1616 = vmul.f32 %v1600, %v1122
  %v1617 = vmul.f32 %v1601, %v1122
  %v1618 = vmul.f32 %v1602, %v1122
  %v1619 = vmul.f32 %v1603, %v1122
  %v1620 = vmul.f32 %v1604, %v1122
  %v1621 = vmul.f32 %v1605, %v1122
  %v1622 = vmul.f32 %v1606, %v1122
  %v1623 = vmul.f32 %v1607, %v1122
  %v1624 = vmul.f32 %v1608, %v1122
  %v1625 = vmul.f32 %v1609, %v1122
  %v1626 = vadd.f32 %v1578, %v1610
  %v1627 = vadd.f32 %v1579, %v1611
  %v1628 = vadd.f32 %v1580, %v1612
  %v1629 = vadd.f32 %v1581, %v1613
  %v1630 = vadd.f32 %v1582, %v1614
  %v1631 = vadd.f32 %v1583, %v1615
  %v1632 = vadd.f32 %v1584, %v1616
  %v1633 = vadd.f32 %v1585, %v1617
  %v1634 = vadd.f32 %v1586, %v1618
  %v1635 = vadd.f32 %v1587, %v1619
  %v1636 = vadd.f32 %v1588, %v1620
  %v1637 = vadd.f32 %v1589, %v1621
  %v1638 = vadd.f32 %v1590, %v1622
  %v1639 = vadd.f32 %v1591, %v1623
  %v1640 = vadd.f32 %v1592, %v1624
  %v1641 = vadd.f32 %v1593, %v1625
  %v1642 = vadd.f32 %v1626, %v1156
  %v1643 = vadd.f32 %v1627, %v1156
  %v1644 = vadd.f32 %v1628, %v1156
  %v1645 = vadd.f32 %v1629, %v1156
  %v1646 = vadd.f32 %v1630, %v1156
  %v1647 = vadd.f32 %v1631, %v1156
  %v1648 = vadd.f32 %v1632, %v1156
  %v1649 = vadd.f32 %v1633, %v1156
  %v1650 = vadd.f32 %v1634, %v1156
  %v1651 = vadd.f32 %v1635, %v1156
  %v1652 = vadd.f32 %v1636, %v1156
  %v1653 = vadd.f32 %v1637, %v1156
  %v1654 = vadd.f32 %v1638, %v1156
  %v1655 = vadd.f32 %v1639, %v1156
  %v1656 = vadd.f32 %v1640, %v1156
  %v1657 = vadd.f32 %v1641, %v1156
  %v1658 = vmax.f32 %v1642, 0.0
  %v1659 = vmax.f32 %v1643, 0.0
  %v1660 = vmax.f32 %v1644, 0.0
  %v1661 = vmax.f32 %v1645, 0.0
  %v1662 = vmax.f32 %v1646, 0.0
  %v1663 = vmax.f32 %v1647, 0.0
  %v1664 = vmax.f32 %v1648, 0.0
  %v1665 = vmax.f32 %v1649, 0.0
  %v1666 = vmax.f32 %v1650, 0.0
  %v1667 = vmax.f32 %v1651, 0.0
  %v1668 = vmax.f32 %v1652, 0.0
  %v1669 = vmax.f32 %v1653, 0.0
  %v1670 = vmax.f32 %v1654, 0.0
  %v1671 = vmax.f32 %v1655, 0.0
  %v1672 = vmax.f32 %v1656, 0.0
  %v1673 = vmax.f32 %v1657, 0.0
  %s1674 = scalar_lea.vmem [#allocation3], 288
  %1675 = vst [vmem:[%s1674 + $0x8] sm:$0xff] %v1658
  %1676 = vst [vmem:[%s1674 + $0x10] sm:$0xff] %v1659
  %1677 = vst [vmem:[%s1674 + $0x28] sm:$0xff] %v1660
  %1678 = vst [vmem:[%s1674 + $0x30] sm:$0xff] %v1661
  %1679 = vst [vmem:[%s1674 + $0x48] sm:$0xff] %v1662
  %1680 = vst [vmem:[%s1674 + $0x50] sm:$0xff] %v1663
  %1681 = vst [vmem:[%s1674 + $0x68] sm:$0xff] %v1664
  %1682 = vst [vmem:[%s1674 + $0x70] sm:$0xff] %v1665
  %1683 = vst [vmem:[%s1674 + $0x88] sm:$0xff] %v1666
  %1684 = vst [vmem:[%s1674 + $0x90] sm:$0xff] %v1667
  %1685 = vst [vmem:[%s1674 + $0xa8] sm:$0xff] %v1668
  %1686 = vst [vmem:[%s1674 + $0xb0] sm:$0xff] %v1669
  %1687 = vst [vmem:[%s1674 + $0xc8] sm:$0xff] %v1670
  %1688 = vst [vmem:[%s1674 + $0xd0] sm:$0xff] %v1671
  %1689 = vst [vmem:[%s1674 + $0xe8] sm:$0xff] %v1672
  %1690 = vst [vmem:[%s1674 + $0xf0] sm:$0xff] %v1673
  %v1691 = vld [vmem:[%s123 + $0x7] sm:$0xff]
  %v1692 = vld [vmem:[%s123 + $0xf] sm:$0xff]
  %v1693 = vld [vmem:[%s123 + $0x27] sm:$0xff]
  %v1694 = vld [vmem:[%s123 + $0x2f] sm:$0xff]
  %v1695 = vld [vmem:[%s123 + $0x47] sm:$0xff]
  %v1696 = vld [vmem:[%s123 + $0x4f] sm:$0xff]
  %v1697 = vld [vmem:[%s123 + $0x67] sm:$0xff]
  %v1698 = vld [vmem:[%s123 + $0x6f] sm:$0xff]
  %v1699 = vld [vmem:[%s123 + $0x87] sm:$0xff]
  %v1700 = vld [vmem:[%s123 + $0x8f] sm:$0xff]
  %v1701 = vld [vmem:[%s123 + $0xa7] sm:$0xff]
  %v1702 = vld [vmem:[%s123 + $0xaf] sm:$0xff]
  %v1703 = vld [vmem:[%s123 + $0xc7] sm:$0xff]
  %v1704 = vld [vmem:[%s123 + $0xcf] sm:$0xff]
  %v1705 = vld [vmem:[%s123 + $0xe7] sm:$0xff]
  %v1706 = vld [vmem:[%s123 + $0xef] sm:$0xff]
  %v1707 = vmul.f32 %v1691, %v729
  %v1708 = vmul.f32 %v1692, %v729
  %v1709 = vmul.f32 %v1693, %v729
  %v1710 = vmul.f32 %v1694, %v729
  %v1711 = vmul.f32 %v1695, %v729
  %v1712 = vmul.f32 %v1696, %v729
  %v1713 = vmul.f32 %v1697, %v729
  %v1714 = vmul.f32 %v1698, %v729
  %v1715 = vmul.f32 %v1699, %v729
  %v1716 = vmul.f32 %v1700, %v729
  %v1717 = vmul.f32 %v1701, %v729
  %v1718 = vmul.f32 %v1702, %v729
  %v1719 = vmul.f32 %v1703, %v729
  %v1720 = vmul.f32 %v1704, %v729
  %v1721 = vmul.f32 %v1705, %v729
  %v1722 = vmul.f32 %v1706, %v729
  %v1723 = vadd.f32 %v1707, 0.0
  %v1724 = vadd.f32 %v1708, 0.0
  %v1725 = vadd.f32 %v1709, 0.0
  %v1726 = vadd.f32 %v1710, 0.0
  %v1727 = vadd.f32 %v1711, 0.0
  %v1728 = vadd.f32 %v1712, 0.0
  %v1729 = vadd.f32 %v1713, 0.0
  %v1730 = vadd.f32 %v1714, 0.0
  %v1731 = vadd.f32 %v1715, 0.0
  %v1732 = vadd.f32 %v1716, 0.0
  %v1733 = vadd.f32 %v1717, 0.0
  %v1734 = vadd.f32 %v1718, 0.0
  %v1735 = vadd.f32 %v1719, 0.0
  %v1736 = vadd.f32 %v1720, 0.0
  %v1737 = vadd.f32 %v1721, 0.0
  %v1738 = vadd.f32 %v1722, 0.0
  %v1739 = vld [vmem:[%s123 + $0x8] sm:$0xff]
  %v1740 = vld [vmem:[%s123 + $0x10] sm:$0xff]
  %v1741 = vld [vmem:[%s123 + $0x28] sm:$0xff]
  %v1742 = vld [vmem:[%s123 + $0x30] sm:$0xff]
  %v1743 = vld [vmem:[%s123 + $0x48] sm:$0xff]
  %v1744 = vld [vmem:[%s123 + $0x50] sm:$0xff]
  %v1745 = vld [vmem:[%s123 + $0x68] sm:$0xff]
  %v1746 = vld [vmem:[%s123 + $0x70] sm:$0xff]
  %v1747 = vld [vmem:[%s123 + $0x88] sm:$0xff]
  %v1748 = vld [vmem:[%s123 + $0x90] sm:$0xff]
  %v1749 = vld [vmem:[%s123 + $0xa8] sm:$0xff]
  %v1750 = vld [vmem:[%s123 + $0xb0] sm:$0xff]
  %v1751 = vld [vmem:[%s123 + $0xc8] sm:$0xff]
  %v1752 = vld [vmem:[%s123 + $0xd0] sm:$0xff]
  %v1753 = vld [vmem:[%s123 + $0xe8] sm:$0xff]
  %v1754 = vld [vmem:[%s123 + $0xf0] sm:$0xff]
  %v1755 = vmul.f32 %v1739, %v778
  %v1756 = vmul.f32 %v1740, %v778
  %v1757 = vmul.f32 %v1741, %v778
  %v1758 = vmul.f32 %v1742, %v778
  %v1759 = vmul.f32 %v1743, %v778
  %v1760 = vmul.f32 %v1744, %v778
  %v1761 = vmul.f32 %v1745, %v778
  %v1762 = vmul.f32 %v1746, %v778
  %v1763 = vmul.f32 %v1747, %v778
  %v1764 = vmul.f32 %v1748, %v778
  %v1765 = vmul.f32 %v1749, %v778
  %v1766 = vmul.f32 %v1750, %v778
  %v1767 = vmul.f32 %v1751, %v778
  %v1768 = vmul.f32 %v1752, %v778
  %v1769 = vmul.f32 %v1753, %v778
  %v1770 = vmul.f32 %v1754, %v778
  %v1771 = vadd.f32 %v1723, %v1755
  %v1772 = vadd.f32 %v1724, %v1756
  %v1773 = vadd.f32 %v1725, %v1757
  %v1774 = vadd.f32 %v1726, %v1758
  %v1775 = vadd.f32 %v1727, %v1759
  %v1776 = vadd.f32 %v1728, %v1760
  %v1777 = vadd.f32 %v1729, %v1761
  %v1778 = vadd.f32 %v1730, %v1762
  %v1779 = vadd.f32 %v1731, %v1763
  %v1780 = vadd.f32 %v1732, %v1764
  %v1781 = vadd.f32 %v1733, %v1765
  %v1782 = vadd.f32 %v1734, %v1766
  %v1783 = vadd.f32 %v1735, %v1767
  %v1784 = vadd.f32 %v1736, %v1768
  %v1785 = vadd.f32 %v1737, %v1769
  %v1786 = vadd.f32 %v1738, %v1770
  %v1787 = vld [vmem:[%s123 + $0x9] sm:$0xff]
  %v1788 = vld [vmem:[%s123 + $0x11] sm:$0xff]
  %v1789 = vld [vmem:[%s123 + $0x29] sm:$0xff]
  %v1790 = vld [vmem:[%s123 + $0x31] sm:$0xff]
  %v1791 = vld [vmem:[%s123 + $0x49] sm:$0xff]
  %v1792 = vld [vmem:[%s123 + $0x51] sm:$0xff]
  %v1793 = vld [vmem:[%s123 + $0x69] sm:$0xff]
  %v1794 = vld [vmem:[%s123 + $0x71] sm:$0xff]
  %v1795 = vld [vmem:[%s123 + $0x89] sm:$0xff]
  %v1796 = vld [vmem:[%s123 + $0x91] sm:$0xff]
  %v1797 = vld [vmem:[%s123 + $0xa9] sm:$0xff]
  %v1798 = vld [vmem:[%s123 + $0xb1] sm:$0xff]
  %v1799 = vld [vmem:[%s123 + $0xc9] sm:$0xff]
  %v1800 = vld [vmem:[%s123 + $0xd1] sm:$0xff]
  %v1801 = vld [vmem:[%s123 + $0xe9] sm:$0xff]
  %v1802 = vld [vmem:[%s123 + $0xf1] sm:$0xff]
  %v1803 = vmul.f32 %v1787, %v827
  %v1804 = vmul.f32 %v1788, %v827
  %v1805 = vmul.f32 %v1789, %v827
  %v1806 = vmul.f32 %v1790, %v827
  %v1807 = vmul.f32 %v1791, %v827
  %v1808 = vmul.f32 %v1792, %v827
  %v1809 = vmul.f32 %v1793, %v827
  %v1810 = vmul.f32 %v1794, %v827
  %v1811 = vmul.f32 %v1795, %v827
  %v1812 = vmul.f32 %v1796, %v827
  %v1813 = vmul.f32 %v1797, %v827
  %v1814 = vmul.f32 %v1798, %v827
  %v1815 = vmul.f32 %v1799, %v827
  %v1816 = vmul.f32 %v1800, %v827
  %v1817 = vmul.f32 %v1801, %v827
  %v1818 = vmul.f32 %v1802, %v827
  %v1819 = vadd.f32 %v1771, %v1803
  %v1820 = vadd.f32 %v1772, %v1804
  %v1821 = vadd.f32 %v1773, %v1805
  %v1822 = vadd.f32 %v1774, %v1806
  %v1823 = vadd.f32 %v1775, %v1807
  %v1824 = vadd.f32 %v1776, %v1808
  %v1825 = vadd.f32 %v1777, %v1809
  %v1826 = vadd.f32 %v1778, %v1810
  %v1827 = vadd.f32 %v1779, %v1811
  %v1828 = vadd.f32 %v1780, %v1812
  %v1829 = vadd.f32 %v1781, %v1813
  %v1830 = vadd.f32 %v1782, %v1814
  %v1831 = vadd.f32 %v1783, %v1815
  %v1832 = vadd.f32 %v1784, %v1816
  %v1833 = vadd.f32 %v1785, %v1817
  %v1834 = vadd.f32 %v1786, %v1818
  %v1835 = vld [vmem:[%s672 + $0x7] sm:$0xff]
  %v1836 = vld [vmem:[%s672 + $0xf] sm:$0xff]
  %v1837 = vld [vmem:[%s672 + $0x27] sm:$0xff]
  %v1838 = vld [vmem:[%s672 + $0x2f] sm:$0xff]
  %v1839 = vld [vmem:[%s672 + $0x47] sm:$0xff]
  %v1840 = vld [vmem:[%s672 + $0x4f] sm:$0xff]
  %v1841 = vld [vmem:[%s672 + $0x67] sm:$0xff]
  %v1842 = vld [vmem:[%s672 + $0x6f] sm:$0xff]
  %v1843 = vld [vmem:[%s672 + $0x87] sm:$0xff]
  %v1844 = vld [vmem:[%s672 + $0x8f] sm:$0xff]
  %v1845 = vld [vmem:[%s672 + $0xa7] sm:$0xff]
  %v1846 = vld [vmem:[%s672 + $0xaf] sm:$0xff]
  %v1847 = vld [vmem:[%s672 + $0xc7] sm:$0xff]
  %v1848 = vld [vmem:[%s672 + $0xcf] sm:$0xff]
  %v1849 = vld [vmem:[%s672 + $0xe7] sm:$0xff]
  %v1850 = vld [vmem:[%s672 + $0xef] sm:$0xff]
  %v1851 = vmul.f32 %v1835, %v876
  %v1852 = vmul.f32 %v1836, %v876
  %v1853 = vmul.f32 %v1837, %v876
  %v1854 = vmul.f32 %v1838, %v876
  %v1855 = vmul.f32 %v1839, %v876
  %v1856 = vmul.f32 %v1840, %v876
  %v1857 = vmul.f32 %v1841, %v876
  %v1858 = vmul.f32 %v1842, %v876
  %v1859 = vmul.f32 %v1843, %v876
  %v1860 = vmul.f32 %v1844, %v876
  %v1861 = vmul.f32 %v1845, %v876
  %v1862 = vmul.f32 %v1846, %v876
  %v1863 = vmul.f32 %v1847, %v876
  %v1864 = vmul.f32 %v1848, %v876
  %v1865 = vmul.f32 %v1849, %v876
  %v1866 = vmul.f32 %v1850, %v876
  %v1867 = vadd.f32 %v1819, %v1851
  %v1868 = vadd.f32 %v1820, %v1852
  %v1869 = vadd.f32 %v1821, %v1853
  %v1870 = vadd.f32 %v1822, %v1854
  %v1871 = vadd.f32 %v1823, %v1855
  %v1872 = vadd.f32 %v1824, %v1856
  %v1873 = vadd.f32 %v1825, %v1857
  %v1874 = vadd.f32 %v1826, %v1858
  %v1875 = vadd.f32 %v1827, %v1859
  %v1876 = vadd.f32 %v1828, %v1860
  %v1877 = vadd.f32 %v1829, %v1861
  %v1878 = vadd.f32 %v1830, %v1862
  %v1879 = vadd.f32 %v1831, %v1863
  %v1880 = vadd.f32 %v1832, %v1864
  %v1881 = vadd.f32 %v1833, %v1865
  %v1882 = vadd.f32 %v1834, %v1866
  %v1883 = vld [vmem:[%s672 + $0x8] sm:$0xff]
  %v1884 = vld [vmem:[%s672 + $0x10] sm:$0xff]
  %v1885 = vld [vmem:[%s672 + $0x28] sm:$0xff]
  %v1886 = vld [vmem:[%s672 + $0x30] sm:$0xff]
  %v1887 = vld [vmem:[%s672 + $0x48] sm:$0xff]
  %v1888 = vld [vmem:[%s672 + $0x50] sm:$0xff]
  %v1889 = vld [vmem:[%s672 + $0x68] sm:$0xff]
  %v1890 = vld [vmem:[%s672 + $0x70] sm:$0xff]
  %v1891 = vld [vmem:[%s672 + $0x88] sm:$0xff]
  %v1892 = vld [vmem:[%s672 + $0x90] sm:$0xff]
  %v1893 = vld [vmem:[%s672 + $0xa8] sm:$0xff]
  %v1894 = vld [vmem:[%s672 + $0xb0] sm:$0xff]
  %v1895 = vld [vmem:[%s672 + $0xc8] sm:$0xff]
  %v1896 = vld [vmem:[%s672 + $0xd0] sm:$0xff]
  %v1897 = vld [vmem:[%s672 + $0xe8] sm:$0xff]
  %v1898 = vld [vmem:[%s672 + $0xf0] sm:$0xff]
  %v1899 = vmul.f32 %v1883, %v925
  %v1900 = vmul.f32 %v1884, %v925
  %v1901 = vmul.f32 %v1885, %v925
  %v1902 = vmul.f32 %v1886, %v925
  %v1903 = vmul.f32 %v1887, %v925
  %v1904 = vmul.f32 %v1888, %v925
  %v1905 = vmul.f32 %v1889, %v925
  %v1906 = vmul.f32 %v1890, %v925
  %v1907 = vmul.f32 %v1891, %v925
  %v1908 = vmul.f32 %v1892, %v925
  %v1909 = vmul.f32 %v1893, %v925
  %v1910 = vmul.f32 %v1894, %v925
  %v1911 = vmul.f32 %v1895, %v925
  %v1912 = vmul.f32 %v1896, %v925
  %v1913 = vmul.f32 %v1897, %v925
  %v1914 = vmul.f32 %v1898, %v925
  %v1915 = vadd.f32 %v1867, %v1899
  %v1916 = vadd.f32 %v1868, %v1900
  %v1917 = vadd.f32 %v1869, %v1901
  %v1918 = vadd.f32 %v1870, %v1902
  %v1919 = vadd.f32 %v1871, %v1903
  %v1920 = vadd.f32 %v1872, %v1904
  %v1921 = vadd.f32 %v1873, %v1905
  %v1922 = vadd.f32 %v1874, %v1906
  %v1923 = vadd.f32 %v1875, %v1907
  %v1924 = vadd.f32 %v1876, %v1908
  %v1925 = vadd.f32 %v1877, %v1909
  %v1926 = vadd.f32 %v1878, %v1910
  %v1927 = vadd.f32 %v1879, %v1911
  %v1928 = vadd.f32 %v1880, %v1912
  %v1929 = vadd.f32 %v1881, %v1913
  %v1930 = vadd.f32 %v1882, %v1914
  %v1931 = vld [vmem:[%s672 + $0x9] sm:$0xff]
  %v1932 = vld [vmem:[%s672 + $0x11] sm:$0xff]
  %v1933 = vld [vmem:[%s672 + $0x29] sm:$0xff]
  %v1934 = vld [vmem:[%s672 + $0x31] sm:$0xff]
  %v1935 = vld [vmem:[%s672 + $0x49] sm:$0xff]
  %v1936 = vld [vmem:[%s672 + $0x51] sm:$0xff]
  %v1937 = vld [vmem:[%s672 + $0x69] sm:$0xff]
  %v1938 = vld [vmem:[%s672 + $0x71] sm:$0xff]
  %v1939 = vld [vmem:[%s672 + $0x89] sm:$0xff]
  %v1940 = vld [vmem:[%s672 + $0x91] sm:$0xff]
  %v1941 = vld [vmem:[%s672 + $0xa9] sm:$0xff]
  %v1942 = vld [vmem:[%s672 + $0xb1] sm:$0xff]
  %v1943 = vld [vmem:[%s672 + $0xc9] sm:$0xff]
  %v1944 = vld [vmem:[%s672 + $0xd1] sm:$0xff]
  %v1945 = vld [vmem:[%s672 + $0xe9] sm:$0xff]
  %v1946 = vld [vmem:[%s672 + $0xf1] sm:$0xff]
  %v1947 = vmul.f32 %v1931, %v974
  %v1948 = vmul.f32 %v1932, %v974
  %v1949 = vmul.f32 %v1933, %v974
  %v1950 = vmul.f32 %v1934, %v974
  %v1951 = vmul.f32 %v1935, %v974
  %v1952 = vmul.f32 %v1936, %v974
  %v1953 = vmul.f32 %v1937, %v974
  %v1954 = vmul.f32 %v1938, %v974
  %v1955 = vmul.f32 %v1939, %v974
  %v1956 = vmul.f32 %v1940, %v974
  %v1957 = vmul.f32 %v1941, %v974
  %v1958 = vmul.f32 %v1942, %v974
  %v1959 = vmul.f32 %v1943, %v974
  %v1960 = vmul.f32 %v1944, %v974
  %v1961 = vmul.f32 %v1945, %v974
  %v1962 = vmul.f32 %v1946, %v974
  %v1963 = vadd.f32 %v1915, %v1947
  %v1964 = vadd.f32 %v1916, %v1948
  %v1965 = vadd.f32 %v1917, %v1949
  %v1966 = vadd.f32 %v1918, %v1950
  %v1967 = vadd.f32 %v1919, %v1951
  %v1968 = vadd.f32 %v1920, %v1952
  %v1969 = vadd.f32 %v1921, %v1953
  %v1970 = vadd.f32 %v1922, %v1954
  %v1971 = vadd.f32 %v1923, %v1955
  %v1972 = vadd.f32 %v1924, %v1956
  %v1973 = vadd.f32 %v1925, %v1957
  %v1974 = vadd.f32 %v1926, %v1958
  %v1975 = vadd.f32 %v1927, %v1959
  %v1976 = vadd.f32 %v1928, %v1960
  %v1977 = vadd.f32 %v1929, %v1961
  %v1978 = vadd.f32 %v1930, %v1962
  %s1979 = scalar_lea.vmem [#allocation2], 640
  %v1980 = vld [vmem:[%s1979 + $0x7] sm:$0xff]
  %v1981 = vld [vmem:[%s1979 + $0xf] sm:$0xff]
  %v1982 = vld [vmem:[%s1979 + $0x27] sm:$0xff]
  %v1983 = vld [vmem:[%s1979 + $0x2f] sm:$0xff]
  %v1984 = vld [vmem:[%s1979 + $0x47] sm:$0xff]
  %v1985 = vld [vmem:[%s1979 + $0x4f] sm:$0xff]
  %v1986 = vld [vmem:[%s1979 + $0x67] sm:$0xff]
  %v1987 = vld [vmem:[%s1979 + $0x6f] sm:$0xff]
  %v1988 = vld [vmem:[%s1979 + $0x87] sm:$0xff]
  %v1989 = vld [vmem:[%s1979 + $0x8f] sm:$0xff]
  %v1990 = vld [vmem:[%s1979 + $0xa7] sm:$0xff]
  %v1991 = vld [vmem:[%s1979 + $0xaf] sm:$0xff]
  %v1992 = vld [vmem:[%s1979 + $0xc7] sm:$0xff]
  %v1993 = vld [vmem:[%s1979 + $0xcf] sm:$0xff]
  %v1994 = vld [vmem:[%s1979 + $0xe7] sm:$0xff]
  %v1995 = vld [vmem:[%s1979 + $0xef] sm:$0xff]
  %v1996 = vmul.f32 %v1980, %v1024
  %v1997 = vmul.f32 %v1981, %v1024
  %v1998 = vmul.f32 %v1982, %v1024
  %v1999 = vmul.f32 %v1983, %v1024
  %v2000 = vmul.f32 %v1984, %v1024
  %v2001 = vmul.f32 %v1985, %v1024
  %v2002 = vmul.f32 %v1986, %v1024
  %v2003 = vmul.f32 %v1987, %v1024
  %v2004 = vmul.f32 %v1988, %v1024
  %v2005 = vmul.f32 %v1989, %v1024
  %v2006 = vmul.f32 %v1990, %v1024
  %v2007 = vmul.f32 %v1991, %v1024
  %v2008 = vmul.f32 %v1992, %v1024
  %v2009 = vmul.f32 %v1993, %v1024
  %v2010 = vmul.f32 %v1994, %v1024
  %v2011 = vmul.f32 %v1995, %v1024
  %v2012 = vadd.f32 %v1963, %v1996
  %v2013 = vadd.f32 %v1964, %v1997
  %v2014 = vadd.f32 %v1965, %v1998
  %v2015 = vadd.f32 %v1966, %v1999
  %v2016 = vadd.f32 %v1967, %v2000
  %v2017 = vadd.f32 %v1968, %v2001
  %v2018 = vadd.f32 %v1969, %v2002
  %v2019 = vadd.f32 %v1970, %v2003
  %v2020 = vadd.f32 %v1971, %v2004
  %v2021 = vadd.f32 %v1972, %v2005
  %v2022 = vadd.f32 %v1973, %v2006
  %v2023 = vadd.f32 %v1974, %v2007
  %v2024 = vadd.f32 %v1975, %v2008
  %v2025 = vadd.f32 %v1976, %v2009
  %v2026 = vadd.f32 %v1977, %v2010
  %v2027 = vadd.f32 %v1978, %v2011
  %v2028 = vld [vmem:[%s1979 + $0x8] sm:$0xff]
  %v2029 = vld [vmem:[%s1979 + $0x10] sm:$0xff]
  %v2030 = vld [vmem:[%s1979 + $0x28] sm:$0xff]
  %v2031 = vld [vmem:[%s1979 + $0x30] sm:$0xff]
  %v2032 = vld [vmem:[%s1979 + $0x48] sm:$0xff]
  %v2033 = vld [vmem:[%s1979 + $0x50] sm:$0xff]
  %v2034 = vld [vmem:[%s1979 + $0x68] sm:$0xff]
  %v2035 = vld [vmem:[%s1979 + $0x70] sm:$0xff]
  %v2036 = vld [vmem:[%s1979 + $0x88] sm:$0xff]
  %v2037 = vld [vmem:[%s1979 + $0x90] sm:$0xff]
  %v2038 = vld [vmem:[%s1979 + $0xa8] sm:$0xff]
  %v2039 = vld [vmem:[%s1979 + $0xb0] sm:$0xff]
  %v2040 = vld [vmem:[%s1979 + $0xc8] sm:$0xff]
  %v2041 = vld [vmem:[%s1979 + $0xd0] sm:$0xff]
  %v2042 = vld [vmem:[%s1979 + $0xe8] sm:$0xff]
  %v2043 = vld [vmem:[%s1979 + $0xf0] sm:$0xff]
  %v2044 = vmul.f32 %v2028, %v1073
  %v2045 = vmul.f32 %v2029, %v1073
  %v2046 = vmul.f32 %v2030, %v1073
  %v2047 = vmul.f32 %v2031, %v1073
  %v2048 = vmul.f32 %v2032, %v1073
  %v2049 = vmul.f32 %v2033, %v1073
  %v2050 = vmul.f32 %v2034, %v1073
  %v2051 = vmul.f32 %v2035, %v1073
  %v2052 = vmul.f32 %v2036, %v1073
  %v2053 = vmul.f32 %v2037, %v1073
  %v2054 = vmul.f32 %v2038, %v1073
  %v2055 = vmul.f32 %v2039, %v1073
  %v2056 = vmul.f32 %v2040, %v1073
  %v2057 = vmul.f32 %v2041, %v1073
  %v2058 = vmul.f32 %v2042, %v1073
  %v2059 = vmul.f32 %v2043, %v1073
  %v2060 = vadd.f32 %v2012, %v2044
  %v2061 = vadd.f32 %v2013, %v2045
  %v2062 = vadd.f32 %v2014, %v2046
  %v2063 = vadd.f32 %v2015, %v2047
  %v2064 = vadd.f32 %v2016, %v2048
  %v2065 = vadd.f32 %v2017, %v2049
  %v2066 = vadd.f32 %v2018, %v2050
  %v2067 = vadd.f32 %v2019, %v2051
  %v2068 = vadd.f32 %v2020, %v2052
  %v2069 = vadd.f32 %v2021, %v2053
  %v2070 = vadd.f32 %v2022, %v2054
  %v2071 = vadd.f32 %v2023, %v2055
  %v2072 = vadd.f32 %v2024, %v2056
  %v2073 = vadd.f32 %v2025, %v2057
  %v2074 = vadd.f32 %v2026, %v2058
  %v2075 = vadd.f32 %v2027, %v2059
  %v2076 = vld [vmem:[%s1979 + $0x9] sm:$0xff]
  %v2077 = vld [vmem:[%s1979 + $0x11] sm:$0xff]
  %v2078 = vld [vmem:[%s1979 + $0x29] sm:$0xff]
  %v2079 = vld [vmem:[%s1979 + $0x31] sm:$0xff]
  %v2080 = vld [vmem:[%s1979 + $0x49] sm:$0xff]
  %v2081 = vld [vmem:[%s1979 + $0x51] sm:$0xff]
  %v2082 = vld [vmem:[%s1979 + $0x69] sm:$0xff]
  %v2083 = vld [vmem:[%s1979 + $0x71] sm:$0xff]
  %v2084 = vld [vmem:[%s1979 + $0x89] sm:$0xff]
  %v2085 = vld [vmem:[%s1979 + $0x91] sm:$0xff]
  %v2086 = vld [vmem:[%s1979 + $0xa9] sm:$0xff]
  %v2087 = vld [vmem:[%s1979 + $0xb1] sm:$0xff]
  %v2088 = vld [vmem:[%s1979 + $0xc9] sm:$0xff]
  %v2089 = vld [vmem:[%s1979 + $0xd1] sm:$0xff]
  %v2090 = vld [vmem:[%s1979 + $0xe9] sm:$0xff]
  %v2091 = vld [vmem:[%s1979 + $0xf1] sm:$0xff]
  %v2092 = vmul.f32 %v2076, %v1122
  %v2093 = vmul.f32 %v2077, %v1122
  %v2094 = vmul.f32 %v2078, %v1122
  %v2095 = vmul.f32 %v2079, %v1122
  %v2096 = vmul.f32 %v2080, %v1122
  %v2097 = vmul.f32 %v2081, %v1122
  %v2098 = vmul.f32 %v2082, %v1122
  %v2099 = vmul.f32 %v2083, %v1122
  %v2100 = vmul.f32 %v2084, %v1122
  %v2101 = vmul.f32 %v2085, %v1122
  %v2102 = vmul.f32 %v2086, %v1122
  %v2103 = vmul.f32 %v2087, %v1122
  %v2104 = vmul.f32 %v2088, %v1122
  %v2105 = vmul.f32 %v2089, %v1122
  %v2106 = vmul.f32 %v2090, %v1122
  %v2107 = vmul.f32 %v2091, %v1122
  %v2108 = vadd.f32 %v2060, %v2092
  %v2109 = vadd.f32 %v2061, %v2093
  %v2110 = vadd.f32 %v2062, %v2094
  %v2111 = vadd.f32 %v2063, %v2095
  %v2112 = vadd.f32 %v2064, %v2096
  %v2113 = vadd.f32 %v2065, %v2097
  %v2114 = vadd.f32 %v2066, %v2098
  %v2115 = vadd.f32 %v2067, %v2099
  %v2116 = vadd.f32 %v2068, %v2100
  %v2117 = vadd.f32 %v2069, %v2101
  %v2118 = vadd.f32 %v2070, %v2102
  %v2119 = vadd.f32 %v2071, %v2103
  %v2120 = vadd.f32 %v2072, %v2104
  %v2121 = vadd.f32 %v2073, %v2105
  %v2122 = vadd.f32 %v2074, %v2106
  %v2123 = vadd.f32 %v2075, %v2107
  %v2124 = vadd.f32 %v2108, %v1156
  %v2125 = vadd.f32 %v2109, %v1156
  %v2126 = vadd.f32 %v2110, %v1156
  %v2127 = vadd.f32 %v2111, %v1156
  %v2128 = vadd.f32 %v2112, %v1156
  %v2129 = vadd.f32 %v2113, %v1156
  %v2130 = vadd.f32 %v2114, %v1156
  %v2131 = vadd.f32 %v2115, %v1156
  %v2132 = vadd.f32 %v2116, %v1156
  %v2133 = vadd.f32 %v2117, %v1156
  %v2134 = vadd.f32 %v2118, %v1156
  %v2135 = vadd.f32 %v2119, %v1156
  %v2136 = vadd.f32 %v2120, %v1156
  %v2137 = vadd.f32 %v2121, %v1156
  %v2138 = vadd.f32 %v2122, %v1156
  %v2139 = vadd.f32 %v2123, %v1156
  %v2140 = vmax.f32 %v2124, 0.0
  %v2141 = vmax.f32 %v2125, 0.0
  %v2142 = vmax.f32 %v2126, 0.0
  %v2143 = vmax.f32 %v2127, 0.0
  %v2144 = vmax.f32 %v2128, 0.0
  %v2145 = vmax.f32 %v2129, 0.0
  %v2146 = vmax.f32 %v2130, 0.0
  %v2147 = vmax.f32 %v2131, 0.0
  %v2148 = vmax.f32 %v2132, 0.0
  %v2149 = vmax.f32 %v2133, 0.0
  %v2150 = vmax.f32 %v2134, 0.0
  %v2151 = vmax.f32 %v2135, 0.0
  %v2152 = vmax.f32 %v2136, 0.0
  %v2153 = vmax.f32 %v2137, 0.0
  %v2154 = vmax.f32 %v2138, 0.0
  %v2155 = vmax.f32 %v2139, 0.0
  %s2156 = scalar_lea.vmem [#allocation3], 608
  %2157 = vst [vmem:[%s2156 + $0x8] sm:$0xff] %v2140
  %2158 = vst [vmem:[%s2156 + $0x10] sm:$0xff] %v2141
  %2159 = vst [vmem:[%s2156 + $0x28] sm:$0xff] %v2142
  %2160 = vst [vmem:[%s2156 + $0x30] sm:$0xff] %v2143
  %2161 = vst [vmem:[%s2156 + $0x48] sm:$0xff] %v2144
  %2162 = vst [vmem:[%s2156 + $0x50] sm:$0xff] %v2145
  %2163 = vst [vmem:[%s2156 + $0x68] sm:$0xff] %v2146
  %2164 = vst [vmem:[%s2156 + $0x70] sm:$0xff] %v2147
  %2165 = vst [vmem:[%s2156 + $0x88] sm:$0xff] %v2148
  %2166 = vst [vmem:[%s2156 + $0x90] sm:$0xff] %v2149
  %2167 = vst [vmem:[%s2156 + $0xa8] sm:$0xff] %v2150
  %2168 = vst [vmem:[%s2156 + $0xb0] sm:$0xff] %v2151
  %2169 = vst [vmem:[%s2156 + $0xc8] sm:$0xff] %v2152
  %2170 = vst [vmem:[%s2156 + $0xd0] sm:$0xff] %v2153
  %2171 = vst [vmem:[%s2156 + $0xe8] sm:$0xff] %v2154
  %2172 = vst [vmem:[%s2156 + $0xf0] sm:$0xff] %v2155
  %s2173 = scalar_lea.vmem [#allocation2], 832
  %v2174 = vld [vmem:[%s2173 + $0x7] sm:$0xff]
  %v2175 = vld [vmem:[%s2173 + $0xf] sm:$0xff]
  %v2176 = vld [vmem:[%s2173 + $0x27] sm:$0xff]
  %v2177 = vld [vmem:[%s2173 + $0x2f] sm:$0xff]
  %v2178 = vld [vmem:[%s2173 + $0x47] sm:$0xff]
  %v2179 = vld [vmem:[%s2173 + $0x4f] sm:$0xff]
  %v2180 = vld [vmem:[%s2173 + $0x67] sm:$0xff]
  %v2181 = vld [vmem:[%s2173 + $0x6f] sm:$0xff]
  %v2182 = vld [vmem:[%s2173 + $0x87] sm:$0xff]
  %v2183 = vld [vmem:[%s2173 + $0x8f] sm:$0xff]
  %v2184 = vld [vmem:[%s2173 + $0xa7] sm:$0xff]
  %v2185 = vld [vmem:[%s2173 + $0xaf] sm:$0xff]
  %v2186 = vld [vmem:[%s2173 + $0xc7] sm:$0xff]
  %v2187 = vld [vmem:[%s2173 + $0xcf] sm:$0xff]
  %v2188 = vld [vmem:[%s2173 + $0xe7] sm:$0xff]
  %v2189 = vld [vmem:[%s2173 + $0xef] sm:$0xff]
  %v2190 = vmul.f32 %v2174, %v729
  %v2191 = vmul.f32 %v2175, %v729
  %v2192 = vmul.f32 %v2176, %v729
  %v2193 = vmul.f32 %v2177, %v729
  %v2194 = vmul.f32 %v2178, %v729
  %v2195 = vmul.f32 %v2179, %v729
  %v2196 = vmul.f32 %v2180, %v729
  %v2197 = vmul.f32 %v2181, %v729
  %v2198 = vmul.f32 %v2182, %v729
  %v2199 = vmul.f32 %v2183, %v729
  %v2200 = vmul.f32 %v2184, %v729
  %v2201 = vmul.f32 %v2185, %v729
  %v2202 = vmul.f32 %v2186, %v729
  %v2203 = vmul.f32 %v2187, %v729
  %v2204 = vmul.f32 %v2188, %v729
  %v2205 = vmul.f32 %v2189, %v729
  %v2206 = vadd.f32 %v2190, 0.0
  %v2207 = vadd.f32 %v2191, 0.0
  %v2208 = vadd.f32 %v2192, 0.0
  %v2209 = vadd.f32 %v2193, 0.0
  %v2210 = vadd.f32 %v2194, 0.0
  %v2211 = vadd.f32 %v2195, 0.0
  %v2212 = vadd.f32 %v2196, 0.0
  %v2213 = vadd.f32 %v2197, 0.0
  %v2214 = vadd.f32 %v2198, 0.0
  %v2215 = vadd.f32 %v2199, 0.0
  %v2216 = vadd.f32 %v2200, 0.0
  %v2217 = vadd.f32 %v2201, 0.0
  %v2218 = vadd.f32 %v2202, 0.0
  %v2219 = vadd.f32 %v2203, 0.0
  %v2220 = vadd.f32 %v2204, 0.0
  %v2221 = vadd.f32 %v2205, 0.0
  %v2222 = vld [vmem:[%s2173 + $0x8] sm:$0xff]
  %v2223 = vld [vmem:[%s2173 + $0x10] sm:$0xff]
  %v2224 = vld [vmem:[%s2173 + $0x28] sm:$0xff]
  %v2225 = vld [vmem:[%s2173 + $0x30] sm:$0xff]
  %v2226 = vld [vmem:[%s2173 + $0x48] sm:$0xff]
  %v2227 = vld [vmem:[%s2173 + $0x50] sm:$0xff]
  %v2228 = vld [vmem:[%s2173 + $0x68] sm:$0xff]
  %v2229 = vld [vmem:[%s2173 + $0x70] sm:$0xff]
  %v2230 = vld [vmem:[%s2173 + $0x88] sm:$0xff]
  %v2231 = vld [vmem:[%s2173 + $0x90] sm:$0xff]
  %v2232 = vld [vmem:[%s2173 + $0xa8] sm:$0xff]
  %v2233 = vld [vmem:[%s2173 + $0xb0] sm:$0xff]
  %v2234 = vld [vmem:[%s2173 + $0xc8] sm:$0xff]
  %v2235 = vld [vmem:[%s2173 + $0xd0] sm:$0xff]
  %v2236 = vld [vmem:[%s2173 + $0xe8] sm:$0xff]
  %v2237 = vld [vmem:[%s2173 + $0xf0] sm:$0xff]
  %v2238 = vmul.f32 %v2222, %v778
  %v2239 = vmul.f32 %v2223, %v778
  %v2240 = vmul.f32 %v2224, %v778
  %v2241 = vmul.f32 %v2225, %v778
  %v2242 = vmul.f32 %v2226, %v778
  %v2243 = vmul.f32 %v2227, %v778
  %v2244 = vmul.f32 %v2228, %v778
  %v2245 = vmul.f32 %v2229, %v778
  %v2246 = vmul.f32 %v2230, %v778
  %v2247 = vmul.f32 %v2231, %v778
  %v2248 = vmul.f32 %v2232, %v778
  %v2249 = vmul.f32 %v2233, %v778
  %v2250 = vmul.f32 %v2234, %v778
  %v2251 = vmul.f32 %v2235, %v778
  %v2252 = vmul.f32 %v2236, %v778
  %v2253 = vmul.f32 %v2237, %v778
  %v2254 = vadd.f32 %v2206, %v2238
  %v2255 = vadd.f32 %v2207, %v2239
  %v2256 = vadd.f32 %v2208, %v2240
  %v2257 = vadd.f32 %v2209, %v2241
  %v2258 = vadd.f32 %v2210, %v2242
  %v2259 = vadd.f32 %v2211, %v2243
  %v2260 = vadd.f32 %v2212, %v2244
  %v2261 = vadd.f32 %v2213, %v2245
  %v2262 = vadd.f32 %v2214, %v2246
  %v2263 = vadd.f32 %v2215, %v2247
  %v2264 = vadd.f32 %v2216, %v2248
  %v2265 = vadd.f32 %v2217, %v2249
  %v2266 = vadd.f32 %v2218, %v2250
  %v2267 = vadd.f32 %v2219, %v2251
  %v2268 = vadd.f32 %v2220, %v2252
  %v2269 = vadd.f32 %v2221, %v2253
  %v2270 = vld [vmem:[%s2173 + $0x9] sm:$0xff]
  %v2271 = vld [vmem:[%s2173 + $0x11] sm:$0xff]
  %v2272 = vld [vmem:[%s2173 + $0x29] sm:$0xff]
  %v2273 = vld [vmem:[%s2173 + $0x31] sm:$0xff]
  %v2274 = vld [vmem:[%s2173 + $0x49] sm:$0xff]
  %v2275 = vld [vmem:[%s2173 + $0x51] sm:$0xff]
  %v2276 = vld [vmem:[%s2173 + $0x69] sm:$0xff]
  %v2277 = vld [vmem:[%s2173 + $0x71] sm:$0xff]
  %v2278 = vld [vmem:[%s2173 + $0x89] sm:$0xff]
  %v2279 = vld [vmem:[%s2173 + $0x91] sm:$0xff]
  %v2280 = vld [vmem:[%s2173 + $0xa9] sm:$0xff]
  %v2281 = vld [vmem:[%s2173 + $0xb1] sm:$0xff]
  %v2282 = vld [vmem:[%s2173 + $0xc9] sm:$0xff]
  %v2283 = vld [vmem:[%s2173 + $0xd1] sm:$0xff]
  %v2284 = vld [vmem:[%s2173 + $0xe9] sm:$0xff]
  %v2285 = vld [vmem:[%s2173 + $0xf1] sm:$0xff]
  %v2286 = vmul.f32 %v2270, %v827
  %v2287 = vmul.f32 %v2271, %v827
  %v2288 = vmul.f32 %v2272, %v827
  %v2289 = vmul.f32 %v2273, %v827
  %v2290 = vmul.f32 %v2274, %v827
  %v2291 = vmul.f32 %v2275, %v827
  %v2292 = vmul.f32 %v2276, %v827
  %v2293 = vmul.f32 %v2277, %v827
  %v2294 = vmul.f32 %v2278, %v827
  %v2295 = vmul.f32 %v2279, %v827
  %v2296 = vmul.f32 %v2280, %v827
  %v2297 = vmul.f32 %v2281, %v827
  %v2298 = vmul.f32 %v2282, %v827
  %v2299 = vmul.f32 %v2283, %v827
  %v2300 = vmul.f32 %v2284, %v827
  %v2301 = vmul.f32 %v2285, %v827
  %v2302 = vadd.f32 %v2254, %v2286
  %v2303 = vadd.f32 %v2255, %v2287
  %v2304 = vadd.f32 %v2256, %v2288
  %v2305 = vadd.f32 %v2257, %v2289
  %v2306 = vadd.f32 %v2258, %v2290
  %v2307 = vadd.f32 %v2259, %v2291
  %v2308 = vadd.f32 %v2260, %v2292
  %v2309 = vadd.f32 %v2261, %v2293
  %v2310 = vadd.f32 %v2262, %v2294
  %v2311 = vadd.f32 %v2263, %v2295
  %v2312 = vadd.f32 %v2264, %v2296
  %v2313 = vadd.f32 %v2265, %v2297
  %v2314 = vadd.f32 %v2266, %v2298
  %v2315 = vadd.f32 %v2267, %v2299
  %v2316 = vadd.f32 %v2268, %v2300
  %v2317 = vadd.f32 %v2269, %v2301
  %s2318 = scalar_lea.vmem [#allocation2], 864
  %v2319 = vld [vmem:[%s2318 + $0x7] sm:$0xff]
  %v2320 = vld [vmem:[%s2318 + $0xf] sm:$0xff]
  %v2321 = vld [vmem:[%s2318 + $0x27] sm:$0xff]
  %v2322 = vld [vmem:[%s2318 + $0x2f] sm:$0xff]
  %v2323 = vld [vmem:[%s2318 + $0x47] sm:$0xff]
  %v2324 = vld [vmem:[%s2318 + $0x4f] sm:$0xff]
  %v2325 = vld [vmem:[%s2318 + $0x67] sm:$0xff]
  %v2326 = vld [vmem:[%s2318 + $0x6f] sm:$0xff]
  %v2327 = vld [vmem:[%s2318 + $0x87] sm:$0xff]
  %v2328 = vld [vmem:[%s2318 + $0x8f] sm:$0xff]
  %v2329 = vld [vmem:[%s2318 + $0xa7] sm:$0xff]
  %v2330 = vld [vmem:[%s2318 + $0xaf] sm:$0xff]
  %v2331 = vld [vmem:[%s2318 + $0xc7] sm:$0xff]
  %v2332 = vld [vmem:[%s2318 + $0xcf] sm:$0xff]
  %v2333 = vld [vmem:[%s2318 + $0xe7] sm:$0xff]
  %v2334 = vld [vmem:[%s2318 + $0xef] sm:$0xff]
  %v2335 = vmul.f32 %v2319, %v876
  %v2336 = vmul.f32 %v2320, %v876
  %v2337 = vmul.f32 %v2321, %v876
  %v2338 = vmul.f32 %v2322, %v876
  %v2339 = vmul.f32 %v2323, %v876
  %v2340 = vmul.f32 %v2324, %v876
  %v2341 = vmul.f32 %v2325, %v876
  %v2342 = vmul.f32 %v2326, %v876
  %v2343 = vmul.f32 %v2327, %v876
  %v2344 = vmul.f32 %v2328, %v876
  %v2345 = vmul.f32 %v2329, %v876
  %v2346 = vmul.f32 %v2330, %v876
  %v2347 = vmul.f32 %v2331, %v876
  %v2348 = vmul.f32 %v2332, %v876
  %v2349 = vmul.f32 %v2333, %v876
  %v2350 = vmul.f32 %v2334, %v876
  %v2351 = vadd.f32 %v2302, %v2335
  %v2352 = vadd.f32 %v2303, %v2336
  %v2353 = vadd.f32 %v2304, %v2337
  %v2354 = vadd.f32 %v2305, %v2338
  %v2355 = vadd.f32 %v2306, %v2339
  %v2356 = vadd.f32 %v2307, %v2340
  %v2357 = vadd.f32 %v2308, %v2341
  %v2358 = vadd.f32 %v2309, %v2342
  %v2359 = vadd.f32 %v2310, %v2343
  %v2360 = vadd.f32 %v2311, %v2344
  %v2361 = vadd.f32 %v2312, %v2345
  %v2362 = vadd.f32 %v2313, %v2346
  %v2363 = vadd.f32 %v2314, %v2347
  %v2364 = vadd.f32 %v2315, %v2348
  %v2365 = vadd.f32 %v2316, %v2349
  %v2366 = vadd.f32 %v2317, %v2350
  %v2367 = vld [vmem:[%s2318 + $0x8] sm:$0xff]
  %v2368 = vld [vmem:[%s2318 + $0x10] sm:$0xff]
  %v2369 = vld [vmem:[%s2318 + $0x28] sm:$0xff]
  %v2370 = vld [vmem:[%s2318 + $0x30] sm:$0xff]
  %v2371 = vld [vmem:[%s2318 + $0x48] sm:$0xff]
  %v2372 = vld [vmem:[%s2318 + $0x50] sm:$0xff]
  %v2373 = vld [vmem:[%s2318 + $0x68] sm:$0xff]
  %v2374 = vld [vmem:[%s2318 + $0x70] sm:$0xff]
  %v2375 = vld [vmem:[%s2318 + $0x88] sm:$0xff]
  %v2376 = vld [vmem:[%s2318 + $0x90] sm:$0xff]
  %v2377 = vld [vmem:[%s2318 + $0xa8] sm:$0xff]
  %v2378 = vld [vmem:[%s2318 + $0xb0] sm:$0xff]
  %v2379 = vld [vmem:[%s2318 + $0xc8] sm:$0xff]
  %v2380 = vld [vmem:[%s2318 + $0xd0] sm:$0xff]
  %v2381 = vld [vmem:[%s2318 + $0xe8] sm:$0xff]
  %v2382 = vld [vmem:[%s2318 + $0xf0] sm:$0xff]
  %v2383 = vmul.f32 %v2367, %v925
  %v2384 = vmul.f32 %v2368, %v925
  %v2385 = vmul.f32 %v2369, %v925
  %v2386 = vmul.f32 %v2370, %v925
  %v2387 = vmul.f32 %v2371, %v925
  %v2388 = vmul.f32 %v2372, %v925
  %v2389 = vmul.f32 %v2373, %v925
  %v2390 = vmul.f32 %v2374, %v925
  %v2391 = vmul.f32 %v2375, %v925
  %v2392 = vmul.f32 %v2376, %v925
  %v2393 = vmul.f32 %v2377, %v925
  %v2394 = vmul.f32 %v2378, %v925
  %v2395 = vmul.f32 %v2379, %v925
  %v2396 = vmul.f32 %v2380, %v925
  %v2397 = vmul.f32 %v2381, %v925
  %v2398 = vmul.f32 %v2382, %v925
  %v2399 = vadd.f32 %v2351, %v2383
  %v2400 = vadd.f32 %v2352, %v2384
  %v2401 = vadd.f32 %v2353, %v2385
  %v2402 = vadd.f32 %v2354, %v2386
  %v2403 = vadd.f32 %v2355, %v2387
  %v2404 = vadd.f32 %v2356, %v2388
  %v2405 = vadd.f32 %v2357, %v2389
  %v2406 = vadd.f32 %v2358, %v2390
  %v2407 = vadd.f32 %v2359, %v2391
  %v2408 = vadd.f32 %v2360, %v2392
  %v2409 = vadd.f32 %v2361, %v2393
  %v2410 = vadd.f32 %v2362, %v2394
  %v2411 = vadd.f32 %v2363, %v2395
  %v2412 = vadd.f32 %v2364, %v2396
  %v2413 = vadd.f32 %v2365, %v2397
  %v2414 = vadd.f32 %v2366, %v2398
  %v2415 = vld [vmem:[%s2318 + $0x9] sm:$0xff]
  %v2416 = vld [vmem:[%s2318 + $0x11] sm:$0xff]
  %v2417 = vld [vmem:[%s2318 + $0x29] sm:$0xff]
  %v2418 = vld [vmem:[%s2318 + $0x31] sm:$0xff]
  %v2419 = vld [vmem:[%s2318 + $0x49] sm:$0xff]
  %v2420 = vld [vmem:[%s2318 + $0x51] sm:$0xff]
  %v2421 = vld [vmem:[%s2318 + $0x69] sm:$0xff]
  %v2422 = vld [vmem:[%s2318 + $0x71] sm:$0xff]
  %v2423 = vld [vmem:[%s2318 + $0x89] sm:$0xff]
  %v2424 = vld [vmem:[%s2318 + $0x91] sm:$0xff]
  %v2425 = vld [vmem:[%s2318 + $0xa9] sm:$0xff]
  %v2426 = vld [vmem:[%s2318 + $0xb1] sm:$0xff]
  %v2427 = vld [vmem:[%s2318 + $0xc9] sm:$0xff]
  %v2428 = vld [vmem:[%s2318 + $0xd1] sm:$0xff]
  %v2429 = vld [vmem:[%s2318 + $0xe9] sm:$0xff]
  %v2430 = vld [vmem:[%s2318 + $0xf1] sm:$0xff]
  %v2431 = vmul.f32 %v2415, %v974
  %v2432 = vmul.f32 %v2416, %v974
  %v2433 = vmul.f32 %v2417, %v974
  %v2434 = vmul.f32 %v2418, %v974
  %v2435 = vmul.f32 %v2419, %v974
  %v2436 = vmul.f32 %v2420, %v974
  %v2437 = vmul.f32 %v2421, %v974
  %v2438 = vmul.f32 %v2422, %v974
  %v2439 = vmul.f32 %v2423, %v974
  %v2440 = vmul.f32 %v2424, %v974
  %v2441 = vmul.f32 %v2425, %v974
  %v2442 = vmul.f32 %v2426, %v974
  %v2443 = vmul.f32 %v2427, %v974
  %v2444 = vmul.f32 %v2428, %v974
  %v2445 = vmul.f32 %v2429, %v974
  %v2446 = vmul.f32 %v2430, %v974
  %v2447 = vadd.f32 %v2399, %v2431
  %v2448 = vadd.f32 %v2400, %v2432
  %v2449 = vadd.f32 %v2401, %v2433
  %v2450 = vadd.f32 %v2402, %v2434
  %v2451 = vadd.f32 %v2403, %v2435
  %v2452 = vadd.f32 %v2404, %v2436
  %v2453 = vadd.f32 %v2405, %v2437
  %v2454 = vadd.f32 %v2406, %v2438
  %v2455 = vadd.f32 %v2407, %v2439
  %v2456 = vadd.f32 %v2408, %v2440
  %v2457 = vadd.f32 %v2409, %v2441
  %v2458 = vadd.f32 %v2410, %v2442
  %v2459 = vadd.f32 %v2411, %v2443
  %v2460 = vadd.f32 %v2412, %v2444
  %v2461 = vadd.f32 %v2413, %v2445
  %v2462 = vadd.f32 %v2414, %v2446
  %s2463 = scalar_lea.vmem [#allocation2], 896
  %v2464 = vld [vmem:[%s2463 + $0x7] sm:$0xff]
  %v2465 = vld [vmem:[%s2463 + $0xf] sm:$0xff]
  %v2466 = vld [vmem:[%s2463 + $0x27] sm:$0xff]
  %v2467 = vld [vmem:[%s2463 + $0x2f] sm:$0xff]
  %v2468 = vld [vmem:[%s2463 + $0x47] sm:$0xff]
  %v2469 = vld [vmem:[%s2463 + $0x4f] sm:$0xff]
  %v2470 = vld [vmem:[%s2463 + $0x67] sm:$0xff]
  %v2471 = vld [vmem:[%s2463 + $0x6f] sm:$0xff]
  %v2472 = vld [vmem:[%s2463 + $0x87] sm:$0xff]
  %v2473 = vld [vmem:[%s2463 + $0x8f] sm:$0xff]
  %v2474 = vld [vmem:[%s2463 + $0xa7] sm:$0xff]
  %v2475 = vld [vmem:[%s2463 + $0xaf] sm:$0xff]
  %v2476 = vld [vmem:[%s2463 + $0xc7] sm:$0xff]
  %v2477 = vld [vmem:[%s2463 + $0xcf] sm:$0xff]
  %v2478 = vld [vmem:[%s2463 + $0xe7] sm:$0xff]
  %v2479 = vld [vmem:[%s2463 + $0xef] sm:$0xff]
  %v2480 = vmul.f32 %v2464, %v1024
  %v2481 = vmul.f32 %v2465, %v1024
  %v2482 = vmul.f32 %v2466, %v1024
  %v2483 = vmul.f32 %v2467, %v1024
  %v2484 = vmul.f32 %v2468, %v1024
  %v2485 = vmul.f32 %v2469, %v1024
  %v2486 = vmul.f32 %v2470, %v1024
  %v2487 = vmul.f32 %v2471, %v1024
  %v2488 = vmul.f32 %v2472, %v1024
  %v2489 = vmul.f32 %v2473, %v1024
  %v2490 = vmul.f32 %v2474, %v1024
  %v2491 = vmul.f32 %v2475, %v1024
  %v2492 = vmul.f32 %v2476, %v1024
  %v2493 = vmul.f32 %v2477, %v1024
  %v2494 = vmul.f32 %v2478, %v1024
  %v2495 = vmul.f32 %v2479, %v1024
  %v2496 = vadd.f32 %v2447, %v2480
  %v2497 = vadd.f32 %v2448, %v2481
  %v2498 = vadd.f32 %v2449, %v2482
  %v2499 = vadd.f32 %v2450, %v2483
  %v2500 = vadd.f32 %v2451, %v2484
  %v2501 = vadd.f32 %v2452, %v2485
  %v2502 = vadd.f32 %v2453, %v2486
  %v2503 = vadd.f32 %v2454, %v2487
  %v2504 = vadd.f32 %v2455, %v2488
  %v2505 = vadd.f32 %v2456, %v2489
  %v2506 = vadd.f32 %v2457, %v2490
  %v2507 = vadd.f32 %v2458, %v2491
  %v2508 = vadd.f32 %v2459, %v2492
  %v2509 = vadd.f32 %v2460, %v2493
  %v2510 = vadd.f32 %v2461, %v2494
  %v2511 = vadd.f32 %v2462, %v2495
  %v2512 = vld [vmem:[%s2463 + $0x8] sm:$0xff]
  %v2513 = vld [vmem:[%s2463 + $0x10] sm:$0xff]
  %v2514 = vld [vmem:[%s2463 + $0x28] sm:$0xff]
  %v2515 = vld [vmem:[%s2463 + $0x30] sm:$0xff]
  %v2516 = vld [vmem:[%s2463 + $0x48] sm:$0xff]
  %v2517 = vld [vmem:[%s2463 + $0x50] sm:$0xff]
  %v2518 = vld [vmem:[%s2463 + $0x68] sm:$0xff]
  %v2519 = vld [vmem:[%s2463 + $0x70] sm:$0xff]
  %v2520 = vld [vmem:[%s2463 + $0x88] sm:$0xff]
  %v2521 = vld [vmem:[%s2463 + $0x90] sm:$0xff]
  %v2522 = vld [vmem:[%s2463 + $0xa8] sm:$0xff]
  %v2523 = vld [vmem:[%s2463 + $0xb0] sm:$0xff]
  %v2524 = vld [vmem:[%s2463 + $0xc8] sm:$0xff]
  %v2525 = vld [vmem:[%s2463 + $0xd0] sm:$0xff]
  %v2526 = vld [vmem:[%s2463 + $0xe8] sm:$0xff]
  %v2527 = vld [vmem:[%s2463 + $0xf0] sm:$0xff]
  %v2528 = vmul.f32 %v2512, %v1073
  %v2529 = vmul.f32 %v2513, %v1073
  %v2530 = vmul.f32 %v2514, %v1073
  %v2531 = vmul.f32 %v2515, %v1073
  %v2532 = vmul.f32 %v2516, %v1073
  %v2533 = vmul.f32 %v2517, %v1073
  %v2534 = vmul.f32 %v2518, %v1073
  %v2535 = vmul.f32 %v2519, %v1073
  %v2536 = vmul.f32 %v2520, %v1073
  %v2537 = vmul.f32 %v2521, %v1073
  %v2538 = vmul.f32 %v2522, %v1073
  %v2539 = vmul.f32 %v2523, %v1073
  %v2540 = vmul.f32 %v2524, %v1073
  %v2541 = vmul.f32 %v2525, %v1073
  %v2542 = vmul.f32 %v2526, %v1073
  %v2543 = vmul.f32 %v2527, %v1073
  %v2544 = vadd.f32 %v2496, %v2528
  %v2545 = vadd.f32 %v2497, %v2529
  %v2546 = vadd.f32 %v2498, %v2530
  %v2547 = vadd.f32 %v2499, %v2531
  %v2548 = vadd.f32 %v2500, %v2532
  %v2549 = vadd.f32 %v2501, %v2533
  %v2550 = vadd.f32 %v2502, %v2534
  %v2551 = vadd.f32 %v2503, %v2535
  %v2552 = vadd.f32 %v2504, %v2536
  %v2553 = vadd.f32 %v2505, %v2537
  %v2554 = vadd.f32 %v2506, %v2538
  %v2555 = vadd.f32 %v2507, %v2539
  %v2556 = vadd.f32 %v2508, %v2540
  %v2557 = vadd.f32 %v2509, %v2541
  %v2558 = vadd.f32 %v2510, %v2542
  %v2559 = vadd.f32 %v2511, %v2543
  %v2560 = vld [vmem:[%s2463 + $0x9] sm:$0xff]
  %v2561 = vld [vmem:[%s2463 + $0x11] sm:$0xff]
  %v2562 = vld [vmem:[%s2463 + $0x29] sm:$0xff]
  %v2563 = vld [vmem:[%s2463 + $0x31] sm:$0xff]
  %v2564 = vld [vmem:[%s2463 + $0x49] sm:$0xff]
  %v2565 = vld [vmem:[%s2463 + $0x51] sm:$0xff]
  %v2566 = vld [vmem:[%s2463 + $0x69] sm:$0xff]
  %v2567 = vld [vmem:[%s2463 + $0x71] sm:$0xff]
  %v2568 = vld [vmem:[%s2463 + $0x89] sm:$0xff]
  %v2569 = vld [vmem:[%s2463 + $0x91] sm:$0xff]
  %v2570 = vld [vmem:[%s2463 + $0xa9] sm:$0xff]
  %v2571 = vld [vmem:[%s2463 + $0xb1] sm:$0xff]
  %v2572 = vld [vmem:[%s2463 + $0xc9] sm:$0xff]
  %v2573 = vld [vmem:[%s2463 + $0xd1] sm:$0xff]
  %v2574 = vld [vmem:[%s2463 + $0xe9] sm:$0xff]
  %v2575 = vld [vmem:[%s2463 + $0xf1] sm:$0xff]
  %v2576 = vmul.f32 %v2560, %v1122
  %v2577 = vmul.f32 %v2561, %v1122
  %v2578 = vmul.f32 %v2562, %v1122
  %v2579 = vmul.f32 %v2563, %v1122
  %v2580 = vmul.f32 %v2564, %v1122
  %v2581 = vmul.f32 %v2565, %v1122
  %v2582 = vmul.f32 %v2566, %v1122
  %v2583 = vmul.f32 %v2567, %v1122
  %v2584 = vmul.f32 %v2568, %v1122
  %v2585 = vmul.f32 %v2569, %v1122
  %v2586 = vmul.f32 %v2570, %v1122
  %v2587 = vmul.f32 %v2571, %v1122
  %v2588 = vmul.f32 %v2572, %v1122
  %v2589 = vmul.f32 %v2573, %v1122
  %v2590 = vmul.f32 %v2574, %v1122
  %v2591 = vmul.f32 %v2575, %v1122
  %v2592 = vadd.f32 %v2544, %v2576
  %v2593 = vadd.f32 %v2545, %v2577
  %v2594 = vadd.f32 %v2546, %v2578
  %v2595 = vadd.f32 %v2547, %v2579
  %v2596 = vadd.f32 %v2548, %v2580
  %v2597 = vadd.f32 %v2549, %v2581
  %v2598 = vadd.f32 %v2550, %v2582
  %v2599 = vadd.f32 %v2551, %v2583
  %v2600 = vadd.f32 %v2552, %v2584
  %v2601 = vadd.f32 %v2553, %v2585
  %v2602 = vadd.f32 %v2554, %v2586
  %v2603 = vadd.f32 %v2555, %v2587
  %v2604 = vadd.f32 %v2556, %v2588
  %v2605 = vadd.f32 %v2557, %v2589
  %v2606 = vadd.f32 %v2558, %v2590
  %v2607 = vadd.f32 %v2559, %v2591
  %v2608 = vadd.f32 %v2592, %v1156
  %v2609 = vadd.f32 %v2593, %v1156
  %v2610 = vadd.f32 %v2594, %v1156
  %v2611 = vadd.f32 %v2595, %v1156
  %v2612 = vadd.f32 %v2596, %v1156
  %v2613 = vadd.f32 %v2597, %v1156
  %v2614 = vadd.f32 %v2598, %v1156
  %v2615 = vadd.f32 %v2599, %v1156
  %v2616 = vadd.f32 %v2600, %v1156
  %v2617 = vadd.f32 %v2601, %v1156
  %v2618 = vadd.f32 %v2602, %v1156
  %v2619 = vadd.f32 %v2603, %v1156
  %v2620 = vadd.f32 %v2604, %v1156
  %v2621 = vadd.f32 %v2605, %v1156
  %v2622 = vadd.f32 %v2606, %v1156
  %v2623 = vadd.f32 %v2607, %v1156
  %v2624 = vmax.f32 %v2608, 0.0
  %v2625 = vmax.f32 %v2609, 0.0
  %v2626 = vmax.f32 %v2610, 0.0
  %v2627 = vmax.f32 %v2611, 0.0
  %v2628 = vmax.f32 %v2612, 0.0
  %v2629 = vmax.f32 %v2613, 0.0
  %v2630 = vmax.f32 %v2614, 0.0
  %v2631 = vmax.f32 %v2615, 0.0
  %v2632 = vmax.f32 %v2616, 0.0
  %v2633 = vmax.f32 %v2617, 0.0
  %v2634 = vmax.f32 %v2618, 0.0
  %v2635 = vmax.f32 %v2619, 0.0
  %v2636 = vmax.f32 %v2620, 0.0
  %v2637 = vmax.f32 %v2621, 0.0
  %v2638 = vmax.f32 %v2622, 0.0
  %v2639 = vmax.f32 %v2623, 0.0
  %s2640 = scalar_lea.vmem [#allocation3], 864
  %2641 = vst [vmem:[%s2640 + $0x8] sm:$0xff] %v2624
  %2642 = vst [vmem:[%s2640 + $0x10] sm:$0xff] %v2625
  %2643 = vst [vmem:[%s2640 + $0x28] sm:$0xff] %v2626
  %2644 = vst [vmem:[%s2640 + $0x30] sm:$0xff] %v2627
  %2645 = vst [vmem:[%s2640 + $0x48] sm:$0xff] %v2628
  %2646 = vst [vmem:[%s2640 + $0x50] sm:$0xff] %v2629
  %2647 = vst [vmem:[%s2640 + $0x68] sm:$0xff] %v2630
  %2648 = vst [vmem:[%s2640 + $0x70] sm:$0xff] %v2631
  %2649 = vst [vmem:[%s2640 + $0x88] sm:$0xff] %v2632
  %2650 = vst [vmem:[%s2640 + $0x90] sm:$0xff] %v2633
  %2651 = vst [vmem:[%s2640 + $0xa8] sm:$0xff] %v2634
  %2652 = vst [vmem:[%s2640 + $0xb0] sm:$0xff] %v2635
  %2653 = vst [vmem:[%s2640 + $0xc8] sm:$0xff] %v2636
  %2654 = vst [vmem:[%s2640 + $0xd0] sm:$0xff] %v2637
  %2655 = vst [vmem:[%s2640 + $0xe8] sm:$0xff] %v2638
  %2656 = vst [vmem:[%s2640 + $0xf0] sm:$0xff] %v2639
  %v2657 = vld [vmem:[#allocation3 + $0x7] sm:$0xff]
  %v2658 = vld [vmem:[#allocation3 + $0xf] sm:$0xff]
  %v2659 = vld [vmem:[#allocation3 + $0x27] sm:$0xff]
  %v2660 = vld [vmem:[#allocation3 + $0x2f] sm:$0xff]
  %v2661 = vld [vmem:[#allocation3 + $0x47] sm:$0xff]
  %v2662 = vld [vmem:[#allocation3 + $0x4f] sm:$0xff]
  %v2663 = vld [vmem:[#allocation3 + $0x67] sm:$0xff]
  %v2664 = vld [vmem:[#allocation3 + $0x6f] sm:$0xff]
  %v2665 = vld [vmem:[#allocation3 + $0x87] sm:$0xff]
  %v2666 = vld [vmem:[#allocation3 + $0x8f] sm:$0xff]
  %v2667 = vld [vmem:[#allocation3 + $0xa7] sm:$0xff]
  %v2668 = vld [vmem:[#allocation3 + $0xaf] sm:$0xff]
  %v2669 = vld [vmem:[#allocation3 + $0xc7] sm:$0xff]
  %v2670 = vld [vmem:[#allocation3 + $0xcf] sm:$0xff]
  %v2671 = vld [vmem:[#allocation3 + $0xe7] sm:$0xff]
  %v2672 = vld [vmem:[#allocation3 + $0xef] sm:$0xff]
  %v2673 = vperm.slane %v707, 0
  %v2674 = vmul.f32 %v2657, %v2673
  %v2675 = vmul.f32 %v2658, %v2673
  %v2676 = vmul.f32 %v2659, %v2673
  %v2677 = vmul.f32 %v2660, %v2673
  %v2678 = vmul.f32 %v2661, %v2673
  %v2679 = vmul.f32 %v2662, %v2673
  %v2680 = vmul.f32 %v2663, %v2673
  %v2681 = vmul.f32 %v2664, %v2673
  %v2682 = vmul.f32 %v2665, %v2673
  %v2683 = vmul.f32 %v2666, %v2673
  %v2684 = vmul.f32 %v2667, %v2673
  %v2685 = vmul.f32 %v2668, %v2673
  %v2686 = vmul.f32 %v2669, %v2673
  %v2687 = vmul.f32 %v2670, %v2673
  %v2688 = vmul.f32 %v2671, %v2673
  %v2689 = vmul.f32 %v2672, %v2673
  %v2690 = vadd.f32 %v2674, 0.0
  %v2691 = vadd.f32 %v2675, 0.0
  %v2692 = vadd.f32 %v2676, 0.0
  %v2693 = vadd.f32 %v2677, 0.0
  %v2694 = vadd.f32 %v2678, 0.0
  %v2695 = vadd.f32 %v2679, 0.0
  %v2696 = vadd.f32 %v2680, 0.0
  %v2697 = vadd.f32 %v2681, 0.0
  %v2698 = vadd.f32 %v2682, 0.0
  %v2699 = vadd.f32 %v2683, 0.0
  %v2700 = vadd.f32 %v2684, 0.0
  %v2701 = vadd.f32 %v2685, 0.0
  %v2702 = vadd.f32 %v2686, 0.0
  %v2703 = vadd.f32 %v2687, 0.0
  %v2704 = vadd.f32 %v2688, 0.0
  %v2705 = vadd.f32 %v2689, 0.0
  %v2706 = vld [vmem:[#allocation3 + $0x8] sm:$0xff]
  %v2707 = vld [vmem:[#allocation3 + $0x10] sm:$0xff]
  %v2708 = vld [vmem:[#allocation3 + $0x28] sm:$0xff]
  %v2709 = vld [vmem:[#allocation3 + $0x30] sm:$0xff]
  %v2710 = vld [vmem:[#allocation3 + $0x48] sm:$0xff]
  %v2711 = vld [vmem:[#allocation3 + $0x50] sm:$0xff]
  %v2712 = vld [vmem:[#allocation3 + $0x68] sm:$0xff]
  %v2713 = vld [vmem:[#allocation3 + $0x70] sm:$0xff]
  %v2714 = vld [vmem:[#allocation3 + $0x88] sm:$0xff]
  %v2715 = vld [vmem:[#allocation3 + $0x90] sm:$0xff]
  %v2716 = vld [vmem:[#allocation3 + $0xa8] sm:$0xff]
  %v2717 = vld [vmem:[#allocation3 + $0xb0] sm:$0xff]
  %v2718 = vld [vmem:[#allocation3 + $0xc8] sm:$0xff]
  %v2719 = vld [vmem:[#allocation3 + $0xd0] sm:$0xff]
  %v2720 = vld [vmem:[#allocation3 + $0xe8] sm:$0xff]
  %v2721 = vld [vmem:[#allocation3 + $0xf0] sm:$0xff]
  %v2722 = vperm.slane %v707, 1
  %v2723 = vmul.f32 %v2706, %v2722
  %v2724 = vmul.f32 %v2707, %v2722
  %v2725 = vmul.f32 %v2708, %v2722
  %v2726 = vmul.f32 %v2709, %v2722
  %v2727 = vmul.f32 %v2710, %v2722
  %v2728 = vmul.f32 %v2711, %v2722
  %v2729 = vmul.f32 %v2712, %v2722
  %v2730 = vmul.f32 %v2713, %v2722
  %v2731 = vmul.f32 %v2714, %v2722
  %v2732 = vmul.f32 %v2715, %v2722
  %v2733 = vmul.f32 %v2716, %v2722
  %v2734 = vmul.f32 %v2717, %v2722
  %v2735 = vmul.f32 %v2718, %v2722
  %v2736 = vmul.f32 %v2719, %v2722
  %v2737 = vmul.f32 %v2720, %v2722
  %v2738 = vmul.f32 %v2721, %v2722
  %v2739 = vadd.f32 %v2690, %v2723
  %v2740 = vadd.f32 %v2691, %v2724
  %v2741 = vadd.f32 %v2692, %v2725
  %v2742 = vadd.f32 %v2693, %v2726
  %v2743 = vadd.f32 %v2694, %v2727
  %v2744 = vadd.f32 %v2695, %v2728
  %v2745 = vadd.f32 %v2696, %v2729
  %v2746 = vadd.f32 %v2697, %v2730
  %v2747 = vadd.f32 %v2698, %v2731
  %v2748 = vadd.f32 %v2699, %v2732
  %v2749 = vadd.f32 %v2700, %v2733
  %v2750 = vadd.f32 %v2701, %v2734
  %v2751 = vadd.f32 %v2702, %v2735
  %v2752 = vadd.f32 %v2703, %v2736
  %v2753 = vadd.f32 %v2704, %v2737
  %v2754 = vadd.f32 %v2705, %v2738
  %v2755 = vld [vmem:[#allocation3 + $0x9] sm:$0xff]
  %v2756 = vld [vmem:[#allocation3 + $0x11] sm:$0xff]
  %v2757 = vld [vmem:[#allocation3 + $0x29] sm:$0xff]
  %v2758 = vld [vmem:[#allocation3 + $0x31] sm:$0xff]
  %v2759 = vld [vmem:[#allocation3 + $0x49] sm:$0xff]
  %v2760 = vld [vmem:[#allocation3 + $0x51] sm:$0xff]
  %v2761 = vld [vmem:[#allocation3 + $0x69] sm:$0xff]
  %v2762 = vld [vmem:[#allocation3 + $0x71] sm:$0xff]
  %v2763 = vld [vmem:[#allocation3 + $0x89] sm:$0xff]
  %v2764 = vld [vmem:[#allocation3 + $0x91] sm:$0xff]
  %v2765 = vld [vmem:[#allocation3 + $0xa9] sm:$0xff]
  %v2766 = vld [vmem:[#allocation3 + $0xb1] sm:$0xff]
  %v2767 = vld [vmem:[#allocation3 + $0xc9] sm:$0xff]
  %v2768 = vld [vmem:[#allocation3 + $0xd1] sm:$0xff]
  %v2769 = vld [vmem:[#allocation3 + $0xe9] sm:$0xff]
  %v2770 = vld [vmem:[#allocation3 + $0xf1] sm:$0xff]
  %v2771 = vperm.slane %v707, 2
  %v2772 = vmul.f32 %v2755, %v2771
  %v2773 = vmul.f32 %v2756, %v2771
  %v2774 = vmul.f32 %v2757, %v2771
  %v2775 = vmul.f32 %v2758, %v2771
  %v2776 = vmul.f32 %v2759, %v2771
  %v2777 = vmul.f32 %v2760, %v2771
  %v2778 = vmul.f32 %v2761, %v2771
  %v2779 = vmul.f32 %v2762, %v2771
  %v2780 = vmul.f32 %v2763, %v2771
  %v2781 = vmul.f32 %v2764, %v2771
  %v2782 = vmul.f32 %v2765, %v2771
  %v2783 = vmul.f32 %v2766, %v2771
  %v2784 = vmul.f32 %v2767, %v2771
  %v2785 = vmul.f32 %v2768, %v2771
  %v2786 = vmul.f32 %v2769, %v2771
  %v2787 = vmul.f32 %v2770, %v2771
  %v2788 = vadd.f32 %v2739, %v2772
  %v2789 = vadd.f32 %v2740, %v2773
  %v2790 = vadd.f32 %v2741, %v2774
  %v2791 = vadd.f32 %v2742, %v2775
  %v2792 = vadd.f32 %v2743, %v2776
  %v2793 = vadd.f32 %v2744, %v2777
  %v2794 = vadd.f32 %v2745, %v2778
  %v2795 = vadd.f32 %v2746, %v2779
  %v2796 = vadd.f32 %v2747, %v2780
  %v2797 = vadd.f32 %v2748, %v2781
  %v2798 = vadd.f32 %v2749, %v2782
  %v2799 = vadd.f32 %v2750, %v2783
  %v2800 = vadd.f32 %v2751, %v2784
  %v2801 = vadd.f32 %v2752, %v2785
  %v2802 = vadd.f32 %v2753, %v2786
  %v2803 = vadd.f32 %v2754, %v2787
  %v2804 = vld [vmem:[%s1190 + $0x7] sm:$0xff]
  %v2805 = vld [vmem:[%s1190 + $0xf] sm:$0xff]
  %v2806 = vld [vmem:[%s1190 + $0x27] sm:$0xff]
  %v2807 = vld [vmem:[%s1190 + $0x2f] sm:$0xff]
  %v2808 = vld [vmem:[%s1190 + $0x47] sm:$0xff]
  %v2809 = vld [vmem:[%s1190 + $0x4f] sm:$0xff]
  %v2810 = vld [vmem:[%s1190 + $0x67] sm:$0xff]
  %v2811 = vld [vmem:[%s1190 + $0x6f] sm:$0xff]
  %v2812 = vld [vmem:[%s1190 + $0x87] sm:$0xff]
  %v2813 = vld [vmem:[%s1190 + $0x8f] sm:$0xff]
  %v2814 = vld [vmem:[%s1190 + $0xa7] sm:$0xff]
  %v2815 = vld [vmem:[%s1190 + $0xaf] sm:$0xff]
  %v2816 = vld [vmem:[%s1190 + $0xc7] sm:$0xff]
  %v2817 = vld [vmem:[%s1190 + $0xcf] sm:$0xff]
  %v2818 = vld [vmem:[%s1190 + $0xe7] sm:$0xff]
  %v2819 = vld [vmem:[%s1190 + $0xef] sm:$0xff]
  %v2820 = vperm.slane %v707, 3
  %v2821 = vmul.f32 %v2804, %v2820
  %v2822 = vmul.f32 %v2805, %v2820
  %v2823 = vmul.f32 %v2806, %v2820
  %v2824 = vmul.f32 %v2807, %v2820
  %v2825 = vmul.f32 %v2808, %v2820
  %v2826 = vmul.f32 %v2809, %v2820
  %v2827 = vmul.f32 %v2810, %v2820
  %v2828 = vmul.f32 %v2811, %v2820
  %v2829 = vmul.f32 %v2812, %v2820
  %v2830 = vmul.f32 %v2813, %v2820
  %v2831 = vmul.f32 %v2814, %v2820
  %v2832 = vmul.f32 %v2815, %v2820
  %v2833 = vmul.f32 %v2816, %v2820
  %v2834 = vmul.f32 %v2817, %v2820
  %v2835 = vmul.f32 %v2818, %v2820
  %v2836 = vmul.f32 %v2819, %v2820
  %v2837 = vadd.f32 %v2788, %v2821
  %v2838 = vadd.f32 %v2789, %v2822
  %v2839 = vadd.f32 %v2790, %v2823
  %v2840 = vadd.f32 %v2791, %v2824
  %v2841 = vadd.f32 %v2792, %v2825
  %v2842 = vadd.f32 %v2793, %v2826
  %v2843 = vadd.f32 %v2794, %v2827
  %v2844 = vadd.f32 %v2795, %v2828
  %v2845 = vadd.f32 %v2796, %v2829
  %v2846 = vadd.f32 %v2797, %v2830
  %v2847 = vadd.f32 %v2798, %v2831
  %v2848 = vadd.f32 %v2799, %v2832
  %v2849 = vadd.f32 %v2800, %v2833
  %v2850 = vadd.f32 %v2801, %v2834
  %v2851 = vadd.f32 %v2802, %v2835
  %v2852 = vadd.f32 %v2803, %v2836
  %v2853 = vld [vmem:[%s1190 + $0x8] sm:$0xff]
  %v2854 = vld [vmem:[%s1190 + $0x10] sm:$0xff]
  %v2855 = vld [vmem:[%s1190 + $0x28] sm:$0xff]
  %v2856 = vld [vmem:[%s1190 + $0x30] sm:$0xff]
  %v2857 = vld [vmem:[%s1190 + $0x48] sm:$0xff]
  %v2858 = vld [vmem:[%s1190 + $0x50] sm:$0xff]
  %v2859 = vld [vmem:[%s1190 + $0x68] sm:$0xff]
  %v2860 = vld [vmem:[%s1190 + $0x70] sm:$0xff]
  %v2861 = vld [vmem:[%s1190 + $0x88] sm:$0xff]
  %v2862 = vld [vmem:[%s1190 + $0x90] sm:$0xff]
  %v2863 = vld [vmem:[%s1190 + $0xa8] sm:$0xff]
  %v2864 = vld [vmem:[%s1190 + $0xb0] sm:$0xff]
  %v2865 = vld [vmem:[%s1190 + $0xc8] sm:$0xff]
  %v2866 = vld [vmem:[%s1190 + $0xd0] sm:$0xff]
  %v2867 = vld [vmem:[%s1190 + $0xe8] sm:$0xff]
  %v2868 = vld [vmem:[%s1190 + $0xf0] sm:$0xff]
  %v2869 = vperm.slane %v707, 4
  %v2870 = vmul.f32 %v2853, %v2869
  %v2871 = vmul.f32 %v2854, %v2869
  %v2872 = vmul.f32 %v2855, %v2869
  %v2873 = vmul.f32 %v2856, %v2869
  %v2874 = vmul.f32 %v2857, %v2869
  %v2875 = vmul.f32 %v2858, %v2869
  %v2876 = vmul.f32 %v2859, %v2869
  %v2877 = vmul.f32 %v2860, %v2869
  %v2878 = vmul.f32 %v2861, %v2869
  %v2879 = vmul.f32 %v2862, %v2869
  %v2880 = vmul.f32 %v2863, %v2869
  %v2881 = vmul.f32 %v2864, %v2869
  %v2882 = vmul.f32 %v2865, %v2869
  %v2883 = vmul.f32 %v2866, %v2869
  %v2884 = vmul.f32 %v2867, %v2869
  %v2885 = vmul.f32 %v2868, %v2869
  %v2886 = vadd.f32 %v2837, %v2870
  %v2887 = vadd.f32 %v2838, %v2871
  %v2888 = vadd.f32 %v2839, %v2872
  %v2889 = vadd.f32 %v2840, %v2873
  %v2890 = vadd.f32 %v2841, %v2874
  %v2891 = vadd.f32 %v2842, %v2875
  %v2892 = vadd.f32 %v2843, %v2876
  %v2893 = vadd.f32 %v2844, %v2877
  %v2894 = vadd.f32 %v2845, %v2878
  %v2895 = vadd.f32 %v2846, %v2879
  %v2896 = vadd.f32 %v2847, %v2880
  %v2897 = vadd.f32 %v2848, %v2881
  %v2898 = vadd.f32 %v2849, %v2882
  %v2899 = vadd.f32 %v2850, %v2883
  %v2900 = vadd.f32 %v2851, %v2884
  %v2901 = vadd.f32 %v2852, %v2885
  %v2902 = vld [vmem:[%s1190 + $0x9] sm:$0xff]
  %v2903 = vld [vmem:[%s1190 + $0x11] sm:$0xff]
  %v2904 = vld [vmem:[%s1190 + $0x29] sm:$0xff]
  %v2905 = vld [vmem:[%s1190 + $0x31] sm:$0xff]
  %v2906 = vld [vmem:[%s1190 + $0x49] sm:$0xff]
  %v2907 = vld [vmem:[%s1190 + $0x51] sm:$0xff]
  %v2908 = vld [vmem:[%s1190 + $0x69] sm:$0xff]
  %v2909 = vld [vmem:[%s1190 + $0x71] sm:$0xff]
  %v2910 = vld [vmem:[%s1190 + $0x89] sm:$0xff]
  %v2911 = vld [vmem:[%s1190 + $0x91] sm:$0xff]
  %v2912 = vld [vmem:[%s1190 + $0xa9] sm:$0xff]
  %v2913 = vld [vmem:[%s1190 + $0xb1] sm:$0xff]
  %v2914 = vld [vmem:[%s1190 + $0xc9] sm:$0xff]
  %v2915 = vld [vmem:[%s1190 + $0xd1] sm:$0xff]
  %v2916 = vld [vmem:[%s1190 + $0xe9] sm:$0xff]
  %v2917 = vld [vmem:[%s1190 + $0xf1] sm:$0xff]
  %v2918 = vperm.slane %v707, 5
  %v2919 = vmul.f32 %v2902, %v2918
  %v2920 = vmul.f32 %v2903, %v2918
  %v2921 = vmul.f32 %v2904, %v2918
  %v2922 = vmul.f32 %v2905, %v2918
  %v2923 = vmul.f32 %v2906, %v2918
  %v2924 = vmul.f32 %v2907, %v2918
  %v2925 = vmul.f32 %v2908, %v2918
  %v2926 = vmul.f32 %v2909, %v2918
  %v2927 = vmul.f32 %v2910, %v2918
  %v2928 = vmul.f32 %v2911, %v2918
  %v2929 = vmul.f32 %v2912, %v2918
  %v2930 = vmul.f32 %v2913, %v2918
  %v2931 = vmul.f32 %v2914, %v2918
  %v2932 = vmul.f32 %v2915, %v2918
  %v2933 = vmul.f32 %v2916, %v2918
  %v2934 = vmul.f32 %v2917, %v2918
  %v2935 = vadd.f32 %v2886, %v2919
  %v2936 = vadd.f32 %v2887, %v2920
  %v2937 = vadd.f32 %v2888, %v2921
  %v2938 = vadd.f32 %v2889, %v2922
  %v2939 = vadd.f32 %v2890, %v2923
  %v2940 = vadd.f32 %v2891, %v2924
  %v2941 = vadd.f32 %v2892, %v2925
  %v2942 = vadd.f32 %v2893, %v2926
  %v2943 = vadd.f32 %v2894, %v2927
  %v2944 = vadd.f32 %v2895, %v2928
  %v2945 = vadd.f32 %v2896, %v2929
  %v2946 = vadd.f32 %v2897, %v2930
  %v2947 = vadd.f32 %v2898, %v2931
  %v2948 = vadd.f32 %v2899, %v2932
  %v2949 = vadd.f32 %v2900, %v2933
  %v2950 = vadd.f32 %v2901, %v2934
  %s2951 = scalar_lea.vmem [#allocation3], 64
  %v2952 = vld [vmem:[%s2951 + $0x7] sm:$0xff]
  %v2953 = vld [vmem:[%s2951 + $0xf] sm:$0xff]
  %v2954 = vld [vmem:[%s2951 + $0x27] sm:$0xff]
  %v2955 = vld [vmem:[%s2951 + $0x2f] sm:$0xff]
  %v2956 = vld [vmem:[%s2951 + $0x47] sm:$0xff]
  %v2957 = vld [vmem:[%s2951 + $0x4f] sm:$0xff]
  %v2958 = vld [vmem:[%s2951 + $0x67] sm:$0xff]
  %v2959 = vld [vmem:[%s2951 + $0x6f] sm:$0xff]
  %v2960 = vld [vmem:[%s2951 + $0x87] sm:$0xff]
  %v2961 = vld [vmem:[%s2951 + $0x8f] sm:$0xff]
  %v2962 = vld [vmem:[%s2951 + $0xa7] sm:$0xff]
  %v2963 = vld [vmem:[%s2951 + $0xaf] sm:$0xff]
  %v2964 = vld [vmem:[%s2951 + $0xc7] sm:$0xff]
  %v2965 = vld [vmem:[%s2951 + $0xcf] sm:$0xff]
  %v2966 = vld [vmem:[%s2951 + $0xe7] sm:$0xff]
  %v2967 = vld [vmem:[%s2951 + $0xef] sm:$0xff]
  %v2968 = vperm.slane %v707, 6
  %v2969 = vmul.f32 %v2952, %v2968
  %v2970 = vmul.f32 %v2953, %v2968
  %v2971 = vmul.f32 %v2954, %v2968
  %v2972 = vmul.f32 %v2955, %v2968
  %v2973 = vmul.f32 %v2956, %v2968
  %v2974 = vmul.f32 %v2957, %v2968
  %v2975 = vmul.f32 %v2958, %v2968
  %v2976 = vmul.f32 %v2959, %v2968
  %v2977 = vmul.f32 %v2960, %v2968
  %v2978 = vmul.f32 %v2961, %v2968
  %v2979 = vmul.f32 %v2962, %v2968
  %v2980 = vmul.f32 %v2963, %v2968
  %v2981 = vmul.f32 %v2964, %v2968
  %v2982 = vmul.f32 %v2965, %v2968
  %v2983 = vmul.f32 %v2966, %v2968
  %v2984 = vmul.f32 %v2967, %v2968
  %v2985 = vadd.f32 %v2935, %v2969
  %v2986 = vadd.f32 %v2936, %v2970
  %v2987 = vadd.f32 %v2937, %v2971
  %v2988 = vadd.f32 %v2938, %v2972
  %v2989 = vadd.f32 %v2939, %v2973
  %v2990 = vadd.f32 %v2940, %v2974
  %v2991 = vadd.f32 %v2941, %v2975
  %v2992 = vadd.f32 %v2942, %v2976
  %v2993 = vadd.f32 %v2943, %v2977
  %v2994 = vadd.f32 %v2944, %v2978
  %v2995 = vadd.f32 %v2945, %v2979
  %v2996 = vadd.f32 %v2946, %v2980
  %v2997 = vadd.f32 %v2947, %v2981
  %v2998 = vadd.f32 %v2948, %v2982
  %v2999 = vadd.f32 %v2949, %v2983
  %v3000 = vadd.f32 %v2950, %v2984
  %v3001 = vld [vmem:[%s2951 + $0x8] sm:$0xff]
  %v3002 = vld [vmem:[%s2951 + $0x10] sm:$0xff]
  %v3003 = vld [vmem:[%s2951 + $0x28] sm:$0xff]
  %v3004 = vld [vmem:[%s2951 + $0x30] sm:$0xff]
  %v3005 = vld [vmem:[%s2951 + $0x48] sm:$0xff]
  %v3006 = vld [vmem:[%s2951 + $0x50] sm:$0xff]
  %v3007 = vld [vmem:[%s2951 + $0x68] sm:$0xff]
  %v3008 = vld [vmem:[%s2951 + $0x70] sm:$0xff]
  %v3009 = vld [vmem:[%s2951 + $0x88] sm:$0xff]
  %v3010 = vld [vmem:[%s2951 + $0x90] sm:$0xff]
  %v3011 = vld [vmem:[%s2951 + $0xa8] sm:$0xff]
  %v3012 = vld [vmem:[%s2951 + $0xb0] sm:$0xff]
  %v3013 = vld [vmem:[%s2951 + $0xc8] sm:$0xff]
  %v3014 = vld [vmem:[%s2951 + $0xd0] sm:$0xff]
  %v3015 = vld [vmem:[%s2951 + $0xe8] sm:$0xff]
  %v3016 = vld [vmem:[%s2951 + $0xf0] sm:$0xff]
  %v3017 = vperm.slane %v707, 7
  %v3018 = vmul.f32 %v3001, %v3017
  %v3019 = vmul.f32 %v3002, %v3017
  %v3020 = vmul.f32 %v3003, %v3017
  %v3021 = vmul.f32 %v3004, %v3017
  %v3022 = vmul.f32 %v3005, %v3017
  %v3023 = vmul.f32 %v3006, %v3017
  %v3024 = vmul.f32 %v3007, %v3017
  %v3025 = vmul.f32 %v3008, %v3017
  %v3026 = vmul.f32 %v3009, %v3017
  %v3027 = vmul.f32 %v3010, %v3017
  %v3028 = vmul.f32 %v3011, %v3017
  %v3029 = vmul.f32 %v3012, %v3017
  %v3030 = vmul.f32 %v3013, %v3017
  %v3031 = vmul.f32 %v3014, %v3017
  %v3032 = vmul.f32 %v3015, %v3017
  %v3033 = vmul.f32 %v3016, %v3017
  %v3034 = vadd.f32 %v2985, %v3018
  %v3035 = vadd.f32 %v2986, %v3019
  %v3036 = vadd.f32 %v2987, %v3020
  %v3037 = vadd.f32 %v2988, %v3021
  %v3038 = vadd.f32 %v2989, %v3022
  %v3039 = vadd.f32 %v2990, %v3023
  %v3040 = vadd.f32 %v2991, %v3024
  %v3041 = vadd.f32 %v2992, %v3025
  %v3042 = vadd.f32 %v2993, %v3026
  %v3043 = vadd.f32 %v2994, %v3027
  %v3044 = vadd.f32 %v2995, %v3028
  %v3045 = vadd.f32 %v2996, %v3029
  %v3046 = vadd.f32 %v2997, %v3030
  %v3047 = vadd.f32 %v2998, %v3031
  %v3048 = vadd.f32 %v2999, %v3032
  %v3049 = vadd.f32 %v3000, %v3033
  %v3050 = vld [vmem:[%s2951 + $0x9] sm:$0xff]
  %v3051 = vld [vmem:[%s2951 + $0x11] sm:$0xff]
  %v3052 = vld [vmem:[%s2951 + $0x29] sm:$0xff]
  %v3053 = vld [vmem:[%s2951 + $0x31] sm:$0xff]
  %v3054 = vld [vmem:[%s2951 + $0x49] sm:$0xff]
  %v3055 = vld [vmem:[%s2951 + $0x51] sm:$0xff]
  %v3056 = vld [vmem:[%s2951 + $0x69] sm:$0xff]
  %v3057 = vld [vmem:[%s2951 + $0x71] sm:$0xff]
  %v3058 = vld [vmem:[%s2951 + $0x89] sm:$0xff]
  %v3059 = vld [vmem:[%s2951 + $0x91] sm:$0xff]
  %v3060 = vld [vmem:[%s2951 + $0xa9] sm:$0xff]
  %v3061 = vld [vmem:[%s2951 + $0xb1] sm:$0xff]
  %v3062 = vld [vmem:[%s2951 + $0xc9] sm:$0xff]
  %v3063 = vld [vmem:[%s2951 + $0xd1] sm:$0xff]
  %v3064 = vld [vmem:[%s2951 + $0xe9] sm:$0xff]
  %v3065 = vld [vmem:[%s2951 + $0xf1] sm:$0xff]
  %v3066 = vperm.slane %v708, 0
  %v3067 = vmul.f32 %v3050, %v3066
  %v3068 = vmul.f32 %v3051, %v3066
  %v3069 = vmul.f32 %v3052, %v3066
  %v3070 = vmul.f32 %v3053, %v3066
  %v3071 = vmul.f32 %v3054, %v3066
  %v3072 = vmul.f32 %v3055, %v3066
  %v3073 = vmul.f32 %v3056, %v3066
  %v3074 = vmul.f32 %v3057, %v3066
  %v3075 = vmul.f32 %v3058, %v3066
  %v3076 = vmul.f32 %v3059, %v3066
  %v3077 = vmul.f32 %v3060, %v3066
  %v3078 = vmul.f32 %v3061, %v3066
  %v3079 = vmul.f32 %v3062, %v3066
  %v3080 = vmul.f32 %v3063, %v3066
  %v3081 = vmul.f32 %v3064, %v3066
  %v3082 = vmul.f32 %v3065, %v3066
  %v3083 = vadd.f32 %v3034, %v3067
  %v3084 = vadd.f32 %v3035, %v3068
  %v3085 = vadd.f32 %v3036, %v3069
  %v3086 = vadd.f32 %v3037, %v3070
  %v3087 = vadd.f32 %v3038, %v3071
  %v3088 = vadd.f32 %v3039, %v3072
  %v3089 = vadd.f32 %v3040, %v3073
  %v3090 = vadd.f32 %v3041, %v3074
  %v3091 = vadd.f32 %v3042, %v3075
  %v3092 = vadd.f32 %v3043, %v3076
  %v3093 = vadd.f32 %v3044, %v3077
  %v3094 = vadd.f32 %v3045, %v3078
  %v3095 = vadd.f32 %v3046, %v3079
  %v3096 = vadd.f32 %v3047, %v3080
  %v3097 = vadd.f32 %v3048, %v3081
  %v3098 = vadd.f32 %v3049, %v3082
  %v3100 = vperm.slane %v710, 0
  %v3102 = vadd.f32 %v3083, %v3100
  %v3103 = vadd.f32 %v3084, %v3100
  %v3104 = vadd.f32 %v3085, %v3100
  %v3105 = vadd.f32 %v3086, %v3100
  %v3106 = vadd.f32 %v3087, %v3100
  %v3107 = vadd.f32 %v3088, %v3100
  %v3108 = vadd.f32 %v3089, %v3100
  %v3109 = vadd.f32 %v3090, %v3100
  %v3110 = vadd.f32 %v3091, %v3100
  %v3111 = vadd.f32 %v3092, %v3100
  %v3112 = vadd.f32 %v3093, %v3100
  %v3113 = vadd.f32 %v3094, %v3100
  %v3114 = vadd.f32 %v3095, %v3100
  %v3115 = vadd.f32 %v3096, %v3100
  %v3116 = vadd.f32 %v3097, %v3100
  %v3117 = vadd.f32 %v3098, %v3100
  %v3118 = vmax.f32 %v3102, 0.0
  %v3119 = vmax.f32 %v3103, 0.0
  %v3120 = vmax.f32 %v3104, 0.0
  %v3121 = vmax.f32 %v3105, 0.0
  %v3122 = vmax.f32 %v3106, 0.0
  %v3123 = vmax.f32 %v3107, 0.0
  %v3124 = vmax.f32 %v3108, 0.0
  %v3125 = vmax.f32 %v3109, 0.0
  %v3126 = vmax.f32 %v3110, 0.0
  %v3127 = vmax.f32 %v3111, 0.0
  %v3128 = vmax.f32 %v3112, 0.0
  %v3129 = vmax.f32 %v3113, 0.0
  %v3130 = vmax.f32 %v3114, 0.0
  %v3131 = vmax.f32 %v3115, 0.0
  %v3132 = vmax.f32 %v3116, 0.0
  %v3133 = vmax.f32 %v3117, 0.0
  %v3134 = vpack.c.bf16 %v3119, %v3118
  %v3135 = vpack.c.bf16 %v3121, %v3120
  %v3136 = vpack.c.bf16 %v3123, %v3122
  %v3137 = vpack.c.bf16 %v3125, %v3124
  %v3138 = vpack.c.bf16 %v3127, %v3126
  %v3139 = vpack.c.bf16 %v3129, %v3128
  %v3140 = vpack.c.bf16 %v3131, %v3130
  %v3141 = vpack.c.bf16 %v3133, %v3132
  %3143 = vset.pattern.permute.xlu0 0
  %3144 = vperm.xlu0 %3143, %v712
  %v3145 = vpop.permute.xlu0 %3144
  %3147 = vmatpush.bf16.xpose.msra.mxu0 %v3141
  %3148 = vmatpush.bf16.xpose.msra.mxu0 %v3140
  %3149 = vmatpush.bf16.xpose.msra.mxu0 %v3139
  %3150 = vmatpush.bf16.xpose.msra.mxu0 %v3138
  %3151 = vmatpush.bf16.xpose.msra.mxu0 %v3137
  %3152 = vmatpush.bf16.xpose.msra.mxu0 %v3136
  %3153 = vmatpush.bf16.xpose.msra.mxu0 %v3135
  %3154 = vmatpush.bf16.xpose.msra.mxu0 %v3134
  %3155 = vmatmul.bf16.gmra.mxu0 %v711
  %v3156 = vpop.f32.mrf.mxu0
  %v3157 = vadd.f32 %v3145, %v3156
  %v3158 = vpop.f32.mrf.mxu0
  %3159 = vdwg.mxu0
  %3160 = vst [vmem:[%s9] sm:$0x3] %v3157
  %s3161 = scalar_lea.vmem [#allocation3], 256
  %v3162 = vld [vmem:[%s3161 + $0x7] sm:$0xff]
  %v3163 = vld [vmem:[%s3161 + $0xf] sm:$0xff]
  %v3164 = vld [vmem:[%s3161 + $0x27] sm:$0xff]
  %v3165 = vld [vmem:[%s3161 + $0x2f] sm:$0xff]
  %v3166 = vld [vmem:[%s3161 + $0x47] sm:$0xff]
  %v3167 = vld [vmem:[%s3161 + $0x4f] sm:$0xff]
  %v3168 = vld [vmem:[%s3161 + $0x67] sm:$0xff]
  %v3169 = vld [vmem:[%s3161 + $0x6f] sm:$0xff]
  %v3170 = vld [vmem:[%s3161 + $0x87] sm:$0xff]
  %v3171 = vld [vmem:[%s3161 + $0x8f] sm:$0xff]
  %v3172 = vld [vmem:[%s3161 + $0xa7] sm:$0xff]
  %v3173 = vld [vmem:[%s3161 + $0xaf] sm:$0xff]
  %v3174 = vld [vmem:[%s3161 + $0xc7] sm:$0xff]
  %v3175 = vld [vmem:[%s3161 + $0xcf] sm:$0xff]
  %v3176 = vld [vmem:[%s3161 + $0xe7] sm:$0xff]
  %v3177 = vld [vmem:[%s3161 + $0xef] sm:$0xff]
  %v3178 = vmul.f32 %v3162, %v2673
  %v3179 = vmul.f32 %v3163, %v2673
  %v3180 = vmul.f32 %v3164, %v2673
  %v3181 = vmul.f32 %v3165, %v2673
  %v3182 = vmul.f32 %v3166, %v2673
  %v3183 = vmul.f32 %v3167, %v2673
  %v3184 = vmul.f32 %v3168, %v2673
  %v3185 = vmul.f32 %v3169, %v2673
  %v3186 = vmul.f32 %v3170, %v2673
  %v3187 = vmul.f32 %v3171, %v2673
  %v3188 = vmul.f32 %v3172, %v2673
  %v3189 = vmul.f32 %v3173, %v2673
  %v3190 = vmul.f32 %v3174, %v2673
  %v3191 = vmul.f32 %v3175, %v2673
  %v3192 = vmul.f32 %v3176, %v2673
  %v3193 = vmul.f32 %v3177, %v2673
  %v3194 = vadd.f32 %v3178, 0.0
  %v3195 = vadd.f32 %v3179, 0.0
  %v3196 = vadd.f32 %v3180, 0.0
  %v3197 = vadd.f32 %v3181, 0.0
  %v3198 = vadd.f32 %v3182, 0.0
  %v3199 = vadd.f32 %v3183, 0.0
  %v3200 = vadd.f32 %v3184, 0.0
  %v3201 = vadd.f32 %v3185, 0.0
  %v3202 = vadd.f32 %v3186, 0.0
  %v3203 = vadd.f32 %v3187, 0.0
  %v3204 = vadd.f32 %v3188, 0.0
  %v3205 = vadd.f32 %v3189, 0.0
  %v3206 = vadd.f32 %v3190, 0.0
  %v3207 = vadd.f32 %v3191, 0.0
  %v3208 = vadd.f32 %v3192, 0.0
  %v3209 = vadd.f32 %v3193, 0.0
  %v3210 = vld [vmem:[%s3161 + $0x8] sm:$0xff]
  %v3211 = vld [vmem:[%s3161 + $0x10] sm:$0xff]
  %v3212 = vld [vmem:[%s3161 + $0x28] sm:$0xff]
  %v3213 = vld [vmem:[%s3161 + $0x30] sm:$0xff]
  %v3214 = vld [vmem:[%s3161 + $0x48] sm:$0xff]
  %v3215 = vld [vmem:[%s3161 + $0x50] sm:$0xff]
  %v3216 = vld [vmem:[%s3161 + $0x68] sm:$0xff]
  %v3217 = vld [vmem:[%s3161 + $0x70] sm:$0xff]
  %v3218 = vld [vmem:[%s3161 + $0x88] sm:$0xff]
  %v3219 = vld [vmem:[%s3161 + $0x90] sm:$0xff]
  %v3220 = vld [vmem:[%s3161 + $0xa8] sm:$0xff]
  %v3221 = vld [vmem:[%s3161 + $0xb0] sm:$0xff]
  %v3222 = vld [vmem:[%s3161 + $0xc8] sm:$0xff]
  %v3223 = vld [vmem:[%s3161 + $0xd0] sm:$0xff]
  %v3224 = vld [vmem:[%s3161 + $0xe8] sm:$0xff]
  %v3225 = vld [vmem:[%s3161 + $0xf0] sm:$0xff]
  %v3226 = vmul.f32 %v3210, %v2722
  %v3227 = vmul.f32 %v3211, %v2722
  %v3228 = vmul.f32 %v3212, %v2722
  %v3229 = vmul.f32 %v3213, %v2722
  %v3230 = vmul.f32 %v3214, %v2722
  %v3231 = vmul.f32 %v3215, %v2722
  %v3232 = vmul.f32 %v3216, %v2722
  %v3233 = vmul.f32 %v3217, %v2722
  %v3234 = vmul.f32 %v3218, %v2722
  %v3235 = vmul.f32 %v3219, %v2722
  %v3236 = vmul.f32 %v3220, %v2722
  %v3237 = vmul.f32 %v3221, %v2722
  %v3238 = vmul.f32 %v3222, %v2722
  %v3239 = vmul.f32 %v3223, %v2722
  %v3240 = vmul.f32 %v3224, %v2722
  %v3241 = vmul.f32 %v3225, %v2722
  %v3242 = vadd.f32 %v3194, %v3226
  %v3243 = vadd.f32 %v3195, %v3227
  %v3244 = vadd.f32 %v3196, %v3228
  %v3245 = vadd.f32 %v3197, %v3229
  %v3246 = vadd.f32 %v3198, %v3230
  %v3247 = vadd.f32 %v3199, %v3231
  %v3248 = vadd.f32 %v3200, %v3232
  %v3249 = vadd.f32 %v3201, %v3233
  %v3250 = vadd.f32 %v3202, %v3234
  %v3251 = vadd.f32 %v3203, %v3235
  %v3252 = vadd.f32 %v3204, %v3236
  %v3253 = vadd.f32 %v3205, %v3237
  %v3254 = vadd.f32 %v3206, %v3238
  %v3255 = vadd.f32 %v3207, %v3239
  %v3256 = vadd.f32 %v3208, %v3240
  %v3257 = vadd.f32 %v3209, %v3241
  %v3258 = vld [vmem:[%s3161 + $0x9] sm:$0xff]
  %v3259 = vld [vmem:[%s3161 + $0x11] sm:$0xff]
  %v3260 = vld [vmem:[%s3161 + $0x29] sm:$0xff]
  %v3261 = vld [vmem:[%s3161 + $0x31] sm:$0xff]
  %v3262 = vld [vmem:[%s3161 + $0x49] sm:$0xff]
  %v3263 = vld [vmem:[%s3161 + $0x51] sm:$0xff]
  %v3264 = vld [vmem:[%s3161 + $0x69] sm:$0xff]
  %v3265 = vld [vmem:[%s3161 + $0x71] sm:$0xff]
  %v3266 = vld [vmem:[%s3161 + $0x89] sm:$0xff]
  %v3267 = vld [vmem:[%s3161 + $0x91] sm:$0xff]
  %v3268 = vld [vmem:[%s3161 + $0xa9] sm:$0xff]
  %v3269 = vld [vmem:[%s3161 + $0xb1] sm:$0xff]
  %v3270 = vld [vmem:[%s3161 + $0xc9] sm:$0xff]
  %v3271 = vld [vmem:[%s3161 + $0xd1] sm:$0xff]
  %v3272 = vld [vmem:[%s3161 + $0xe9] sm:$0xff]
  %v3273 = vld [vmem:[%s3161 + $0xf1] sm:$0xff]
  %v3274 = vmul.f32 %v3258, %v2771
  %v3275 = vmul.f32 %v3259, %v2771
  %v3276 = vmul.f32 %v3260, %v2771
  %v3277 = vmul.f32 %v3261, %v2771
  %v3278 = vmul.f32 %v3262, %v2771
  %v3279 = vmul.f32 %v3263, %v2771
  %v3280 = vmul.f32 %v3264, %v2771
  %v3281 = vmul.f32 %v3265, %v2771
  %v3282 = vmul.f32 %v3266, %v2771
  %v3283 = vmul.f32 %v3267, %v2771
  %v3284 = vmul.f32 %v3268, %v2771
  %v3285 = vmul.f32 %v3269, %v2771
  %v3286 = vmul.f32 %v3270, %v2771
  %v3287 = vmul.f32 %v3271, %v2771
  %v3288 = vmul.f32 %v3272, %v2771
  %v3289 = vmul.f32 %v3273, %v2771
  %v3290 = vadd.f32 %v3242, %v3274
  %v3291 = vadd.f32 %v3243, %v3275
  %v3292 = vadd.f32 %v3244, %v3276
  %v3293 = vadd.f32 %v3245, %v3277
  %v3294 = vadd.f32 %v3246, %v3278
  %v3295 = vadd.f32 %v3247, %v3279
  %v3296 = vadd.f32 %v3248, %v3280
  %v3297 = vadd.f32 %v3249, %v3281
  %v3298 = vadd.f32 %v3250, %v3282
  %v3299 = vadd.f32 %v3251, %v3283
  %v3300 = vadd.f32 %v3252, %v3284
  %v3301 = vadd.f32 %v3253, %v3285
  %v3302 = vadd.f32 %v3254, %v3286
  %v3303 = vadd.f32 %v3255, %v3287
  %v3304 = vadd.f32 %v3256, %v3288
  %v3305 = vadd.f32 %v3257, %v3289
  %v3306 = vld [vmem:[%s1674 + $0x7] sm:$0xff]
  %v3307 = vld [vmem:[%s1674 + $0xf] sm:$0xff]
  %v3308 = vld [vmem:[%s1674 + $0x27] sm:$0xff]
  %v3309 = vld [vmem:[%s1674 + $0x2f] sm:$0xff]
  %v3310 = vld [vmem:[%s1674 + $0x47] sm:$0xff]
  %v3311 = vld [vmem:[%s1674 + $0x4f] sm:$0xff]
  %v3312 = vld [vmem:[%s1674 + $0x67] sm:$0xff]
  %v3313 = vld [vmem:[%s1674 + $0x6f] sm:$0xff]
  %v3314 = vld [vmem:[%s1674 + $0x87] sm:$0xff]
  %v3315 = vld [vmem:[%s1674 + $0x8f] sm:$0xff]
  %v3316 = vld [vmem:[%s1674 + $0xa7] sm:$0xff]
  %v3317 = vld [vmem:[%s1674 + $0xaf] sm:$0xff]
  %v3318 = vld [vmem:[%s1674 + $0xc7] sm:$0xff]
  %v3319 = vld [vmem:[%s1674 + $0xcf] sm:$0xff]
  %v3320 = vld [vmem:[%s1674 + $0xe7] sm:$0xff]
  %v3321 = vld [vmem:[%s1674 + $0xef] sm:$0xff]
  %v3322 = vmul.f32 %v3306, %v2820
  %v3323 = vmul.f32 %v3307, %v2820
  %v3324 = vmul.f32 %v3308, %v2820
  %v3325 = vmul.f32 %v3309, %v2820
  %v3326 = vmul.f32 %v3310, %v2820
  %v3327 = vmul.f32 %v3311, %v2820
  %v3328 = vmul.f32 %v3312, %v2820
  %v3329 = vmul.f32 %v3313, %v2820
  %v3330 = vmul.f32 %v3314, %v2820
  %v3331 = vmul.f32 %v3315, %v2820
  %v3332 = vmul.f32 %v3316, %v2820
  %v3333 = vmul.f32 %v3317, %v2820
  %v3334 = vmul.f32 %v3318, %v2820
  %v3335 = vmul.f32 %v3319, %v2820
  %v3336 = vmul.f32 %v3320, %v2820
  %v3337 = vmul.f32 %v3321, %v2820
  %v3338 = vadd.f32 %v3290, %v3322
  %v3339 = vadd.f32 %v3291, %v3323
  %v3340 = vadd.f32 %v3292, %v3324
  %v3341 = vadd.f32 %v3293, %v3325
  %v3342 = vadd.f32 %v3294, %v3326
  %v3343 = vadd.f32 %v3295, %v3327
  %v3344 = vadd.f32 %v3296, %v3328
  %v3345 = vadd.f32 %v3297, %v3329
  %v3346 = vadd.f32 %v3298, %v3330
  %v3347 = vadd.f32 %v3299, %v3331
  %v3348 = vadd.f32 %v3300, %v3332
  %v3349 = vadd.f32 %v3301, %v3333
  %v3350 = vadd.f32 %v3302, %v3334
  %v3351 = vadd.f32 %v3303, %v3335
  %v3352 = vadd.f32 %v3304, %v3336
  %v3353 = vadd.f32 %v3305, %v3337
  %v3354 = vld [vmem:[%s1674 + $0x8] sm:$0xff]
  %v3355 = vld [vmem:[%s1674 + $0x10] sm:$0xff]
  %v3356 = vld [vmem:[%s1674 + $0x28] sm:$0xff]
  %v3357 = vld [vmem:[%s1674 + $0x30] sm:$0xff]
  %v3358 = vld [vmem:[%s1674 + $0x48] sm:$0xff]
  %v3359 = vld [vmem:[%s1674 + $0x50] sm:$0xff]
  %v3360 = vld [vmem:[%s1674 + $0x68] sm:$0xff]
  %v3361 = vld [vmem:[%s1674 + $0x70] sm:$0xff]
  %v3362 = vld [vmem:[%s1674 + $0x88] sm:$0xff]
  %v3363 = vld [vmem:[%s1674 + $0x90] sm:$0xff]
  %v3364 = vld [vmem:[%s1674 + $0xa8] sm:$0xff]
  %v3365 = vld [vmem:[%s1674 + $0xb0] sm:$0xff]
  %v3366 = vld [vmem:[%s1674 + $0xc8] sm:$0xff]
  %v3367 = vld [vmem:[%s1674 + $0xd0] sm:$0xff]
  %v3368 = vld [vmem:[%s1674 + $0xe8] sm:$0xff]
  %v3369 = vld [vmem:[%s1674 + $0xf0] sm:$0xff]
  %v3370 = vmul.f32 %v3354, %v2869
  %v3371 = vmul.f32 %v3355, %v2869
  %v3372 = vmul.f32 %v3356, %v2869
  %v3373 = vmul.f32 %v3357, %v2869
  %v3374 = vmul.f32 %v3358, %v2869
  %v3375 = vmul.f32 %v3359, %v2869
  %v3376 = vmul.f32 %v3360, %v2869
  %v3377 = vmul.f32 %v3361, %v2869
  %v3378 = vmul.f32 %v3362, %v2869
  %v3379 = vmul.f32 %v3363, %v2869
  %v3380 = vmul.f32 %v3364, %v2869
  %v3381 = vmul.f32 %v3365, %v2869
  %v3382 = vmul.f32 %v3366, %v2869
  %v3383 = vmul.f32 %v3367, %v2869
  %v3384 = vmul.f32 %v3368, %v2869
  %v3385 = vmul.f32 %v3369, %v2869
  %v3386 = vadd.f32 %v3338, %v3370
  %v3387 = vadd.f32 %v3339, %v3371
  %v3388 = vadd.f32 %v3340, %v3372
  %v3389 = vadd.f32 %v3341, %v3373
  %v3390 = vadd.f32 %v3342, %v3374
  %v3391 = vadd.f32 %v3343, %v3375
  %v3392 = vadd.f32 %v3344, %v3376
  %v3393 = vadd.f32 %v3345, %v3377
  %v3394 = vadd.f32 %v3346, %v3378
  %v3395 = vadd.f32 %v3347, %v3379
  %v3396 = vadd.f32 %v3348, %v3380
  %v3397 = vadd.f32 %v3349, %v3381
  %v3398 = vadd.f32 %v3350, %v3382
  %v3399 = vadd.f32 %v3351, %v3383
  %v3400 = vadd.f32 %v3352, %v3384
  %v3401 = vadd.f32 %v3353, %v3385
  %v3402 = vld [vmem:[%s1674 + $0x9] sm:$0xff]
  %v3403 = vld [vmem:[%s1674 + $0x11] sm:$0xff]
  %v3404 = vld [vmem:[%s1674 + $0x29] sm:$0xff]
  %v3405 = vld [vmem:[%s1674 + $0x31] sm:$0xff]
  %v3406 = vld [vmem:[%s1674 + $0x49] sm:$0xff]
  %v3407 = vld [vmem:[%s1674 + $0x51] sm:$0xff]
  %v3408 = vld [vmem:[%s1674 + $0x69] sm:$0xff]
  %v3409 = vld [vmem:[%s1674 + $0x71] sm:$0xff]
  %v3410 = vld [vmem:[%s1674 + $0x89] sm:$0xff]
  %v3411 = vld [vmem:[%s1674 + $0x91] sm:$0xff]
  %v3412 = vld [vmem:[%s1674 + $0xa9] sm:$0xff]
  %v3413 = vld [vmem:[%s1674 + $0xb1] sm:$0xff]
  %v3414 = vld [vmem:[%s1674 + $0xc9] sm:$0xff]
  %v3415 = vld [vmem:[%s1674 + $0xd1] sm:$0xff]
  %v3416 = vld [vmem:[%s1674 + $0xe9] sm:$0xff]
  %v3417 = vld [vmem:[%s1674 + $0xf1] sm:$0xff]
  %v3418 = vmul.f32 %v3402, %v2918
  %v3419 = vmul.f32 %v3403, %v2918
  %v3420 = vmul.f32 %v3404, %v2918
  %v3421 = vmul.f32 %v3405, %v2918
  %v3422 = vmul.f32 %v3406, %v2918
  %v3423 = vmul.f32 %v3407, %v2918
  %v3424 = vmul.f32 %v3408, %v2918
  %v3425 = vmul.f32 %v3409, %v2918
  %v3426 = vmul.f32 %v3410, %v2918
  %v3427 = vmul.f32 %v3411, %v2918
  %v3428 = vmul.f32 %v3412, %v2918
  %v3429 = vmul.f32 %v3413, %v2918
  %v3430 = vmul.f32 %v3414, %v2918
  %v3431 = vmul.f32 %v3415, %v2918
  %v3432 = vmul.f32 %v3416, %v2918
  %v3433 = vmul.f32 %v3417, %v2918
  %v3434 = vadd.f32 %v3386, %v3418
  %v3435 = vadd.f32 %v3387, %v3419
  %v3436 = vadd.f32 %v3388, %v3420
  %v3437 = vadd.f32 %v3389, %v3421
  %v3438 = vadd.f32 %v3390, %v3422
  %v3439 = vadd.f32 %v3391, %v3423
  %v3440 = vadd.f32 %v3392, %v3424
  %v3441 = vadd.f32 %v3393, %v3425
  %v3442 = vadd.f32 %v3394, %v3426
  %v3443 = vadd.f32 %v3395, %v3427
  %v3444 = vadd.f32 %v3396, %v3428
  %v3445 = vadd.f32 %v3397, %v3429
  %v3446 = vadd.f32 %v3398, %v3430
  %v3447 = vadd.f32 %v3399, %v3431
  %v3448 = vadd.f32 %v3400, %v3432
  %v3449 = vadd.f32 %v3401, %v3433
  %s3450 = scalar_lea.vmem [#allocation3], 320
  %v3451 = vld [vmem:[%s3450 + $0x7] sm:$0xff]
  %v3452 = vld [vmem:[%s3450 + $0xf] sm:$0xff]
  %v3453 = vld [vmem:[%s3450 + $0x27] sm:$0xff]
  %v3454 = vld [vmem:[%s3450 + $0x2f] sm:$0xff]
  %v3455 = vld [vmem:[%s3450 + $0x47] sm:$0xff]
  %v3456 = vld [vmem:[%s3450 + $0x4f] sm:$0xff]
  %v3457 = vld [vmem:[%s3450 + $0x67] sm:$0xff]
  %v3458 = vld [vmem:[%s3450 + $0x6f] sm:$0xff]
  %v3459 = vld [vmem:[%s3450 + $0x87] sm:$0xff]
  %v3460 = vld [vmem:[%s3450 + $0x8f] sm:$0xff]
  %v3461 = vld [vmem:[%s3450 + $0xa7] sm:$0xff]
  %v3462 = vld [vmem:[%s3450 + $0xaf] sm:$0xff]
  %v3463 = vld [vmem:[%s3450 + $0xc7] sm:$0xff]
  %v3464 = vld [vmem:[%s3450 + $0xcf] sm:$0xff]
  %v3465 = vld [vmem:[%s3450 + $0xe7] sm:$0xff]
  %v3466 = vld [vmem:[%s3450 + $0xef] sm:$0xff]
  %v3467 = vmul.f32 %v3451, %v2968
  %v3468 = vmul.f32 %v3452, %v2968
  %v3469 = vmul.f32 %v3453, %v2968
  %v3470 = vmul.f32 %v3454, %v2968
  %v3471 = vmul.f32 %v3455, %v2968
  %v3472 = vmul.f32 %v3456, %v2968
  %v3473 = vmul.f32 %v3457, %v2968
  %v3474 = vmul.f32 %v3458, %v2968
  %v3475 = vmul.f32 %v3459, %v2968
  %v3476 = vmul.f32 %v3460, %v2968
  %v3477 = vmul.f32 %v3461, %v2968
  %v3478 = vmul.f32 %v3462, %v2968
  %v3479 = vmul.f32 %v3463, %v2968
  %v3480 = vmul.f32 %v3464, %v2968
  %v3481 = vmul.f32 %v3465, %v2968
  %v3482 = vmul.f32 %v3466, %v2968
  %v3483 = vadd.f32 %v3434, %v3467
  %v3484 = vadd.f32 %v3435, %v3468
  %v3485 = vadd.f32 %v3436, %v3469
  %v3486 = vadd.f32 %v3437, %v3470
  %v3487 = vadd.f32 %v3438, %v3471
  %v3488 = vadd.f32 %v3439, %v3472
  %v3489 = vadd.f32 %v3440, %v3473
  %v3490 = vadd.f32 %v3441, %v3474
  %v3491 = vadd.f32 %v3442, %v3475
  %v3492 = vadd.f32 %v3443, %v3476
  %v3493 = vadd.f32 %v3444, %v3477
  %v3494 = vadd.f32 %v3445, %v3478
  %v3495 = vadd.f32 %v3446, %v3479
  %v3496 = vadd.f32 %v3447, %v3480
  %v3497 = vadd.f32 %v3448, %v3481
  %v3498 = vadd.f32 %v3449, %v3482
  %v3499 = vld [vmem:[%s3450 + $0x8] sm:$0xff]
  %v3500 = vld [vmem:[%s3450 + $0x10] sm:$0xff]
  %v3501 = vld [vmem:[%s3450 + $0x28] sm:$0xff]
  %v3502 = vld [vmem:[%s3450 + $0x30] sm:$0xff]
  %v3503 = vld [vmem:[%s3450 + $0x48] sm:$0xff]
  %v3504 = vld [vmem:[%s3450 + $0x50] sm:$0xff]
  %v3505 = vld [vmem:[%s3450 + $0x68] sm:$0xff]
  %v3506 = vld [vmem:[%s3450 + $0x70] sm:$0xff]
  %v3507 = vld [vmem:[%s3450 + $0x88] sm:$0xff]
  %v3508 = vld [vmem:[%s3450 + $0x90] sm:$0xff]
  %v3509 = vld [vmem:[%s3450 + $0xa8] sm:$0xff]
  %v3510 = vld [vmem:[%s3450 + $0xb0] sm:$0xff]
  %v3511 = vld [vmem:[%s3450 + $0xc8] sm:$0xff]
  %v3512 = vld [vmem:[%s3450 + $0xd0] sm:$0xff]
  %v3513 = vld [vmem:[%s3450 + $0xe8] sm:$0xff]
  %v3514 = vld [vmem:[%s3450 + $0xf0] sm:$0xff]
  %v3515 = vmul.f32 %v3499, %v3017
  %v3516 = vmul.f32 %v3500, %v3017
  %v3517 = vmul.f32 %v3501, %v3017
  %v3518 = vmul.f32 %v3502, %v3017
  %v3519 = vmul.f32 %v3503, %v3017
  %v3520 = vmul.f32 %v3504, %v3017
  %v3521 = vmul.f32 %v3505, %v3017
  %v3522 = vmul.f32 %v3506, %v3017
  %v3523 = vmul.f32 %v3507, %v3017
  %v3524 = vmul.f32 %v3508, %v3017
  %v3525 = vmul.f32 %v3509, %v3017
  %v3526 = vmul.f32 %v3510, %v3017
  %v3527 = vmul.f32 %v3511, %v3017
  %v3528 = vmul.f32 %v3512, %v3017
  %v3529 = vmul.f32 %v3513, %v3017
  %v3530 = vmul.f32 %v3514, %v3017
  %v3531 = vadd.f32 %v3483, %v3515
  %v3532 = vadd.f32 %v3484, %v3516
  %v3533 = vadd.f32 %v3485, %v3517
  %v3534 = vadd.f32 %v3486, %v3518
  %v3535 = vadd.f32 %v3487, %v3519
  %v3536 = vadd.f32 %v3488, %v3520
  %v3537 = vadd.f32 %v3489, %v3521
  %v3538 = vadd.f32 %v3490, %v3522
  %v3539 = vadd.f32 %v3491, %v3523
  %v3540 = vadd.f32 %v3492, %v3524
  %v3541 = vadd.f32 %v3493, %v3525
  %v3542 = vadd.f32 %v3494, %v3526
  %v3543 = vadd.f32 %v3495, %v3527
  %v3544 = vadd.f32 %v3496, %v3528
  %v3545 = vadd.f32 %v3497, %v3529
  %v3546 = vadd.f32 %v3498, %v3530
  %v3547 = vld [vmem:[%s3450 + $0x9] sm:$0xff]
  %v3548 = vld [vmem:[%s3450 + $0x11] sm:$0xff]
  %v3549 = vld [vmem:[%s3450 + $0x29] sm:$0xff]
  %v3550 = vld [vmem:[%s3450 + $0x31] sm:$0xff]
  %v3551 = vld [vmem:[%s3450 + $0x49] sm:$0xff]
  %v3552 = vld [vmem:[%s3450 + $0x51] sm:$0xff]
  %v3553 = vld [vmem:[%s3450 + $0x69] sm:$0xff]
  %v3554 = vld [vmem:[%s3450 + $0x71] sm:$0xff]
  %v3555 = vld [vmem:[%s3450 + $0x89] sm:$0xff]
  %v3556 = vld [vmem:[%s3450 + $0x91] sm:$0xff]
  %v3557 = vld [vmem:[%s3450 + $0xa9] sm:$0xff]
  %v3558 = vld [vmem:[%s3450 + $0xb1] sm:$0xff]
  %v3559 = vld [vmem:[%s3450 + $0xc9] sm:$0xff]
  %v3560 = vld [vmem:[%s3450 + $0xd1] sm:$0xff]
  %v3561 = vld [vmem:[%s3450 + $0xe9] sm:$0xff]
  %v3562 = vld [vmem:[%s3450 + $0xf1] sm:$0xff]
  %v3563 = vmul.f32 %v3547, %v3066
  %v3564 = vmul.f32 %v3548, %v3066
  %v3565 = vmul.f32 %v3549, %v3066
  %v3566 = vmul.f32 %v3550, %v3066
  %v3567 = vmul.f32 %v3551, %v3066
  %v3568 = vmul.f32 %v3552, %v3066
  %v3569 = vmul.f32 %v3553, %v3066
  %v3570 = vmul.f32 %v3554, %v3066
  %v3571 = vmul.f32 %v3555, %v3066
  %v3572 = vmul.f32 %v3556, %v3066
  %v3573 = vmul.f32 %v3557, %v3066
  %v3574 = vmul.f32 %v3558, %v3066
  %v3575 = vmul.f32 %v3559, %v3066
  %v3576 = vmul.f32 %v3560, %v3066
  %v3577 = vmul.f32 %v3561, %v3066
  %v3578 = vmul.f32 %v3562, %v3066
  %v3579 = vadd.f32 %v3531, %v3563
  %v3580 = vadd.f32 %v3532, %v3564
  %v3581 = vadd.f32 %v3533, %v3565
  %v3582 = vadd.f32 %v3534, %v3566
  %v3583 = vadd.f32 %v3535, %v3567
  %v3584 = vadd.f32 %v3536, %v3568
  %v3585 = vadd.f32 %v3537, %v3569
  %v3586 = vadd.f32 %v3538, %v3570
  %v3587 = vadd.f32 %v3539, %v3571
  %v3588 = vadd.f32 %v3540, %v3572
  %v3589 = vadd.f32 %v3541, %v3573
  %v3590 = vadd.f32 %v3542, %v3574
  %v3591 = vadd.f32 %v3543, %v3575
  %v3592 = vadd.f32 %v3544, %v3576
  %v3593 = vadd.f32 %v3545, %v3577
  %v3594 = vadd.f32 %v3546, %v3578
  %v3595 = vadd.f32 %v3579, %v3100
  %v3596 = vadd.f32 %v3580, %v3100
  %v3597 = vadd.f32 %v3581, %v3100
  %v3598 = vadd.f32 %v3582, %v3100
  %v3599 = vadd.f32 %v3583, %v3100
  %v3600 = vadd.f32 %v3584, %v3100
  %v3601 = vadd.f32 %v3585, %v3100
  %v3602 = vadd.f32 %v3586, %v3100
  %v3603 = vadd.f32 %v3587, %v3100
  %v3604 = vadd.f32 %v3588, %v3100
  %v3605 = vadd.f32 %v3589, %v3100
  %v3606 = vadd.f32 %v3590, %v3100
  %v3607 = vadd.f32 %v3591, %v3100
  %v3608 = vadd.f32 %v3592, %v3100
  %v3609 = vadd.f32 %v3593, %v3100
  %v3610 = vadd.f32 %v3594, %v3100
  %v3611 = vmax.f32 %v3595, 0.0
  %v3612 = vmax.f32 %v3596, 0.0
  %v3613 = vmax.f32 %v3597, 0.0
  %v3614 = vmax.f32 %v3598, 0.0
  %v3615 = vmax.f32 %v3599, 0.0
  %v3616 = vmax.f32 %v3600, 0.0
  %v3617 = vmax.f32 %v3601, 0.0
  %v3618 = vmax.f32 %v3602, 0.0
  %v3619 = vmax.f32 %v3603, 0.0
  %v3620 = vmax.f32 %v3604, 0.0
  %v3621 = vmax.f32 %v3605, 0.0
  %v3622 = vmax.f32 %v3606, 0.0
  %v3623 = vmax.f32 %v3607, 0.0
  %v3624 = vmax.f32 %v3608, 0.0
  %v3625 = vmax.f32 %v3609, 0.0
  %v3626 = vmax.f32 %v3610, 0.0
  %v3627 = vpack.c.bf16 %v3612, %v3611
  %v3628 = vpack.c.bf16 %v3614, %v3613
  %v3629 = vpack.c.bf16 %v3616, %v3615
  %v3630 = vpack.c.bf16 %v3618, %v3617
  %v3631 = vpack.c.bf16 %v3620, %v3619
  %v3632 = vpack.c.bf16 %v3622, %v3621
  %v3633 = vpack.c.bf16 %v3624, %v3623
  %v3634 = vpack.c.bf16 %v3626, %v3625
  %3635 = vmatpush.bf16.xpose.msra.mxu0 %v3634
  %3636 = vmatpush.bf16.xpose.msra.mxu0 %v3633
  %3637 = vmatpush.bf16.xpose.msra.mxu0 %v3632
  %3638 = vmatpush.bf16.xpose.msra.mxu0 %v3631
  %3639 = vmatpush.bf16.xpose.msra.mxu0 %v3630
  %3640 = vmatpush.bf16.xpose.msra.mxu0 %v3629
  %3641 = vmatpush.bf16.xpose.msra.mxu0 %v3628
  %3642 = vmatpush.bf16.xpose.msra.mxu0 %v3627
  %3643 = vmatmul.bf16.gmra.mxu0 %v711
  %v3644 = vpop.f32.mrf.mxu0
  %v3645 = vadd.f32 %v3145, %v3644
  %v3646 = vpop.f32.mrf.mxu0
  %3647 = vdwg.mxu0
  %3648 = vst [vmem:[%s9 + $0x2] sm:$0x3] %v3645
  %v3649 = vld [vmem:[%s169 + $0x7] sm:$0xff]
  %v3650 = vld [vmem:[%s169 + $0xf] sm:$0xff]
  %v3651 = vld [vmem:[%s169 + $0x27] sm:$0xff]
  %v3652 = vld [vmem:[%s169 + $0x2f] sm:$0xff]
  %v3653 = vld [vmem:[%s169 + $0x47] sm:$0xff]
  %v3654 = vld [vmem:[%s169 + $0x4f] sm:$0xff]
  %v3655 = vld [vmem:[%s169 + $0x67] sm:$0xff]
  %v3656 = vld [vmem:[%s169 + $0x6f] sm:$0xff]
  %v3657 = vld [vmem:[%s169 + $0x87] sm:$0xff]
  %v3658 = vld [vmem:[%s169 + $0x8f] sm:$0xff]
  %v3659 = vld [vmem:[%s169 + $0xa7] sm:$0xff]
  %v3660 = vld [vmem:[%s169 + $0xaf] sm:$0xff]
  %v3661 = vld [vmem:[%s169 + $0xc7] sm:$0xff]
  %v3662 = vld [vmem:[%s169 + $0xcf] sm:$0xff]
  %v3663 = vld [vmem:[%s169 + $0xe7] sm:$0xff]
  %v3664 = vld [vmem:[%s169 + $0xef] sm:$0xff]
  %v3665 = vmul.f32 %v3649, %v2673
  %v3666 = vmul.f32 %v3650, %v2673
  %v3667 = vmul.f32 %v3651, %v2673
  %v3668 = vmul.f32 %v3652, %v2673
  %v3669 = vmul.f32 %v3653, %v2673
  %v3670 = vmul.f32 %v3654, %v2673
  %v3671 = vmul.f32 %v3655, %v2673
  %v3672 = vmul.f32 %v3656, %v2673
  %v3673 = vmul.f32 %v3657, %v2673
  %v3674 = vmul.f32 %v3658, %v2673
  %v3675 = vmul.f32 %v3659, %v2673
  %v3676 = vmul.f32 %v3660, %v2673
  %v3677 = vmul.f32 %v3661, %v2673
  %v3678 = vmul.f32 %v3662, %v2673
  %v3679 = vmul.f32 %v3663, %v2673
  %v3680 = vmul.f32 %v3664, %v2673
  %v3681 = vadd.f32 %v3665, 0.0
  %v3682 = vadd.f32 %v3666, 0.0
  %v3683 = vadd.f32 %v3667, 0.0
  %v3684 = vadd.f32 %v3668, 0.0
  %v3685 = vadd.f32 %v3669, 0.0
  %v3686 = vadd.f32 %v3670, 0.0
  %v3687 = vadd.f32 %v3671, 0.0
  %v3688 = vadd.f32 %v3672, 0.0
  %v3689 = vadd.f32 %v3673, 0.0
  %v3690 = vadd.f32 %v3674, 0.0
  %v3691 = vadd.f32 %v3675, 0.0
  %v3692 = vadd.f32 %v3676, 0.0
  %v3693 = vadd.f32 %v3677, 0.0
  %v3694 = vadd.f32 %v3678, 0.0
  %v3695 = vadd.f32 %v3679, 0.0
  %v3696 = vadd.f32 %v3680, 0.0
  %v3697 = vld [vmem:[%s169 + $0x8] sm:$0xff]
  %v3698 = vld [vmem:[%s169 + $0x10] sm:$0xff]
  %v3699 = vld [vmem:[%s169 + $0x28] sm:$0xff]
  %v3700 = vld [vmem:[%s169 + $0x30] sm:$0xff]
  %v3701 = vld [vmem:[%s169 + $0x48] sm:$0xff]
  %v3702 = vld [vmem:[%s169 + $0x50] sm:$0xff]
  %v3703 = vld [vmem:[%s169 + $0x68] sm:$0xff]
  %v3704 = vld [vmem:[%s169 + $0x70] sm:$0xff]
  %v3705 = vld [vmem:[%s169 + $0x88] sm:$0xff]
  %v3706 = vld [vmem:[%s169 + $0x90] sm:$0xff]
  %v3707 = vld [vmem:[%s169 + $0xa8] sm:$0xff]
  %v3708 = vld [vmem:[%s169 + $0xb0] sm:$0xff]
  %v3709 = vld [vmem:[%s169 + $0xc8] sm:$0xff]
  %v3710 = vld [vmem:[%s169 + $0xd0] sm:$0xff]
  %v3711 = vld [vmem:[%s169 + $0xe8] sm:$0xff]
  %v3712 = vld [vmem:[%s169 + $0xf0] sm:$0xff]
  %v3713 = vmul.f32 %v3697, %v2722
  %v3714 = vmul.f32 %v3698, %v2722
  %v3715 = vmul.f32 %v3699, %v2722
  %v3716 = vmul.f32 %v3700, %v2722
  %v3717 = vmul.f32 %v3701, %v2722
  %v3718 = vmul.f32 %v3702, %v2722
  %v3719 = vmul.f32 %v3703, %v2722
  %v3720 = vmul.f32 %v3704, %v2722
  %v3721 = vmul.f32 %v3705, %v2722
  %v3722 = vmul.f32 %v3706, %v2722
  %v3723 = vmul.f32 %v3707, %v2722
  %v3724 = vmul.f32 %v3708, %v2722
  %v3725 = vmul.f32 %v3709, %v2722
  %v3726 = vmul.f32 %v3710, %v2722
  %v3727 = vmul.f32 %v3711, %v2722
  %v3728 = vmul.f32 %v3712, %v2722
  %v3729 = vadd.f32 %v3681, %v3713
  %v3730 = vadd.f32 %v3682, %v3714
  %v3731 = vadd.f32 %v3683, %v3715
  %v3732 = vadd.f32 %v3684, %v3716
  %v3733 = vadd.f32 %v3685, %v3717
  %v3734 = vadd.f32 %v3686, %v3718
  %v3735 = vadd.f32 %v3687, %v3719
  %v3736 = vadd.f32 %v3688, %v3720
  %v3737 = vadd.f32 %v3689, %v3721
  %v3738 = vadd.f32 %v3690, %v3722
  %v3739 = vadd.f32 %v3691, %v3723
  %v3740 = vadd.f32 %v3692, %v3724
  %v3741 = vadd.f32 %v3693, %v3725
  %v3742 = vadd.f32 %v3694, %v3726
  %v3743 = vadd.f32 %v3695, %v3727
  %v3744 = vadd.f32 %v3696, %v3728
  %v3745 = vld [vmem:[%s169 + $0x9] sm:$0xff]
  %v3746 = vld [vmem:[%s169 + $0x11] sm:$0xff]
  %v3747 = vld [vmem:[%s169 + $0x29] sm:$0xff]
  %v3748 = vld [vmem:[%s169 + $0x31] sm:$0xff]
  %v3749 = vld [vmem:[%s169 + $0x49] sm:$0xff]
  %v3750 = vld [vmem:[%s169 + $0x51] sm:$0xff]
  %v3751 = vld [vmem:[%s169 + $0x69] sm:$0xff]
  %v3752 = vld [vmem:[%s169 + $0x71] sm:$0xff]
  %v3753 = vld [vmem:[%s169 + $0x89] sm:$0xff]
  %v3754 = vld [vmem:[%s169 + $0x91] sm:$0xff]
  %v3755 = vld [vmem:[%s169 + $0xa9] sm:$0xff]
  %v3756 = vld [vmem:[%s169 + $0xb1] sm:$0xff]
  %v3757 = vld [vmem:[%s169 + $0xc9] sm:$0xff]
  %v3758 = vld [vmem:[%s169 + $0xd1] sm:$0xff]
  %v3759 = vld [vmem:[%s169 + $0xe9] sm:$0xff]
  %v3760 = vld [vmem:[%s169 + $0xf1] sm:$0xff]
  %v3761 = vmul.f32 %v3745, %v2771
  %v3762 = vmul.f32 %v3746, %v2771
  %v3763 = vmul.f32 %v3747, %v2771
  %v3764 = vmul.f32 %v3748, %v2771
  %v3765 = vmul.f32 %v3749, %v2771
  %v3766 = vmul.f32 %v3750, %v2771
  %v3767 = vmul.f32 %v3751, %v2771
  %v3768 = vmul.f32 %v3752, %v2771
  %v3769 = vmul.f32 %v3753, %v2771
  %v3770 = vmul.f32 %v3754, %v2771
  %v3771 = vmul.f32 %v3755, %v2771
  %v3772 = vmul.f32 %v3756, %v2771
  %v3773 = vmul.f32 %v3757, %v2771
  %v3774 = vmul.f32 %v3758, %v2771
  %v3775 = vmul.f32 %v3759, %v2771
  %v3776 = vmul.f32 %v3760, %v2771
  %v3777 = vadd.f32 %v3729, %v3761
  %v3778 = vadd.f32 %v3730, %v3762
  %v3779 = vadd.f32 %v3731, %v3763
  %v3780 = vadd.f32 %v3732, %v3764
  %v3781 = vadd.f32 %v3733, %v3765
  %v3782 = vadd.f32 %v3734, %v3766
  %v3783 = vadd.f32 %v3735, %v3767
  %v3784 = vadd.f32 %v3736, %v3768
  %v3785 = vadd.f32 %v3737, %v3769
  %v3786 = vadd.f32 %v3738, %v3770
  %v3787 = vadd.f32 %v3739, %v3771
  %v3788 = vadd.f32 %v3740, %v3772
  %v3789 = vadd.f32 %v3741, %v3773
  %v3790 = vadd.f32 %v3742, %v3774
  %v3791 = vadd.f32 %v3743, %v3775
  %v3792 = vadd.f32 %v3744, %v3776
  %v3793 = vld [vmem:[%s2156 + $0x7] sm:$0xff]
  %v3794 = vld [vmem:[%s2156 + $0xf] sm:$0xff]
  %v3795 = vld [vmem:[%s2156 + $0x27] sm:$0xff]
  %v3796 = vld [vmem:[%s2156 + $0x2f] sm:$0xff]
  %v3797 = vld [vmem:[%s2156 + $0x47] sm:$0xff]
  %v3798 = vld [vmem:[%s2156 + $0x4f] sm:$0xff]
  %v3799 = vld [vmem:[%s2156 + $0x67] sm:$0xff]
  %v3800 = vld [vmem:[%s2156 + $0x6f] sm:$0xff]
  %v3801 = vld [vmem:[%s2156 + $0x87] sm:$0xff]
  %v3802 = vld [vmem:[%s2156 + $0x8f] sm:$0xff]
  %v3803 = vld [vmem:[%s2156 + $0xa7] sm:$0xff]
  %v3804 = vld [vmem:[%s2156 + $0xaf] sm:$0xff]
  %v3805 = vld [vmem:[%s2156 + $0xc7] sm:$0xff]
  %v3806 = vld [vmem:[%s2156 + $0xcf] sm:$0xff]
  %v3807 = vld [vmem:[%s2156 + $0xe7] sm:$0xff]
  %v3808 = vld [vmem:[%s2156 + $0xef] sm:$0xff]
  %v3809 = vmul.f32 %v3793, %v2820
  %v3810 = vmul.f32 %v3794, %v2820
  %v3811 = vmul.f32 %v3795, %v2820
  %v3812 = vmul.f32 %v3796, %v2820
  %v3813 = vmul.f32 %v3797, %v2820
  %v3814 = vmul.f32 %v3798, %v2820
  %v3815 = vmul.f32 %v3799, %v2820
  %v3816 = vmul.f32 %v3800, %v2820
  %v3817 = vmul.f32 %v3801, %v2820
  %v3818 = vmul.f32 %v3802, %v2820
  %v3819 = vmul.f32 %v3803, %v2820
  %v3820 = vmul.f32 %v3804, %v2820
  %v3821 = vmul.f32 %v3805, %v2820
  %v3822 = vmul.f32 %v3806, %v2820
  %v3823 = vmul.f32 %v3807, %v2820
  %v3824 = vmul.f32 %v3808, %v2820
  %v3825 = vadd.f32 %v3777, %v3809
  %v3826 = vadd.f32 %v3778, %v3810
  %v3827 = vadd.f32 %v3779, %v3811
  %v3828 = vadd.f32 %v3780, %v3812
  %v3829 = vadd.f32 %v3781, %v3813
  %v3830 = vadd.f32 %v3782, %v3814
  %v3831 = vadd.f32 %v3783, %v3815
  %v3832 = vadd.f32 %v3784, %v3816
  %v3833 = vadd.f32 %v3785, %v3817
  %v3834 = vadd.f32 %v3786, %v3818
  %v3835 = vadd.f32 %v3787, %v3819
  %v3836 = vadd.f32 %v3788, %v3820
  %v3837 = vadd.f32 %v3789, %v3821
  %v3838 = vadd.f32 %v3790, %v3822
  %v3839 = vadd.f32 %v3791, %v3823
  %v3840 = vadd.f32 %v3792, %v3824
  %v3841 = vld [vmem:[%s2156 + $0x8] sm:$0xff]
  %v3842 = vld [vmem:[%s2156 + $0x10] sm:$0xff]
  %v3843 = vld [vmem:[%s2156 + $0x28] sm:$0xff]
  %v3844 = vld [vmem:[%s2156 + $0x30] sm:$0xff]
  %v3845 = vld [vmem:[%s2156 + $0x48] sm:$0xff]
  %v3846 = vld [vmem:[%s2156 + $0x50] sm:$0xff]
  %v3847 = vld [vmem:[%s2156 + $0x68] sm:$0xff]
  %v3848 = vld [vmem:[%s2156 + $0x70] sm:$0xff]
  %v3849 = vld [vmem:[%s2156 + $0x88] sm:$0xff]
  %v3850 = vld [vmem:[%s2156 + $0x90] sm:$0xff]
  %v3851 = vld [vmem:[%s2156 + $0xa8] sm:$0xff]
  %v3852 = vld [vmem:[%s2156 + $0xb0] sm:$0xff]
  %v3853 = vld [vmem:[%s2156 + $0xc8] sm:$0xff]
  %v3854 = vld [vmem:[%s2156 + $0xd0] sm:$0xff]
  %v3855 = vld [vmem:[%s2156 + $0xe8] sm:$0xff]
  %v3856 = vld [vmem:[%s2156 + $0xf0] sm:$0xff]
  %v3857 = vmul.f32 %v3841, %v2869
  %v3858 = vmul.f32 %v3842, %v2869
  %v3859 = vmul.f32 %v3843, %v2869
  %v3860 = vmul.f32 %v3844, %v2869
  %v3861 = vmul.f32 %v3845, %v2869
  %v3862 = vmul.f32 %v3846, %v2869
  %v3863 = vmul.f32 %v3847, %v2869
  %v3864 = vmul.f32 %v3848, %v2869
  %v3865 = vmul.f32 %v3849, %v2869
  %v3866 = vmul.f32 %v3850, %v2869
  %v3867 = vmul.f32 %v3851, %v2869
  %v3868 = vmul.f32 %v3852, %v2869
  %v3869 = vmul.f32 %v3853, %v2869
  %v3870 = vmul.f32 %v3854, %v2869
  %v3871 = vmul.f32 %v3855, %v2869
  %v3872 = vmul.f32 %v3856, %v2869
  %v3873 = vadd.f32 %v3825, %v3857
  %v3874 = vadd.f32 %v3826, %v3858
  %v3875 = vadd.f32 %v3827, %v3859
  %v3876 = vadd.f32 %v3828, %v3860
  %v3877 = vadd.f32 %v3829, %v3861
  %v3878 = vadd.f32 %v3830, %v3862
  %v3879 = vadd.f32 %v3831, %v3863
  %v3880 = vadd.f32 %v3832, %v3864
  %v3881 = vadd.f32 %v3833, %v3865
  %v3882 = vadd.f32 %v3834, %v3866
  %v3883 = vadd.f32 %v3835, %v3867
  %v3884 = vadd.f32 %v3836, %v3868
  %v3885 = vadd.f32 %v3837, %v3869
  %v3886 = vadd.f32 %v3838, %v3870
  %v3887 = vadd.f32 %v3839, %v3871
  %v3888 = vadd.f32 %v3840, %v3872
  %v3889 = vld [vmem:[%s2156 + $0x9] sm:$0xff]
  %v3890 = vld [vmem:[%s2156 + $0x11] sm:$0xff]
  %v3891 = vld [vmem:[%s2156 + $0x29] sm:$0xff]
  %v3892 = vld [vmem:[%s2156 + $0x31] sm:$0xff]
  %v3893 = vld [vmem:[%s2156 + $0x49] sm:$0xff]
  %v3894 = vld [vmem:[%s2156 + $0x51] sm:$0xff]
  %v3895 = vld [vmem:[%s2156 + $0x69] sm:$0xff]
  %v3896 = vld [vmem:[%s2156 + $0x71] sm:$0xff]
  %v3897 = vld [vmem:[%s2156 + $0x89] sm:$0xff]
  %v3898 = vld [vmem:[%s2156 + $0x91] sm:$0xff]
  %v3899 = vld [vmem:[%s2156 + $0xa9] sm:$0xff]
  %v3900 = vld [vmem:[%s2156 + $0xb1] sm:$0xff]
  %v3901 = vld [vmem:[%s2156 + $0xc9] sm:$0xff]
  %v3902 = vld [vmem:[%s2156 + $0xd1] sm:$0xff]
  %v3903 = vld [vmem:[%s2156 + $0xe9] sm:$0xff]
  %v3904 = vld [vmem:[%s2156 + $0xf1] sm:$0xff]
  %v3905 = vmul.f32 %v3889, %v2918
  %v3906 = vmul.f32 %v3890, %v2918
  %v3907 = vmul.f32 %v3891, %v2918
  %v3908 = vmul.f32 %v3892, %v2918
  %v3909 = vmul.f32 %v3893, %v2918
  %v3910 = vmul.f32 %v3894, %v2918
  %v3911 = vmul.f32 %v3895, %v2918
  %v3912 = vmul.f32 %v3896, %v2918
  %v3913 = vmul.f32 %v3897, %v2918
  %v3914 = vmul.f32 %v3898, %v2918
  %v3915 = vmul.f32 %v3899, %v2918
  %v3916 = vmul.f32 %v3900, %v2918
  %v3917 = vmul.f32 %v3901, %v2918
  %v3918 = vmul.f32 %v3902, %v2918
  %v3919 = vmul.f32 %v3903, %v2918
  %v3920 = vmul.f32 %v3904, %v2918
  %v3921 = vadd.f32 %v3873, %v3905
  %v3922 = vadd.f32 %v3874, %v3906
  %v3923 = vadd.f32 %v3875, %v3907
  %v3924 = vadd.f32 %v3876, %v3908
  %v3925 = vadd.f32 %v3877, %v3909
  %v3926 = vadd.f32 %v3878, %v3910
  %v3927 = vadd.f32 %v3879, %v3911
  %v3928 = vadd.f32 %v3880, %v3912
  %v3929 = vadd.f32 %v3881, %v3913
  %v3930 = vadd.f32 %v3882, %v3914
  %v3931 = vadd.f32 %v3883, %v3915
  %v3932 = vadd.f32 %v3884, %v3916
  %v3933 = vadd.f32 %v3885, %v3917
  %v3934 = vadd.f32 %v3886, %v3918
  %v3935 = vadd.f32 %v3887, %v3919
  %v3936 = vadd.f32 %v3888, %v3920
  %s3937 = scalar_lea.vmem [#allocation3], 640
  %v3938 = vld [vmem:[%s3937 + $0x7] sm:$0xff]
  %v3939 = vld [vmem:[%s3937 + $0xf] sm:$0xff]
  %v3940 = vld [vmem:[%s3937 + $0x27] sm:$0xff]
  %v3941 = vld [vmem:[%s3937 + $0x2f] sm:$0xff]
  %v3942 = vld [vmem:[%s3937 + $0x47] sm:$0xff]
  %v3943 = vld [vmem:[%s3937 + $0x4f] sm:$0xff]
  %v3944 = vld [vmem:[%s3937 + $0x67] sm:$0xff]
  %v3945 = vld [vmem:[%s3937 + $0x6f] sm:$0xff]
  %v3946 = vld [vmem:[%s3937 + $0x87] sm:$0xff]
  %v3947 = vld [vmem:[%s3937 + $0x8f] sm:$0xff]
  %v3948 = vld [vmem:[%s3937 + $0xa7] sm:$0xff]
  %v3949 = vld [vmem:[%s3937 + $0xaf] sm:$0xff]
  %v3950 = vld [vmem:[%s3937 + $0xc7] sm:$0xff]
  %v3951 = vld [vmem:[%s3937 + $0xcf] sm:$0xff]
  %v3952 = vld [vmem:[%s3937 + $0xe7] sm:$0xff]
  %v3953 = vld [vmem:[%s3937 + $0xef] sm:$0xff]
  %v3954 = vmul.f32 %v3938, %v2968
  %v3955 = vmul.f32 %v3939, %v2968
  %v3956 = vmul.f32 %v3940, %v2968
  %v3957 = vmul.f32 %v3941, %v2968
  %v3958 = vmul.f32 %v3942, %v2968
  %v3959 = vmul.f32 %v3943, %v2968
  %v3960 = vmul.f32 %v3944, %v2968
  %v3961 = vmul.f32 %v3945, %v2968
  %v3962 = vmul.f32 %v3946, %v2968
  %v3963 = vmul.f32 %v3947, %v2968
  %v3964 = vmul.f32 %v3948, %v2968
  %v3965 = vmul.f32 %v3949, %v2968
  %v3966 = vmul.f32 %v3950, %v2968
  %v3967 = vmul.f32 %v3951, %v2968
  %v3968 = vmul.f32 %v3952, %v2968
  %v3969 = vmul.f32 %v3953, %v2968
  %v3970 = vadd.f32 %v3921, %v3954
  %v3971 = vadd.f32 %v3922, %v3955
  %v3972 = vadd.f32 %v3923, %v3956
  %v3973 = vadd.f32 %v3924, %v3957
  %v3974 = vadd.f32 %v3925, %v3958
  %v3975 = vadd.f32 %v3926, %v3959
  %v3976 = vadd.f32 %v3927, %v3960
  %v3977 = vadd.f32 %v3928, %v3961
  %v3978 = vadd.f32 %v3929, %v3962
  %v3979 = vadd.f32 %v3930, %v3963
  %v3980 = vadd.f32 %v3931, %v3964
  %v3981 = vadd.f32 %v3932, %v3965
  %v3982 = vadd.f32 %v3933, %v3966
  %v3983 = vadd.f32 %v3934, %v3967
  %v3984 = vadd.f32 %v3935, %v3968
  %v3985 = vadd.f32 %v3936, %v3969
  %v3986 = vld [vmem:[%s3937 + $0x8] sm:$0xff]
  %v3987 = vld [vmem:[%s3937 + $0x10] sm:$0xff]
  %v3988 = vld [vmem:[%s3937 + $0x28] sm:$0xff]
  %v3989 = vld [vmem:[%s3937 + $0x30] sm:$0xff]
  %v3990 = vld [vmem:[%s3937 + $0x48] sm:$0xff]
  %v3991 = vld [vmem:[%s3937 + $0x50] sm:$0xff]
  %v3992 = vld [vmem:[%s3937 + $0x68] sm:$0xff]
  %v3993 = vld [vmem:[%s3937 + $0x70] sm:$0xff]
  %v3994 = vld [vmem:[%s3937 + $0x88] sm:$0xff]
  %v3995 = vld [vmem:[%s3937 + $0x90] sm:$0xff]
  %v3996 = vld [vmem:[%s3937 + $0xa8] sm:$0xff]
  %v3997 = vld [vmem:[%s3937 + $0xb0] sm:$0xff]
  %v3998 = vld [vmem:[%s3937 + $0xc8] sm:$0xff]
  %v3999 = vld [vmem:[%s3937 + $0xd0] sm:$0xff]
  %v4000 = vld [vmem:[%s3937 + $0xe8] sm:$0xff]
  %v4001 = vld [vmem:[%s3937 + $0xf0] sm:$0xff]
  %v4002 = vmul.f32 %v3986, %v3017
  %v4003 = vmul.f32 %v3987, %v3017
  %v4004 = vmul.f32 %v3988, %v3017
  %v4005 = vmul.f32 %v3989, %v3017
  %v4006 = vmul.f32 %v3990, %v3017
  %v4007 = vmul.f32 %v3991, %v3017
  %v4008 = vmul.f32 %v3992, %v3017
  %v4009 = vmul.f32 %v3993, %v3017
  %v4010 = vmul.f32 %v3994, %v3017
  %v4011 = vmul.f32 %v3995, %v3017
  %v4012 = vmul.f32 %v3996, %v3017
  %v4013 = vmul.f32 %v3997, %v3017
  %v4014 = vmul.f32 %v3998, %v3017
  %v4015 = vmul.f32 %v3999, %v3017
  %v4016 = vmul.f32 %v4000, %v3017
  %v4017 = vmul.f32 %v4001, %v3017
  %v4018 = vadd.f32 %v3970, %v4002
  %v4019 = vadd.f32 %v3971, %v4003
  %v4020 = vadd.f32 %v3972, %v4004
  %v4021 = vadd.f32 %v3973, %v4005
  %v4022 = vadd.f32 %v3974, %v4006
  %v4023 = vadd.f32 %v3975, %v4007
  %v4024 = vadd.f32 %v3976, %v4008
  %v4025 = vadd.f32 %v3977, %v4009
  %v4026 = vadd.f32 %v3978, %v4010
  %v4027 = vadd.f32 %v3979, %v4011
  %v4028 = vadd.f32 %v3980, %v4012
  %v4029 = vadd.f32 %v3981, %v4013
  %v4030 = vadd.f32 %v3982, %v4014
  %v4031 = vadd.f32 %v3983, %v4015
  %v4032 = vadd.f32 %v3984, %v4016
  %v4033 = vadd.f32 %v3985, %v4017
  %v4034 = vld [vmem:[%s3937 + $0x9] sm:$0xff]
  %v4035 = vld [vmem:[%s3937 + $0x11] sm:$0xff]
  %v4036 = vld [vmem:[%s3937 + $0x29] sm:$0xff]
  %v4037 = vld [vmem:[%s3937 + $0x31] sm:$0xff]
  %v4038 = vld [vmem:[%s3937 + $0x49] sm:$0xff]
  %v4039 = vld [vmem:[%s3937 + $0x51] sm:$0xff]
  %v4040 = vld [vmem:[%s3937 + $0x69] sm:$0xff]
  %v4041 = vld [vmem:[%s3937 + $0x71] sm:$0xff]
  %v4042 = vld [vmem:[%s3937 + $0x89] sm:$0xff]
  %v4043 = vld [vmem:[%s3937 + $0x91] sm:$0xff]
  %v4044 = vld [vmem:[%s3937 + $0xa9] sm:$0xff]
  %v4045 = vld [vmem:[%s3937 + $0xb1] sm:$0xff]
  %v4046 = vld [vmem:[%s3937 + $0xc9] sm:$0xff]
  %v4047 = vld [vmem:[%s3937 + $0xd1] sm:$0xff]
  %v4048 = vld [vmem:[%s3937 + $0xe9] sm:$0xff]
  %v4049 = vld [vmem:[%s3937 + $0xf1] sm:$0xff]
  %v4050 = vmul.f32 %v4034, %v3066
  %v4051 = vmul.f32 %v4035, %v3066
  %v4052 = vmul.f32 %v4036, %v3066
  %v4053 = vmul.f32 %v4037, %v3066
  %v4054 = vmul.f32 %v4038, %v3066
  %v4055 = vmul.f32 %v4039, %v3066
  %v4056 = vmul.f32 %v4040, %v3066
  %v4057 = vmul.f32 %v4041, %v3066
  %v4058 = vmul.f32 %v4042, %v3066
  %v4059 = vmul.f32 %v4043, %v3066
  %v4060 = vmul.f32 %v4044, %v3066
  %v4061 = vmul.f32 %v4045, %v3066
  %v4062 = vmul.f32 %v4046, %v3066
  %v4063 = vmul.f32 %v4047, %v3066
  %v4064 = vmul.f32 %v4048, %v3066
  %v4065 = vmul.f32 %v4049, %v3066
  %v4066 = vadd.f32 %v4018, %v4050
  %v4067 = vadd.f32 %v4019, %v4051
  %v4068 = vadd.f32 %v4020, %v4052
  %v4069 = vadd.f32 %v4021, %v4053
  %v4070 = vadd.f32 %v4022, %v4054
  %v4071 = vadd.f32 %v4023, %v4055
  %v4072 = vadd.f32 %v4024, %v4056
  %v4073 = vadd.f32 %v4025, %v4057
  %v4074 = vadd.f32 %v4026, %v4058
  %v4075 = vadd.f32 %v4027, %v4059
  %v4076 = vadd.f32 %v4028, %v4060
  %v4077 = vadd.f32 %v4029, %v4061
  %v4078 = vadd.f32 %v4030, %v4062
  %v4079 = vadd.f32 %v4031, %v4063
  %v4080 = vadd.f32 %v4032, %v4064
  %v4081 = vadd.f32 %v4033, %v4065
  %v4082 = vadd.f32 %v4066, %v3100
  %v4083 = vadd.f32 %v4067, %v3100
  %v4084 = vadd.f32 %v4068, %v3100
  %v4085 = vadd.f32 %v4069, %v3100
  %v4086 = vadd.f32 %v4070, %v3100
  %v4087 = vadd.f32 %v4071, %v3100
  %v4088 = vadd.f32 %v4072, %v3100
  %v4089 = vadd.f32 %v4073, %v3100
  %v4090 = vadd.f32 %v4074, %v3100
  %v4091 = vadd.f32 %v4075, %v3100
  %v4092 = vadd.f32 %v4076, %v3100
  %v4093 = vadd.f32 %v4077, %v3100
  %v4094 = vadd.f32 %v4078, %v3100
  %v4095 = vadd.f32 %v4079, %v3100
  %v4096 = vadd.f32 %v4080, %v3100
  %v4097 = vadd.f32 %v4081, %v3100
  %v4098 = vmax.f32 %v4082, 0.0
  %v4099 = vmax.f32 %v4083, 0.0
  %v4100 = vmax.f32 %v4084, 0.0
  %v4101 = vmax.f32 %v4085, 0.0
  %v4102 = vmax.f32 %v4086, 0.0
  %v4103 = vmax.f32 %v4087, 0.0
  %v4104 = vmax.f32 %v4088, 0.0
  %v4105 = vmax.f32 %v4089, 0.0
  %v4106 = vmax.f32 %v4090, 0.0
  %v4107 = vmax.f32 %v4091, 0.0
  %v4108 = vmax.f32 %v4092, 0.0
  %v4109 = vmax.f32 %v4093, 0.0
  %v4110 = vmax.f32 %v4094, 0.0
  %v4111 = vmax.f32 %v4095, 0.0
  %v4112 = vmax.f32 %v4096, 0.0
  %v4113 = vmax.f32 %v4097, 0.0
  %v4114 = vpack.c.bf16 %v4099, %v4098
  %v4115 = vpack.c.bf16 %v4101, %v4100
  %v4116 = vpack.c.bf16 %v4103, %v4102
  %v4117 = vpack.c.bf16 %v4105, %v4104
  %v4118 = vpack.c.bf16 %v4107, %v4106
  %v4119 = vpack.c.bf16 %v4109, %v4108
  %v4120 = vpack.c.bf16 %v4111, %v4110
  %v4121 = vpack.c.bf16 %v4113, %v4112
  %4122 = vmatpush.bf16.xpose.msra.mxu0 %v4121
  %4123 = vmatpush.bf16.xpose.msra.mxu0 %v4120
  %4124 = vmatpush.bf16.xpose.msra.mxu0 %v4119
  %4125 = vmatpush.bf16.xpose.msra.mxu0 %v4118
  %4126 = vmatpush.bf16.xpose.msra.mxu0 %v4117
  %4127 = vmatpush.bf16.xpose.msra.mxu0 %v4116
  %4128 = vmatpush.bf16.xpose.msra.mxu0 %v4115
  %4129 = vmatpush.bf16.xpose.msra.mxu0 %v4114
  %4130 = vmatmul.bf16.gmra.mxu0 %v711
  %v4131 = vpop.f32.mrf.mxu0
  %v4132 = vadd.f32 %v3145, %v4131
  %v4133 = vpop.f32.mrf.mxu0
  %4134 = vdwg.mxu0
  %s4135 = scalar_lea.vmem %s9, 4
  %4136 = vst [vmem:[%s4135] sm:$0x3] %v4132
  %s4137 = scalar_lea.vmem [#allocation3], 832
  %v4138 = vld [vmem:[%s4137 + $0x7] sm:$0xff]
  %v4139 = vld [vmem:[%s4137 + $0xf] sm:$0xff]
  %v4140 = vld [vmem:[%s4137 + $0x27] sm:$0xff]
  %v4141 = vld [vmem:[%s4137 + $0x2f] sm:$0xff]
  %v4142 = vld [vmem:[%s4137 + $0x47] sm:$0xff]
  %v4143 = vld [vmem:[%s4137 + $0x4f] sm:$0xff]
  %v4144 = vld [vmem:[%s4137 + $0x67] sm:$0xff]
  %v4145 = vld [vmem:[%s4137 + $0x6f] sm:$0xff]
  %v4146 = vld [vmem:[%s4137 + $0x87] sm:$0xff]
  %v4147 = vld [vmem:[%s4137 + $0x8f] sm:$0xff]
  %v4148 = vld [vmem:[%s4137 + $0xa7] sm:$0xff]
  %v4149 = vld [vmem:[%s4137 + $0xaf] sm:$0xff]
  %v4150 = vld [vmem:[%s4137 + $0xc7] sm:$0xff]
  %v4151 = vld [vmem:[%s4137 + $0xcf] sm:$0xff]
  %v4152 = vld [vmem:[%s4137 + $0xe7] sm:$0xff]
  %v4153 = vld [vmem:[%s4137 + $0xef] sm:$0xff]
  %v4154 = vmul.f32 %v4138, %v2673
  %v4155 = vmul.f32 %v4139, %v2673
  %v4156 = vmul.f32 %v4140, %v2673
  %v4157 = vmul.f32 %v4141, %v2673
  %v4158 = vmul.f32 %v4142, %v2673
  %v4159 = vmul.f32 %v4143, %v2673
  %v4160 = vmul.f32 %v4144, %v2673
  %v4161 = vmul.f32 %v4145, %v2673
  %v4162 = vmul.f32 %v4146, %v2673
  %v4163 = vmul.f32 %v4147, %v2673
  %v4164 = vmul.f32 %v4148, %v2673
  %v4165 = vmul.f32 %v4149, %v2673
  %v4166 = vmul.f32 %v4150, %v2673
  %v4167 = vmul.f32 %v4151, %v2673
  %v4168 = vmul.f32 %v4152, %v2673
  %v4169 = vmul.f32 %v4153, %v2673
  %v4170 = vadd.f32 %v4154, 0.0
  %v4171 = vadd.f32 %v4155, 0.0
  %v4172 = vadd.f32 %v4156, 0.0
  %v4173 = vadd.f32 %v4157, 0.0
  %v4174 = vadd.f32 %v4158, 0.0
  %v4175 = vadd.f32 %v4159, 0.0
  %v4176 = vadd.f32 %v4160, 0.0
  %v4177 = vadd.f32 %v4161, 0.0
  %v4178 = vadd.f32 %v4162, 0.0
  %v4179 = vadd.f32 %v4163, 0.0
  %v4180 = vadd.f32 %v4164, 0.0
  %v4181 = vadd.f32 %v4165, 0.0
  %v4182 = vadd.f32 %v4166, 0.0
  %v4183 = vadd.f32 %v4167, 0.0
  %v4184 = vadd.f32 %v4168, 0.0
  %v4185 = vadd.f32 %v4169, 0.0
  %v4186 = vld [vmem:[%s4137 + $0x8] sm:$0xff]
  %v4187 = vld [vmem:[%s4137 + $0x10] sm:$0xff]
  %v4188 = vld [vmem:[%s4137 + $0x28] sm:$0xff]
  %v4189 = vld [vmem:[%s4137 + $0x30] sm:$0xff]
  %v4190 = vld [vmem:[%s4137 + $0x48] sm:$0xff]
  %v4191 = vld [vmem:[%s4137 + $0x50] sm:$0xff]
  %v4192 = vld [vmem:[%s4137 + $0x68] sm:$0xff]
  %v4193 = vld [vmem:[%s4137 + $0x70] sm:$0xff]
  %v4194 = vld [vmem:[%s4137 + $0x88] sm:$0xff]
  %v4195 = vld [vmem:[%s4137 + $0x90] sm:$0xff]
  %v4196 = vld [vmem:[%s4137 + $0xa8] sm:$0xff]
  %v4197 = vld [vmem:[%s4137 + $0xb0] sm:$0xff]
  %v4198 = vld [vmem:[%s4137 + $0xc8] sm:$0xff]
  %v4199 = vld [vmem:[%s4137 + $0xd0] sm:$0xff]
  %v4200 = vld [vmem:[%s4137 + $0xe8] sm:$0xff]
  %v4201 = vld [vmem:[%s4137 + $0xf0] sm:$0xff]
  %v4202 = vmul.f32 %v4186, %v2722
  %v4203 = vmul.f32 %v4187, %v2722
  %v4204 = vmul.f32 %v4188, %v2722
  %v4205 = vmul.f32 %v4189, %v2722
  %v4206 = vmul.f32 %v4190, %v2722
  %v4207 = vmul.f32 %v4191, %v2722
  %v4208 = vmul.f32 %v4192, %v2722
  %v4209 = vmul.f32 %v4193, %v2722
  %v4210 = vmul.f32 %v4194, %v2722
  %v4211 = vmul.f32 %v4195, %v2722
  %v4212 = vmul.f32 %v4196, %v2722
  %v4213 = vmul.f32 %v4197, %v2722
  %v4214 = vmul.f32 %v4198, %v2722
  %v4215 = vmul.f32 %v4199, %v2722
  %v4216 = vmul.f32 %v4200, %v2722
  %v4217 = vmul.f32 %v4201, %v2722
  %v4218 = vadd.f32 %v4170, %v4202
  %v4219 = vadd.f32 %v4171, %v4203
  %v4220 = vadd.f32 %v4172, %v4204
  %v4221 = vadd.f32 %v4173, %v4205
  %v4222 = vadd.f32 %v4174, %v4206
  %v4223 = vadd.f32 %v4175, %v4207
  %v4224 = vadd.f32 %v4176, %v4208
  %v4225 = vadd.f32 %v4177, %v4209
  %v4226 = vadd.f32 %v4178, %v4210
  %v4227 = vadd.f32 %v4179, %v4211
  %v4228 = vadd.f32 %v4180, %v4212
  %v4229 = vadd.f32 %v4181, %v4213
  %v4230 = vadd.f32 %v4182, %v4214
  %v4231 = vadd.f32 %v4183, %v4215
  %v4232 = vadd.f32 %v4184, %v4216
  %v4233 = vadd.f32 %v4185, %v4217
  %v4234 = vld [vmem:[%s4137 + $0x9] sm:$0xff]
  %v4235 = vld [vmem:[%s4137 + $0x11] sm:$0xff]
  %v4236 = vld [vmem:[%s4137 + $0x29] sm:$0xff]
  %v4237 = vld [vmem:[%s4137 + $0x31] sm:$0xff]
  %v4238 = vld [vmem:[%s4137 + $0x49] sm:$0xff]
  %v4239 = vld [vmem:[%s4137 + $0x51] sm:$0xff]
  %v4240 = vld [vmem:[%s4137 + $0x69] sm:$0xff]
  %v4241 = vld [vmem:[%s4137 + $0x71] sm:$0xff]
  %v4242 = vld [vmem:[%s4137 + $0x89] sm:$0xff]
  %v4243 = vld [vmem:[%s4137 + $0x91] sm:$0xff]
  %v4244 = vld [vmem:[%s4137 + $0xa9] sm:$0xff]
  %v4245 = vld [vmem:[%s4137 + $0xb1] sm:$0xff]
  %v4246 = vld [vmem:[%s4137 + $0xc9] sm:$0xff]
  %v4247 = vld [vmem:[%s4137 + $0xd1] sm:$0xff]
  %v4248 = vld [vmem:[%s4137 + $0xe9] sm:$0xff]
  %v4249 = vld [vmem:[%s4137 + $0xf1] sm:$0xff]
  %v4250 = vmul.f32 %v4234, %v2771
  %v4251 = vmul.f32 %v4235, %v2771
  %v4252 = vmul.f32 %v4236, %v2771
  %v4253 = vmul.f32 %v4237, %v2771
  %v4254 = vmul.f32 %v4238, %v2771
  %v4255 = vmul.f32 %v4239, %v2771
  %v4256 = vmul.f32 %v4240, %v2771
  %v4257 = vmul.f32 %v4241, %v2771
  %v4258 = vmul.f32 %v4242, %v2771
  %v4259 = vmul.f32 %v4243, %v2771
  %v4260 = vmul.f32 %v4244, %v2771
  %v4261 = vmul.f32 %v4245, %v2771
  %v4262 = vmul.f32 %v4246, %v2771
  %v4263 = vmul.f32 %v4247, %v2771
  %v4264 = vmul.f32 %v4248, %v2771
  %v4265 = vmul.f32 %v4249, %v2771
  %v4266 = vadd.f32 %v4218, %v4250
  %v4267 = vadd.f32 %v4219, %v4251
  %v4268 = vadd.f32 %v4220, %v4252
  %v4269 = vadd.f32 %v4221, %v4253
  %v4270 = vadd.f32 %v4222, %v4254
  %v4271 = vadd.f32 %v4223, %v4255
  %v4272 = vadd.f32 %v4224, %v4256
  %v4273 = vadd.f32 %v4225, %v4257
  %v4274 = vadd.f32 %v4226, %v4258
  %v4275 = vadd.f32 %v4227, %v4259
  %v4276 = vadd.f32 %v4228, %v4260
  %v4277 = vadd.f32 %v4229, %v4261
  %v4278 = vadd.f32 %v4230, %v4262
  %v4279 = vadd.f32 %v4231, %v4263
  %v4280 = vadd.f32 %v4232, %v4264
  %v4281 = vadd.f32 %v4233, %v4265
  %v4282 = vld [vmem:[%s2640 + $0x7] sm:$0xff]
  %v4283 = vld [vmem:[%s2640 + $0xf] sm:$0xff]
  %v4284 = vld [vmem:[%s2640 + $0x27] sm:$0xff]
  %v4285 = vld [vmem:[%s2640 + $0x2f] sm:$0xff]
  %v4286 = vld [vmem:[%s2640 + $0x47] sm:$0xff]
  %v4287 = vld [vmem:[%s2640 + $0x4f] sm:$0xff]
  %v4288 = vld [vmem:[%s2640 + $0x67] sm:$0xff]
  %v4289 = vld [vmem:[%s2640 + $0x6f] sm:$0xff]
  %v4290 = vld [vmem:[%s2640 + $0x87] sm:$0xff]
  %v4291 = vld [vmem:[%s2640 + $0x8f] sm:$0xff]
  %v4292 = vld [vmem:[%s2640 + $0xa7] sm:$0xff]
  %v4293 = vld [vmem:[%s2640 + $0xaf] sm:$0xff]
  %v4294 = vld [vmem:[%s2640 + $0xc7] sm:$0xff]
  %v4295 = vld [vmem:[%s2640 + $0xcf] sm:$0xff]
  %v4296 = vld [vmem:[%s2640 + $0xe7] sm:$0xff]
  %v4297 = vld [vmem:[%s2640 + $0xef] sm:$0xff]
  %v4298 = vmul.f32 %v4282, %v2820
  %v4299 = vmul.f32 %v4283, %v2820
  %v4300 = vmul.f32 %v4284, %v2820
  %v4301 = vmul.f32 %v4285, %v2820
  %v4302 = vmul.f32 %v4286, %v2820
  %v4303 = vmul.f32 %v4287, %v2820
  %v4304 = vmul.f32 %v4288, %v2820
  %v4305 = vmul.f32 %v4289, %v2820
  %v4306 = vmul.f32 %v4290, %v2820
  %v4307 = vmul.f32 %v4291, %v2820
  %v4308 = vmul.f32 %v4292, %v2820
  %v4309 = vmul.f32 %v4293, %v2820
  %v4310 = vmul.f32 %v4294, %v2820
  %v4311 = vmul.f32 %v4295, %v2820
  %v4312 = vmul.f32 %v4296, %v2820
  %v4313 = vmul.f32 %v4297, %v2820
  %v4314 = vadd.f32 %v4266, %v4298
  %v4315 = vadd.f32 %v4267, %v4299
  %v4316 = vadd.f32 %v4268, %v4300
  %v4317 = vadd.f32 %v4269, %v4301
  %v4318 = vadd.f32 %v4270, %v4302
  %v4319 = vadd.f32 %v4271, %v4303
  %v4320 = vadd.f32 %v4272, %v4304
  %v4321 = vadd.f32 %v4273, %v4305
  %v4322 = vadd.f32 %v4274, %v4306
  %v4323 = vadd.f32 %v4275, %v4307
  %v4324 = vadd.f32 %v4276, %v4308
  %v4325 = vadd.f32 %v4277, %v4309
  %v4326 = vadd.f32 %v4278, %v4310
  %v4327 = vadd.f32 %v4279, %v4311
  %v4328 = vadd.f32 %v4280, %v4312
  %v4329 = vadd.f32 %v4281, %v4313
  %v4330 = vld [vmem:[%s2640 + $0x8] sm:$0xff]
  %v4331 = vld [vmem:[%s2640 + $0x10] sm:$0xff]
  %v4332 = vld [vmem:[%s2640 + $0x28] sm:$0xff]
  %v4333 = vld [vmem:[%s2640 + $0x30] sm:$0xff]
  %v4334 = vld [vmem:[%s2640 + $0x48] sm:$0xff]
  %v4335 = vld [vmem:[%s2640 + $0x50] sm:$0xff]
  %v4336 = vld [vmem:[%s2640 + $0x68] sm:$0xff]
  %v4337 = vld [vmem:[%s2640 + $0x70] sm:$0xff]
  %v4338 = vld [vmem:[%s2640 + $0x88] sm:$0xff]
  %v4339 = vld [vmem:[%s2640 + $0x90] sm:$0xff]
  %v4340 = vld [vmem:[%s2640 + $0xa8] sm:$0xff]
  %v4341 = vld [vmem:[%s2640 + $0xb0] sm:$0xff]
  %v4342 = vld [vmem:[%s2640 + $0xc8] sm:$0xff]
  %v4343 = vld [vmem:[%s2640 + $0xd0] sm:$0xff]
  %v4344 = vld [vmem:[%s2640 + $0xe8] sm:$0xff]
  %v4345 = vld [vmem:[%s2640 + $0xf0] sm:$0xff]
  %v4346 = vmul.f32 %v4330, %v2869
  %v4347 = vmul.f32 %v4331, %v2869
  %v4348 = vmul.f32 %v4332, %v2869
  %v4349 = vmul.f32 %v4333, %v2869
  %v4350 = vmul.f32 %v4334, %v2869
  %v4351 = vmul.f32 %v4335, %v2869
  %v4352 = vmul.f32 %v4336, %v2869
  %v4353 = vmul.f32 %v4337, %v2869
  %v4354 = vmul.f32 %v4338, %v2869
  %v4355 = vmul.f32 %v4339, %v2869
  %v4356 = vmul.f32 %v4340, %v2869
  %v4357 = vmul.f32 %v4341, %v2869
  %v4358 = vmul.f32 %v4342, %v2869
  %v4359 = vmul.f32 %v4343, %v2869
  %v4360 = vmul.f32 %v4344, %v2869
  %v4361 = vmul.f32 %v4345, %v2869
  %v4362 = vadd.f32 %v4314, %v4346
  %v4363 = vadd.f32 %v4315, %v4347
  %v4364 = vadd.f32 %v4316, %v4348
  %v4365 = vadd.f32 %v4317, %v4349
  %v4366 = vadd.f32 %v4318, %v4350
  %v4367 = vadd.f32 %v4319, %v4351
  %v4368 = vadd.f32 %v4320, %v4352
  %v4369 = vadd.f32 %v4321, %v4353
  %v4370 = vadd.f32 %v4322, %v4354
  %v4371 = vadd.f32 %v4323, %v4355
  %v4372 = vadd.f32 %v4324, %v4356
  %v4373 = vadd.f32 %v4325, %v4357
  %v4374 = vadd.f32 %v4326, %v4358
  %v4375 = vadd.f32 %v4327, %v4359
  %v4376 = vadd.f32 %v4328, %v4360
  %v4377 = vadd.f32 %v4329, %v4361
  %v4378 = vld [vmem:[%s2640 + $0x9] sm:$0xff]
  %v4379 = vld [vmem:[%s2640 + $0x11] sm:$0xff]
  %v4380 = vld [vmem:[%s2640 + $0x29] sm:$0xff]
  %v4381 = vld [vmem:[%s2640 + $0x31] sm:$0xff]
  %v4382 = vld [vmem:[%s2640 + $0x49] sm:$0xff]
  %v4383 = vld [vmem:[%s2640 + $0x51] sm:$0xff]
  %v4384 = vld [vmem:[%s2640 + $0x69] sm:$0xff]
  %v4385 = vld [vmem:[%s2640 + $0x71] sm:$0xff]
  %v4386 = vld [vmem:[%s2640 + $0x89] sm:$0xff]
  %v4387 = vld [vmem:[%s2640 + $0x91] sm:$0xff]
  %v4388 = vld [vmem:[%s2640 + $0xa9] sm:$0xff]
  %v4389 = vld [vmem:[%s2640 + $0xb1] sm:$0xff]
  %v4390 = vld [vmem:[%s2640 + $0xc9] sm:$0xff]
  %v4391 = vld [vmem:[%s2640 + $0xd1] sm:$0xff]
  %v4392 = vld [vmem:[%s2640 + $0xe9] sm:$0xff]
  %v4393 = vld [vmem:[%s2640 + $0xf1] sm:$0xff]
  %v4394 = vmul.f32 %v4378, %v2918
  %v4395 = vmul.f32 %v4379, %v2918
  %v4396 = vmul.f32 %v4380, %v2918
  %v4397 = vmul.f32 %v4381, %v2918
  %v4398 = vmul.f32 %v4382, %v2918
  %v4399 = vmul.f32 %v4383, %v2918
  %v4400 = vmul.f32 %v4384, %v2918
  %v4401 = vmul.f32 %v4385, %v2918
  %v4402 = vmul.f32 %v4386, %v2918
  %v4403 = vmul.f32 %v4387, %v2918
  %v4404 = vmul.f32 %v4388, %v2918
  %v4405 = vmul.f32 %v4389, %v2918
  %v4406 = vmul.f32 %v4390, %v2918
  %v4407 = vmul.f32 %v4391, %v2918
  %v4408 = vmul.f32 %v4392, %v2918
  %v4409 = vmul.f32 %v4393, %v2918
  %v4410 = vadd.f32 %v4362, %v4394
  %v4411 = vadd.f32 %v4363, %v4395
  %v4412 = vadd.f32 %v4364, %v4396
  %v4413 = vadd.f32 %v4365, %v4397
  %v4414 = vadd.f32 %v4366, %v4398
  %v4415 = vadd.f32 %v4367, %v4399
  %v4416 = vadd.f32 %v4368, %v4400
  %v4417 = vadd.f32 %v4369, %v4401
  %v4418 = vadd.f32 %v4370, %v4402
  %v4419 = vadd.f32 %v4371, %v4403
  %v4420 = vadd.f32 %v4372, %v4404
  %v4421 = vadd.f32 %v4373, %v4405
  %v4422 = vadd.f32 %v4374, %v4406
  %v4423 = vadd.f32 %v4375, %v4407
  %v4424 = vadd.f32 %v4376, %v4408
  %v4425 = vadd.f32 %v4377, %v4409
  %s4426 = scalar_lea.vmem [#allocation3], 896
  %v4427 = vld [vmem:[%s4426 + $0x7] sm:$0xff]
  %v4428 = vld [vmem:[%s4426 + $0xf] sm:$0xff]
  %v4429 = vld [vmem:[%s4426 + $0x27] sm:$0xff]
  %v4430 = vld [vmem:[%s4426 + $0x2f] sm:$0xff]
  %v4431 = vld [vmem:[%s4426 + $0x47] sm:$0xff]
  %v4432 = vld [vmem:[%s4426 + $0x4f] sm:$0xff]
  %v4433 = vld [vmem:[%s4426 + $0x67] sm:$0xff]
  %v4434 = vld [vmem:[%s4426 + $0x6f] sm:$0xff]
  %v4435 = vld [vmem:[%s4426 + $0x87] sm:$0xff]
  %v4436 = vld [vmem:[%s4426 + $0x8f] sm:$0xff]
  %v4437 = vld [vmem:[%s4426 + $0xa7] sm:$0xff]
  %v4438 = vld [vmem:[%s4426 + $0xaf] sm:$0xff]
  %v4439 = vld [vmem:[%s4426 + $0xc7] sm:$0xff]
  %v4440 = vld [vmem:[%s4426 + $0xcf] sm:$0xff]
  %v4441 = vld [vmem:[%s4426 + $0xe7] sm:$0xff]
  %v4442 = vld [vmem:[%s4426 + $0xef] sm:$0xff]
  %v4443 = vmul.f32 %v4427, %v2968
  %v4444 = vmul.f32 %v4428, %v2968
  %v4445 = vmul.f32 %v4429, %v2968
  %v4446 = vmul.f32 %v4430, %v2968
  %v4447 = vmul.f32 %v4431, %v2968
  %v4448 = vmul.f32 %v4432, %v2968
  %v4449 = vmul.f32 %v4433, %v2968
  %v4450 = vmul.f32 %v4434, %v2968
  %v4451 = vmul.f32 %v4435, %v2968
  %v4452 = vmul.f32 %v4436, %v2968
  %v4453 = vmul.f32 %v4437, %v2968
  %v4454 = vmul.f32 %v4438, %v2968
  %v4455 = vmul.f32 %v4439, %v2968
  %v4456 = vmul.f32 %v4440, %v2968
  %v4457 = vmul.f32 %v4441, %v2968
  %v4458 = vmul.f32 %v4442, %v2968
  %v4459 = vadd.f32 %v4410, %v4443
  %v4460 = vadd.f32 %v4411, %v4444
  %v4461 = vadd.f32 %v4412, %v4445
  %v4462 = vadd.f32 %v4413, %v4446
  %v4463 = vadd.f32 %v4414, %v4447
  %v4464 = vadd.f32 %v4415, %v4448
  %v4465 = vadd.f32 %v4416, %v4449
  %v4466 = vadd.f32 %v4417, %v4450
  %v4467 = vadd.f32 %v4418, %v4451
  %v4468 = vadd.f32 %v4419, %v4452
  %v4469 = vadd.f32 %v4420, %v4453
  %v4470 = vadd.f32 %v4421, %v4454
  %v4471 = vadd.f32 %v4422, %v4455
  %v4472 = vadd.f32 %v4423, %v4456
  %v4473 = vadd.f32 %v4424, %v4457
  %v4474 = vadd.f32 %v4425, %v4458
  %v4475 = vld [vmem:[%s4426 + $0x8] sm:$0xff]
  %v4476 = vld [vmem:[%s4426 + $0x10] sm:$0xff]
  %v4477 = vld [vmem:[%s4426 + $0x28] sm:$0xff]
  %v4478 = vld [vmem:[%s4426 + $0x30] sm:$0xff]
  %v4479 = vld [vmem:[%s4426 + $0x48] sm:$0xff]
  %v4480 = vld [vmem:[%s4426 + $0x50] sm:$0xff]
  %v4481 = vld [vmem:[%s4426 + $0x68] sm:$0xff]
  %v4482 = vld [vmem:[%s4426 + $0x70] sm:$0xff]
  %v4483 = vld [vmem:[%s4426 + $0x88] sm:$0xff]
  %v4484 = vld [vmem:[%s4426 + $0x90] sm:$0xff]
  %v4485 = vld [vmem:[%s4426 + $0xa8] sm:$0xff]
  %v4486 = vld [vmem:[%s4426 + $0xb0] sm:$0xff]
  %v4487 = vld [vmem:[%s4426 + $0xc8] sm:$0xff]
  %v4488 = vld [vmem:[%s4426 + $0xd0] sm:$0xff]
  %v4489 = vld [vmem:[%s4426 + $0xe8] sm:$0xff]
  %v4490 = vld [vmem:[%s4426 + $0xf0] sm:$0xff]
  %v4491 = vmul.f32 %v4475, %v3017
  %v4492 = vmul.f32 %v4476, %v3017
  %v4493 = vmul.f32 %v4477, %v3017
  %v4494 = vmul.f32 %v4478, %v3017
  %v4495 = vmul.f32 %v4479, %v3017
  %v4496 = vmul.f32 %v4480, %v3017
  %v4497 = vmul.f32 %v4481, %v3017
  %v4498 = vmul.f32 %v4482, %v3017
  %v4499 = vmul.f32 %v4483, %v3017
  %v4500 = vmul.f32 %v4484, %v3017
  %v4501 = vmul.f32 %v4485, %v3017
  %v4502 = vmul.f32 %v4486, %v3017
  %v4503 = vmul.f32 %v4487, %v3017
  %v4504 = vmul.f32 %v4488, %v3017
  %v4505 = vmul.f32 %v4489, %v3017
  %v4506 = vmul.f32 %v4490, %v3017
  %v4507 = vadd.f32 %v4459, %v4491
  %v4508 = vadd.f32 %v4460, %v4492
  %v4509 = vadd.f32 %v4461, %v4493
  %v4510 = vadd.f32 %v4462, %v4494
  %v4511 = vadd.f32 %v4463, %v4495
  %v4512 = vadd.f32 %v4464, %v4496
  %v4513 = vadd.f32 %v4465, %v4497
  %v4514 = vadd.f32 %v4466, %v4498
  %v4515 = vadd.f32 %v4467, %v4499
  %v4516 = vadd.f32 %v4468, %v4500
  %v4517 = vadd.f32 %v4469, %v4501
  %v4518 = vadd.f32 %v4470, %v4502
  %v4519 = vadd.f32 %v4471, %v4503
  %v4520 = vadd.f32 %v4472, %v4504
  %v4521 = vadd.f32 %v4473, %v4505
  %v4522 = vadd.f32 %v4474, %v4506
  %v4523 = vld [vmem:[%s4426 + $0x9] sm:$0xff]
  %v4524 = vld [vmem:[%s4426 + $0x11] sm:$0xff]
  %v4525 = vld [vmem:[%s4426 + $0x29] sm:$0xff]
  %v4526 = vld [vmem:[%s4426 + $0x31] sm:$0xff]
  %v4527 = vld [vmem:[%s4426 + $0x49] sm:$0xff]
  %v4528 = vld [vmem:[%s4426 + $0x51] sm:$0xff]
  %v4529 = vld [vmem:[%s4426 + $0x69] sm:$0xff]
  %v4530 = vld [vmem:[%s4426 + $0x71] sm:$0xff]
  %v4531 = vld [vmem:[%s4426 + $0x89] sm:$0xff]
  %v4532 = vld [vmem:[%s4426 + $0x91] sm:$0xff]
  %v4533 = vld [vmem:[%s4426 + $0xa9] sm:$0xff]
  %v4534 = vld [vmem:[%s4426 + $0xb1] sm:$0xff]
  %v4535 = vld [vmem:[%s4426 + $0xc9] sm:$0xff]
  %v4536 = vld [vmem:[%s4426 + $0xd1] sm:$0xff]
  %v4537 = vld [vmem:[%s4426 + $0xe9] sm:$0xff]
  %v4538 = vld [vmem:[%s4426 + $0xf1] sm:$0xff]
  %v4539 = vmul.f32 %v4523, %v3066
  %v4540 = vmul.f32 %v4524, %v3066
  %v4541 = vmul.f32 %v4525, %v3066
  %v4542 = vmul.f32 %v4526, %v3066
  %v4543 = vmul.f32 %v4527, %v3066
  %v4544 = vmul.f32 %v4528, %v3066
  %v4545 = vmul.f32 %v4529, %v3066
  %v4546 = vmul.f32 %v4530, %v3066
  %v4547 = vmul.f32 %v4531, %v3066
  %v4548 = vmul.f32 %v4532, %v3066
  %v4549 = vmul.f32 %v4533, %v3066
  %v4550 = vmul.f32 %v4534, %v3066
  %v4551 = vmul.f32 %v4535, %v3066
  %v4552 = vmul.f32 %v4536, %v3066
  %v4553 = vmul.f32 %v4537, %v3066
  %v4554 = vmul.f32 %v4538, %v3066
  %v4555 = vadd.f32 %v4507, %v4539
  %v4556 = vadd.f32 %v4508, %v4540
  %v4557 = vadd.f32 %v4509, %v4541
  %v4558 = vadd.f32 %v4510, %v4542
  %v4559 = vadd.f32 %v4511, %v4543
  %v4560 = vadd.f32 %v4512, %v4544
  %v4561 = vadd.f32 %v4513, %v4545
  %v4562 = vadd.f32 %v4514, %v4546
  %v4563 = vadd.f32 %v4515, %v4547
  %v4564 = vadd.f32 %v4516, %v4548
  %v4565 = vadd.f32 %v4517, %v4549
  %v4566 = vadd.f32 %v4518, %v4550
  %v4567 = vadd.f32 %v4519, %v4551
  %v4568 = vadd.f32 %v4520, %v4552
  %v4569 = vadd.f32 %v4521, %v4553
  %v4570 = vadd.f32 %v4522, %v4554
  %v4571 = vadd.f32 %v4555, %v3100
  %v4572 = vadd.f32 %v4556, %v3100
  %v4573 = vadd.f32 %v4557, %v3100
  %v4574 = vadd.f32 %v4558, %v3100
  %v4575 = vadd.f32 %v4559, %v3100
  %v4576 = vadd.f32 %v4560, %v3100
  %v4577 = vadd.f32 %v4561, %v3100
  %v4578 = vadd.f32 %v4562, %v3100
  %v4579 = vadd.f32 %v4563, %v3100
  %v4580 = vadd.f32 %v4564, %v3100
  %v4581 = vadd.f32 %v4565, %v3100
  %v4582 = vadd.f32 %v4566, %v3100
  %v4583 = vadd.f32 %v4567, %v3100
  %v4584 = vadd.f32 %v4568, %v3100
  %v4585 = vadd.f32 %v4569, %v3100
  %v4586 = vadd.f32 %v4570, %v3100
  %v4587 = vmax.f32 %v4571, 0.0
  %v4588 = vmax.f32 %v4572, 0.0
  %v4589 = vmax.f32 %v4573, 0.0
  %v4590 = vmax.f32 %v4574, 0.0
  %v4591 = vmax.f32 %v4575, 0.0
  %v4592 = vmax.f32 %v4576, 0.0
  %v4593 = vmax.f32 %v4577, 0.0
  %v4594 = vmax.f32 %v4578, 0.0
  %v4595 = vmax.f32 %v4579, 0.0
  %v4596 = vmax.f32 %v4580, 0.0
  %v4597 = vmax.f32 %v4581, 0.0
  %v4598 = vmax.f32 %v4582, 0.0
  %v4599 = vmax.f32 %v4583, 0.0
  %v4600 = vmax.f32 %v4584, 0.0
  %v4601 = vmax.f32 %v4585, 0.0
  %v4602 = vmax.f32 %v4586, 0.0
  %v4603 = vpack.c.bf16 %v4588, %v4587
  %v4604 = vpack.c.bf16 %v4590, %v4589
  %v4605 = vpack.c.bf16 %v4592, %v4591
  %v4606 = vpack.c.bf16 %v4594, %v4593
  %v4607 = vpack.c.bf16 %v4596, %v4595
  %v4608 = vpack.c.bf16 %v4598, %v4597
  %v4609 = vpack.c.bf16 %v4600, %v4599
  %v4610 = vpack.c.bf16 %v4602, %v4601
  %4611 = vmatpush.bf16.xpose.msra.mxu0 %v4610
  %4612 = vmatpush.bf16.xpose.msra.mxu0 %v4609
  %4613 = vmatpush.bf16.xpose.msra.mxu0 %v4608
  %4614 = vmatpush.bf16.xpose.msra.mxu0 %v4607
  %4615 = vmatpush.bf16.xpose.msra.mxu0 %v4606
  %4616 = vmatpush.bf16.xpose.msra.mxu0 %v4605
  %4617 = vmatpush.bf16.xpose.msra.mxu0 %v4604
  %4618 = vmatpush.bf16.xpose.msra.mxu0 %v4603
  %4619 = vmatmul.bf16.gmra.mxu0 %v711
  %v4620 = vpop.f32.mrf.mxu0
  %v4621 = vadd.f32 %v3145, %v4620
  %v4622 = vpop.f32.mrf.mxu0
  %4623 = vdwg.mxu0
  %4624 = vst [vmem:[%s4135 + $0x2] sm:$0x3] %v4621
  // Predicated region
  $region38: #{_lambda_.1} parent=0 // pred_check
    _
  $region39: #{_lambda_.1} parent=0 // pred_check_branch
    %4626 = sbr.rel (0) target = $region41
  $region40: #{_lambda_.1} parent=0 // pred_region
    _
  $region41: #{_lambda_.1} parent=0 // pred_fallthru
    _
  // Predicated region
  $region42: #{_lambda_.1} parent=0 // pred_check
    _
  $region43: #{_lambda_.1} parent=0 // pred_check_branch
    %4628 = sbr.rel (0) target = $region45
  $region44: #{_lambda_.1} parent=0 // pred_region
    _
  $region45: #{_lambda_.1} parent=0 // pred_fallthru
    _

</llo_original>
